<compile_context>
chip_gen: v7x
topology: tpu7x:2x2x1
jax: 0.10.0
libtpu: 0.0.40
codegen_flags: <defaults>
</compile_context>

<pallas_src>
import functools

import jax
import jax.numpy as jnp
from jax.experimental import pallas as pl
from jax.experimental.pallas import tpu as pltpu


def _feature_map(x):
    # elu(x) + 1 (alpha = 1) in f32.  The exp argument is clamped so the
    # discarded branch of the where never produces inf (keeps a future VJP
    # through this where NaN-free).
    return jnp.where(x > 0, x + 1.0, jnp.exp(jnp.minimum(x, 0.0)))


def _layernorm(x, gamma, beta, eps=1e-5):
    # Single-pass statistics: E[x] and E[x^2] together -> one cross-lane
    # (XLU) reduction sweep instead of two.
    mean = jnp.mean(x, axis=-1, keepdims=True)
    mean_sq = jnp.mean(x * x, axis=-1, keepdims=True)
    var = jnp.maximum(mean_sq - mean * mean, 0.0)
    return (x - mean) * jax.lax.rsqrt(var + eps) * gamma + beta


def _loftr_kernel(x_ref, s_ref, mask_ref, wq1x_ref, wkv_ref, wm_ref,
                  g1_ref, b1_ref, w1m_ref, w2_ref, g2_ref, b2_ref,
                  o_ref, r_ref, *, eps, ln_eps, approx_recip, compute_dtype):
    C = mask_ref.shape[0]

    # ---- source-side work: once per (batch, core-split chunk) --------------
    @pl.when(pl.program_id(2) == 0)
    def _():
        src = s_ref[0]                                          # [S, C] (compute_dtype)
        S = src.shape[0]
        kvp = jnp.dot(src, wkv_ref[...],
                      preferred_element_type=jnp.float32)       # [S, 2C] f32
        kf = _feature_map(kvp[:, :C])                           # [S, C] f32
        v = kvp[:, C:]                                          # [S, C] f32
        kfc = kf.astype(compute_dtype)
        # KV = Kf^T @ V, contraction over axis 0 (no explicit transpose).
        kv_full = jax.lax.dot_general(
            kfc, v.astype(compute_dtype),
            dimension_numbers=(((0,), (0,)), ((), ())),
            preferred_element_type=jnp.float32)                 # [C, C]
        # Ksum as a column vector via an MXU contraction (avoids XLU transpose).
        ksum_col = jax.lax.dot_general(
            kfc, jnp.ones((S, 1), compute_dtype),
            dimension_numbers=(((0,), (0,)), ((), ())),
            preferred_element_type=jnp.float32)                 # [C, 1]
        mask = mask_ref[...]                                    # 0/1 block-diag
        # Fused RHS: [KV*mask | Ksum*mask] -> one per-tile matmul gives both
        # the attention numerator and the denominator.
        r_ref[...] = jnp.concatenate(
            [kv_full * mask, ksum_col * mask], axis=1).astype(r_ref.dtype)

    # ---- query-side work: per (batch, L-tile) -------------------------------
    x = x_ref[0].astype(jnp.float32)                            # [TL, C]
    xc = x.astype(compute_dtype)

    # Fused q projection + x-half of MLP-1: [C, 3C] RHS fills a 256-wide MXU.
    qh = jnp.dot(xc, wq1x_ref[...], preferred_element_type=jnp.float32)  # [TL, 3C]
    qf = _feature_map(qh[:, :C])                                # [TL, C]  f32
    h_x = qh[:, C:]                                             # [TL, 2C] f32

    res = jnp.dot(qf.astype(compute_dtype), r_ref[...],
                  preferred_element_type=jnp.float32)           # [TL, 2C]
    den = res[:, C:] + eps
    z = pl.reciprocal(den, approx=True) if approx_recip else 1.0 / den
    attn = res[:, :C] * z                                       # [TL, C]

    merged = jnp.dot(attn.astype(compute_dtype), wm_ref[...],
                     preferred_element_type=jnp.float32)        # [TL, C]
    message = _layernorm(merged, g1_ref[...], b1_ref[...], ln_eps)

    # MLP on concat([x, message]) without materializing the concat;
    # the x-half was already produced by the fused projection above.
    hidden = jnp.maximum(
        h_x + jnp.dot(message.astype(compute_dtype), w1m_ref[...],
                      preferred_element_type=jnp.float32), 0.0)  # [TL, 2C]
    mlp_out = jnp.dot(hidden.astype(compute_dtype), w2_ref[...],
                      preferred_element_type=jnp.float32)        # [TL, C]
    message = _layernorm(mlp_out, g2_ref[...], b2_ref[...], ln_eps)

    o_ref[0] = (x + message).astype(o_ref.dtype)


def _detect_single_buffer_mode():
    """Weights use constant index maps; single-buffering halves their VMEM.
    Detected once at import (not per call)."""
    if not hasattr(pl, "Buffered"):
        return None
    try:
        mode = pl.Buffered(1)
        pl.BlockSpec((8, 128), lambda n, c, l: (0, 0), pipeline_mode=mode)
        return mode
    except (TypeError, ValueError):
        return None


_WEIGHT_PIPELINE_MODE = _detect_single_buffer_mode()


@functools.lru_cache(maxsize=1)
def _vmem_limit_bytes():
    try:
        cap = int(pltpu.get_tpu_info().vmem_capacity_bytes)
        return int(max(min(cap * 3 // 4, 100 << 20), 32 << 20))
    except Exception:
        # Conservative fallback: leaves headroom on v7x's 64 MiB per-TC VMEM.
        return 48 << 20


def loftr_encoder_layer(x, source, weights, nhead, *,
                        compute_dtype=jnp.bfloat16, l_tile=None, core_splits=1):
    """weights = (wq, wk, wv, wm, g1, b1, w1, w2, g2, b2).
    Projection / MLP weights are [in, out]; LayerNorm gamma/beta are [1, C].
    core_splits > 1 adds a core-parallel split of L (v7x megacore with N=1)."""
    wq, wk, wv, wm, g1, b1, w1, w2, g2, b2 = weights
    N, L, C = x.shape
    S = source.shape[1]
    assert C % nhead == 0
    head_dim = C // nhead

    if l_tile is None:
        # 128 MiB VMEM on v5e/v6e leaves plenty of headroom; amortize the
        # ~0.35 us per-grid-step overhead with large tiles.
        l_tile = L if L <= 1024 else 1024
    assert L % (core_splits * l_tile) == 0 and (l_tile == L or l_tile % 8 == 0)
    tiles_per_split = L // (core_splits * l_tile)

    # Host-side packing (done once): fused k/v weight, fused [q | MLP1(x)]
    # weight, block-diagonal head mask, compute-dtype casts (incl. source).
    wdt = compute_dtype
    wkv = jnp.concatenate([wk, wv], axis=1).astype(wdt)            # [C, 2C]
    wq1x = jnp.concatenate([wq, w1[:C, :]], axis=1).astype(wdt)    # [C, 3C]
    w1m = w1[C:, :].astype(wdt)                                    # [C, 2C]
    wm_c = wm.astype(wdt)                                          # [C, C]
    w2_c = w2.astype(wdt)                                          # [2C, C]
    head_id = jnp.arange(C, dtype=jnp.int32) // head_dim
    head_mask = (head_id[:, None] == head_id[None, :]).astype(wdt) # [C, C]
    source_c = source.astype(wdt)                                  # halves source DMA

    kernel = functools.partial(
        _loftr_kernel, eps=1e-6, ln_eps=1e-5,
        approx_recip=(compute_dtype != jnp.float32),
        compute_dtype=compute_dtype)

    # Advisory cost estimate for the XLA scheduler.
    flops = 2 * N * (core_splits * (S * C * 2 * C + S * C * C)  # k/v proj + KV/Ksum
                     + L * C * 3 * C          # fused q + MLP1(x) projection
                     + L * C * 2 * C          # fused attention num + den
                     + L * C * C              # merge
                     + L * C * 2 * C          # MLP1 (message half)
                     + L * 2 * C * C)         # MLP2
    transcendentals = N * (core_splits * S * C + 2 * L * C)
    wbytes = jnp.dtype(wdt).itemsize
    bytes_accessed = (2 * N * L * C) * 4 + N * S * C * wbytes \
        + (C * 3 * C + C * 2 * C + C * C + C * 2 * C + 2 * C * C + C * C) * wbytes \
        + 4 * C * 4
    cost = pl.CostEstimate(flops=int(flops),
                           transcendentals=int(transcendentals),
                           bytes_accessed=int(bytes_accessed))

    def wspec(shape):
        kwargs = ({} if _WEIGHT_PIPELINE_MODE is None
                  else {"pipeline_mode": _WEIGHT_PIPELINE_MODE})
        return pl.BlockSpec(shape, lambda n, c, l: (0,) * len(shape), **kwargs)

    x_index = lambda n, c, l: (n, c * tiles_per_split + l, 0)
    in_specs = [
        pl.BlockSpec((1, l_tile, C), x_index),                   # x tile (f32)
        pl.BlockSpec((1, S, C), lambda n, c, l: (n, 0, 0)),      # source (compute dtype)
        wspec((C, C)),            # block-diagonal head mask
        wspec((C, 3 * C)),        # [wq | w1_x]
        wspec((C, 2 * C)),        # [wk | wv]
        wspec((C, C)),            # merge
        wspec((1, C)),            # norm1 gamma
        wspec((1, C)),            # norm1 beta
        wspec((C, 2 * C)),        # w1 half acting on message
        wspec((2 * C, C)),        # w2
        wspec((1, C)),            # norm2 gamma
        wspec((1, C)),            # norm2 beta
    ]

    return pl.pallas_call(
        kernel,
        out_shape=jax.ShapeDtypeStruct((N, L, C), x.dtype),
        grid=(N, core_splits, tiles_per_split),
        in_specs=in_specs,
        out_specs=pl.BlockSpec((1, l_tile, C), x_index),
        scratch_shapes=[pltpu.VMEM((C, 2 * C), compute_dtype)],  # [KV*mask | Ksum*mask]
        compiler_params=pltpu.CompilerParams(
            dimension_semantics=("parallel", "parallel", "arbitrary"),
            vmem_limit_bytes=_vmem_limit_bytes()),
        cost_estimate=cost,
    )(x, source_c, head_mask, wq1x, wkv, wm_c, g1, b1, w1m, w2_c, g2, b2)


def reference(x, source, wq, wk, wv, wm, g1, b1, w1, w2, g2, b2, nhead):
    """Pure-JAX f32 reference mirroring the PyTorch module (linear attention,
    no optional q/kv masks)."""
    N, L, C = x.shape
    S = source.shape[1]
    D = C // nhead
    q = (x @ wq).reshape(N, L, nhead, D)
    k = (source @ wk).reshape(N, S, nhead, D)
    v = (source @ wv).reshape(N, S, nhead, D)
    Q = jax.nn.elu(q) + 1.0
    K = jax.nn.elu(k) + 1.0
    v = v / S
    KV = jnp.einsum('nshd,nshv->nhdv', K, v)
    Z = 1.0 / (jnp.einsum('nlhd,nhd->nlh', Q, K.sum(axis=1)) + 1e-6)
    out = jnp.einsum('nlhd,nhdv,nlh->nlhv', Q, KV, Z) * S
    msg = out.reshape(N, L, C) @ wm
    msg = _layernorm(msg, g1, b1)
    hidden = jnp.maximum(jnp.concatenate([x, msg], axis=-1) @ w1, 0.0)
    msg = _layernorm(hidden @ w2, g2, b2)
    return x + msg


if __name__ == "__main__":
    # Make the pure-JAX reference matmuls full-precision so the f32 kernel
    # path can be checked tightly.
    jax.config.update("jax_default_matmul_precision", "highest")

    # Small deterministic configuration (lane-dense: C = 128; L tiled).
    N, L, S, C, NHEAD = 2, 32, 16, 128, 8

    key = jax.random.PRNGKey(0)
    keys = jax.random.split(key, 8)

    x = jax.random.normal(keys[0], (N, L, C), dtype=jnp.float32)
    source = jax.random.normal(keys[1], (N, S, C), dtype=jnp.float32)

    sc = 1.0 / jnp.sqrt(jnp.float32(C))
    s2 = 1.0 / jnp.sqrt(jnp.float32(2 * C))
    wq = jax.random.normal(keys[2], (C, C), jnp.float32) * sc
    wk = jax.random.normal(keys[3], (C, C), jnp.float32) * sc
    wv = jax.random.normal(keys[4], (C, C), jnp.float32) * sc
    wm = jax.random.normal(keys[5], (C, C), jnp.float32) * sc
    w1 = jax.random.normal(keys[6], (2 * C, 2 * C), jnp.float32) * s2
    w2 = jax.random.normal(keys[7], (2 * C, C), jnp.float32) * s2
    # LayerNorm params (PyTorch defaults: gamma=1, beta=0), kept 2D for VMEM.
    g1 = jnp.ones((1, C), jnp.float32)
    b1 = jnp.zeros((1, C), jnp.float32)
    g2 = jnp.ones((1, C), jnp.float32)
    b2 = jnp.zeros((1, C), jnp.float32)

    weights = (wq, wk, wv, wm, g1, b1, w1, w2, g2, b2)
    ref = reference(x, source, wq, wk, wv, wm, g1, b1, w1, w2, g2, b2, NHEAD)

    # 1) Full-f32 compute path: tight check (exercises L-tiling + scratch carry).
    out_f32 = jax.block_until_ready(
        loftr_encoder_layer(x, source, weights, NHEAD,
                            compute_dtype=jnp.float32, l_tile=16))
    assert out_f32.shape == (N, L, C)
    max_err = float(jnp.max(jnp.abs(out_f32 - ref)))
    assert max_err < 5e-3, f"f32 path max abs error {max_err}"

    # 2) bf16-matmul path with a core-parallel L split (v7x-style config).
    out_bf16 = jax.block_until_ready(
        loftr_encoder_layer(x, source, weights, NHEAD,
                            compute_dtype=jnp.bfloat16, l_tile=16, core_splits=2))
    rel = float(jnp.linalg.norm(out_bf16 - ref) / jnp.linalg.norm(ref))
    assert rel < 5e-2, f"bf16 path relative error {rel}"

    print("KERNEL_OK")
</pallas_src>

<mosaic_0001>
module attributes {stable_mosaic.version = 11 : i64} {
  func.func @_loftr_kernel(%arg0: i32, %arg1: i32, %arg2: i32, %arg3: memref<1x16x128xf32, #tpu.memory_space<vmem>>, %arg4: memref<1x16x128xf32, #tpu.memory_space<vmem>>, %arg5: memref<128x128xf32, #tpu.memory_space<vmem>>, %arg6: memref<128x384xf32, #tpu.memory_space<vmem>>, %arg7: memref<128x256xf32, #tpu.memory_space<vmem>>, %arg8: memref<128x128xf32, #tpu.memory_space<vmem>>, %arg9: memref<1x128xf32, #tpu.memory_space<vmem>>, %arg10: memref<1x128xf32, #tpu.memory_space<vmem>>, %arg11: memref<128x256xf32, #tpu.memory_space<vmem>>, %arg12: memref<256x128xf32, #tpu.memory_space<vmem>>, %arg13: memref<1x128xf32, #tpu.memory_space<vmem>>, %arg14: memref<1x128xf32, #tpu.memory_space<vmem>>, %arg15: memref<1x16x128xf32, #tpu.memory_space<vmem>>, %arg16: memref<128x256xf32, #tpu.memory_space<vmem>>) attributes {dimension_semantics = [#tpu.dimension_semantics<parallel>, #tpu.dimension_semantics<parallel>, #tpu.dimension_semantics<arbitrary>], iteration_bounds = array<i64: 2, 1, 2>, scalar_prefetch = 0 : i64, scratch_operands = 1 : i64, tpu.core_type = #tpu.core_type<tc>, window_params = [{transform_indices = @transform_0, window_bounds = array<i64: 1, 16, 128>}, {transform_indices = @transform_1, window_bounds = array<i64: 1, 16, 128>}, {pipeline_mode = #tpu.pipeline_mode<synchronous>, transform_indices = @transform_2, window_bounds = array<i64: 128, 128>}, {pipeline_mode = #tpu.pipeline_mode<synchronous>, transform_indices = @transform_3, window_bounds = array<i64: 128, 384>}, {pipeline_mode = #tpu.pipeline_mode<synchronous>, transform_indices = @transform_4, window_bounds = array<i64: 128, 256>}, {pipeline_mode = #tpu.pipeline_mode<synchronous>, transform_indices = @transform_5, window_bounds = array<i64: 128, 128>}, {pipeline_mode = #tpu.pipeline_mode<synchronous>, transform_indices = @transform_6, window_bounds = array<i64: 1, 128>}, {pipeline_mode = #tpu.pipeline_mode<synchronous>, transform_indices = @transform_7, window_bounds = array<i64: 1, 128>}, {pipeline_mode = #tpu.pipeline_mode<synchronous>, transform_indices = @transform_8, window_bounds = array<i64: 128, 256>}, {pipeline_mode = #tpu.pipeline_mode<synchronous>, transform_indices = @transform_9, window_bounds = array<i64: 256, 128>}, {pipeline_mode = #tpu.pipeline_mode<synchronous>, transform_indices = @transform_10, window_bounds = array<i64: 1, 128>}, {pipeline_mode = #tpu.pipeline_mode<synchronous>, transform_indices = @transform_11, window_bounds = array<i64: 1, 128>}, {transform_indices = @transform_12, window_bounds = array<i64: 1, 16, 128>}]} {
    %c0_i32 = arith.constant 0 : i32
    %0 = arith.cmpi eq, %arg2, %c0_i32 : i32
    %1 = arith.extui %0 : i1 to i32
    %c0_i32_0 = arith.constant 0 : i32
    %2 = arith.cmpi ne, %1, %c0_i32_0 : i32
    scf.if %2 {
      %c0_46 = arith.constant 0 : index
      %c0_47 = arith.constant 0 : index
      %c0_48 = arith.constant 0 : index
      %91 = vector.load %arg4[%c0_46, %c0_47, %c0_48] : memref<1x16x128xf32, #tpu.memory_space<vmem>>, vector<1x16x128xf32>
      %92 = vector.shape_cast %91 : vector<1x16x128xf32> to vector<16x128xf32>
      %c0_49 = arith.constant 0 : index
      %c0_50 = arith.constant 0 : index
      %93 = vector.load %arg7[%c0_49, %c0_50] : memref<128x256xf32, #tpu.memory_space<vmem>>, vector<128x256xf32>
      %cst_51 = arith.constant dense<0.000000e+00> : vector<16x256xf32>
      %94 = tpu.matmul %92, %93, %cst_51 {dimension_numbers = #tpu.dot_dimension_numbers<[1], [0], [0], [1], [0, 0, 1, 1], [], []>, precision = #tpu.contract_precision<fp32>} : vector<16x128xf32>, vector<128x256xf32>, vector<16x256xf32> -> vector<16x256xf32>
      %95 = vector.extract_strided_slice %94 {offsets = [0, 0], sizes = [16, 128], strides = [1, 1]} : vector<16x256xf32> to vector<16x128xf32>
      %cst_52 = arith.constant 0.000000e+00 : f32
      %96 = vector.broadcast %cst_52 : f32 to vector<16x128xf32>
      %97 = arith.cmpf ogt, %95, %96 : vector<16x128xf32>
      %cst_53 = arith.constant 1.000000e+00 : f32
      %98 = vector.broadcast %cst_53 : f32 to vector<16x128xf32>
      %99 = arith.addf %95, %98 : vector<16x128xf32>
      %cst_54 = arith.constant 0.000000e+00 : f32
      %100 = vector.broadcast %cst_54 : f32 to vector<16x128xf32>
      %101 = arith.minimumf %95, %100 : vector<16x128xf32>
      %102 = math.exp %101 : vector<16x128xf32>
      %103 = arith.select %97, %99, %102 : vector<16x128xi1>, vector<16x128xf32>
      %104 = vector.extract_strided_slice %94 {offsets = [0, 128], sizes = [16, 128], strides = [1, 1]} : vector<16x256xf32> to vector<16x128xf32>
      %cst_55 = arith.constant dense<0.000000e+00> : vector<128x128xf32>
      %105 = tpu.matmul %103, %104, %cst_55 {dimension_numbers = #tpu.dot_dimension_numbers<[0], [0], [1], [1], [0, 1, 1, 1], [], []>, precision = #tpu.contract_precision<fp32>} : vector<16x128xf32>, vector<16x128xf32>, vector<128x128xf32> -> vector<128x128xf32>
      %cst_56 = arith.constant 1.000000e+00 : f32
      %106 = vector.broadcast %cst_56 : f32 to vector<16x1xf32>
      %cst_57 = arith.constant dense<0.000000e+00> : vector<128x1xf32>
      %107 = tpu.matmul %103, %106, %cst_57 {dimension_numbers = #tpu.dot_dimension_numbers<[0], [0], [1], [1], [0, 1, 1, 1], [], []>, precision = #tpu.contract_precision<fp32>} : vector<16x128xf32>, vector<16x1xf32>, vector<128x1xf32> -> vector<128x1xf32>
      %c0_58 = arith.constant 0 : index
      %c0_59 = arith.constant 0 : index
      %108 = vector.load %arg5[%c0_58, %c0_59] : memref<128x128xf32, #tpu.memory_space<vmem>>, vector<128x128xf32>
      %109 = arith.mulf %105, %108 : vector<128x128xf32>
      %110 = vector.broadcast %107 : vector<128x1xf32> to vector<128x128xf32>
      %111 = arith.mulf %110, %108 : vector<128x128xf32>
      %112 = tpu.concatenate %109, %111 in 1 : vector<128x128xf32>, vector<128x128xf32> -> vector<128x256xf32>
      %c0_60 = arith.constant 0 : index
      %c0_61 = arith.constant 0 : index
      %113 = vector.load %arg16[%c0_60, %c0_61] : memref<128x256xf32, #tpu.memory_space<vmem>>, vector<128x256xf32>
      tpu.vector_store %arg16[%c0_60, %c0_61], %112 {strides = array<i32>} : memref<128x256xf32, #tpu.memory_space<vmem>>, vector<128x256xf32>,
    } else {
    }
    %c0 = arith.constant 0 : index
    %c0_1 = arith.constant 0 : index
    %c0_2 = arith.constant 0 : index
    %3 = vector.load %arg3[%c0, %c0_1, %c0_2] : memref<1x16x128xf32, #tpu.memory_space<vmem>>, vector<1x16x128xf32>
    %4 = vector.shape_cast %3 : vector<1x16x128xf32> to vector<16x128xf32>
    %c0_3 = arith.constant 0 : index
    %c0_4 = arith.constant 0 : index
    %5 = vector.load %arg6[%c0_3, %c0_4] : memref<128x384xf32, #tpu.memory_space<vmem>>, vector<128x384xf32>
    %cst = arith.constant dense<0.000000e+00> : vector<16x384xf32>
    %6 = tpu.matmul %4, %5, %cst {dimension_numbers = #tpu.dot_dimension_numbers<[1], [0], [0], [1], [0, 0, 1, 1], [], []>, precision = #tpu.contract_precision<fp32>} : vector<16x128xf32>, vector<128x384xf32>, vector<16x384xf32> -> vector<16x384xf32>
    %7 = vector.extract_strided_slice %6 {offsets = [0, 0], sizes = [16, 128], strides = [1, 1]} : vector<16x384xf32> to vector<16x128xf32>
    %cst_5 = arith.constant 0.000000e+00 : f32
    %8 = vector.broadcast %cst_5 : f32 to vector<16x128xf32>
    %9 = arith.cmpf ogt, %7, %8 : vector<16x128xf32>
    %cst_6 = arith.constant 1.000000e+00 : f32
    %10 = vector.broadcast %cst_6 : f32 to vector<16x128xf32>
    %11 = arith.addf %7, %10 : vector<16x128xf32>
    %cst_7 = arith.constant 0.000000e+00 : f32
    %12 = vector.broadcast %cst_7 : f32 to vector<16x128xf32>
    %13 = arith.minimumf %7, %12 : vector<16x128xf32>
    %14 = math.exp %13 : vector<16x128xf32>
    %15 = arith.select %9, %11, %14 : vector<16x128xi1>, vector<16x128xf32>
    %16 = vector.extract_strided_slice %6 {offsets = [0, 128], sizes = [16, 256], strides = [1, 1]} : vector<16x384xf32> to vector<16x256xf32>
    %c0_8 = arith.constant 0 : index
    %c0_9 = arith.constant 0 : index
    %17 = vector.load %arg16[%c0_8, %c0_9] : memref<128x256xf32, #tpu.memory_space<vmem>>, vector<128x256xf32>
    %cst_10 = arith.constant dense<0.000000e+00> : vector<16x256xf32>
    %18 = tpu.matmul %15, %17, %cst_10 {dimension_numbers = #tpu.dot_dimension_numbers<[1], [0], [0], [1], [0, 0, 1, 1], [], []>, precision = #tpu.contract_precision<fp32>} : vector<16x128xf32>, vector<128x256xf32>, vector<16x256xf32> -> vector<16x256xf32>
    %19 = vector.extract_strided_slice %18 {offsets = [0, 128], sizes = [16, 128], strides = [1, 1]} : vector<16x256xf32> to vector<16x128xf32>
    %cst_11 = arith.constant 9.99999997E-7 : f32
    %20 = vector.broadcast %cst_11 : f32 to vector<16x128xf32>
    %21 = arith.addf %19, %20 : vector<16x128xf32>
    %cst_12 = arith.constant 1.000000e+00 : f32
    %22 = vector.broadcast %cst_12 : f32 to vector<16x128xf32>
    %23 = arith.divf %22, %21 : vector<16x128xf32>
    %24 = vector.extract_strided_slice %18 {offsets = [0, 0], sizes = [16, 128], strides = [1, 1]} : vector<16x256xf32> to vector<16x128xf32>
    %25 = arith.mulf %24, %23 : vector<16x128xf32>
    %c0_13 = arith.constant 0 : index
    %c0_14 = arith.constant 0 : index
    %26 = vector.load %arg8[%c0_13, %c0_14] : memref<128x128xf32, #tpu.memory_space<vmem>>, vector<128x128xf32>
    %cst_15 = arith.constant dense<0.000000e+00> : vector<16x128xf32>
    %27 = tpu.matmul %25, %26, %cst_15 {dimension_numbers = #tpu.dot_dimension_numbers<[1], [0], [0], [1], [0, 0, 1, 1], [], []>, precision = #tpu.contract_precision<fp32>} : vector<16x128xf32>, vector<128x128xf32>, vector<16x128xf32> -> vector<16x128xf32>
    %c0_16 = arith.constant 0 : index
    %c0_17 = arith.constant 0 : index
    %28 = vector.load %arg9[%c0_16, %c0_17] : memref<1x128xf32, #tpu.memory_space<vmem>>, vector<1x128xf32>
    %c0_18 = arith.constant 0 : index
    %c0_19 = arith.constant 0 : index
    %29 = vector.load %arg10[%c0_18, %c0_19] : memref<1x128xf32, #tpu.memory_space<vmem>>, vector<1x128xf32>
    %cst_20 = arith.constant dense<0.000000e+00> : vector<16xf32>
    %30 = vector.multi_reduction <add>, %27, %cst_20 [1] : vector<16x128xf32> to vector<16xf32>
    %31 = vector.shape_cast %30 : vector<16xf32> to vector<16x1xf32>
    %cst_21 = arith.constant 1.280000e+02 : f32
    %32 = vector.broadcast %cst_21 : f32 to vector<16x1xf32>
    %33 = arith.divf %31, %32 : vector<16x1xf32>
    %34 = arith.mulf %27, %27 : vector<16x128xf32>
    %cst_22 = arith.constant dense<0.000000e+00> : vector<16xf32>
    %35 = vector.multi_reduction <add>, %34, %cst_22 [1] : vector<16x128xf32> to vector<16xf32>
    %36 = vector.shape_cast %35 : vector<16xf32> to vector<16x1xf32>
    %cst_23 = arith.constant 1.280000e+02 : f32
    %37 = vector.broadcast %cst_23 : f32 to vector<16x1xf32>
    %38 = arith.divf %36, %37 : vector<16x1xf32>
    %39 = arith.mulf %33, %33 : vector<16x1xf32>
    %40 = arith.subf %38, %39 : vector<16x1xf32>
    %cst_24 = arith.constant 0.000000e+00 : f32
    %41 = vector.broadcast %cst_24 : f32 to vector<16x1xf32>
    %42 = arith.maximumf %40, %41 : vector<16x1xf32>
    %43 = vector.broadcast %33 : vector<16x1xf32> to vector<16x128xf32>
    %44 = arith.subf %27, %43 : vector<16x128xf32>
    %cst_25 = arith.constant 9.99999974E-6 : f32
    %45 = vector.broadcast %cst_25 : f32 to vector<16x1xf32>
    %46 = arith.addf %42, %45 : vector<16x1xf32>
    %47 = math.rsqrt %46 : vector<16x1xf32>
    %48 = vector.broadcast %47 : vector<16x1xf32> to vector<16x128xf32>
    %49 = arith.mulf %44, %48 : vector<16x128xf32>
    %50 = vector.broadcast %28 : vector<1x128xf32> to vector<16x128xf32>
    %51 = arith.mulf %49, %50 : vector<16x128xf32>
    %52 = vector.broadcast %29 : vector<1x128xf32> to vector<16x128xf32>
    %53 = arith.addf %51, %52 : vector<16x128xf32>
    %c0_26 = arith.constant 0 : index
    %c0_27 = arith.constant 0 : index
    %54 = vector.load %arg11[%c0_26, %c0_27] : memref<128x256xf32, #tpu.memory_space<vmem>>, vector<128x256xf32>
    %cst_28 = arith.constant dense<0.000000e+00> : vector<16x256xf32>
    %55 = tpu.matmul %53, %54, %cst_28 {dimension_numbers = #tpu.dot_dimension_numbers<[1], [0], [0], [1], [0, 0, 1, 1], [], []>, precision = #tpu.contract_precision<fp32>} : vector<16x128xf32>, vector<128x256xf32>, vector<16x256xf32> -> vector<16x256xf32>
    %56 = arith.addf %16, %55 : vector<16x256xf32>
    %cst_29 = arith.constant 0.000000e+00 : f32
    %57 = vector.broadcast %cst_29 : f32 to vector<16x256xf32>
    %58 = arith.maximumf %56, %57 : vector<16x256xf32>
    %c0_30 = arith.constant 0 : index
    %c0_31 = arith.constant 0 : index
    %59 = vector.load %arg12[%c0_30, %c0_31] : memref<256x128xf32, #tpu.memory_space<vmem>>, vector<256x128xf32>
    %cst_32 = arith.constant dense<0.000000e+00> : vector<16x128xf32>
    %60 = tpu.matmul %58, %59, %cst_32 {dimension_numbers = #tpu.dot_dimension_numbers<[1], [0], [0], [1], [0, 0, 1, 1], [], []>, precision = #tpu.contract_precision<fp32>} : vector<16x256xf32>, vector<256x128xf32>, vector<16x128xf32> -> vector<16x128xf32>
    %c0_33 = arith.constant 0 : index
    %c0_34 = arith.constant 0 : index
    %61 = vector.load %arg13[%c0_33, %c0_34] : memref<1x128xf32, #tpu.memory_space<vmem>>, vector<1x128xf32>
    %c0_35 = arith.constant 0 : index
    %c0_36 = arith.constant 0 : index
    %62 = vector.load %arg14[%c0_35, %c0_36] : memref<1x128xf32, #tpu.memory_space<vmem>>, vector<1x128xf32>
    %cst_37 = arith.constant dense<0.000000e+00> : vector<16xf32>
    %63 = vector.multi_reduction <add>, %60, %cst_37 [1] : vector<16x128xf32> to vector<16xf32>
    %64 = vector.shape_cast %63 : vector<16xf32> to vector<16x1xf32>
    %cst_38 = arith.constant 1.280000e+02 : f32
    %65 = vector.broadcast %cst_38 : f32 to vector<16x1xf32>
    %66 = arith.divf %64, %65 : vector<16x1xf32>
    %67 = arith.mulf %60, %60 : vector<16x128xf32>
    %cst_39 = arith.constant dense<0.000000e+00> : vector<16xf32>
    %68 = vector.multi_reduction <add>, %67, %cst_39 [1] : vector<16x128xf32> to vector<16xf32>
    %69 = vector.shape_cast %68 : vector<16xf32> to vector<16x1xf32>
    %cst_40 = arith.constant 1.280000e+02 : f32
    %70 = vector.broadcast %cst_40 : f32 to vector<16x1xf32>
    %71 = arith.divf %69, %70 : vector<16x1xf32>
    %72 = arith.mulf %66, %66 : vector<16x1xf32>
    %73 = arith.subf %71, %72 : vector<16x1xf32>
    %cst_41 = arith.constant 0.000000e+00 : f32
    %74 = vector.broadcast %cst_41 : f32 to vector<16x1xf32>
    %75 = arith.maximumf %73, %74 : vector<16x1xf32>
    %76 = vector.broadcast %66 : vector<16x1xf32> to vector<16x128xf32>
    %77 = arith.subf %60, %76 : vector<16x128xf32>
    %cst_42 = arith.constant 9.99999974E-6 : f32
    %78 = vector.broadcast %cst_42 : f32 to vector<16x1xf32>
    %79 = arith.addf %75, %78 : vector<16x1xf32>
    %80 = math.rsqrt %79 : vector<16x1xf32>
    %81 = vector.broadcast %80 : vector<16x1xf32> to vector<16x128xf32>
    %82 = arith.mulf %77, %81 : vector<16x128xf32>
    %83 = vector.broadcast %61 : vector<1x128xf32> to vector<16x128xf32>
    %84 = arith.mulf %82, %83 : vector<16x128xf32>
    %85 = vector.broadcast %62 : vector<1x128xf32> to vector<16x128xf32>
    %86 = arith.addf %84, %85 : vector<16x128xf32>
    %87 = arith.addf %4, %86 : vector<16x128xf32>
    %c0_43 = arith.constant 0 : index
    %c0_44 = arith.constant 0 : index
    %c0_45 = arith.constant 0 : index
    %88 = vector.load %arg15[%c0_43, %c0_44, %c0_45] : memref<1x16x128xf32, #tpu.memory_space<vmem>>, vector<1x16x128xf32>
    %89 = vector.shape_cast %88 : vector<1x16x128xf32> to vector<16x128xf32>
    %90 = vector.shape_cast %87 : vector<16x128xf32> to vector<1x16x128xf32>
    tpu.vector_store %arg15[%c0_43, %c0_44, %c0_45], %90 {strides = array<i32>} : memref<1x16x128xf32, #tpu.memory_space<vmem>>, vector<1x16x128xf32>,
    return
  }
  func.func @transform_0(%arg0: i32, %arg1: i32, %arg2: i32) -> (i32, i32, i32) {
    %c2_i32 = arith.constant 2 : i32
    %0 = arith.muli %arg1, %c2_i32 : i32
    %1 = arith.addi %0, %arg2 : i32
    %c0_i32 = arith.constant 0 : i32
    %c0_i32_0 = arith.constant 0 : i32
    return %arg0, %1, %c0_i32 : i32, i32, i32
  }
  func.func @transform_1(%arg0: i32, %arg1: i32, %arg2: i32) -> (i32, i32, i32) {
    %c0_i32 = arith.constant 0 : i32
    %c0_i32_0 = arith.constant 0 : i32
    %c0_i32_1 = arith.constant 0 : i32
    return %arg0, %c0_i32, %c0_i32_0 : i32, i32, i32
  }
  func.func @transform_2(%arg0: i32, %arg1: i32, %arg2: i32) -> (i32, i32) {
    %c0_i32 = arith.constant 0 : i32
    %c0_i32_0 = arith.constant 0 : i32
    %c0_i32_1 = arith.constant 0 : i32
    return %c0_i32, %c0_i32_0 : i32, i32
  }
  func.func @transform_3(%arg0: i32, %arg1: i32, %arg2: i32) -> (i32, i32) {
    %c0_i32 = arith.constant 0 : i32
    %c0_i32_0 = arith.constant 0 : i32
    %c0_i32_1 = arith.constant 0 : i32
    return %c0_i32, %c0_i32_0 : i32, i32
  }
  func.func @transform_4(%arg0: i32, %arg1: i32, %arg2: i32) -> (i32, i32) {
    %c0_i32 = arith.constant 0 : i32
    %c0_i32_0 = arith.constant 0 : i32
    %c0_i32_1 = arith.constant 0 : i32
    return %c0_i32, %c0_i32_0 : i32, i32
  }
  func.func @transform_5(%arg0: i32, %arg1: i32, %arg2: i32) -> (i32, i32) {
    %c0_i32 = arith.constant 0 : i32
    %c0_i32_0 = arith.constant 0 : i32
    %c0_i32_1 = arith.constant 0 : i32
    return %c0_i32, %c0_i32_0 : i32, i32
  }
  func.func @transform_6(%arg0: i32, %arg1: i32, %arg2: i32) -> (i32, i32) {
    %c0_i32 = arith.constant 0 : i32
    %c0_i32_0 = arith.constant 0 : i32
    %c0_i32_1 = arith.constant 0 : i32
    return %c0_i32, %c0_i32_0 : i32, i32
  }
  func.func @transform_7(%arg0: i32, %arg1: i32, %arg2: i32) -> (i32, i32) {
    %c0_i32 = arith.constant 0 : i32
    %c0_i32_0 = arith.constant 0 : i32
    %c0_i32_1 = arith.constant 0 : i32
    return %c0_i32, %c0_i32_0 : i32, i32
  }
  func.func @transform_8(%arg0: i32, %arg1: i32, %arg2: i32) -> (i32, i32) {
    %c0_i32 = arith.constant 0 : i32
    %c0_i32_0 = arith.constant 0 : i32
    %c0_i32_1 = arith.constant 0 : i32
    return %c0_i32, %c0_i32_0 : i32, i32
  }
  func.func @transform_9(%arg0: i32, %arg1: i32, %arg2: i32) -> (i32, i32) {
    %c0_i32 = arith.constant 0 : i32
    %c0_i32_0 = arith.constant 0 : i32
    %c0_i32_1 = arith.constant 0 : i32
    return %c0_i32, %c0_i32_0 : i32, i32
  }
  func.func @transform_10(%arg0: i32, %arg1: i32, %arg2: i32) -> (i32, i32) {
    %c0_i32 = arith.constant 0 : i32
    %c0_i32_0 = arith.constant 0 : i32
    %c0_i32_1 = arith.constant 0 : i32
    return %c0_i32, %c0_i32_0 : i32, i32
  }
  func.func @transform_11(%arg0: i32, %arg1: i32, %arg2: i32) -> (i32, i32) {
    %c0_i32 = arith.constant 0 : i32
    %c0_i32_0 = arith.constant 0 : i32
    %c0_i32_1 = arith.constant 0 : i32
    return %c0_i32, %c0_i32_0 : i32, i32
  }
  func.func @transform_12(%arg0: i32, %arg1: i32, %arg2: i32) -> (i32, i32, i32) {
    %c2_i32 = arith.constant 2 : i32
    %0 = arith.muli %arg1, %c2_i32 : i32
    %1 = arith.addi %0, %arg2 : i32
    %c0_i32 = arith.constant 0 : i32
    %c0_i32_0 = arith.constant 0 : i32
    return %arg0, %1, %c0_i32 : i32, i32, i32
  }
}

</mosaic_0001>

<llo_original>
// kernel: tpu_custom_call.1
$region0: #{tpu_custom_call.1}
  #allocation0 [shape = 'u32[]', space=smem, size = 0x4, offset = 0x4, fixed_abs, tag = 'smem constant byte address 0x4 - core index']
  #allocation1 [shape = 'u32[144,128]{1,0:T(1,128)}', space=vmem, size = 0x12000, scoped, tag = 'internal scratch']
  #allocation2 [shape = 'f32[128,256]{1,0:T(8,128)}', space=vmem, size = 0x20000, scoped, tag = 'scratch operand']
  %s0 = inlined_call_operand.hbm [shape: f32[2,32,128], index: 0, kind: input, shape index: {}]
  %s1 = inlined_call_operand.hbm [shape: f32[2,16,128], index: 1, kind: input, shape index: {}]
  %s2 = inlined_call_operand.hbm [shape: f32[128,128], index: 2, kind: input, shape index: {}]
  %s3 = inlined_call_operand.hbm [shape: f32[128,384], index: 3, kind: input, shape index: {}]
  %s4 = inlined_call_operand.hbm [shape: f32[128,256], index: 4, kind: input, shape index: {}]
  %s5 = inlined_call_operand.hbm [shape: f32[128,128], index: 5, kind: input, shape index: {}]
  %s6 = inlined_call_operand.vmem [shape: f32[1,128], index: 6, kind: input, shape index: {}]
  %s7 = inlined_call_operand.vmem [shape: f32[1,128], index: 7, kind: input, shape index: {}]
  %s8 = inlined_call_operand.hbm [shape: f32[128,256], index: 8, kind: input, shape index: {}]
  %s9 = inlined_call_operand.hbm [shape: f32[256,128], index: 9, kind: input, shape index: {}]
  %s10 = inlined_call_operand.vmem [shape: f32[1,128], index: 10, kind: input, shape index: {}]
  %s11 = inlined_call_operand.vmem [shape: f32[1,128], index: 11, kind: input, shape index: {}]
  %s12 = inlined_call_operand.hbm [shape: f32[2,32,128], index: 12, kind: output, shape index: {}]
  %s13 = sld [smem:[#allocation0]]
  $region117: #{tpu_custom_call.1} parent=0
    _
  %s15 = ssub.s32 1, %s13
  %s16 = scalar_select 0, %s15, %s13
  $region1: #{tpu_custom_call.1} parent=0
    #allocation3 [shape = 'u8[16384]{0}', space=vmem, size = 0x4000, scoped, tag = 'input window, operand 0']
    #allocation4 [shape = 's32[2]{0}', space=sflag, size = 0x8, scoped, tag = 'scoped memory for tpu_custom_call.1']
    #allocation5 [shape = 's32[2]{0}', space=sflag, size = 0x8, scoped, tag = 'scoped memory for tpu_custom_call.1']
    #allocation6 [shape = 'u8[16384]{0}', space=vmem, size = 0x4000, scoped, tag = 'input window, operand 1']
    #allocation7 [shape = 's32[2]{0}', space=sflag, size = 0x8, scoped, tag = 'scoped memory for tpu_custom_call.1']
    #allocation8 [shape = 'u8[65536]{0}', space=vmem, size = 0x10000, scoped, tag = 'input window, operand 2, single buffered']
    #allocation9 [shape = 'u8[196608]{0}', space=vmem, size = 0x30000, scoped, tag = 'input window, operand 3, single buffered']
    #allocation10 [shape = 's32[1]{0}', space=sflag, size = 0x4, scoped, tag = 'scoped memory for tpu_custom_call.1']
    #allocation11 [shape = 'u8[131072]{0}', space=vmem, size = 0x20000, scoped, tag = 'input window, operand 4, single buffered']
    #allocation12 [shape = 'u8[65536]{0}', space=vmem, size = 0x10000, scoped, tag = 'input window, operand 5, single buffered']
    #allocation13 [shape = 's32[1]{0}', space=sflag, size = 0x4, scoped, tag = 'scoped memory for tpu_custom_call.1']
    #allocation14 [shape = 'u8[131072]{0}', space=vmem, size = 0x20000, scoped, tag = 'input window, operand 8, single buffered']
    #allocation15 [shape = 'u8[131072]{0}', space=vmem, size = 0x20000, scoped, tag = 'input window, operand 9, single buffered']
    #allocation16 [shape = 's32[1]{0}', space=sflag, size = 0x4, scoped, tag = 'scoped memory for tpu_custom_call.1']
    #allocation17 [shape = 'u8[16384]{0}', space=vmem, size = 0x4000, scoped, tag = 'output window, operand 0']
    %17 = vsyncpa [#allocation4], 0
    %s18 = scalar_lea.sflag [#allocation4], 1
    %19 = vsyncpa %s18, 0
    %20 = vsyncpa [#allocation7], 0
    %s21 = scalar_lea.sflag [#allocation7], 1
    %22 = vsyncpa %s21, 0
    %23 = vsyncpa [#allocation10], 0
    %24 = vsyncpa [#allocation13], 0
    %25 = vsyncpa [#allocation16], 0
    %26 = vsyncpa [#allocation5], 0
    %s27 = scalar_lea.sflag [#allocation5], 1
    %28 = vsyncpa %s27, 0
    loop: start=0, step=1, limit=6
    $region2: #{tpu_custom_call.1} parent=1 // loop_pre_header
      _
    $region3: #{tpu_custom_call.1} parent=1 // loop_header
      %s30 = sphi 0, %s34
      %p31 = scmp.ge.s32.totalorder %s30, 6
      %s37 = sphi 0, %s56
      %s38 = sphi 0, %s52
      %s39 = sphi 0, %s48
      %s40 = sphi 0, %s37
      %s41 = sphi 0, %s38
      %s42 = sphi 0, %s39
      %s43 = sphi 0, %s40
      %s44 = sphi 0, %s41
      %s45 = sphi 0, %s42
      %s65 = sphi 0, %s67
      %s68 = sphi 0, %s65
      %s69 = sphi 0, %s68
      %s85 = sphi 0, %s69
      %s91 = sphi 0, %s93
      %s94 = sphi 0, %s91
      %s95 = sphi 0, %s94
      %s111 = sphi 0, %s95
      %s115 = sphi 0, %s115
      %s117 = sphi 0, %s115
      %s118 = sphi 0, %s117
      %s132 = sphi 0, %s118
      %s136 = sphi 0, %s136
      %s138 = sphi 0, %s136
      %s139 = sphi 0, %s138
      %s153 = sphi 0, %s139
      %s157 = sphi 0, %s157
      %s159 = sphi 0, %s157
      %s160 = sphi 0, %s159
      %s174 = sphi 0, %s160
      %s178 = sphi 0, %s178
      %s180 = sphi 0, %s178
      %s181 = sphi 0, %s180
      %s195 = sphi 0, %s181
      %s199 = sphi 0, %s199
      %s201 = sphi 0, %s199
      %s202 = sphi 0, %s201
      %s216 = sphi 0, %s202
      %s220 = sphi 0, %s220
      %s222 = sphi 0, %s220
      %s223 = sphi 0, %s222
      %s237 = sphi 0, %s223
      %s241 = sphi 0, %s241
      %s243 = sphi 0, %s241
      %s244 = sphi 0, %s243
      %s258 = sphi 0, %s244
      %s262 = sphi 0, %s262
      %s264 = sphi 0, %s262
      %s265 = sphi 0, %s264
      %s279 = sphi 0, %s265
      %s283 = sphi 0, %s283
      %s285 = sphi 0, %s283
      %s286 = sphi 0, %s285
      %s300 = sphi 0, %s286
      %s304 = sphi 0, %s304
      %s306 = sphi 0, %s304
      %s307 = sphi 0, %s306
      %s321 = sphi 0, %s307
      %s333 = sphi 0, %s335
      %s336 = sphi 0, %s333
      %s337 = sphi 0, %s336
      %s353 = sphi 0, %s337
    $region4: #{tpu_custom_call.1} parent=1 // loop_header_branch
      %33 = sbr.rel (%p31) target = $region8
    $region5: #{tpu_custom_call.1} parent=1 // loop_body
      %s35 = ssub.s32 %s30, 1
      %s36 = ssub.s32 %s30, 2
      %s46 = sadd.s32 1, %s39
      %p47 = scmp.ge.s32.totalorder %s46, 2
      %s48 = scalar_select %p47, 0, %s46
      %s49 = sadd.s32 1, %s38
      %s50 = scalar_select %p47, %s49, %s38
      %p51 = scmp.ge.s32.totalorder %s50, 1
      %s52 = scalar_select %p51, 0, %s50
      %s53 = sadd.s32 1, %s37
      %s54 = scalar_select %p51, %s53, %s37
      %p55 = scmp.ge.s32.totalorder %s54, 2
      %s56 = scalar_select %p55, 0, %s54
      %s57 = smul.u32 %s38, 2
      %s58 = sadd.s32 %s57, %s39
      %s59 = smul.u32 %s52, 2
      %s60 = sadd.s32 %s59, %s48
      %s61 = ssub.s32 %s37, %s56
      %s62 = ssub.s32 %s58, %s60
      %s63 = sor.u32 %s61, %s62
      %p64 = scmp.eq.s32.totalorder %s63, 0
      %s66 = sadd.s32 %s65, 1
      %s67 = scalar_select %p64, %s65, %s66
      %p70 = pneg %p64
      %p71 = scmp.eq.s32.totalorder %s30, 3
      %p72 = por %p70, %p71
      %p73 = scmp.ne.s32.totalorder %s65, %s68
      %p74 = scmp.eq.s32.totalorder %s30, 0
      %p75 = por %p73, %p74
      %p76 = scmp.ne.s32.totalorder %s65, %s68
      %p77 = scmp.eq.s32.totalorder %s35, 3
      %p78 = por %p76, %p77
      %p79 = scmp.ne.s32.totalorder %s68, %s69
      %p80 = scmp.eq.s32.totalorder %s35, 0
      %p81 = por %p79, %p80
      %p82 = scmp.ne.s32.totalorder %s68, %s69
      %p83 = scmp.eq.s32.totalorder %s36, 3
      %p84 = por %p82, %p83
      %p86 = scmp.ne.s32.totalorder %s69, %s85
      %p87 = scmp.eq.s32.totalorder %s36, 0
      %p88 = por %p86, %p87
      %s89 = ssub.s32 %s37, %s56
      %p90 = scmp.eq.s32.totalorder %s89, 0
      %s92 = sadd.s32 %s91, 1
      %s93 = scalar_select %p90, %s91, %s92
      %p96 = pneg %p90
      %p97 = scmp.eq.s32.totalorder %s30, 3
      %p98 = por %p96, %p97
      %p99 = scmp.ne.s32.totalorder %s91, %s94
      %p100 = scmp.eq.s32.totalorder %s30, 0
      %p101 = por %p99, %p100
      %p102 = scmp.ne.s32.totalorder %s91, %s94
      %p103 = scmp.eq.s32.totalorder %s35, 3
      %p104 = por %p102, %p103
      %p105 = scmp.ne.s32.totalorder %s94, %s95
      %p106 = scmp.eq.s32.totalorder %s35, 0
      %p107 = por %p105, %p106
      %p108 = scmp.ne.s32.totalorder %s94, %s95
      %p109 = scmp.eq.s32.totalorder %s36, 3
      %p110 = por %p108, %p109
      %p112 = scmp.ne.s32.totalorder %s95, %s111
      %p113 = scmp.eq.s32.totalorder %s36, 0
      %p114 = por %p112, %p113
      %s116 = sadd.s32 %s115, 1
      %p119 = scmp.eq.s32.totalorder %s30, 3
      %p120 = scmp.ne.s32.totalorder %s115, %s117
      %p121 = scmp.eq.s32.totalorder %s30, 0
      %p122 = por %p120, %p121
      %p123 = scmp.ne.s32.totalorder %s115, %s117
      %p124 = scmp.eq.s32.totalorder %s35, 3
      %p125 = por %p123, %p124
      %p126 = scmp.ne.s32.totalorder %s117, %s118
      %p127 = scmp.eq.s32.totalorder %s35, 0
      %p128 = por %p126, %p127
      %p129 = scmp.ne.s32.totalorder %s117, %s118
      %p130 = scmp.eq.s32.totalorder %s36, 3
      %p131 = por %p129, %p130
      %p133 = scmp.ne.s32.totalorder %s118, %s132
      %p134 = scmp.eq.s32.totalorder %s36, 0
      %p135 = por %p133, %p134
      %s137 = sadd.s32 %s136, 1
      %p140 = scmp.eq.s32.totalorder %s30, 3
      %p141 = scmp.ne.s32.totalorder %s136, %s138
      %p142 = scmp.eq.s32.totalorder %s30, 0
      %p143 = por %p141, %p142
      %p144 = scmp.ne.s32.totalorder %s136, %s138
      %p145 = scmp.eq.s32.totalorder %s35, 3
      %p146 = por %p144, %p145
      %p147 = scmp.ne.s32.totalorder %s138, %s139
      %p148 = scmp.eq.s32.totalorder %s35, 0
      %p149 = por %p147, %p148
      %p150 = scmp.ne.s32.totalorder %s138, %s139
      %p151 = scmp.eq.s32.totalorder %s36, 3
      %p152 = por %p150, %p151
      %p154 = scmp.ne.s32.totalorder %s139, %s153
      %p155 = scmp.eq.s32.totalorder %s36, 0
      %p156 = por %p154, %p155
      %s158 = sadd.s32 %s157, 1
      %p161 = scmp.eq.s32.totalorder %s30, 3
      %p162 = scmp.ne.s32.totalorder %s157, %s159
      %p163 = scmp.eq.s32.totalorder %s30, 0
      %p164 = por %p162, %p163
      %p165 = scmp.ne.s32.totalorder %s157, %s159
      %p166 = scmp.eq.s32.totalorder %s35, 3
      %p167 = por %p165, %p166
      %p168 = scmp.ne.s32.totalorder %s159, %s160
      %p169 = scmp.eq.s32.totalorder %s35, 0
      %p170 = por %p168, %p169
      %p171 = scmp.ne.s32.totalorder %s159, %s160
      %p172 = scmp.eq.s32.totalorder %s36, 3
      %p173 = por %p171, %p172
      %p175 = scmp.ne.s32.totalorder %s160, %s174
      %p176 = scmp.eq.s32.totalorder %s36, 0
      %p177 = por %p175, %p176
      %s179 = sadd.s32 %s178, 1
      %p182 = scmp.eq.s32.totalorder %s30, 3
      %p183 = scmp.ne.s32.totalorder %s178, %s180
      %p184 = scmp.eq.s32.totalorder %s30, 0
      %p185 = por %p183, %p184
      %p186 = scmp.ne.s32.totalorder %s178, %s180
      %p187 = scmp.eq.s32.totalorder %s35, 3
      %p188 = por %p186, %p187
      %p189 = scmp.ne.s32.totalorder %s180, %s181
      %p190 = scmp.eq.s32.totalorder %s35, 0
      %p191 = por %p189, %p190
      %p192 = scmp.ne.s32.totalorder %s180, %s181
      %p193 = scmp.eq.s32.totalorder %s36, 3
      %p194 = por %p192, %p193
      %p196 = scmp.ne.s32.totalorder %s181, %s195
      %p197 = scmp.eq.s32.totalorder %s36, 0
      %p198 = por %p196, %p197
      %s200 = sadd.s32 %s199, 1
      %p203 = scmp.eq.s32.totalorder %s30, 3
      %p204 = scmp.ne.s32.totalorder %s199, %s201
      %p205 = scmp.eq.s32.totalorder %s30, 0
      %p206 = por %p204, %p205
      %p207 = scmp.ne.s32.totalorder %s199, %s201
      %p208 = scmp.eq.s32.totalorder %s35, 3
      %p209 = por %p207, %p208
      %p210 = scmp.ne.s32.totalorder %s201, %s202
      %p211 = scmp.eq.s32.totalorder %s35, 0
      %p212 = por %p210, %p211
      %p213 = scmp.ne.s32.totalorder %s201, %s202
      %p214 = scmp.eq.s32.totalorder %s36, 3
      %p215 = por %p213, %p214
      %p217 = scmp.ne.s32.totalorder %s202, %s216
      %p218 = scmp.eq.s32.totalorder %s36, 0
      %p219 = por %p217, %p218
      %s221 = sadd.s32 %s220, 1
      %p224 = scmp.eq.s32.totalorder %s30, 3
      %p225 = scmp.ne.s32.totalorder %s220, %s222
      %p226 = scmp.eq.s32.totalorder %s30, 0
      %p227 = por %p225, %p226
      %p228 = scmp.ne.s32.totalorder %s220, %s222
      %p229 = scmp.eq.s32.totalorder %s35, 3
      %p230 = por %p228, %p229
      %p231 = scmp.ne.s32.totalorder %s222, %s223
      %p232 = scmp.eq.s32.totalorder %s35, 0
      %p233 = por %p231, %p232
      %p234 = scmp.ne.s32.totalorder %s222, %s223
      %p235 = scmp.eq.s32.totalorder %s36, 3
      %p236 = por %p234, %p235
      %p238 = scmp.ne.s32.totalorder %s223, %s237
      %p239 = scmp.eq.s32.totalorder %s36, 0
      %p240 = por %p238, %p239
      %s242 = sadd.s32 %s241, 1
      %p245 = scmp.eq.s32.totalorder %s30, 3
      %p246 = scmp.ne.s32.totalorder %s241, %s243
      %p247 = scmp.eq.s32.totalorder %s30, 0
      %p248 = por %p246, %p247
      %p249 = scmp.ne.s32.totalorder %s241, %s243
      %p250 = scmp.eq.s32.totalorder %s35, 3
      %p251 = por %p249, %p250
      %p252 = scmp.ne.s32.totalorder %s243, %s244
      %p253 = scmp.eq.s32.totalorder %s35, 0
      %p254 = por %p252, %p253
      %p255 = scmp.ne.s32.totalorder %s243, %s244
      %p256 = scmp.eq.s32.totalorder %s36, 3
      %p257 = por %p255, %p256
      %p259 = scmp.ne.s32.totalorder %s244, %s258
      %p260 = scmp.eq.s32.totalorder %s36, 0
      %p261 = por %p259, %p260
      %s263 = sadd.s32 %s262, 1
      %p266 = scmp.eq.s32.totalorder %s30, 3
      %p267 = scmp.ne.s32.totalorder %s262, %s264
      %p268 = scmp.eq.s32.totalorder %s30, 0
      %p269 = por %p267, %p268
      %p270 = scmp.ne.s32.totalorder %s262, %s264
      %p271 = scmp.eq.s32.totalorder %s35, 3
      %p272 = por %p270, %p271
      %p273 = scmp.ne.s32.totalorder %s264, %s265
      %p274 = scmp.eq.s32.totalorder %s35, 0
      %p275 = por %p273, %p274
      %p276 = scmp.ne.s32.totalorder %s264, %s265
      %p277 = scmp.eq.s32.totalorder %s36, 3
      %p278 = por %p276, %p277
      %p280 = scmp.ne.s32.totalorder %s265, %s279
      %p281 = scmp.eq.s32.totalorder %s36, 0
      %p282 = por %p280, %p281
      %s284 = sadd.s32 %s283, 1
      %p287 = scmp.eq.s32.totalorder %s30, 3
      %p288 = scmp.ne.s32.totalorder %s283, %s285
      %p289 = scmp.eq.s32.totalorder %s30, 0
      %p290 = por %p288, %p289
      %p291 = scmp.ne.s32.totalorder %s283, %s285
      %p292 = scmp.eq.s32.totalorder %s35, 3
      %p293 = por %p291, %p292
      %p294 = scmp.ne.s32.totalorder %s285, %s286
      %p295 = scmp.eq.s32.totalorder %s35, 0
      %p296 = por %p294, %p295
      %p297 = scmp.ne.s32.totalorder %s285, %s286
      %p298 = scmp.eq.s32.totalorder %s36, 3
      %p299 = por %p297, %p298
      %p301 = scmp.ne.s32.totalorder %s286, %s300
      %p302 = scmp.eq.s32.totalorder %s36, 0
      %p303 = por %p301, %p302
      %s305 = sadd.s32 %s304, 1
      %p308 = scmp.eq.s32.totalorder %s30, 3
      %p309 = scmp.ne.s32.totalorder %s304, %s306
      %p310 = scmp.eq.s32.totalorder %s30, 0
      %p311 = por %p309, %p310
      %p312 = scmp.ne.s32.totalorder %s304, %s306
      %p313 = scmp.eq.s32.totalorder %s35, 3
      %p314 = por %p312, %p313
      %p315 = scmp.ne.s32.totalorder %s306, %s307
      %p316 = scmp.eq.s32.totalorder %s35, 0
      %p317 = por %p315, %p316
      %p318 = scmp.ne.s32.totalorder %s306, %s307
      %p319 = scmp.eq.s32.totalorder %s36, 3
      %p320 = por %p318, %p319
      %p322 = scmp.ne.s32.totalorder %s307, %s321
      %p323 = scmp.eq.s32.totalorder %s36, 0
      %p324 = por %p322, %p323
      %s325 = smul.u32 %s38, 2
      %s326 = sadd.s32 %s325, %s39
      %s327 = smul.u32 %s52, 2
      %s328 = sadd.s32 %s327, %s48
      %s329 = ssub.s32 %s37, %s56
      %s330 = ssub.s32 %s326, %s328
      %s331 = sor.u32 %s329, %s330
      %p332 = scmp.eq.s32.totalorder %s331, 0
      %s334 = sadd.s32 %s333, 1
      %s335 = scalar_select %p332, %s333, %s334
      %p338 = pneg %p332
      %p339 = scmp.eq.s32.totalorder %s30, 3
      %p340 = por %p338, %p339
      %p341 = scmp.ne.s32.totalorder %s333, %s336
      %p342 = scmp.eq.s32.totalorder %s30, 0
      %p343 = por %p341, %p342
      %p344 = scmp.ne.s32.totalorder %s333, %s336
      %p345 = scmp.eq.s32.totalorder %s35, 3
      %p346 = por %p344, %p345
      %p347 = scmp.ne.s32.totalorder %s336, %s337
      %p348 = scmp.eq.s32.totalorder %s35, 0
      %p349 = por %p347, %p348
      %p350 = scmp.ne.s32.totalorder %s336, %s337
      %p351 = scmp.eq.s32.totalorder %s36, 3
      %p352 = por %p350, %p351
      %p354 = scmp.ne.s32.totalorder %s337, %s353
      %p355 = scmp.eq.s32.totalorder %s36, 0
      %p356 = por %p354, %p355
      %p357 = scmp.le.s32.totalorder 1, %s30
      %p358 = scmp.lt.s32.totalorder %s30, 5
      %p359 = pnand %p357, %p358
      %p360 = pneg %p359
      // Predicated region
      $region9: #{tpu_custom_call.1} parent=5 // pred_check
        _
      $region10: #{tpu_custom_call.1} parent=5 // pred_check_branch
        %362 = sbr.rel (%p359) target = $region12
      $region11: #{tpu_custom_call.1} parent=5 // pred_region
        %s363 = ssub.s32 %s30, 1
        // Predicated region
        $region13: #{tpu_custom_call.1} parent=11 // pred_check
          %p364 = pneg %p128
        $region14: #{tpu_custom_call.1} parent=11 // pred_check_branch
          %366 = sbr.rel (%p364) target = $region16
        $region15: #{tpu_custom_call.1} parent=11 // pred_region
          %s368 = ssub.s32 2048, 2048
          %369 = vsyncadd [#allocation7], %s368
          %s370 = sshll.u32 [#allocation8], 4
          %s371 = int_to_ptr.vmem [resolvable:$true] %s370
          %376 = dma.hbm_to_vmem [thread:$0]  %s2, 2048, %s371, [#allocation7], 128, 128, 8
        $region16: #{tpu_custom_call.1} parent=11 // pred_fallthru
          _
        // Predicated region
        $region17: #{tpu_custom_call.1} parent=11 // pred_check
          %p377 = pneg %p149
        $region18: #{tpu_custom_call.1} parent=11 // pred_check_branch
          %379 = sbr.rel (%p377) target = $region20
        $region19: #{tpu_custom_call.1} parent=11 // pred_region
          %s381 = ssub.s32 6144, 6144
          %382 = vsyncadd [#allocation10], %s381
          %s383 = sshll.u32 [#allocation9], 4
          %s384 = int_to_ptr.vmem [resolvable:$true] %s383
          %389 = dma.hbm_to_vmem [thread:$0]  %s3, 6144, %s384, [#allocation10], 384, 384, 24
        $region20: #{tpu_custom_call.1} parent=11 // pred_fallthru
          _
        // Predicated region
        $region21: #{tpu_custom_call.1} parent=11 // pred_check
          %p390 = pneg %p170
        $region22: #{tpu_custom_call.1} parent=11 // pred_check_branch
          %392 = sbr.rel (%p390) target = $region24
        $region23: #{tpu_custom_call.1} parent=11 // pred_region
          %s394 = ssub.s32 4096, 4096
          %395 = vsyncadd [#allocation10], %s394
          %s396 = sshll.u32 [#allocation11], 4
          %s397 = int_to_ptr.vmem [resolvable:$true] %s396
          %402 = dma.hbm_to_vmem [thread:$0]  %s4, 4096, %s397, [#allocation10], 256, 256, 16
        $region24: #{tpu_custom_call.1} parent=11 // pred_fallthru
          _
        // Predicated region
        $region25: #{tpu_custom_call.1} parent=11 // pred_check
          %p403 = pneg %p191
        $region26: #{tpu_custom_call.1} parent=11 // pred_check_branch
          %405 = sbr.rel (%p403) target = $region28
        $region27: #{tpu_custom_call.1} parent=11 // pred_region
          %s407 = ssub.s32 2048, 2048
          %408 = vsyncadd [#allocation13], %s407
          %s409 = sshll.u32 [#allocation12], 4
          %s410 = int_to_ptr.vmem [resolvable:$true] %s409
          %415 = dma.hbm_to_vmem [thread:$0]  %s5, 2048, %s410, [#allocation13], 128, 128, 8
        $region28: #{tpu_custom_call.1} parent=11 // pred_fallthru
          _
        // Predicated region
        $region29: #{tpu_custom_call.1} parent=11 // pred_check
          %p416 = pneg %p212
        $region30: #{tpu_custom_call.1} parent=11 // pred_check_branch
          %418 = sbr.rel (%p416) target = $region32
        $region31: #{tpu_custom_call.1} parent=11 // pred_region
          _
        $region32: #{tpu_custom_call.1} parent=11 // pred_fallthru
          _
        // Predicated region
        $region33: #{tpu_custom_call.1} parent=11 // pred_check
          %p419 = pneg %p233
        $region34: #{tpu_custom_call.1} parent=11 // pred_check_branch
          %421 = sbr.rel (%p419) target = $region36
        $region35: #{tpu_custom_call.1} parent=11 // pred_region
          _
        $region36: #{tpu_custom_call.1} parent=11 // pred_fallthru
          _
        // Predicated region
        $region37: #{tpu_custom_call.1} parent=11 // pred_check
          %p422 = pneg %p254
        $region38: #{tpu_custom_call.1} parent=11 // pred_check_branch
          %424 = sbr.rel (%p422) target = $region40
        $region39: #{tpu_custom_call.1} parent=11 // pred_region
          %s426 = ssub.s32 4096, 4096
          %427 = vsyncadd [#allocation13], %s426
          %s428 = sshll.u32 [#allocation14], 4
          %s429 = int_to_ptr.vmem [resolvable:$true] %s428
          %434 = dma.hbm_to_vmem [thread:$0]  %s8, 4096, %s429, [#allocation13], 256, 256, 16
        $region40: #{tpu_custom_call.1} parent=11 // pred_fallthru
          _
        // Predicated region
        $region41: #{tpu_custom_call.1} parent=11 // pred_check
          %p435 = pneg %p275
        $region42: #{tpu_custom_call.1} parent=11 // pred_check_branch
          %437 = sbr.rel (%p435) target = $region44
        $region43: #{tpu_custom_call.1} parent=11 // pred_region
          %s439 = ssub.s32 4096, 4096
          %440 = vsyncadd [#allocation16], %s439
          %s441 = sshll.u32 [#allocation15], 4
          %s442 = int_to_ptr.vmem [resolvable:$true] %s441
          %447 = dma.hbm_to_vmem [thread:$0]  %s9, 4096, %s442, [#allocation16], 128, 128, 8
        $region44: #{tpu_custom_call.1} parent=11 // pred_fallthru
          _
        // Predicated region
        $region45: #{tpu_custom_call.1} parent=11 // pred_check
          %p448 = pneg %p296
        $region46: #{tpu_custom_call.1} parent=11 // pred_check_branch
          %450 = sbr.rel (%p448) target = $region48
        $region47: #{tpu_custom_call.1} parent=11 // pred_region
          _
        $region48: #{tpu_custom_call.1} parent=11 // pred_fallthru
          _
        // Predicated region
        $region49: #{tpu_custom_call.1} parent=11 // pred_check
          %p451 = pneg %p317
        $region50: #{tpu_custom_call.1} parent=11 // pred_check_branch
          %453 = sbr.rel (%p451) target = $region52
        $region51: #{tpu_custom_call.1} parent=11 // pred_region
          _
        $region52: #{tpu_custom_call.1} parent=11 // pred_fallthru
          _
      $region12: #{tpu_custom_call.1} parent=5 // pred_fallthru
        _
      %p454 = scmp.lt.s32.totalorder %s30, 4
      // Predicated region
      $region53: #{tpu_custom_call.1} parent=5 // pred_check
        %p455 = pneg %p454
      $region54: #{tpu_custom_call.1} parent=5 // pred_check_branch
        %457 = sbr.rel (%p455) target = $region56
      $region55: #{tpu_custom_call.1} parent=5 // pred_region
        // Predicated region
        $region57: #{tpu_custom_call.1} parent=55 // pred_check
          %p458 = pneg %p75
        $region58: #{tpu_custom_call.1} parent=55 // pred_check_branch
          %460 = sbr.rel (%p458) target = $region60
        $region59: #{tpu_custom_call.1} parent=55 // pred_region
          %s461 = sand.u32 %s65, 1
          %s462 = scalar_lea.sflag [#allocation4], %s461
          %s463 = sand.u32 %s65, 1
          %s464 = smul.addr %s463, 16
          %s465 = scalar_lea.vmem [#allocation3], %s464
          %s466 = smul.u32 %s38, 2
          %s467 = sadd.s32 %s466, %s39
          %s468 = smul.u32 2, %s467
          %s470 = ssub.s32 256, 256
          %471 = vsyncadd %s462, %s470
          %s472 = smul.addr %s37, 4
          %s473 = sadd.s32 %s468, %s472
          %s474 = smul.addr %s473, 128
          %s475 = scalar_lea.hbm %s0, %s474
          %s476 = sshll.u32 %s465, 4
          %s477 = int_to_ptr.vmem [resolvable:$true] %s476
          %482 = dma.hbm_to_vmem [thread:$0]  %s475, 256, %s477, %s462, 128, 128, 8
        $region60: #{tpu_custom_call.1} parent=55 // pred_fallthru
          _
        // Predicated region
        $region61: #{tpu_custom_call.1} parent=55 // pred_check
          %p483 = pneg %p101
        $region62: #{tpu_custom_call.1} parent=55 // pred_check_branch
          %485 = sbr.rel (%p483) target = $region64
        $region63: #{tpu_custom_call.1} parent=55 // pred_region
          %s486 = sand.u32 %s30, 1
          %s487 = scalar_lea.sflag [#allocation7], %s486
          %s488 = sand.u32 %s91, 1
          %s489 = smul.addr %s488, 16
          %s490 = scalar_lea.vmem [#allocation6], %s489
          %s492 = ssub.s32 256, 256
          %493 = vsyncadd %s487, %s492
          %s494 = smul.addr %s37, 2
          %s495 = smul.addr %s494, 128
          %s496 = scalar_lea.hbm %s1, %s495
          %s497 = sshll.u32 %s490, 4
          %s498 = int_to_ptr.vmem [resolvable:$true] %s497
          %503 = dma.hbm_to_vmem [thread:$0]  %s496, 256, %s498, %s487, 128, 128, 8
        $region64: #{tpu_custom_call.1} parent=55 // pred_fallthru
          _
      $region56: #{tpu_custom_call.1} parent=5 // pred_fallthru
        _
      %p504 = scmp.le.s32.totalorder 1, %s30
      %p505 = scmp.lt.s32.totalorder %s30, 5
      %p506 = pnand %p504, %p505
      %p507 = pneg %p506
      // Predicated region
      $region65: #{tpu_custom_call.1} parent=5 // pred_check
        _
      $region66: #{tpu_custom_call.1} parent=5 // pred_check_branch
        %509 = sbr.rel (%p506) target = $region68
      $region67: #{tpu_custom_call.1} parent=5 // pred_region
        %s510 = ssub.s32 %s30, 1
        %s511 = sand.u32 %s68, 1
        %s512 = scalar_lea.sflag [#allocation4], %s511
        %s513 = sand.u32 %s68, 1
        %s514 = smul.addr %s513, 16
        %s515 = scalar_lea.vmem [#allocation3], %s514
        // Predicated region
        $region69: #{tpu_custom_call.1} parent=67 // pred_check
          %p516 = pneg %p81
        $region70: #{tpu_custom_call.1} parent=67 // pred_check_branch
          %518 = sbr.rel (%p516) target = $region72
        $region71: #{tpu_custom_call.1} parent=67 // pred_region
          %519 = dma.done %s512, 256
        $region72: #{tpu_custom_call.1} parent=67 // pred_fallthru
          _
        %s520 = sand.u32 %s35, 1
        %s521 = scalar_lea.sflag [#allocation7], %s520
        %s522 = sand.u32 %s94, 1
        %s523 = smul.addr %s522, 16
        %s524 = scalar_lea.vmem [#allocation6], %s523
        // Predicated region
        $region73: #{tpu_custom_call.1} parent=67 // pred_check
          %p525 = pneg %p107
        $region74: #{tpu_custom_call.1} parent=67 // pred_check_branch
          %527 = sbr.rel (%p525) target = $region76
        $region75: #{tpu_custom_call.1} parent=67 // pred_region
          %528 = dma.done %s521, 256
        $region76: #{tpu_custom_call.1} parent=67 // pred_fallthru
          _
        // Predicated region
        $region77: #{tpu_custom_call.1} parent=67 // pred_check
          %p529 = pneg %p128
        $region78: #{tpu_custom_call.1} parent=67 // pred_check_branch
          %531 = sbr.rel (%p529) target = $region80
        $region79: #{tpu_custom_call.1} parent=67 // pred_region
          %532 = dma.done [#allocation7], 2048
        $region80: #{tpu_custom_call.1} parent=67 // pred_fallthru
          _
        // Predicated region
        $region81: #{tpu_custom_call.1} parent=67 // pred_check
          %p533 = pneg %p149
        $region82: #{tpu_custom_call.1} parent=67 // pred_check_branch
          %535 = sbr.rel (%p533) target = $region84
        $region83: #{tpu_custom_call.1} parent=67 // pred_region
          %536 = dma.done [#allocation10], 6144
        $region84: #{tpu_custom_call.1} parent=67 // pred_fallthru
          _
        // Predicated region
        $region85: #{tpu_custom_call.1} parent=67 // pred_check
          %p537 = pneg %p170
        $region86: #{tpu_custom_call.1} parent=67 // pred_check_branch
          %539 = sbr.rel (%p537) target = $region88
        $region87: #{tpu_custom_call.1} parent=67 // pred_region
          %540 = dma.done [#allocation10], 4096
        $region88: #{tpu_custom_call.1} parent=67 // pred_fallthru
          _
        // Predicated region
        $region89: #{tpu_custom_call.1} parent=67 // pred_check
          %p541 = pneg %p191
        $region90: #{tpu_custom_call.1} parent=67 // pred_check_branch
          %543 = sbr.rel (%p541) target = $region92
        $region91: #{tpu_custom_call.1} parent=67 // pred_region
          %544 = dma.done [#allocation13], 2048
        $region92: #{tpu_custom_call.1} parent=67 // pred_fallthru
          _
        // Predicated region
        $region93: #{tpu_custom_call.1} parent=67 // pred_check
          %p545 = pneg %p254
        $region94: #{tpu_custom_call.1} parent=67 // pred_check_branch
          %547 = sbr.rel (%p545) target = $region96
        $region95: #{tpu_custom_call.1} parent=67 // pred_region
          %548 = dma.done [#allocation13], 4096
        $region96: #{tpu_custom_call.1} parent=67 // pred_fallthru
          _
        // Predicated region
        $region97: #{tpu_custom_call.1} parent=67 // pred_check
          %p549 = pneg %p275
        $region98: #{tpu_custom_call.1} parent=67 // pred_check_branch
          %551 = sbr.rel (%p549) target = $region100
        $region99: #{tpu_custom_call.1} parent=67 // pred_region
          %552 = dma.done [#allocation16], 4096
        $region100: #{tpu_custom_call.1} parent=67 // pred_fallthru
          _
        %s553 = sand.u32 %s68, 1
        %s554 = scalar_lea.sflag [#allocation4], %s553
        %s555 = sand.u32 %s68, 1
        %s556 = smul.addr %s555, 16
        %s557 = scalar_lea.vmem [#allocation3], %s556
        %p558 = pneg %p81
        %p559 = pneg %p78
        %s560 = sand.u32 %s35, 1
        %s561 = scalar_lea.sflag [#allocation7], %s560
        %s562 = sand.u32 %s94, 1
        %s563 = smul.addr %s562, 16
        %s564 = scalar_lea.vmem [#allocation6], %s563
        %p565 = pneg %p107
        %p566 = pneg %p104
        %p567 = pneg %p128
        %p568 = pneg %p125
        %p569 = pneg %p149
        %p570 = pneg %p146
        %p571 = pneg %p170
        %p572 = pneg %p167
        %p573 = pneg %p191
        %p574 = pneg %p188
        %p575 = pneg %p212
        %p576 = pneg %p209
        %p577 = pneg %p233
        %p578 = pneg %p230
        %p579 = pneg %p254
        %p580 = pneg %p251
        %p581 = pneg %p275
        %p582 = pneg %p272
        %p583 = pneg %p296
        %p584 = pneg %p293
        %p585 = pneg %p317
        %p586 = pneg %p314
        %p587 = pneg %p349
        %p588 = pneg %p346
        %s589 = sand.u32 %s336, 1
        %s590 = scalar_lea.sflag [#allocation5], %s589
        %s591 = sand.u32 %s336, 1
        %s592 = smul.addr %s591, 16
        %s593 = scalar_lea.vmem [#allocation17], %s592
        %s594 = smul.u32 %s41, 2
        %s595 = sadd.s32 %s594, %s42
        %s596 = smul.u32 2, %s595
        %s597 = smul.u32 %s41, 2
        %s598 = sadd.s32 %s597, %s42
        %s599 = smul.u32 2, %s598
        %p600 = scmp.eq.s32.totalorder %s42, 0
        // Predicated region
        $region101: #{tpu_custom_call.1} parent=67 // pred_check
          %p601 = pneg %p600
        $region102: #{tpu_custom_call.1} parent=67 // pred_check_branch
          %603 = sbr.rel (%p601) target = $region104
        $region103: #{tpu_custom_call.1} parent=67 // pred_region
          %v604 = vld [vmem:[%s524] sm:$0xff]
          %v605 = vld [vmem:[%s524 + $0x8] sm:$0xff]
          %v606 = vld [vmem:[#allocation11] sm:$0xff]
          %v607 = vld [vmem:[#allocation11 + $0x8] sm:$0xff]
          %v608 = vld [vmem:[#allocation11 + $0x10] sm:$0xff]
          %v609 = vld [vmem:[#allocation11 + $0x18] sm:$0xff]
          %v610 = vld [vmem:[#allocation11 + $0x20] sm:$0xff]
          %v611 = vld [vmem:[#allocation11 + $0x28] sm:$0xff]
          %v612 = vld [vmem:[#allocation11 + $0x30] sm:$0xff]
          %v613 = vld [vmem:[#allocation11 + $0x38] sm:$0xff]
          %v614 = vld [vmem:[#allocation11 + $0x40] sm:$0xff]
          %v615 = vld [vmem:[#allocation11 + $0x48] sm:$0xff]
          %v616 = vld [vmem:[#allocation11 + $0x50] sm:$0xff]
          %v617 = vld [vmem:[#allocation11 + $0x58] sm:$0xff]
          %v618 = vld [vmem:[#allocation11 + $0x60] sm:$0xff]
          %v619 = vld [vmem:[#allocation11 + $0x68] sm:$0xff]
          %v620 = vld [vmem:[#allocation11 + $0x70] sm:$0xff]
          %v621 = vld [vmem:[#allocation11 + $0x78] sm:$0xff]
          %v622 = vld [vmem:[#allocation11 + $0x80] sm:$0xff]
          %v623 = vld [vmem:[#allocation11 + $0x88] sm:$0xff]
          %v624 = vld [vmem:[#allocation11 + $0x90] sm:$0xff]
          %v625 = vld [vmem:[#allocation11 + $0x98] sm:$0xff]
          %v626 = vld [vmem:[#allocation11 + $0xa0] sm:$0xff]
          %v627 = vld [vmem:[#allocation11 + $0xa8] sm:$0xff]
          %v628 = vld [vmem:[#allocation11 + $0xb0] sm:$0xff]
          %v629 = vld [vmem:[#allocation11 + $0xb8] sm:$0xff]
          %v630 = vld [vmem:[#allocation11 + $0xc0] sm:$0xff]
          %v631 = vld [vmem:[#allocation11 + $0xc8] sm:$0xff]
          %v632 = vld [vmem:[#allocation11 + $0xd0] sm:$0xff]
          %v633 = vld [vmem:[#allocation11 + $0xd8] sm:$0xff]
          %v634 = vld [vmem:[#allocation11 + $0xe0] sm:$0xff]
          %v635 = vld [vmem:[#allocation11 + $0xe8] sm:$0xff]
          %v636 = vld [vmem:[#allocation11 + $0xf0] sm:$0xff]
          %v637 = vld [vmem:[#allocation11 + $0xf8] sm:$0xff]
          %v638 = vand.u32 %v607, 4294901760
          %639 = vmatprep.subr.mxu0 %v638
          %v640 = vand.u32 %v606, 4294901760
          %641 = vmatpush1.msra.mxu0 %v640
          %v642 = vand.u32 %v609, 4294901760
          %643 = vmatprep.subr.mxu0 %v642
          %v644 = vand.u32 %v608, 4294901760
          %645 = vmatpush1.msra.mxu0 %v644
          %v646 = vand.u32 %v611, 4294901760
          %647 = vmatprep.subr.mxu0 %v646
          %v648 = vand.u32 %v610, 4294901760
          %649 = vmatpush1.msra.mxu0 %v648
          %v650 = vand.u32 %v613, 4294901760
          %651 = vmatprep.subr.mxu0 %v650
          %v652 = vand.u32 %v612, 4294901760
          %653 = vmatpush1.msra.mxu0 %v652
          %v654 = vand.u32 %v615, 4294901760
          %655 = vmatprep.subr.mxu0 %v654
          %v656 = vand.u32 %v614, 4294901760
          %657 = vmatpush1.msra.mxu0 %v656
          %v658 = vand.u32 %v617, 4294901760
          %659 = vmatprep.subr.mxu0 %v658
          %v660 = vand.u32 %v616, 4294901760
          %661 = vmatpush1.msra.mxu0 %v660
          %v662 = vand.u32 %v619, 4294901760
          %663 = vmatprep.subr.mxu0 %v662
          %v664 = vand.u32 %v618, 4294901760
          %665 = vmatpush1.msra.mxu0 %v664
          %v666 = vand.u32 %v621, 4294901760
          %667 = vmatprep.subr.mxu0 %v666
          %v668 = vand.u32 %v620, 4294901760
          %669 = vmatpush1.msra.mxu0 %v668
          %v670 = vand.u32 %v623, 4294901760
          %671 = vmatprep.subr.mxu0 %v670
          %v672 = vand.u32 %v622, 4294901760
          %673 = vmatpush1.msra.mxu0 %v672
          %v674 = vand.u32 %v625, 4294901760
          %675 = vmatprep.subr.mxu0 %v674
          %v676 = vand.u32 %v624, 4294901760
          %677 = vmatpush1.msra.mxu0 %v676
          %v678 = vand.u32 %v627, 4294901760
          %679 = vmatprep.subr.mxu0 %v678
          %v680 = vand.u32 %v626, 4294901760
          %681 = vmatpush1.msra.mxu0 %v680
          %v682 = vand.u32 %v629, 4294901760
          %683 = vmatprep.subr.mxu0 %v682
          %v684 = vand.u32 %v628, 4294901760
          %685 = vmatpush1.msra.mxu0 %v684
          %v686 = vand.u32 %v631, 4294901760
          %687 = vmatprep.subr.mxu0 %v686
          %v688 = vand.u32 %v630, 4294901760
          %689 = vmatpush1.msra.mxu0 %v688
          %v690 = vand.u32 %v633, 4294901760
          %691 = vmatprep.subr.mxu0 %v690
          %v692 = vand.u32 %v632, 4294901760
          %693 = vmatpush1.msra.mxu0 %v692
          %v694 = vand.u32 %v635, 4294901760
          %695 = vmatprep.subr.mxu0 %v694
          %v696 = vand.u32 %v634, 4294901760
          %697 = vmatpush1.msra.mxu0 %v696
          %v698 = vand.u32 %v637, 4294901760
          %699 = vmatprep.subr.mxu0 %v698
          %v700 = vand.u32 %v636, 4294901760
          %701 = vmatpush1.msra.mxu0 %v700
          %702 = vmatprep.subr.mxu0 0.0
          %703 = vmatpush1.msra.mxu0 0.0
          %704 = vmatprep.subr.mxu0 0.0
          %705 = vmatpush1.msra.mxu0 0.0
          %706 = vmatprep.subr.mxu0 0.0
          %707 = vmatpush1.msra.mxu0 0.0
          %708 = vmatprep.subr.mxu0 0.0
          %709 = vmatpush1.msra.mxu0 0.0
          %710 = vmatprep.subr.mxu0 0.0
          %711 = vmatpush1.msra.mxu0 0.0
          %712 = vmatprep.subr.mxu0 0.0
          %713 = vmatpush1.msra.mxu0 0.0
          %714 = vmatprep.subr.mxu0 0.0
          %715 = vmatpush1.msra.mxu0 0.0
          %716 = vmatprep.subr.mxu0 0.0
          %717 = vmatpush1.msra.mxu0 0.0
          %718 = vmatprep.subr.mxu0 0.0
          %719 = vmatpush1.msra.mxu0 0.0
          %720 = vmatprep.subr.mxu0 0.0
          %721 = vmatpush1.msra.mxu0 0.0
          %722 = vmatprep.subr.mxu0 0.0
          %723 = vmatpush1.msra.mxu0 0.0
          %724 = vmatprep.subr.mxu0 0.0
          %725 = vmatpush1.msra.mxu0 0.0
          %726 = vmatprep.subr.mxu0 0.0
          %727 = vmatpush1.msra.mxu0 0.0
          %728 = vmatprep.subr.mxu0 0.0
          %729 = vmatpush1.msra.mxu0 0.0
          %730 = vmatprep.subr.mxu0 0.0
          %731 = vmatpush1.msra.mxu0 0.0
          %732 = vmatprep.subr.mxu0 0.0
          %733 = vmatpush1.msra.mxu0 0.0
          %734 = vmatprep.mubr.f32.mxu0 0.0
          %v735 = vand.u32 %v604, 4294901760
          %v736 = vsub.f32 %v604, %v735
          %v737 = vand.u32 %v736, 4294901760
          %v738 = vsub.f32 %v736, %v737
          %v739 = vand.u32 %v738, 4294901760
          %740 = vmatmul.mubr.f32.gmra.mrb[0].mxu0 %v739
          %v741 = vpop.f32.mrb[0].mxu0
          %v742 = vadd.f32 0.0, %v741
          %v743 = vpop.f32.mrb[0].mxu0
          %v744 = vadd.f32 0.0, %v743
          %745 = vmatprep.mubr.f32.mxu0 0.0
          %v746 = vand.u32 %v605, 4294901760
          %v747 = vsub.f32 %v605, %v746
          %v748 = vand.u32 %v747, 4294901760
          %v749 = vsub.f32 %v747, %v748
          %v750 = vand.u32 %v749, 4294901760
          %751 = vmatmul.mubr.f32.gmra.mrb[0].mxu0 %v750
          %v752 = vpop.f32.mrb[0].mxu0
          %v753 = vadd.f32 0.0, %v752
          %v754 = vpop.f32.mrb[0].mxu0
          %v755 = vadd.f32 0.0, %v754
          %756 = vdwg.mxu0
          %v757 = vand.u32 %v607, 4294901760
          %v758 = vsub.f32 %v607, %v757
          %v759 = vand.u32 %v758, 4294901760
          %v760 = vsub.f32 %v758, %v759
          %v761 = vand.u32 %v760, 4294901760
          %762 = vmatprep.subr.mxu0 %v761
          %v763 = vand.u32 %v606, 4294901760
          %v764 = vsub.f32 %v606, %v763
          %v765 = vand.u32 %v764, 4294901760
          %v766 = vsub.f32 %v764, %v765
          %v767 = vand.u32 %v766, 4294901760
          %768 = vmatpush1.msra.mxu0 %v767
          %v769 = vand.u32 %v609, 4294901760
          %v770 = vsub.f32 %v609, %v769
          %v771 = vand.u32 %v770, 4294901760
          %v772 = vsub.f32 %v770, %v771
          %v773 = vand.u32 %v772, 4294901760
          %774 = vmatprep.subr.mxu0 %v773
          %v775 = vand.u32 %v608, 4294901760
          %v776 = vsub.f32 %v608, %v775
          %v777 = vand.u32 %v776, 4294901760
          %v778 = vsub.f32 %v776, %v777
          %v779 = vand.u32 %v778, 4294901760
          %780 = vmatpush1.msra.mxu0 %v779
          %v781 = vand.u32 %v611, 4294901760
          %v782 = vsub.f32 %v611, %v781
          %v783 = vand.u32 %v782, 4294901760
          %v784 = vsub.f32 %v782, %v783
          %v785 = vand.u32 %v784, 4294901760
          %786 = vmatprep.subr.mxu0 %v785
          %v787 = vand.u32 %v610, 4294901760
          %v788 = vsub.f32 %v610, %v787
          %v789 = vand.u32 %v788, 4294901760
          %v790 = vsub.f32 %v788, %v789
          %v791 = vand.u32 %v790, 4294901760
          %792 = vmatpush1.msra.mxu0 %v791
          %v793 = vand.u32 %v613, 4294901760
          %v794 = vsub.f32 %v613, %v793
          %v795 = vand.u32 %v794, 4294901760
          %v796 = vsub.f32 %v794, %v795
          %v797 = vand.u32 %v796, 4294901760
          %798 = vmatprep.subr.mxu0 %v797
          %v799 = vand.u32 %v612, 4294901760
          %v800 = vsub.f32 %v612, %v799
          %v801 = vand.u32 %v800, 4294901760
          %v802 = vsub.f32 %v800, %v801
          %v803 = vand.u32 %v802, 4294901760
          %804 = vmatpush1.msra.mxu0 %v803
          %v805 = vand.u32 %v615, 4294901760
          %v806 = vsub.f32 %v615, %v805
          %v807 = vand.u32 %v806, 4294901760
          %v808 = vsub.f32 %v806, %v807
          %v809 = vand.u32 %v808, 4294901760
          %810 = vmatprep.subr.mxu0 %v809
          %v811 = vand.u32 %v614, 4294901760
          %v812 = vsub.f32 %v614, %v811
          %v813 = vand.u32 %v812, 4294901760
          %v814 = vsub.f32 %v812, %v813
          %v815 = vand.u32 %v814, 4294901760
          %816 = vmatpush1.msra.mxu0 %v815
          %v817 = vand.u32 %v617, 4294901760
          %v818 = vsub.f32 %v617, %v817
          %v819 = vand.u32 %v818, 4294901760
          %v820 = vsub.f32 %v818, %v819
          %v821 = vand.u32 %v820, 4294901760
          %822 = vmatprep.subr.mxu0 %v821
          %v823 = vand.u32 %v616, 4294901760
          %v824 = vsub.f32 %v616, %v823
          %v825 = vand.u32 %v824, 4294901760
          %v826 = vsub.f32 %v824, %v825
          %v827 = vand.u32 %v826, 4294901760
          %828 = vmatpush1.msra.mxu0 %v827
          %v829 = vand.u32 %v619, 4294901760
          %v830 = vsub.f32 %v619, %v829
          %v831 = vand.u32 %v830, 4294901760
          %v832 = vsub.f32 %v830, %v831
          %v833 = vand.u32 %v832, 4294901760
          %834 = vmatprep.subr.mxu0 %v833
          %v835 = vand.u32 %v618, 4294901760
          %v836 = vsub.f32 %v618, %v835
          %v837 = vand.u32 %v836, 4294901760
          %v838 = vsub.f32 %v836, %v837
          %v839 = vand.u32 %v838, 4294901760
          %840 = vmatpush1.msra.mxu0 %v839
          %v841 = vand.u32 %v621, 4294901760
          %v842 = vsub.f32 %v621, %v841
          %v843 = vand.u32 %v842, 4294901760
          %v844 = vsub.f32 %v842, %v843
          %v845 = vand.u32 %v844, 4294901760
          %846 = vmatprep.subr.mxu0 %v845
          %v847 = vand.u32 %v620, 4294901760
          %v848 = vsub.f32 %v620, %v847
          %v849 = vand.u32 %v848, 4294901760
          %v850 = vsub.f32 %v848, %v849
          %v851 = vand.u32 %v850, 4294901760
          %852 = vmatpush1.msra.mxu0 %v851
          %v853 = vand.u32 %v623, 4294901760
          %v854 = vsub.f32 %v623, %v853
          %v855 = vand.u32 %v854, 4294901760
          %v856 = vsub.f32 %v854, %v855
          %v857 = vand.u32 %v856, 4294901760
          %858 = vmatprep.subr.mxu0 %v857
          %v859 = vand.u32 %v622, 4294901760
          %v860 = vsub.f32 %v622, %v859
          %v861 = vand.u32 %v860, 4294901760
          %v862 = vsub.f32 %v860, %v861
          %v863 = vand.u32 %v862, 4294901760
          %864 = vmatpush1.msra.mxu0 %v863
          %v865 = vand.u32 %v625, 4294901760
          %v866 = vsub.f32 %v625, %v865
          %v867 = vand.u32 %v866, 4294901760
          %v868 = vsub.f32 %v866, %v867
          %v869 = vand.u32 %v868, 4294901760
          %870 = vmatprep.subr.mxu0 %v869
          %v871 = vand.u32 %v624, 4294901760
          %v872 = vsub.f32 %v624, %v871
          %v873 = vand.u32 %v872, 4294901760
          %v874 = vsub.f32 %v872, %v873
          %v875 = vand.u32 %v874, 4294901760
          %876 = vmatpush1.msra.mxu0 %v875
          %v877 = vand.u32 %v627, 4294901760
          %v878 = vsub.f32 %v627, %v877
          %v879 = vand.u32 %v878, 4294901760
          %v880 = vsub.f32 %v878, %v879
          %v881 = vand.u32 %v880, 4294901760
          %882 = vmatprep.subr.mxu0 %v881
          %v883 = vand.u32 %v626, 4294901760
          %v884 = vsub.f32 %v626, %v883
          %v885 = vand.u32 %v884, 4294901760
          %v886 = vsub.f32 %v884, %v885
          %v887 = vand.u32 %v886, 4294901760
          %888 = vmatpush1.msra.mxu0 %v887
          %v889 = vand.u32 %v629, 4294901760
          %v890 = vsub.f32 %v629, %v889
          %v891 = vand.u32 %v890, 4294901760
          %v892 = vsub.f32 %v890, %v891
          %v893 = vand.u32 %v892, 4294901760
          %894 = vmatprep.subr.mxu0 %v893
          %v895 = vand.u32 %v628, 4294901760
          %v896 = vsub.f32 %v628, %v895
          %v897 = vand.u32 %v896, 4294901760
          %v898 = vsub.f32 %v896, %v897
          %v899 = vand.u32 %v898, 4294901760
          %900 = vmatpush1.msra.mxu0 %v899
          %v901 = vand.u32 %v631, 4294901760
          %v902 = vsub.f32 %v631, %v901
          %v903 = vand.u32 %v902, 4294901760
          %v904 = vsub.f32 %v902, %v903
          %v905 = vand.u32 %v904, 4294901760
          %906 = vmatprep.subr.mxu0 %v905
          %v907 = vand.u32 %v630, 4294901760
          %v908 = vsub.f32 %v630, %v907
          %v909 = vand.u32 %v908, 4294901760
          %v910 = vsub.f32 %v908, %v909
          %v911 = vand.u32 %v910, 4294901760
          %912 = vmatpush1.msra.mxu0 %v911
          %v913 = vand.u32 %v633, 4294901760
          %v914 = vsub.f32 %v633, %v913
          %v915 = vand.u32 %v914, 4294901760
          %v916 = vsub.f32 %v914, %v915
          %v917 = vand.u32 %v916, 4294901760
          %918 = vmatprep.subr.mxu0 %v917
          %v919 = vand.u32 %v632, 4294901760
          %v920 = vsub.f32 %v632, %v919
          %v921 = vand.u32 %v920, 4294901760
          %v922 = vsub.f32 %v920, %v921
          %v923 = vand.u32 %v922, 4294901760
          %924 = vmatpush1.msra.mxu0 %v923
          %v925 = vand.u32 %v635, 4294901760
          %v926 = vsub.f32 %v635, %v925
          %v927 = vand.u32 %v926, 4294901760
          %v928 = vsub.f32 %v926, %v927
          %v929 = vand.u32 %v928, 4294901760
          %930 = vmatprep.subr.mxu0 %v929
          %v931 = vand.u32 %v634, 4294901760
          %v932 = vsub.f32 %v634, %v931
          %v933 = vand.u32 %v932, 4294901760
          %v934 = vsub.f32 %v932, %v933
          %v935 = vand.u32 %v934, 4294901760
          %936 = vmatpush1.msra.mxu0 %v935
          %v937 = vand.u32 %v637, 4294901760
          %v938 = vsub.f32 %v637, %v937
          %v939 = vand.u32 %v938, 4294901760
          %v940 = vsub.f32 %v938, %v939
          %v941 = vand.u32 %v940, 4294901760
          %942 = vmatprep.subr.mxu0 %v941
          %v943 = vand.u32 %v636, 4294901760
          %v944 = vsub.f32 %v636, %v943
          %v945 = vand.u32 %v944, 4294901760
          %v946 = vsub.f32 %v944, %v945
          %v947 = vand.u32 %v946, 4294901760
          %948 = vmatpush1.msra.mxu0 %v947
          %949 = vmatprep.subr.mxu0 0.0
          %950 = vmatpush1.msra.mxu0 0.0
          %951 = vmatprep.subr.mxu0 0.0
          %952 = vmatpush1.msra.mxu0 0.0
          %953 = vmatprep.subr.mxu0 0.0
          %954 = vmatpush1.msra.mxu0 0.0
          %955 = vmatprep.subr.mxu0 0.0
          %956 = vmatpush1.msra.mxu0 0.0
          %957 = vmatprep.subr.mxu0 0.0
          %958 = vmatpush1.msra.mxu0 0.0
          %959 = vmatprep.subr.mxu0 0.0
          %960 = vmatpush1.msra.mxu0 0.0
          %961 = vmatprep.subr.mxu0 0.0
          %962 = vmatpush1.msra.mxu0 0.0
          %963 = vmatprep.subr.mxu0 0.0
          %964 = vmatpush1.msra.mxu0 0.0
          %965 = vmatprep.subr.mxu0 0.0
          %966 = vmatpush1.msra.mxu0 0.0
          %967 = vmatprep.subr.mxu0 0.0
          %968 = vmatpush1.msra.mxu0 0.0
          %969 = vmatprep.subr.mxu0 0.0
          %970 = vmatpush1.msra.mxu0 0.0
          %971 = vmatprep.subr.mxu0 0.0
          %972 = vmatpush1.msra.mxu0 0.0
          %973 = vmatprep.subr.mxu0 0.0
          %974 = vmatpush1.msra.mxu0 0.0
          %975 = vmatprep.subr.mxu0 0.0
          %976 = vmatpush1.msra.mxu0 0.0
          %977 = vmatprep.subr.mxu0 0.0
          %978 = vmatpush1.msra.mxu0 0.0
          %979 = vmatprep.subr.mxu0 0.0
          %980 = vmatpush1.msra.mxu0 0.0
          %981 = vmatprep.mubr.f32.mxu0 0.0
          %v982 = vand.u32 %v604, 4294901760
          %983 = vmatmul.mubr.f32.gmra.mrb[0].mxu0 %v982
          %v984 = vpop.f32.mrb[0].mxu0
          %v985 = vadd.f32 %v742, %v984
          %v986 = vpop.f32.mrb[0].mxu0
          %v987 = vadd.f32 %v744, %v986
          %988 = vmatprep.mubr.f32.mxu0 0.0
          %v989 = vand.u32 %v605, 4294901760
          %990 = vmatmul.mubr.f32.gmra.mrb[0].mxu0 %v989
          %v991 = vpop.f32.mrb[0].mxu0
          %v992 = vadd.f32 %v753, %v991
          %v993 = vpop.f32.mrb[0].mxu0
          %v994 = vadd.f32 %v755, %v993
          %995 = vdwg.mxu0
          %v996 = vand.u32 %v607, 4294901760
          %v997 = vsub.f32 %v607, %v996
          %998 = vmatprep.subr.mxu0 %v997
          %v999 = vand.u32 %v606, 4294901760
          %v1000 = vsub.f32 %v606, %v999
          %1001 = vmatpush1.msra.mxu0 %v1000
          %v1002 = vand.u32 %v609, 4294901760
          %v1003 = vsub.f32 %v609, %v1002
          %1004 = vmatprep.subr.mxu0 %v1003
          %v1005 = vand.u32 %v608, 4294901760
          %v1006 = vsub.f32 %v608, %v1005
          %1007 = vmatpush1.msra.mxu0 %v1006
          %v1008 = vand.u32 %v611, 4294901760
          %v1009 = vsub.f32 %v611, %v1008
          %1010 = vmatprep.subr.mxu0 %v1009
          %v1011 = vand.u32 %v610, 4294901760
          %v1012 = vsub.f32 %v610, %v1011
          %1013 = vmatpush1.msra.mxu0 %v1012
          %v1014 = vand.u32 %v613, 4294901760
          %v1015 = vsub.f32 %v613, %v1014
          %1016 = vmatprep.subr.mxu0 %v1015
          %v1017 = vand.u32 %v612, 4294901760
          %v1018 = vsub.f32 %v612, %v1017
          %1019 = vmatpush1.msra.mxu0 %v1018
          %v1020 = vand.u32 %v615, 4294901760
          %v1021 = vsub.f32 %v615, %v1020
          %1022 = vmatprep.subr.mxu0 %v1021
          %v1023 = vand.u32 %v614, 4294901760
          %v1024 = vsub.f32 %v614, %v1023
          %1025 = vmatpush1.msra.mxu0 %v1024
          %v1026 = vand.u32 %v617, 4294901760
          %v1027 = vsub.f32 %v617, %v1026
          %1028 = vmatprep.subr.mxu0 %v1027
          %v1029 = vand.u32 %v616, 4294901760
          %v1030 = vsub.f32 %v616, %v1029
          %1031 = vmatpush1.msra.mxu0 %v1030
          %v1032 = vand.u32 %v619, 4294901760
          %v1033 = vsub.f32 %v619, %v1032
          %1034 = vmatprep.subr.mxu0 %v1033
          %v1035 = vand.u32 %v618, 4294901760
          %v1036 = vsub.f32 %v618, %v1035
          %1037 = vmatpush1.msra.mxu0 %v1036
          %v1038 = vand.u32 %v621, 4294901760
          %v1039 = vsub.f32 %v621, %v1038
          %1040 = vmatprep.subr.mxu0 %v1039
          %v1041 = vand.u32 %v620, 4294901760
          %v1042 = vsub.f32 %v620, %v1041
          %1043 = vmatpush1.msra.mxu0 %v1042
          %v1044 = vand.u32 %v623, 4294901760
          %v1045 = vsub.f32 %v623, %v1044
          %1046 = vmatprep.subr.mxu0 %v1045
          %v1047 = vand.u32 %v622, 4294901760
          %v1048 = vsub.f32 %v622, %v1047
          %1049 = vmatpush1.msra.mxu0 %v1048
          %v1050 = vand.u32 %v625, 4294901760
          %v1051 = vsub.f32 %v625, %v1050
          %1052 = vmatprep.subr.mxu0 %v1051
          %v1053 = vand.u32 %v624, 4294901760
          %v1054 = vsub.f32 %v624, %v1053
          %1055 = vmatpush1.msra.mxu0 %v1054
          %v1056 = vand.u32 %v627, 4294901760
          %v1057 = vsub.f32 %v627, %v1056
          %1058 = vmatprep.subr.mxu0 %v1057
          %v1059 = vand.u32 %v626, 4294901760
          %v1060 = vsub.f32 %v626, %v1059
          %1061 = vmatpush1.msra.mxu0 %v1060
          %v1062 = vand.u32 %v629, 4294901760
          %v1063 = vsub.f32 %v629, %v1062
          %1064 = vmatprep.subr.mxu0 %v1063
          %v1065 = vand.u32 %v628, 4294901760
          %v1066 = vsub.f32 %v628, %v1065
          %1067 = vmatpush1.msra.mxu0 %v1066
          %v1068 = vand.u32 %v631, 4294901760
          %v1069 = vsub.f32 %v631, %v1068
          %1070 = vmatprep.subr.mxu0 %v1069
          %v1071 = vand.u32 %v630, 4294901760
          %v1072 = vsub.f32 %v630, %v1071
          %1073 = vmatpush1.msra.mxu0 %v1072
          %v1074 = vand.u32 %v633, 4294901760
          %v1075 = vsub.f32 %v633, %v1074
          %1076 = vmatprep.subr.mxu0 %v1075
          %v1077 = vand.u32 %v632, 4294901760
          %v1078 = vsub.f32 %v632, %v1077
          %1079 = vmatpush1.msra.mxu0 %v1078
          %v1080 = vand.u32 %v635, 4294901760
          %v1081 = vsub.f32 %v635, %v1080
          %1082 = vmatprep.subr.mxu0 %v1081
          %v1083 = vand.u32 %v634, 4294901760
          %v1084 = vsub.f32 %v634, %v1083
          %1085 = vmatpush1.msra.mxu0 %v1084
          %v1086 = vand.u32 %v637, 4294901760
          %v1087 = vsub.f32 %v637, %v1086
          %1088 = vmatprep.subr.mxu0 %v1087
          %v1089 = vand.u32 %v636, 4294901760
          %v1090 = vsub.f32 %v636, %v1089
          %1091 = vmatpush1.msra.mxu0 %v1090
          %1092 = vmatprep.subr.mxu0 0.0
          %1093 = vmatpush1.msra.mxu0 0.0
          %1094 = vmatprep.subr.mxu0 0.0
          %1095 = vmatpush1.msra.mxu0 0.0
          %1096 = vmatprep.subr.mxu0 0.0
          %1097 = vmatpush1.msra.mxu0 0.0
          %1098 = vmatprep.subr.mxu0 0.0
          %1099 = vmatpush1.msra.mxu0 0.0
          %1100 = vmatprep.subr.mxu0 0.0
          %1101 = vmatpush1.msra.mxu0 0.0
          %1102 = vmatprep.subr.mxu0 0.0
          %1103 = vmatpush1.msra.mxu0 0.0
          %1104 = vmatprep.subr.mxu0 0.0
          %1105 = vmatpush1.msra.mxu0 0.0
          %1106 = vmatprep.subr.mxu0 0.0
          %1107 = vmatpush1.msra.mxu0 0.0
          %1108 = vmatprep.subr.mxu0 0.0
          %1109 = vmatpush1.msra.mxu0 0.0
          %1110 = vmatprep.subr.mxu0 0.0
          %1111 = vmatpush1.msra.mxu0 0.0
          %1112 = vmatprep.subr.mxu0 0.0
          %1113 = vmatpush1.msra.mxu0 0.0
          %1114 = vmatprep.subr.mxu0 0.0
          %1115 = vmatpush1.msra.mxu0 0.0
          %1116 = vmatprep.subr.mxu0 0.0
          %1117 = vmatpush1.msra.mxu0 0.0
          %1118 = vmatprep.subr.mxu0 0.0
          %1119 = vmatpush1.msra.mxu0 0.0
          %1120 = vmatprep.subr.mxu0 0.0
          %1121 = vmatpush1.msra.mxu0 0.0
          %1122 = vmatprep.subr.mxu0 0.0
          %1123 = vmatpush1.msra.mxu0 0.0
          %1124 = vmatprep.mubr.f32.mxu0 0.0
          %v1125 = vand.u32 %v604, 4294901760
          %v1126 = vsub.f32 %v604, %v1125
          %1127 = vmatmul.mubr.f32.gmra.mrb[0].mxu0 %v1126
          %v1128 = vpop.f32.mrb[0].mxu0
          %v1129 = vadd.f32 %v985, %v1128
          %v1130 = vpop.f32.mrb[0].mxu0
          %v1131 = vadd.f32 %v987, %v1130
          %1132 = vmatprep.mubr.f32.mxu0 0.0
          %v1133 = vand.u32 %v605, 4294901760
          %v1134 = vsub.f32 %v605, %v1133
          %1135 = vmatmul.mubr.f32.gmra.mrb[0].mxu0 %v1134
          %v1136 = vpop.f32.mrb[0].mxu0
          %v1137 = vadd.f32 %v992, %v1136
          %v1138 = vpop.f32.mrb[0].mxu0
          %v1139 = vadd.f32 %v994, %v1138
          %1140 = vdwg.mxu0
          %v1141 = vand.u32 %v607, 4294901760
          %1142 = vmatprep.subr.mxu0 %v1141
          %v1143 = vand.u32 %v606, 4294901760
          %1144 = vmatpush1.msra.mxu0 %v1143
          %v1145 = vand.u32 %v609, 4294901760
          %1146 = vmatprep.subr.mxu0 %v1145
          %v1147 = vand.u32 %v608, 4294901760
          %1148 = vmatpush1.msra.mxu0 %v1147
          %v1149 = vand.u32 %v611, 4294901760
          %1150 = vmatprep.subr.mxu0 %v1149
          %v1151 = vand.u32 %v610, 4294901760
          %1152 = vmatpush1.msra.mxu0 %v1151
          %v1153 = vand.u32 %v613, 4294901760
          %1154 = vmatprep.subr.mxu0 %v1153
          %v1155 = vand.u32 %v612, 4294901760
          %1156 = vmatpush1.msra.mxu0 %v1155
          %v1157 = vand.u32 %v615, 4294901760
          %1158 = vmatprep.subr.mxu0 %v1157
          %v1159 = vand.u32 %v614, 4294901760
          %1160 = vmatpush1.msra.mxu0 %v1159
          %v1161 = vand.u32 %v617, 4294901760
          %1162 = vmatprep.subr.mxu0 %v1161
          %v1163 = vand.u32 %v616, 4294901760
          %1164 = vmatpush1.msra.mxu0 %v1163
          %v1165 = vand.u32 %v619, 4294901760
          %1166 = vmatprep.subr.mxu0 %v1165
          %v1167 = vand.u32 %v618, 4294901760
          %1168 = vmatpush1.msra.mxu0 %v1167
          %v1169 = vand.u32 %v621, 4294901760
          %1170 = vmatprep.subr.mxu0 %v1169
          %v1171 = vand.u32 %v620, 4294901760
          %1172 = vmatpush1.msra.mxu0 %v1171
          %v1173 = vand.u32 %v623, 4294901760
          %1174 = vmatprep.subr.mxu0 %v1173
          %v1175 = vand.u32 %v622, 4294901760
          %1176 = vmatpush1.msra.mxu0 %v1175
          %v1177 = vand.u32 %v625, 4294901760
          %1178 = vmatprep.subr.mxu0 %v1177
          %v1179 = vand.u32 %v624, 4294901760
          %1180 = vmatpush1.msra.mxu0 %v1179
          %v1181 = vand.u32 %v627, 4294901760
          %1182 = vmatprep.subr.mxu0 %v1181
          %v1183 = vand.u32 %v626, 4294901760
          %1184 = vmatpush1.msra.mxu0 %v1183
          %v1185 = vand.u32 %v629, 4294901760
          %1186 = vmatprep.subr.mxu0 %v1185
          %v1187 = vand.u32 %v628, 4294901760
          %1188 = vmatpush1.msra.mxu0 %v1187
          %v1189 = vand.u32 %v631, 4294901760
          %1190 = vmatprep.subr.mxu0 %v1189
          %v1191 = vand.u32 %v630, 4294901760
          %1192 = vmatpush1.msra.mxu0 %v1191
          %v1193 = vand.u32 %v633, 4294901760
          %1194 = vmatprep.subr.mxu0 %v1193
          %v1195 = vand.u32 %v632, 4294901760
          %1196 = vmatpush1.msra.mxu0 %v1195
          %v1197 = vand.u32 %v635, 4294901760
          %1198 = vmatprep.subr.mxu0 %v1197
          %v1199 = vand.u32 %v634, 4294901760
          %1200 = vmatpush1.msra.mxu0 %v1199
          %v1201 = vand.u32 %v637, 4294901760
          %1202 = vmatprep.subr.mxu0 %v1201
          %v1203 = vand.u32 %v636, 4294901760
          %1204 = vmatpush1.msra.mxu0 %v1203
          %1205 = vmatprep.subr.mxu0 0.0
          %1206 = vmatpush1.msra.mxu0 0.0
          %1207 = vmatprep.subr.mxu0 0.0
          %1208 = vmatpush1.msra.mxu0 0.0
          %1209 = vmatprep.subr.mxu0 0.0
          %1210 = vmatpush1.msra.mxu0 0.0
          %1211 = vmatprep.subr.mxu0 0.0
          %1212 = vmatpush1.msra.mxu0 0.0
          %1213 = vmatprep.subr.mxu0 0.0
          %1214 = vmatpush1.msra.mxu0 0.0
          %1215 = vmatprep.subr.mxu0 0.0
          %1216 = vmatpush1.msra.mxu0 0.0
          %1217 = vmatprep.subr.mxu0 0.0
          %1218 = vmatpush1.msra.mxu0 0.0
          %1219 = vmatprep.subr.mxu0 0.0
          %1220 = vmatpush1.msra.mxu0 0.0
          %1221 = vmatprep.subr.mxu0 0.0
          %1222 = vmatpush1.msra.mxu0 0.0
          %1223 = vmatprep.subr.mxu0 0.0
          %1224 = vmatpush1.msra.mxu0 0.0
          %1225 = vmatprep.subr.mxu0 0.0
          %1226 = vmatpush1.msra.mxu0 0.0
          %1227 = vmatprep.subr.mxu0 0.0
          %1228 = vmatpush1.msra.mxu0 0.0
          %1229 = vmatprep.subr.mxu0 0.0
          %1230 = vmatpush1.msra.mxu0 0.0
          %1231 = vmatprep.subr.mxu0 0.0
          %1232 = vmatpush1.msra.mxu0 0.0
          %1233 = vmatprep.subr.mxu0 0.0
          %1234 = vmatpush1.msra.mxu0 0.0
          %1235 = vmatprep.subr.mxu0 0.0
          %1236 = vmatpush1.msra.mxu0 0.0
          %1237 = vmatprep.mubr.f32.mxu0 0.0
          %v1238 = vand.u32 %v604, 4294901760
          %v1239 = vsub.f32 %v604, %v1238
          %v1240 = vand.u32 %v1239, 4294901760
          %1241 = vmatmul.mubr.f32.gmra.mrb[0].mxu0 %v1240
          %v1242 = vpop.f32.mrb[0].mxu0
          %v1243 = vadd.f32 %v1129, %v1242
          %v1244 = vpop.f32.mrb[0].mxu0
          %v1245 = vadd.f32 %v1131, %v1244
          %1246 = vmatprep.mubr.f32.mxu0 0.0
          %v1247 = vand.u32 %v605, 4294901760
          %v1248 = vsub.f32 %v605, %v1247
          %v1249 = vand.u32 %v1248, 4294901760
          %1250 = vmatmul.mubr.f32.gmra.mrb[0].mxu0 %v1249
          %v1251 = vpop.f32.mrb[0].mxu0
          %v1252 = vadd.f32 %v1137, %v1251
          %v1253 = vpop.f32.mrb[0].mxu0
          %v1254 = vadd.f32 %v1139, %v1253
          %1255 = vdwg.mxu0
          %v1256 = vand.u32 %v607, 4294901760
          %v1257 = vsub.f32 %v607, %v1256
          %v1258 = vand.u32 %v1257, 4294901760
          %1259 = vmatprep.subr.mxu0 %v1258
          %v1260 = vand.u32 %v606, 4294901760
          %v1261 = vsub.f32 %v606, %v1260
          %v1262 = vand.u32 %v1261, 4294901760
          %1263 = vmatpush1.msra.mxu0 %v1262
          %v1264 = vand.u32 %v609, 4294901760
          %v1265 = vsub.f32 %v609, %v1264
          %v1266 = vand.u32 %v1265, 4294901760
          %1267 = vmatprep.subr.mxu0 %v1266
          %v1268 = vand.u32 %v608, 4294901760
          %v1269 = vsub.f32 %v608, %v1268
          %v1270 = vand.u32 %v1269, 4294901760
          %1271 = vmatpush1.msra.mxu0 %v1270
          %v1272 = vand.u32 %v611, 4294901760
          %v1273 = vsub.f32 %v611, %v1272
          %v1274 = vand.u32 %v1273, 4294901760
          %1275 = vmatprep.subr.mxu0 %v1274
          %v1276 = vand.u32 %v610, 4294901760
          %v1277 = vsub.f32 %v610, %v1276
          %v1278 = vand.u32 %v1277, 4294901760
          %1279 = vmatpush1.msra.mxu0 %v1278
          %v1280 = vand.u32 %v613, 4294901760
          %v1281 = vsub.f32 %v613, %v1280
          %v1282 = vand.u32 %v1281, 4294901760
          %1283 = vmatprep.subr.mxu0 %v1282
          %v1284 = vand.u32 %v612, 4294901760
          %v1285 = vsub.f32 %v612, %v1284
          %v1286 = vand.u32 %v1285, 4294901760
          %1287 = vmatpush1.msra.mxu0 %v1286
          %v1288 = vand.u32 %v615, 4294901760
          %v1289 = vsub.f32 %v615, %v1288
          %v1290 = vand.u32 %v1289, 4294901760
          %1291 = vmatprep.subr.mxu0 %v1290
          %v1292 = vand.u32 %v614, 4294901760
          %v1293 = vsub.f32 %v614, %v1292
          %v1294 = vand.u32 %v1293, 4294901760
          %1295 = vmatpush1.msra.mxu0 %v1294
          %v1296 = vand.u32 %v617, 4294901760
          %v1297 = vsub.f32 %v617, %v1296
          %v1298 = vand.u32 %v1297, 4294901760
          %1299 = vmatprep.subr.mxu0 %v1298
          %v1300 = vand.u32 %v616, 4294901760
          %v1301 = vsub.f32 %v616, %v1300
          %v1302 = vand.u32 %v1301, 4294901760
          %1303 = vmatpush1.msra.mxu0 %v1302
          %v1304 = vand.u32 %v619, 4294901760
          %v1305 = vsub.f32 %v619, %v1304
          %v1306 = vand.u32 %v1305, 4294901760
          %1307 = vmatprep.subr.mxu0 %v1306
          %v1308 = vand.u32 %v618, 4294901760
          %v1309 = vsub.f32 %v618, %v1308
          %v1310 = vand.u32 %v1309, 4294901760
          %1311 = vmatpush1.msra.mxu0 %v1310
          %v1312 = vand.u32 %v621, 4294901760
          %v1313 = vsub.f32 %v621, %v1312
          %v1314 = vand.u32 %v1313, 4294901760
          %1315 = vmatprep.subr.mxu0 %v1314
          %v1316 = vand.u32 %v620, 4294901760
          %v1317 = vsub.f32 %v620, %v1316
          %v1318 = vand.u32 %v1317, 4294901760
          %1319 = vmatpush1.msra.mxu0 %v1318
          %v1320 = vand.u32 %v623, 4294901760
          %v1321 = vsub.f32 %v623, %v1320
          %v1322 = vand.u32 %v1321, 4294901760
          %1323 = vmatprep.subr.mxu0 %v1322
          %v1324 = vand.u32 %v622, 4294901760
          %v1325 = vsub.f32 %v622, %v1324
          %v1326 = vand.u32 %v1325, 4294901760
          %1327 = vmatpush1.msra.mxu0 %v1326
          %v1328 = vand.u32 %v625, 4294901760
          %v1329 = vsub.f32 %v625, %v1328
          %v1330 = vand.u32 %v1329, 4294901760
          %1331 = vmatprep.subr.mxu0 %v1330
          %v1332 = vand.u32 %v624, 4294901760
          %v1333 = vsub.f32 %v624, %v1332
          %v1334 = vand.u32 %v1333, 4294901760
          %1335 = vmatpush1.msra.mxu0 %v1334
          %v1336 = vand.u32 %v627, 4294901760
          %v1337 = vsub.f32 %v627, %v1336
          %v1338 = vand.u32 %v1337, 4294901760
          %1339 = vmatprep.subr.mxu0 %v1338
          %v1340 = vand.u32 %v626, 4294901760
          %v1341 = vsub.f32 %v626, %v1340
          %v1342 = vand.u32 %v1341, 4294901760
          %1343 = vmatpush1.msra.mxu0 %v1342
          %v1344 = vand.u32 %v629, 4294901760
          %v1345 = vsub.f32 %v629, %v1344
          %v1346 = vand.u32 %v1345, 4294901760
          %1347 = vmatprep.subr.mxu0 %v1346
          %v1348 = vand.u32 %v628, 4294901760
          %v1349 = vsub.f32 %v628, %v1348
          %v1350 = vand.u32 %v1349, 4294901760
          %1351 = vmatpush1.msra.mxu0 %v1350
          %v1352 = vand.u32 %v631, 4294901760
          %v1353 = vsub.f32 %v631, %v1352
          %v1354 = vand.u32 %v1353, 4294901760
          %1355 = vmatprep.subr.mxu0 %v1354
          %v1356 = vand.u32 %v630, 4294901760
          %v1357 = vsub.f32 %v630, %v1356
          %v1358 = vand.u32 %v1357, 4294901760
          %1359 = vmatpush1.msra.mxu0 %v1358
          %v1360 = vand.u32 %v633, 4294901760
          %v1361 = vsub.f32 %v633, %v1360
          %v1362 = vand.u32 %v1361, 4294901760
          %1363 = vmatprep.subr.mxu0 %v1362
          %v1364 = vand.u32 %v632, 4294901760
          %v1365 = vsub.f32 %v632, %v1364
          %v1366 = vand.u32 %v1365, 4294901760
          %1367 = vmatpush1.msra.mxu0 %v1366
          %v1368 = vand.u32 %v635, 4294901760
          %v1369 = vsub.f32 %v635, %v1368
          %v1370 = vand.u32 %v1369, 4294901760
          %1371 = vmatprep.subr.mxu0 %v1370
          %v1372 = vand.u32 %v634, 4294901760
          %v1373 = vsub.f32 %v634, %v1372
          %v1374 = vand.u32 %v1373, 4294901760
          %1375 = vmatpush1.msra.mxu0 %v1374
          %v1376 = vand.u32 %v637, 4294901760
          %v1377 = vsub.f32 %v637, %v1376
          %v1378 = vand.u32 %v1377, 4294901760
          %1379 = vmatprep.subr.mxu0 %v1378
          %v1380 = vand.u32 %v636, 4294901760
          %v1381 = vsub.f32 %v636, %v1380
          %v1382 = vand.u32 %v1381, 4294901760
          %1383 = vmatpush1.msra.mxu0 %v1382
          %1384 = vmatprep.subr.mxu0 0.0
          %1385 = vmatpush1.msra.mxu0 0.0
          %1386 = vmatprep.subr.mxu0 0.0
          %1387 = vmatpush1.msra.mxu0 0.0
          %1388 = vmatprep.subr.mxu0 0.0
          %1389 = vmatpush1.msra.mxu0 0.0
          %1390 = vmatprep.subr.mxu0 0.0
          %1391 = vmatpush1.msra.mxu0 0.0
          %1392 = vmatprep.subr.mxu0 0.0
          %1393 = vmatpush1.msra.mxu0 0.0
          %1394 = vmatprep.subr.mxu0 0.0
          %1395 = vmatpush1.msra.mxu0 0.0
          %1396 = vmatprep.subr.mxu0 0.0
          %1397 = vmatpush1.msra.mxu0 0.0
          %1398 = vmatprep.subr.mxu0 0.0
          %1399 = vmatpush1.msra.mxu0 0.0
          %1400 = vmatprep.subr.mxu0 0.0
          %1401 = vmatpush1.msra.mxu0 0.0
          %1402 = vmatprep.subr.mxu0 0.0
          %1403 = vmatpush1.msra.mxu0 0.0
          %1404 = vmatprep.subr.mxu0 0.0
          %1405 = vmatpush1.msra.mxu0 0.0
          %1406 = vmatprep.subr.mxu0 0.0
          %1407 = vmatpush1.msra.mxu0 0.0
          %1408 = vmatprep.subr.mxu0 0.0
          %1409 = vmatpush1.msra.mxu0 0.0
          %1410 = vmatprep.subr.mxu0 0.0
          %1411 = vmatpush1.msra.mxu0 0.0
          %1412 = vmatprep.subr.mxu0 0.0
          %1413 = vmatpush1.msra.mxu0 0.0
          %1414 = vmatprep.subr.mxu0 0.0
          %1415 = vmatpush1.msra.mxu0 0.0
          %1416 = vmatprep.mubr.f32.mxu0 0.0
          %v1417 = vand.u32 %v604, 4294901760
          %1418 = vmatmul.mubr.f32.gmra.mrb[0].mxu0 %v1417
          %v1419 = vpop.f32.mrb[0].mxu0
          %v1420 = vadd.f32 %v1243, %v1419
          %v1421 = vpop.f32.mrb[0].mxu0
          %v1422 = vadd.f32 %v1245, %v1421
          %1423 = vmatprep.mubr.f32.mxu0 0.0
          %v1424 = vand.u32 %v605, 4294901760
          %1425 = vmatmul.mubr.f32.gmra.mrb[0].mxu0 %v1424
          %v1426 = vpop.f32.mrb[0].mxu0
          %v1427 = vadd.f32 %v1252, %v1426
          %v1428 = vpop.f32.mrb[0].mxu0
          %v1429 = vadd.f32 %v1254, %v1428
          %1430 = vdwg.mxu0
          %v1431 = vand.u32 %v607, 4294901760
          %1432 = vmatprep.subr.mxu0 %v1431
          %v1433 = vand.u32 %v606, 4294901760
          %1434 = vmatpush1.msra.mxu0 %v1433
          %v1435 = vand.u32 %v609, 4294901760
          %1436 = vmatprep.subr.mxu0 %v1435
          %v1437 = vand.u32 %v608, 4294901760
          %1438 = vmatpush1.msra.mxu0 %v1437
          %v1439 = vand.u32 %v611, 4294901760
          %1440 = vmatprep.subr.mxu0 %v1439
          %v1441 = vand.u32 %v610, 4294901760
          %1442 = vmatpush1.msra.mxu0 %v1441
          %v1443 = vand.u32 %v613, 4294901760
          %1444 = vmatprep.subr.mxu0 %v1443
          %v1445 = vand.u32 %v612, 4294901760
          %1446 = vmatpush1.msra.mxu0 %v1445
          %v1447 = vand.u32 %v615, 4294901760
          %1448 = vmatprep.subr.mxu0 %v1447
          %v1449 = vand.u32 %v614, 4294901760
          %1450 = vmatpush1.msra.mxu0 %v1449
          %v1451 = vand.u32 %v617, 4294901760
          %1452 = vmatprep.subr.mxu0 %v1451
          %v1453 = vand.u32 %v616, 4294901760
          %1454 = vmatpush1.msra.mxu0 %v1453
          %v1455 = vand.u32 %v619, 4294901760
          %1456 = vmatprep.subr.mxu0 %v1455
          %v1457 = vand.u32 %v618, 4294901760
          %1458 = vmatpush1.msra.mxu0 %v1457
          %v1459 = vand.u32 %v621, 4294901760
          %1460 = vmatprep.subr.mxu0 %v1459
          %v1461 = vand.u32 %v620, 4294901760
          %1462 = vmatpush1.msra.mxu0 %v1461
          %v1463 = vand.u32 %v623, 4294901760
          %1464 = vmatprep.subr.mxu0 %v1463
          %v1465 = vand.u32 %v622, 4294901760
          %1466 = vmatpush1.msra.mxu0 %v1465
          %v1467 = vand.u32 %v625, 4294901760
          %1468 = vmatprep.subr.mxu0 %v1467
          %v1469 = vand.u32 %v624, 4294901760
          %1470 = vmatpush1.msra.mxu0 %v1469
          %v1471 = vand.u32 %v627, 4294901760
          %1472 = vmatprep.subr.mxu0 %v1471
          %v1473 = vand.u32 %v626, 4294901760
          %1474 = vmatpush1.msra.mxu0 %v1473
          %v1475 = vand.u32 %v629, 4294901760
          %1476 = vmatprep.subr.mxu0 %v1475
          %v1477 = vand.u32 %v628, 4294901760
          %1478 = vmatpush1.msra.mxu0 %v1477
          %v1479 = vand.u32 %v631, 4294901760
          %1480 = vmatprep.subr.mxu0 %v1479
          %v1481 = vand.u32 %v630, 4294901760
          %1482 = vmatpush1.msra.mxu0 %v1481
          %v1483 = vand.u32 %v633, 4294901760
          %1484 = vmatprep.subr.mxu0 %v1483
          %v1485 = vand.u32 %v632, 4294901760
          %1486 = vmatpush1.msra.mxu0 %v1485
          %v1487 = vand.u32 %v635, 4294901760
          %1488 = vmatprep.subr.mxu0 %v1487
          %v1489 = vand.u32 %v634, 4294901760
          %1490 = vmatpush1.msra.mxu0 %v1489
          %v1491 = vand.u32 %v637, 4294901760
          %1492 = vmatprep.subr.mxu0 %v1491
          %v1493 = vand.u32 %v636, 4294901760
          %1494 = vmatpush1.msra.mxu0 %v1493
          %1495 = vmatprep.subr.mxu0 0.0
          %1496 = vmatpush1.msra.mxu0 0.0
          %1497 = vmatprep.subr.mxu0 0.0
          %1498 = vmatpush1.msra.mxu0 0.0
          %1499 = vmatprep.subr.mxu0 0.0
          %1500 = vmatpush1.msra.mxu0 0.0
          %1501 = vmatprep.subr.mxu0 0.0
          %1502 = vmatpush1.msra.mxu0 0.0
          %1503 = vmatprep.subr.mxu0 0.0
          %1504 = vmatpush1.msra.mxu0 0.0
          %1505 = vmatprep.subr.mxu0 0.0
          %1506 = vmatpush1.msra.mxu0 0.0
          %1507 = vmatprep.subr.mxu0 0.0
          %1508 = vmatpush1.msra.mxu0 0.0
          %1509 = vmatprep.subr.mxu0 0.0
          %1510 = vmatpush1.msra.mxu0 0.0
          %1511 = vmatprep.subr.mxu0 0.0
          %1512 = vmatpush1.msra.mxu0 0.0
          %1513 = vmatprep.subr.mxu0 0.0
          %1514 = vmatpush1.msra.mxu0 0.0
          %1515 = vmatprep.subr.mxu0 0.0
          %1516 = vmatpush1.msra.mxu0 0.0
          %1517 = vmatprep.subr.mxu0 0.0
          %1518 = vmatpush1.msra.mxu0 0.0
          %1519 = vmatprep.subr.mxu0 0.0
          %1520 = vmatpush1.msra.mxu0 0.0
          %1521 = vmatprep.subr.mxu0 0.0
          %1522 = vmatpush1.msra.mxu0 0.0
          %1523 = vmatprep.subr.mxu0 0.0
          %1524 = vmatpush1.msra.mxu0 0.0
          %1525 = vmatprep.subr.mxu0 0.0
          %1526 = vmatpush1.msra.mxu0 0.0
          %1527 = vmatprep.mubr.f32.mxu0 0.0
          %v1528 = vand.u32 %v604, 4294901760
          %1529 = vmatmul.mubr.f32.gmra.mrb[0].mxu0 %v1528
          %v1530 = vpop.f32.mrb[0].mxu0
          %v1531 = vadd.f32 %v1420, %v1530
          %v1532 = vpop.f32.mrb[0].mxu0
          %v1533 = vadd.f32 %v1422, %v1532
          %1534 = vmatprep.mubr.f32.mxu0 0.0
          %v1535 = vand.u32 %v605, 4294901760
          %1536 = vmatmul.mubr.f32.gmra.mrb[0].mxu0 %v1535
          %v1537 = vpop.f32.mrb[0].mxu0
          %v1538 = vadd.f32 %v1427, %v1537
          %v1539 = vpop.f32.mrb[0].mxu0
          %v1540 = vadd.f32 %v1429, %v1539
          %1541 = vdwg.mxu0
          %vm1542 = vcmp.gt.f32.partialorder %v1531, 0.0
          %vm1543 = vcmp.gt.f32.partialorder %v1538, 0.0
          %v1544 = vadd.f32 %v1531, 1.0
          %v1545 = vadd.f32 %v1538, 1.0
          %v1546 = vmin.f32 %v1531, 0.0
          %v1547 = vmin.f32 %v1538, 0.0
          %v1548 = vmul.f32 %v1546, 1.442695
          %v1549 = vpow.pop %v1548
          %v1550 = vmul.f32 %v1547, 1.442695
          %v1551 = vpow.pop %v1550
          %v1552 = vsel %vm1542, %v1544, %v1549
          %v1553 = vsel %vm1543, %v1545, %v1551
          %1554 = vxpose.xlu0.b32.start [1/16] %v1552, 128
          %1555 = vxpose.xlu0.b32.cont [2/16] %v1553, 128
          %1556 = vxpose.xlu0.b32.cont [3/16] 0.0, 128
          %1557 = vxpose.xlu0.b32.cont [4/16] 0.0, 128
          %1558 = vxpose.xlu0.b32.cont [5/16] 0.0, 128
          %1559 = vxpose.xlu0.b32.cont [6/16] 0.0, 128
          %1560 = vxpose.xlu0.b32.cont [7/16] 0.0, 128
          %1561 = vxpose.xlu0.b32.cont [8/16] 0.0, 128
          %1562 = vxpose.xlu0.b32.cont [9/16] 0.0, 128
          %1563 = vxpose.xlu0.b32.cont [10/16] 0.0, 128
          %1564 = vxpose.xlu0.b32.cont [11/16] 0.0, 128
          %1565 = vxpose.xlu0.b32.cont [12/16] 0.0, 128
          %1566 = vxpose.xlu0.b32.cont [13/16] 0.0, 128
          %1567 = vxpose.xlu0.b32.cont [14/16] 0.0, 128
          %1568 = vxpose.xlu0.b32.cont [15/16] 0.0, 128
          %1569 = vxpose.xlu0.b32.end [16/16] 0.0, 128
          %v1570 = vpop.trf.xlu0
          %v1571 = vpop.trf.xlu0
          %v1572 = vpop.trf.xlu0
          %v1573 = vpop.trf.xlu0
          %v1574 = vpop.trf.xlu0
          %v1575 = vpop.trf.xlu0
          %v1576 = vpop.trf.xlu0
          %v1577 = vpop.trf.xlu0
          %v1578 = vpop.trf.xlu0
          %v1579 = vpop.trf.xlu0
          %v1580 = vpop.trf.xlu0
          %v1581 = vpop.trf.xlu0
          %v1582 = vpop.trf.xlu0
          %v1583 = vpop.trf.xlu0
          %v1584 = vpop.trf.xlu0
          %v1585 = vpop.trf.xlu0
          %vm1586 = vcmask 130048
          %v1588 = vsel %vm1586, %v1570, 0
          %v1591 = vsel %vm1586, %v1571, 0
          %v1594 = vsel %vm1586, %v1572, 0
          %v1597 = vsel %vm1586, %v1573, 0
          %v1600 = vsel %vm1586, %v1574, 0
          %v1603 = vsel %vm1586, %v1575, 0
          %v1606 = vsel %vm1586, %v1576, 0
          %v1609 = vsel %vm1586, %v1577, 0
          %v1612 = vsel %vm1586, %v1578, 0
          %v1615 = vsel %vm1586, %v1579, 0
          %v1618 = vsel %vm1586, %v1580, 0
          %v1621 = vsel %vm1586, %v1581, 0
          %v1624 = vsel %vm1586, %v1582, 0
          %v1627 = vsel %vm1586, %v1583, 0
          %v1630 = vsel %vm1586, %v1584, 0
          %v1633 = vsel %vm1586, %v1585, 0
          %1635 = vmatprep.subr.mxu0 0.0
          %v1636 = vand.u32 %v1533, 4294901760
          %1637 = vmatpush1.msra.mxu0 %v1636
          %1638 = vmatprep.subr.mxu0 0.0
          %v1639 = vand.u32 %v1540, 4294901760
          %1640 = vmatpush1.msra.mxu0 %v1639
          %1641 = vmatprep.subr.mxu0 0.0
          %1642 = vmatpush1.msra.mxu0 0.0
          %1643 = vmatprep.subr.mxu0 0.0
          %1644 = vmatpush1.msra.mxu0 0.0
          %1645 = vmatprep.subr.mxu0 0.0
          %1646 = vmatpush1.msra.mxu0 0.0
          %1647 = vmatprep.subr.mxu0 0.0
          %1648 = vmatpush1.msra.mxu0 0.0
          %1649 = vmatprep.subr.mxu0 0.0
          %1650 = vmatpush1.msra.mxu0 0.0
          %1651 = vmatprep.subr.mxu0 0.0
          %1652 = vmatpush1.msra.mxu0 0.0
          %1653 = vmatprep.subr.mxu0 0.0
          %1654 = vmatpush1.msra.mxu0 0.0
          %1655 = vmatprep.subr.mxu0 0.0
          %1656 = vmatpush1.msra.mxu0 0.0
          %1657 = vmatprep.subr.mxu0 0.0
          %1658 = vmatpush1.msra.mxu0 0.0
          %1659 = vmatprep.subr.mxu0 0.0
          %1660 = vmatpush1.msra.mxu0 0.0
          %1661 = vmatprep.subr.mxu0 0.0
          %1662 = vmatpush1.msra.mxu0 0.0
          %1663 = vmatprep.subr.mxu0 0.0
          %1664 = vmatpush1.msra.mxu0 0.0
          %1665 = vmatprep.subr.mxu0 0.0
          %1666 = vmatpush1.msra.mxu0 0.0
          %1667 = vmatprep.subr.mxu0 0.0
          %1668 = vmatpush1.msra.mxu0 0.0
          %1669 = vmatprep.subr.mxu0 0.0
          %1670 = vmatpush1.msra.mxu0 0.0
          %1671 = vmatprep.subr.mxu0 0.0
          %1672 = vmatpush1.msra.mxu0 0.0
          %1673 = vmatprep.subr.mxu0 0.0
          %1674 = vmatpush1.msra.mxu0 0.0
          %1675 = vmatprep.subr.mxu0 0.0
          %1676 = vmatpush1.msra.mxu0 0.0
          %1677 = vmatprep.subr.mxu0 0.0
          %1678 = vmatpush1.msra.mxu0 0.0
          %1679 = vmatprep.subr.mxu0 0.0
          %1680 = vmatpush1.msra.mxu0 0.0
          %1681 = vmatprep.subr.mxu0 0.0
          %1682 = vmatpush1.msra.mxu0 0.0
          %1683 = vmatprep.subr.mxu0 0.0
          %1684 = vmatpush1.msra.mxu0 0.0
          %1685 = vmatprep.subr.mxu0 0.0
          %1686 = vmatpush1.msra.mxu0 0.0
          %1687 = vmatprep.subr.mxu0 0.0
          %1688 = vmatpush1.msra.mxu0 0.0
          %1689 = vmatprep.subr.mxu0 0.0
          %1690 = vmatpush1.msra.mxu0 0.0
          %1691 = vmatprep.subr.mxu0 0.0
          %1692 = vmatpush1.msra.mxu0 0.0
          %1693 = vmatprep.subr.mxu0 0.0
          %1694 = vmatpush1.msra.mxu0 0.0
          %1695 = vmatprep.subr.mxu0 0.0
          %1696 = vmatpush1.msra.mxu0 0.0
          %1697 = vmatprep.subr.mxu0 0.0
          %1698 = vmatpush1.msra.mxu0 0.0
          %1699 = vmatprep.subr.mxu0 0.0
          %1700 = vmatpush1.msra.mxu0 0.0
          %1701 = vmatprep.mubr.f32.mxu0 0.0
          %v1702 = vand.u32 %v1588, 4294901760
          %v1703 = vsub.f32 %v1588, %v1702
          %v1704 = vand.u32 %v1703, 4294901760
          %v1705 = vsub.f32 %v1703, %v1704
          %v1706 = vand.u32 %v1705, 4294901760
          %1707 = vmatmul.mubr.f32.gmra.mrb[0].mxu0 %v1706
          %v1708 = vpop.f32.mrb[0].mxu0
          %v1709 = vadd.f32 0.0, %v1708
          %v1710 = vpop.f32.mrb[0].mxu0
          %1711 = vmatprep.mubr.f32.mxu0 0.0
          %v1712 = vand.u32 %v1591, 4294901760
          %v1713 = vsub.f32 %v1591, %v1712
          %v1714 = vand.u32 %v1713, 4294901760
          %v1715 = vsub.f32 %v1713, %v1714
          %v1716 = vand.u32 %v1715, 4294901760
          %1717 = vmatmul.mubr.f32.gmra.mrb[0].mxu0 %v1716
          %v1718 = vpop.f32.mrb[0].mxu0
          %v1719 = vadd.f32 0.0, %v1718
          %v1720 = vpop.f32.mrb[0].mxu0
          %1721 = vmatprep.mubr.f32.mxu0 0.0
          %v1722 = vand.u32 %v1594, 4294901760
          %v1723 = vsub.f32 %v1594, %v1722
          %v1724 = vand.u32 %v1723, 4294901760
          %v1725 = vsub.f32 %v1723, %v1724
          %v1726 = vand.u32 %v1725, 4294901760
          %1727 = vmatmul.mubr.f32.gmra.mrb[0].mxu0 %v1726
          %v1728 = vpop.f32.mrb[0].mxu0
          %v1729 = vadd.f32 0.0, %v1728
          %v1730 = vpop.f32.mrb[0].mxu0
          %1731 = vmatprep.mubr.f32.mxu0 0.0
          %v1732 = vand.u32 %v1597, 4294901760
          %v1733 = vsub.f32 %v1597, %v1732
          %v1734 = vand.u32 %v1733, 4294901760
          %v1735 = vsub.f32 %v1733, %v1734
          %v1736 = vand.u32 %v1735, 4294901760
          %1737 = vmatmul.mubr.f32.gmra.mrb[0].mxu0 %v1736
          %v1738 = vpop.f32.mrb[0].mxu0
          %v1739 = vadd.f32 0.0, %v1738
          %v1740 = vpop.f32.mrb[0].mxu0
          %1741 = vmatprep.mubr.f32.mxu0 0.0
          %v1742 = vand.u32 %v1600, 4294901760
          %v1743 = vsub.f32 %v1600, %v1742
          %v1744 = vand.u32 %v1743, 4294901760
          %v1745 = vsub.f32 %v1743, %v1744
          %v1746 = vand.u32 %v1745, 4294901760
          %1747 = vmatmul.mubr.f32.gmra.mrb[0].mxu0 %v1746
          %v1748 = vpop.f32.mrb[0].mxu0
          %v1749 = vadd.f32 0.0, %v1748
          %v1750 = vpop.f32.mrb[0].mxu0
          %1751 = vmatprep.mubr.f32.mxu0 0.0
          %v1752 = vand.u32 %v1603, 4294901760
          %v1753 = vsub.f32 %v1603, %v1752
          %v1754 = vand.u32 %v1753, 4294901760
          %v1755 = vsub.f32 %v1753, %v1754
          %v1756 = vand.u32 %v1755, 4294901760
          %1757 = vmatmul.mubr.f32.gmra.mrb[0].mxu0 %v1756
          %v1758 = vpop.f32.mrb[0].mxu0
          %v1759 = vadd.f32 0.0, %v1758
          %v1760 = vpop.f32.mrb[0].mxu0
          %1761 = vmatprep.mubr.f32.mxu0 0.0
          %v1762 = vand.u32 %v1606, 4294901760
          %v1763 = vsub.f32 %v1606, %v1762
          %v1764 = vand.u32 %v1763, 4294901760
          %v1765 = vsub.f32 %v1763, %v1764
          %v1766 = vand.u32 %v1765, 4294901760
          %1767 = vmatmul.mubr.f32.gmra.mrb[0].mxu0 %v1766
          %v1768 = vpop.f32.mrb[0].mxu0
          %v1769 = vadd.f32 0.0, %v1768
          %v1770 = vpop.f32.mrb[0].mxu0
          %1771 = vmatprep.mubr.f32.mxu0 0.0
          %v1772 = vand.u32 %v1609, 4294901760
          %v1773 = vsub.f32 %v1609, %v1772
          %v1774 = vand.u32 %v1773, 4294901760
          %v1775 = vsub.f32 %v1773, %v1774
          %v1776 = vand.u32 %v1775, 4294901760
          %1777 = vmatmul.mubr.f32.gmra.mrb[0].mxu0 %v1776
          %v1778 = vpop.f32.mrb[0].mxu0
          %v1779 = vadd.f32 0.0, %v1778
          %v1780 = vpop.f32.mrb[0].mxu0
          %1781 = vmatprep.mubr.f32.mxu0 0.0
          %v1782 = vand.u32 %v1612, 4294901760
          %v1783 = vsub.f32 %v1612, %v1782
          %v1784 = vand.u32 %v1783, 4294901760
          %v1785 = vsub.f32 %v1783, %v1784
          %v1786 = vand.u32 %v1785, 4294901760
          %1787 = vmatmul.mubr.f32.gmra.mrb[0].mxu0 %v1786
          %v1788 = vpop.f32.mrb[0].mxu0
          %v1789 = vadd.f32 0.0, %v1788
          %v1790 = vpop.f32.mrb[0].mxu0
          %1791 = vmatprep.mubr.f32.mxu0 0.0
          %v1792 = vand.u32 %v1615, 4294901760
          %v1793 = vsub.f32 %v1615, %v1792
          %v1794 = vand.u32 %v1793, 4294901760
          %v1795 = vsub.f32 %v1793, %v1794
          %v1796 = vand.u32 %v1795, 4294901760
          %1797 = vmatmul.mubr.f32.gmra.mrb[0].mxu0 %v1796
          %v1798 = vpop.f32.mrb[0].mxu0
          %v1799 = vadd.f32 0.0, %v1798
          %v1800 = vpop.f32.mrb[0].mxu0
          %1801 = vmatprep.mubr.f32.mxu0 0.0
          %v1802 = vand.u32 %v1618, 4294901760
          %v1803 = vsub.f32 %v1618, %v1802
          %v1804 = vand.u32 %v1803, 4294901760
          %v1805 = vsub.f32 %v1803, %v1804
          %v1806 = vand.u32 %v1805, 4294901760
          %1807 = vmatmul.mubr.f32.gmra.mrb[0].mxu0 %v1806
          %v1808 = vpop.f32.mrb[0].mxu0
          %v1809 = vadd.f32 0.0, %v1808
          %v1810 = vpop.f32.mrb[0].mxu0
          %1811 = vmatprep.mubr.f32.mxu0 0.0
          %v1812 = vand.u32 %v1621, 4294901760
          %v1813 = vsub.f32 %v1621, %v1812
          %v1814 = vand.u32 %v1813, 4294901760
          %v1815 = vsub.f32 %v1813, %v1814
          %v1816 = vand.u32 %v1815, 4294901760
          %1817 = vmatmul.mubr.f32.gmra.mrb[0].mxu0 %v1816
          %v1818 = vpop.f32.mrb[0].mxu0
          %v1819 = vadd.f32 0.0, %v1818
          %v1820 = vpop.f32.mrb[0].mxu0
          %1821 = vmatprep.mubr.f32.mxu0 0.0
          %v1822 = vand.u32 %v1624, 4294901760
          %v1823 = vsub.f32 %v1624, %v1822
          %v1824 = vand.u32 %v1823, 4294901760
          %v1825 = vsub.f32 %v1823, %v1824
          %v1826 = vand.u32 %v1825, 4294901760
          %1827 = vmatmul.mubr.f32.gmra.mrb[0].mxu0 %v1826
          %v1828 = vpop.f32.mrb[0].mxu0
          %v1829 = vadd.f32 0.0, %v1828
          %v1830 = vpop.f32.mrb[0].mxu0
          %1831 = vmatprep.mubr.f32.mxu0 0.0
          %v1832 = vand.u32 %v1627, 4294901760
          %v1833 = vsub.f32 %v1627, %v1832
          %v1834 = vand.u32 %v1833, 4294901760
          %v1835 = vsub.f32 %v1833, %v1834
          %v1836 = vand.u32 %v1835, 4294901760
          %1837 = vmatmul.mubr.f32.gmra.mrb[0].mxu0 %v1836
          %v1838 = vpop.f32.mrb[0].mxu0
          %v1839 = vadd.f32 0.0, %v1838
          %v1840 = vpop.f32.mrb[0].mxu0
          %1841 = vmatprep.mubr.f32.mxu0 0.0
          %v1842 = vand.u32 %v1630, 4294901760
          %v1843 = vsub.f32 %v1630, %v1842
          %v1844 = vand.u32 %v1843, 4294901760
          %v1845 = vsub.f32 %v1843, %v1844
          %v1846 = vand.u32 %v1845, 4294901760
          %1847 = vmatmul.mubr.f32.gmra.mrb[0].mxu0 %v1846
          %v1848 = vpop.f32.mrb[0].mxu0
          %v1849 = vadd.f32 0.0, %v1848
          %v1850 = vpop.f32.mrb[0].mxu0
          %1851 = vmatprep.mubr.f32.mxu0 0.0
          %v1852 = vand.u32 %v1633, 4294901760
          %v1853 = vsub.f32 %v1633, %v1852
          %v1854 = vand.u32 %v1853, 4294901760
          %v1855 = vsub.f32 %v1853, %v1854
          %v1856 = vand.u32 %v1855, 4294901760
          %1857 = vmatmul.mubr.f32.gmra.mrb[0].mxu0 %v1856
          %v1858 = vpop.f32.mrb[0].mxu0
          %v1859 = vadd.f32 0.0, %v1858
          %v1860 = vpop.f32.mrb[0].mxu0
          %1861 = vdwg.mxu0
          %1862 = vmatprep.subr.mxu0 0.0
          %v1863 = vand.u32 %v1533, 4294901760
          %v1864 = vsub.f32 %v1533, %v1863
          %v1865 = vand.u32 %v1864, 4294901760
          %v1866 = vsub.f32 %v1864, %v1865
          %v1867 = vand.u32 %v1866, 4294901760
          %1868 = vmatpush1.msra.mxu0 %v1867
          %1869 = vmatprep.subr.mxu0 0.0
          %v1870 = vand.u32 %v1540, 4294901760
          %v1871 = vsub.f32 %v1540, %v1870
          %v1872 = vand.u32 %v1871, 4294901760
          %v1873 = vsub.f32 %v1871, %v1872
          %v1874 = vand.u32 %v1873, 4294901760
          %1875 = vmatpush1.msra.mxu0 %v1874
          %1876 = vmatprep.subr.mxu0 0.0
          %1877 = vmatpush1.msra.mxu0 0.0
          %1878 = vmatprep.subr.mxu0 0.0
          %1879 = vmatpush1.msra.mxu0 0.0
          %1880 = vmatprep.subr.mxu0 0.0
          %1881 = vmatpush1.msra.mxu0 0.0
          %1882 = vmatprep.subr.mxu0 0.0
          %1883 = vmatpush1.msra.mxu0 0.0
          %1884 = vmatprep.subr.mxu0 0.0
          %1885 = vmatpush1.msra.mxu0 0.0
          %1886 = vmatprep.subr.mxu0 0.0
          %1887 = vmatpush1.msra.mxu0 0.0
          %1888 = vmatprep.subr.mxu0 0.0
          %1889 = vmatpush1.msra.mxu0 0.0
          %1890 = vmatprep.subr.mxu0 0.0
          %1891 = vmatpush1.msra.mxu0 0.0
          %1892 = vmatprep.subr.mxu0 0.0
          %1893 = vmatpush1.msra.mxu0 0.0
          %1894 = vmatprep.subr.mxu0 0.0
          %1895 = vmatpush1.msra.mxu0 0.0
          %1896 = vmatprep.subr.mxu0 0.0
          %1897 = vmatpush1.msra.mxu0 0.0
          %1898 = vmatprep.subr.mxu0 0.0
          %1899 = vmatpush1.msra.mxu0 0.0
          %1900 = vmatprep.subr.mxu0 0.0
          %1901 = vmatpush1.msra.mxu0 0.0
          %1902 = vmatprep.subr.mxu0 0.0
          %1903 = vmatpush1.msra.mxu0 0.0
          %1904 = vmatprep.subr.mxu0 0.0
          %1905 = vmatpush1.msra.mxu0 0.0
          %1906 = vmatprep.subr.mxu0 0.0
          %1907 = vmatpush1.msra.mxu0 0.0
          %1908 = vmatprep.subr.mxu0 0.0
          %1909 = vmatpush1.msra.mxu0 0.0
          %1910 = vmatprep.subr.mxu0 0.0
          %1911 = vmatpush1.msra.mxu0 0.0
          %1912 = vmatprep.subr.mxu0 0.0
          %1913 = vmatpush1.msra.mxu0 0.0
          %1914 = vmatprep.subr.mxu0 0.0
          %1915 = vmatpush1.msra.mxu0 0.0
          %1916 = vmatprep.subr.mxu0 0.0
          %1917 = vmatpush1.msra.mxu0 0.0
          %1918 = vmatprep.subr.mxu0 0.0
          %1919 = vmatpush1.msra.mxu0 0.0
          %1920 = vmatprep.subr.mxu0 0.0
          %1921 = vmatpush1.msra.mxu0 0.0
          %1922 = vmatprep.subr.mxu0 0.0
          %1923 = vmatpush1.msra.mxu0 0.0
          %1924 = vmatprep.subr.mxu0 0.0
          %1925 = vmatpush1.msra.mxu0 0.0
          %1926 = vmatprep.subr.mxu0 0.0
          %1927 = vmatpush1.msra.mxu0 0.0
          %1928 = vmatprep.subr.mxu0 0.0
          %1929 = vmatpush1.msra.mxu0 0.0
          %1930 = vmatprep.subr.mxu0 0.0
          %1931 = vmatpush1.msra.mxu0 0.0
          %1932 = vmatprep.subr.mxu0 0.0
          %1933 = vmatpush1.msra.mxu0 0.0
          %1934 = vmatprep.subr.mxu0 0.0
          %1935 = vmatpush1.msra.mxu0 0.0
          %1936 = vmatprep.mubr.f32.mxu0 0.0
          %v1937 = vand.u32 %v1588, 4294901760
          %1938 = vmatmul.mubr.f32.gmra.mrb[0].mxu0 %v1937
          %v1939 = vpop.f32.mrb[0].mxu0
          %v1940 = vadd.f32 %v1709, %v1939
          %v1941 = vpop.f32.mrb[0].mxu0
          %1942 = vmatprep.mubr.f32.mxu0 0.0
          %v1943 = vand.u32 %v1591, 4294901760
          %1944 = vmatmul.mubr.f32.gmra.mrb[0].mxu0 %v1943
          %v1945 = vpop.f32.mrb[0].mxu0
          %v1946 = vadd.f32 %v1719, %v1945
          %v1947 = vpop.f32.mrb[0].mxu0
          %1948 = vmatprep.mubr.f32.mxu0 0.0
          %v1949 = vand.u32 %v1594, 4294901760
          %1950 = vmatmul.mubr.f32.gmra.mrb[0].mxu0 %v1949
          %v1951 = vpop.f32.mrb[0].mxu0
          %v1952 = vadd.f32 %v1729, %v1951
          %v1953 = vpop.f32.mrb[0].mxu0
          %1954 = vmatprep.mubr.f32.mxu0 0.0
          %v1955 = vand.u32 %v1597, 4294901760
          %1956 = vmatmul.mubr.f32.gmra.mrb[0].mxu0 %v1955
          %v1957 = vpop.f32.mrb[0].mxu0
          %v1958 = vadd.f32 %v1739, %v1957
          %v1959 = vpop.f32.mrb[0].mxu0
          %1960 = vmatprep.mubr.f32.mxu0 0.0
          %v1961 = vand.u32 %v1600, 4294901760
          %1962 = vmatmul.mubr.f32.gmra.mrb[0].mxu0 %v1961
          %v1963 = vpop.f32.mrb[0].mxu0
          %v1964 = vadd.f32 %v1749, %v1963
          %v1965 = vpop.f32.mrb[0].mxu0
          %1966 = vmatprep.mubr.f32.mxu0 0.0
          %v1967 = vand.u32 %v1603, 4294901760
          %1968 = vmatmul.mubr.f32.gmra.mrb[0].mxu0 %v1967
          %v1969 = vpop.f32.mrb[0].mxu0
          %v1970 = vadd.f32 %v1759, %v1969
          %v1971 = vpop.f32.mrb[0].mxu0
          %1972 = vmatprep.mubr.f32.mxu0 0.0
          %v1973 = vand.u32 %v1606, 4294901760
          %1974 = vmatmul.mubr.f32.gmra.mrb[0].mxu0 %v1973
          %v1975 = vpop.f32.mrb[0].mxu0
          %v1976 = vadd.f32 %v1769, %v1975
          %v1977 = vpop.f32.mrb[0].mxu0
          %1978 = vmatprep.mubr.f32.mxu0 0.0
          %v1979 = vand.u32 %v1609, 4294901760
          %1980 = vmatmul.mubr.f32.gmra.mrb[0].mxu0 %v1979
          %v1981 = vpop.f32.mrb[0].mxu0
          %v1982 = vadd.f32 %v1779, %v1981
          %v1983 = vpop.f32.mrb[0].mxu0
          %1984 = vmatprep.mubr.f32.mxu0 0.0
          %v1985 = vand.u32 %v1612, 4294901760
          %1986 = vmatmul.mubr.f32.gmra.mrb[0].mxu0 %v1985
          %v1987 = vpop.f32.mrb[0].mxu0
          %v1988 = vadd.f32 %v1789, %v1987
          %v1989 = vpop.f32.mrb[0].mxu0
          %1990 = vmatprep.mubr.f32.mxu0 0.0
          %v1991 = vand.u32 %v1615, 4294901760
          %1992 = vmatmul.mubr.f32.gmra.mrb[0].mxu0 %v1991
          %v1993 = vpop.f32.mrb[0].mxu0
          %v1994 = vadd.f32 %v1799, %v1993
          %v1995 = vpop.f32.mrb[0].mxu0
          %1996 = vmatprep.mubr.f32.mxu0 0.0
          %v1997 = vand.u32 %v1618, 4294901760
          %1998 = vmatmul.mubr.f32.gmra.mrb[0].mxu0 %v1997
          %v1999 = vpop.f32.mrb[0].mxu0
          %v2000 = vadd.f32 %v1809, %v1999
          %v2001 = vpop.f32.mrb[0].mxu0
          %2002 = vmatprep.mubr.f32.mxu0 0.0
          %v2003 = vand.u32 %v1621, 4294901760
          %2004 = vmatmul.mubr.f32.gmra.mrb[0].mxu0 %v2003
          %v2005 = vpop.f32.mrb[0].mxu0
          %v2006 = vadd.f32 %v1819, %v2005
          %v2007 = vpop.f32.mrb[0].mxu0
          %2008 = vmatprep.mubr.f32.mxu0 0.0
          %v2009 = vand.u32 %v1624, 4294901760
          %2010 = vmatmul.mubr.f32.gmra.mrb[0].mxu0 %v2009
          %v2011 = vpop.f32.mrb[0].mxu0
          %v2012 = vadd.f32 %v1829, %v2011
          %v2013 = vpop.f32.mrb[0].mxu0
          %2014 = vmatprep.mubr.f32.mxu0 0.0
          %v2015 = vand.u32 %v1627, 4294901760
          %2016 = vmatmul.mubr.f32.gmra.mrb[0].mxu0 %v2015
          %v2017 = vpop.f32.mrb[0].mxu0
          %v2018 = vadd.f32 %v1839, %v2017
          %v2019 = vpop.f32.mrb[0].mxu0
          %2020 = vmatprep.mubr.f32.mxu0 0.0
          %v2021 = vand.u32 %v1630, 4294901760
          %2022 = vmatmul.mubr.f32.gmra.mrb[0].mxu0 %v2021
          %v2023 = vpop.f32.mrb[0].mxu0
          %v2024 = vadd.f32 %v1849, %v2023
          %v2025 = vpop.f32.mrb[0].mxu0
          %2026 = vmatprep.mubr.f32.mxu0 0.0
          %v2027 = vand.u32 %v1633, 4294901760
          %2028 = vmatmul.mubr.f32.gmra.mrb[0].mxu0 %v2027
          %v2029 = vpop.f32.mrb[0].mxu0
          %v2030 = vadd.f32 %v1859, %v2029
          %v2031 = vpop.f32.mrb[0].mxu0
          %2032 = vdwg.mxu0
          %2033 = vmatprep.subr.mxu0 0.0
          %v2034 = vand.u32 %v1533, 4294901760
          %v2035 = vsub.f32 %v1533, %v2034
          %2036 = vmatpush1.msra.mxu0 %v2035
          %2037 = vmatprep.subr.mxu0 0.0
          %v2038 = vand.u32 %v1540, 4294901760
          %v2039 = vsub.f32 %v1540, %v2038
          %2040 = vmatpush1.msra.mxu0 %v2039
          %2041 = vmatprep.subr.mxu0 0.0
          %2042 = vmatpush1.msra.mxu0 0.0
          %2043 = vmatprep.subr.mxu0 0.0
          %2044 = vmatpush1.msra.mxu0 0.0
          %2045 = vmatprep.subr.mxu0 0.0
          %2046 = vmatpush1.msra.mxu0 0.0
          %2047 = vmatprep.subr.mxu0 0.0
          %2048 = vmatpush1.msra.mxu0 0.0
          %2049 = vmatprep.subr.mxu0 0.0
          %2050 = vmatpush1.msra.mxu0 0.0
          %2051 = vmatprep.subr.mxu0 0.0
          %2052 = vmatpush1.msra.mxu0 0.0
          %2053 = vmatprep.subr.mxu0 0.0
          %2054 = vmatpush1.msra.mxu0 0.0
          %2055 = vmatprep.subr.mxu0 0.0
          %2056 = vmatpush1.msra.mxu0 0.0
          %2057 = vmatprep.subr.mxu0 0.0
          %2058 = vmatpush1.msra.mxu0 0.0
          %2059 = vmatprep.subr.mxu0 0.0
          %2060 = vmatpush1.msra.mxu0 0.0
          %2061 = vmatprep.subr.mxu0 0.0
          %2062 = vmatpush1.msra.mxu0 0.0
          %2063 = vmatprep.subr.mxu0 0.0
          %2064 = vmatpush1.msra.mxu0 0.0
          %2065 = vmatprep.subr.mxu0 0.0
          %2066 = vmatpush1.msra.mxu0 0.0
          %2067 = vmatprep.subr.mxu0 0.0
          %2068 = vmatpush1.msra.mxu0 0.0
          %2069 = vmatprep.subr.mxu0 0.0
          %2070 = vmatpush1.msra.mxu0 0.0
          %2071 = vmatprep.subr.mxu0 0.0
          %2072 = vmatpush1.msra.mxu0 0.0
          %2073 = vmatprep.subr.mxu0 0.0
          %2074 = vmatpush1.msra.mxu0 0.0
          %2075 = vmatprep.subr.mxu0 0.0
          %2076 = vmatpush1.msra.mxu0 0.0
          %2077 = vmatprep.subr.mxu0 0.0
          %2078 = vmatpush1.msra.mxu0 0.0
          %2079 = vmatprep.subr.mxu0 0.0
          %2080 = vmatpush1.msra.mxu0 0.0
          %2081 = vmatprep.subr.mxu0 0.0
          %2082 = vmatpush1.msra.mxu0 0.0
          %2083 = vmatprep.subr.mxu0 0.0
          %2084 = vmatpush1.msra.mxu0 0.0
          %2085 = vmatprep.subr.mxu0 0.0
          %2086 = vmatpush1.msra.mxu0 0.0
          %2087 = vmatprep.subr.mxu0 0.0
          %2088 = vmatpush1.msra.mxu0 0.0
          %2089 = vmatprep.subr.mxu0 0.0
          %2090 = vmatpush1.msra.mxu0 0.0
          %2091 = vmatprep.subr.mxu0 0.0
          %2092 = vmatpush1.msra.mxu0 0.0
          %2093 = vmatprep.subr.mxu0 0.0
          %2094 = vmatpush1.msra.mxu0 0.0
          %2095 = vmatprep.subr.mxu0 0.0
          %2096 = vmatpush1.msra.mxu0 0.0
          %2097 = vmatprep.subr.mxu0 0.0
          %2098 = vmatpush1.msra.mxu0 0.0
          %2099 = vmatprep.subr.mxu0 0.0
          %2100 = vmatpush1.msra.mxu0 0.0
          %2101 = vmatprep.mubr.f32.mxu0 0.0
          %v2102 = vand.u32 %v1588, 4294901760
          %v2103 = vsub.f32 %v1588, %v2102
          %2104 = vmatmul.mubr.f32.gmra.mrb[0].mxu0 %v2103
          %v2105 = vpop.f32.mrb[0].mxu0
          %v2106 = vadd.f32 %v1940, %v2105
          %v2107 = vpop.f32.mrb[0].mxu0
          %2108 = vmatprep.mubr.f32.mxu0 0.0
          %v2109 = vand.u32 %v1591, 4294901760
          %v2110 = vsub.f32 %v1591, %v2109
          %2111 = vmatmul.mubr.f32.gmra.mrb[0].mxu0 %v2110
          %v2112 = vpop.f32.mrb[0].mxu0
          %v2113 = vadd.f32 %v1946, %v2112
          %v2114 = vpop.f32.mrb[0].mxu0
          %2115 = vmatprep.mubr.f32.mxu0 0.0
          %v2116 = vand.u32 %v1594, 4294901760
          %v2117 = vsub.f32 %v1594, %v2116
          %2118 = vmatmul.mubr.f32.gmra.mrb[0].mxu0 %v2117
          %v2119 = vpop.f32.mrb[0].mxu0
          %v2120 = vadd.f32 %v1952, %v2119
          %v2121 = vpop.f32.mrb[0].mxu0
          %2122 = vmatprep.mubr.f32.mxu0 0.0
          %v2123 = vand.u32 %v1597, 4294901760
          %v2124 = vsub.f32 %v1597, %v2123
          %2125 = vmatmul.mubr.f32.gmra.mrb[0].mxu0 %v2124
          %v2126 = vpop.f32.mrb[0].mxu0
          %v2127 = vadd.f32 %v1958, %v2126
          %v2128 = vpop.f32.mrb[0].mxu0
          %2129 = vmatprep.mubr.f32.mxu0 0.0
          %v2130 = vand.u32 %v1600, 4294901760
          %v2131 = vsub.f32 %v1600, %v2130
          %2132 = vmatmul.mubr.f32.gmra.mrb[0].mxu0 %v2131
          %v2133 = vpop.f32.mrb[0].mxu0
          %v2134 = vadd.f32 %v1964, %v2133
          %v2135 = vpop.f32.mrb[0].mxu0
          %2136 = vmatprep.mubr.f32.mxu0 0.0
          %v2137 = vand.u32 %v1603, 4294901760
          %v2138 = vsub.f32 %v1603, %v2137
          %2139 = vmatmul.mubr.f32.gmra.mrb[0].mxu0 %v2138
          %v2140 = vpop.f32.mrb[0].mxu0
          %v2141 = vadd.f32 %v1970, %v2140
          %v2142 = vpop.f32.mrb[0].mxu0
          %2143 = vmatprep.mubr.f32.mxu0 0.0
          %v2144 = vand.u32 %v1606, 4294901760
          %v2145 = vsub.f32 %v1606, %v2144
          %2146 = vmatmul.mubr.f32.gmra.mrb[0].mxu0 %v2145
          %v2147 = vpop.f32.mrb[0].mxu0
          %v2148 = vadd.f32 %v1976, %v2147
          %v2149 = vpop.f32.mrb[0].mxu0
          %2150 = vmatprep.mubr.f32.mxu0 0.0
          %v2151 = vand.u32 %v1609, 4294901760
          %v2152 = vsub.f32 %v1609, %v2151
          %2153 = vmatmul.mubr.f32.gmra.mrb[0].mxu0 %v2152
          %v2154 = vpop.f32.mrb[0].mxu0
          %v2155 = vadd.f32 %v1982, %v2154
          %v2156 = vpop.f32.mrb[0].mxu0
          %2157 = vmatprep.mubr.f32.mxu0 0.0
          %v2158 = vand.u32 %v1612, 4294901760
          %v2159 = vsub.f32 %v1612, %v2158
          %2160 = vmatmul.mubr.f32.gmra.mrb[0].mxu0 %v2159
          %v2161 = vpop.f32.mrb[0].mxu0
          %v2162 = vadd.f32 %v1988, %v2161
          %v2163 = vpop.f32.mrb[0].mxu0
          %2164 = vmatprep.mubr.f32.mxu0 0.0
          %v2165 = vand.u32 %v1615, 4294901760
          %v2166 = vsub.f32 %v1615, %v2165
          %2167 = vmatmul.mubr.f32.gmra.mrb[0].mxu0 %v2166
          %v2168 = vpop.f32.mrb[0].mxu0
          %v2169 = vadd.f32 %v1994, %v2168
          %v2170 = vpop.f32.mrb[0].mxu0
          %2171 = vmatprep.mubr.f32.mxu0 0.0
          %v2172 = vand.u32 %v1618, 4294901760
          %v2173 = vsub.f32 %v1618, %v2172
          %2174 = vmatmul.mubr.f32.gmra.mrb[0].mxu0 %v2173
          %v2175 = vpop.f32.mrb[0].mxu0
          %v2176 = vadd.f32 %v2000, %v2175
          %v2177 = vpop.f32.mrb[0].mxu0
          %2178 = vmatprep.mubr.f32.mxu0 0.0
          %v2179 = vand.u32 %v1621, 4294901760
          %v2180 = vsub.f32 %v1621, %v2179
          %2181 = vmatmul.mubr.f32.gmra.mrb[0].mxu0 %v2180
          %v2182 = vpop.f32.mrb[0].mxu0
          %v2183 = vadd.f32 %v2006, %v2182
          %v2184 = vpop.f32.mrb[0].mxu0
          %2185 = vmatprep.mubr.f32.mxu0 0.0
          %v2186 = vand.u32 %v1624, 4294901760
          %v2187 = vsub.f32 %v1624, %v2186
          %2188 = vmatmul.mubr.f32.gmra.mrb[0].mxu0 %v2187
          %v2189 = vpop.f32.mrb[0].mxu0
          %v2190 = vadd.f32 %v2012, %v2189
          %v2191 = vpop.f32.mrb[0].mxu0
          %2192 = vmatprep.mubr.f32.mxu0 0.0
          %v2193 = vand.u32 %v1627, 4294901760
          %v2194 = vsub.f32 %v1627, %v2193
          %2195 = vmatmul.mubr.f32.gmra.mrb[0].mxu0 %v2194
          %v2196 = vpop.f32.mrb[0].mxu0
          %v2197 = vadd.f32 %v2018, %v2196
          %v2198 = vpop.f32.mrb[0].mxu0
          %2199 = vmatprep.mubr.f32.mxu0 0.0
          %v2200 = vand.u32 %v1630, 4294901760
          %v2201 = vsub.f32 %v1630, %v2200
          %2202 = vmatmul.mubr.f32.gmra.mrb[0].mxu0 %v2201
          %v2203 = vpop.f32.mrb[0].mxu0
          %v2204 = vadd.f32 %v2024, %v2203
          %v2205 = vpop.f32.mrb[0].mxu0
          %2206 = vmatprep.mubr.f32.mxu0 0.0
          %v2207 = vand.u32 %v1633, 4294901760
          %v2208 = vsub.f32 %v1633, %v2207
          %2209 = vmatmul.mubr.f32.gmra.mrb[0].mxu0 %v2208
          %v2210 = vpop.f32.mrb[0].mxu0
          %v2211 = vadd.f32 %v2030, %v2210
          %v2212 = vpop.f32.mrb[0].mxu0
          %2213 = vdwg.mxu0
          %2214 = vmatprep.subr.mxu0 0.0
          %v2215 = vand.u32 %v1533, 4294901760
          %2216 = vmatpush1.msra.mxu0 %v2215
          %2217 = vmatprep.subr.mxu0 0.0
          %v2218 = vand.u32 %v1540, 4294901760
          %2219 = vmatpush1.msra.mxu0 %v2218
          %2220 = vmatprep.subr.mxu0 0.0
          %2221 = vmatpush1.msra.mxu0 0.0
          %2222 = vmatprep.subr.mxu0 0.0
          %2223 = vmatpush1.msra.mxu0 0.0
          %2224 = vmatprep.subr.mxu0 0.0
          %2225 = vmatpush1.msra.mxu0 0.0
          %2226 = vmatprep.subr.mxu0 0.0
          %2227 = vmatpush1.msra.mxu0 0.0
          %2228 = vmatprep.subr.mxu0 0.0
          %2229 = vmatpush1.msra.mxu0 0.0
          %2230 = vmatprep.subr.mxu0 0.0
          %2231 = vmatpush1.msra.mxu0 0.0
          %2232 = vmatprep.subr.mxu0 0.0
          %2233 = vmatpush1.msra.mxu0 0.0
          %2234 = vmatprep.subr.mxu0 0.0
          %2235 = vmatpush1.msra.mxu0 0.0
          %2236 = vmatprep.subr.mxu0 0.0
          %2237 = vmatpush1.msra.mxu0 0.0
          %2238 = vmatprep.subr.mxu0 0.0
          %2239 = vmatpush1.msra.mxu0 0.0
          %2240 = vmatprep.subr.mxu0 0.0
          %2241 = vmatpush1.msra.mxu0 0.0
          %2242 = vmatprep.subr.mxu0 0.0
          %2243 = vmatpush1.msra.mxu0 0.0
          %2244 = vmatprep.subr.mxu0 0.0
          %2245 = vmatpush1.msra.mxu0 0.0
          %2246 = vmatprep.subr.mxu0 0.0
          %2247 = vmatpush1.msra.mxu0 0.0
          %2248 = vmatprep.subr.mxu0 0.0
          %2249 = vmatpush1.msra.mxu0 0.0
          %2250 = vmatprep.subr.mxu0 0.0
          %2251 = vmatpush1.msra.mxu0 0.0
          %2252 = vmatprep.subr.mxu0 0.0
          %2253 = vmatpush1.msra.mxu0 0.0
          %2254 = vmatprep.subr.mxu0 0.0
          %2255 = vmatpush1.msra.mxu0 0.0
          %2256 = vmatprep.subr.mxu0 0.0
          %2257 = vmatpush1.msra.mxu0 0.0
          %2258 = vmatprep.subr.mxu0 0.0
          %2259 = vmatpush1.msra.mxu0 0.0
          %2260 = vmatprep.subr.mxu0 0.0
          %2261 = vmatpush1.msra.mxu0 0.0
          %2262 = vmatprep.subr.mxu0 0.0
          %2263 = vmatpush1.msra.mxu0 0.0
          %2264 = vmatprep.subr.mxu0 0.0
          %2265 = vmatpush1.msra.mxu0 0.0
          %2266 = vmatprep.subr.mxu0 0.0
          %2267 = vmatpush1.msra.mxu0 0.0
          %2268 = vmatprep.subr.mxu0 0.0
          %2269 = vmatpush1.msra.mxu0 0.0
          %2270 = vmatprep.subr.mxu0 0.0
          %2271 = vmatpush1.msra.mxu0 0.0
          %2272 = vmatprep.subr.mxu0 0.0
          %2273 = vmatpush1.msra.mxu0 0.0
          %2274 = vmatprep.subr.mxu0 0.0
          %2275 = vmatpush1.msra.mxu0 0.0
          %2276 = vmatprep.subr.mxu0 0.0
          %2277 = vmatpush1.msra.mxu0 0.0
          %2278 = vmatprep.subr.mxu0 0.0
          %2279 = vmatpush1.msra.mxu0 0.0
          %2280 = vmatprep.mubr.f32.mxu0 0.0
          %v2281 = vand.u32 %v1588, 4294901760
          %v2282 = vsub.f32 %v1588, %v2281
          %v2283 = vand.u32 %v2282, 4294901760
          %2284 = vmatmul.mubr.f32.gmra.mrb[0].mxu0 %v2283
          %v2285 = vpop.f32.mrb[0].mxu0
          %v2286 = vadd.f32 %v2106, %v2285
          %v2287 = vpop.f32.mrb[0].mxu0
          %2288 = vmatprep.mubr.f32.mxu0 0.0
          %v2289 = vand.u32 %v1591, 4294901760
          %v2290 = vsub.f32 %v1591, %v2289
          %v2291 = vand.u32 %v2290, 4294901760
          %2292 = vmatmul.mubr.f32.gmra.mrb[0].mxu0 %v2291
          %v2293 = vpop.f32.mrb[0].mxu0
          %v2294 = vadd.f32 %v2113, %v2293
          %v2295 = vpop.f32.mrb[0].mxu0
          %2296 = vmatprep.mubr.f32.mxu0 0.0
          %v2297 = vand.u32 %v1594, 4294901760
          %v2298 = vsub.f32 %v1594, %v2297
          %v2299 = vand.u32 %v2298, 4294901760
          %2300 = vmatmul.mubr.f32.gmra.mrb[0].mxu0 %v2299
          %v2301 = vpop.f32.mrb[0].mxu0
          %v2302 = vadd.f32 %v2120, %v2301
          %v2303 = vpop.f32.mrb[0].mxu0
          %2304 = vmatprep.mubr.f32.mxu0 0.0
          %v2305 = vand.u32 %v1597, 4294901760
          %v2306 = vsub.f32 %v1597, %v2305
          %v2307 = vand.u32 %v2306, 4294901760
          %2308 = vmatmul.mubr.f32.gmra.mrb[0].mxu0 %v2307
          %v2309 = vpop.f32.mrb[0].mxu0
          %v2310 = vadd.f32 %v2127, %v2309
          %v2311 = vpop.f32.mrb[0].mxu0
          %2312 = vmatprep.mubr.f32.mxu0 0.0
          %v2313 = vand.u32 %v1600, 4294901760
          %v2314 = vsub.f32 %v1600, %v2313
          %v2315 = vand.u32 %v2314, 4294901760
          %2316 = vmatmul.mubr.f32.gmra.mrb[0].mxu0 %v2315
          %v2317 = vpop.f32.mrb[0].mxu0
          %v2318 = vadd.f32 %v2134, %v2317
          %v2319 = vpop.f32.mrb[0].mxu0
          %2320 = vmatprep.mubr.f32.mxu0 0.0
          %v2321 = vand.u32 %v1603, 4294901760
          %v2322 = vsub.f32 %v1603, %v2321
          %v2323 = vand.u32 %v2322, 4294901760
          %2324 = vmatmul.mubr.f32.gmra.mrb[0].mxu0 %v2323
          %v2325 = vpop.f32.mrb[0].mxu0
          %v2326 = vadd.f32 %v2141, %v2325
          %v2327 = vpop.f32.mrb[0].mxu0
          %2328 = vmatprep.mubr.f32.mxu0 0.0
          %v2329 = vand.u32 %v1606, 4294901760
          %v2330 = vsub.f32 %v1606, %v2329
          %v2331 = vand.u32 %v2330, 4294901760
          %2332 = vmatmul.mubr.f32.gmra.mrb[0].mxu0 %v2331
          %v2333 = vpop.f32.mrb[0].mxu0
          %v2334 = vadd.f32 %v2148, %v2333
          %v2335 = vpop.f32.mrb[0].mxu0
          %2336 = vmatprep.mubr.f32.mxu0 0.0
          %v2337 = vand.u32 %v1609, 4294901760
          %v2338 = vsub.f32 %v1609, %v2337
          %v2339 = vand.u32 %v2338, 4294901760
          %2340 = vmatmul.mubr.f32.gmra.mrb[0].mxu0 %v2339
          %v2341 = vpop.f32.mrb[0].mxu0
          %v2342 = vadd.f32 %v2155, %v2341
          %v2343 = vpop.f32.mrb[0].mxu0
          %2344 = vmatprep.mubr.f32.mxu0 0.0
          %v2345 = vand.u32 %v1612, 4294901760
          %v2346 = vsub.f32 %v1612, %v2345
          %v2347 = vand.u32 %v2346, 4294901760
          %2348 = vmatmul.mubr.f32.gmra.mrb[0].mxu0 %v2347
          %v2349 = vpop.f32.mrb[0].mxu0
          %v2350 = vadd.f32 %v2162, %v2349
          %v2351 = vpop.f32.mrb[0].mxu0
          %2352 = vmatprep.mubr.f32.mxu0 0.0
          %v2353 = vand.u32 %v1615, 4294901760
          %v2354 = vsub.f32 %v1615, %v2353
          %v2355 = vand.u32 %v2354, 4294901760
          %2356 = vmatmul.mubr.f32.gmra.mrb[0].mxu0 %v2355
          %v2357 = vpop.f32.mrb[0].mxu0
          %v2358 = vadd.f32 %v2169, %v2357
          %v2359 = vpop.f32.mrb[0].mxu0
          %2360 = vmatprep.mubr.f32.mxu0 0.0
          %v2361 = vand.u32 %v1618, 4294901760
          %v2362 = vsub.f32 %v1618, %v2361
          %v2363 = vand.u32 %v2362, 4294901760
          %2364 = vmatmul.mubr.f32.gmra.mrb[0].mxu0 %v2363
          %v2365 = vpop.f32.mrb[0].mxu0
          %v2366 = vadd.f32 %v2176, %v2365
          %v2367 = vpop.f32.mrb[0].mxu0
          %2368 = vmatprep.mubr.f32.mxu0 0.0
          %v2369 = vand.u32 %v1621, 4294901760
          %v2370 = vsub.f32 %v1621, %v2369
          %v2371 = vand.u32 %v2370, 4294901760
          %2372 = vmatmul.mubr.f32.gmra.mrb[0].mxu0 %v2371
          %v2373 = vpop.f32.mrb[0].mxu0
          %v2374 = vadd.f32 %v2183, %v2373
          %v2375 = vpop.f32.mrb[0].mxu0
          %2376 = vmatprep.mubr.f32.mxu0 0.0
          %v2377 = vand.u32 %v1624, 4294901760
          %v2378 = vsub.f32 %v1624, %v2377
          %v2379 = vand.u32 %v2378, 4294901760
          %2380 = vmatmul.mubr.f32.gmra.mrb[0].mxu0 %v2379
          %v2381 = vpop.f32.mrb[0].mxu0
          %v2382 = vadd.f32 %v2190, %v2381
          %v2383 = vpop.f32.mrb[0].mxu0
          %2384 = vmatprep.mubr.f32.mxu0 0.0
          %v2385 = vand.u32 %v1627, 4294901760
          %v2386 = vsub.f32 %v1627, %v2385
          %v2387 = vand.u32 %v2386, 4294901760
          %2388 = vmatmul.mubr.f32.gmra.mrb[0].mxu0 %v2387
          %v2389 = vpop.f32.mrb[0].mxu0
          %v2390 = vadd.f32 %v2197, %v2389
          %v2391 = vpop.f32.mrb[0].mxu0
          %2392 = vmatprep.mubr.f32.mxu0 0.0
          %v2393 = vand.u32 %v1630, 4294901760
          %v2394 = vsub.f32 %v1630, %v2393
          %v2395 = vand.u32 %v2394, 4294901760
          %2396 = vmatmul.mubr.f32.gmra.mrb[0].mxu0 %v2395
          %v2397 = vpop.f32.mrb[0].mxu0
          %v2398 = vadd.f32 %v2204, %v2397
          %v2399 = vpop.f32.mrb[0].mxu0
          %2400 = vmatprep.mubr.f32.mxu0 0.0
          %v2401 = vand.u32 %v1633, 4294901760
          %v2402 = vsub.f32 %v1633, %v2401
          %v2403 = vand.u32 %v2402, 4294901760
          %2404 = vmatmul.mubr.f32.gmra.mrb[0].mxu0 %v2403
          %v2405 = vpop.f32.mrb[0].mxu0
          %v2406 = vadd.f32 %v2211, %v2405
          %v2407 = vpop.f32.mrb[0].mxu0
          %2408 = vdwg.mxu0
          %2409 = vmatprep.subr.mxu0 0.0
          %v2410 = vand.u32 %v1533, 4294901760
          %v2411 = vsub.f32 %v1533, %v2410
          %v2412 = vand.u32 %v2411, 4294901760
          %2413 = vmatpush1.msra.mxu0 %v2412
          %2414 = vmatprep.subr.mxu0 0.0
          %v2415 = vand.u32 %v1540, 4294901760
          %v2416 = vsub.f32 %v1540, %v2415
          %v2417 = vand.u32 %v2416, 4294901760
          %2418 = vmatpush1.msra.mxu0 %v2417
          %2419 = vmatprep.subr.mxu0 0.0
          %2420 = vmatpush1.msra.mxu0 0.0
          %2421 = vmatprep.subr.mxu0 0.0
          %2422 = vmatpush1.msra.mxu0 0.0
          %2423 = vmatprep.subr.mxu0 0.0
          %2424 = vmatpush1.msra.mxu0 0.0
          %2425 = vmatprep.subr.mxu0 0.0
          %2426 = vmatpush1.msra.mxu0 0.0
          %2427 = vmatprep.subr.mxu0 0.0
          %2428 = vmatpush1.msra.mxu0 0.0
          %2429 = vmatprep.subr.mxu0 0.0
          %2430 = vmatpush1.msra.mxu0 0.0
          %2431 = vmatprep.subr.mxu0 0.0
          %2432 = vmatpush1.msra.mxu0 0.0
          %2433 = vmatprep.subr.mxu0 0.0
          %2434 = vmatpush1.msra.mxu0 0.0
          %2435 = vmatprep.subr.mxu0 0.0
          %2436 = vmatpush1.msra.mxu0 0.0
          %2437 = vmatprep.subr.mxu0 0.0
          %2438 = vmatpush1.msra.mxu0 0.0
          %2439 = vmatprep.subr.mxu0 0.0
          %2440 = vmatpush1.msra.mxu0 0.0
          %2441 = vmatprep.subr.mxu0 0.0
          %2442 = vmatpush1.msra.mxu0 0.0
          %2443 = vmatprep.subr.mxu0 0.0
          %2444 = vmatpush1.msra.mxu0 0.0
          %2445 = vmatprep.subr.mxu0 0.0
          %2446 = vmatpush1.msra.mxu0 0.0
          %2447 = vmatprep.subr.mxu0 0.0
          %2448 = vmatpush1.msra.mxu0 0.0
          %2449 = vmatprep.subr.mxu0 0.0
          %2450 = vmatpush1.msra.mxu0 0.0
          %2451 = vmatprep.subr.mxu0 0.0
          %2452 = vmatpush1.msra.mxu0 0.0
          %2453 = vmatprep.subr.mxu0 0.0
          %2454 = vmatpush1.msra.mxu0 0.0
          %2455 = vmatprep.subr.mxu0 0.0
          %2456 = vmatpush1.msra.mxu0 0.0
          %2457 = vmatprep.subr.mxu0 0.0
          %2458 = vmatpush1.msra.mxu0 0.0
          %2459 = vmatprep.subr.mxu0 0.0
          %2460 = vmatpush1.msra.mxu0 0.0
          %2461 = vmatprep.subr.mxu0 0.0
          %2462 = vmatpush1.msra.mxu0 0.0
          %2463 = vmatprep.subr.mxu0 0.0
          %2464 = vmatpush1.msra.mxu0 0.0
          %2465 = vmatprep.subr.mxu0 0.0
          %2466 = vmatpush1.msra.mxu0 0.0
          %2467 = vmatprep.subr.mxu0 0.0
          %2468 = vmatpush1.msra.mxu0 0.0
          %2469 = vmatprep.subr.mxu0 0.0
          %2470 = vmatpush1.msra.mxu0 0.0
          %2471 = vmatprep.subr.mxu0 0.0
          %2472 = vmatpush1.msra.mxu0 0.0
          %2473 = vmatprep.subr.mxu0 0.0
          %2474 = vmatpush1.msra.mxu0 0.0
          %2475 = vmatprep.subr.mxu0 0.0
          %2476 = vmatpush1.msra.mxu0 0.0
          %2477 = vmatprep.subr.mxu0 0.0
          %2478 = vmatpush1.msra.mxu0 0.0
          %2479 = vmatprep.mubr.f32.mxu0 0.0
          %v2480 = vand.u32 %v1588, 4294901760
          %2481 = vmatmul.mubr.f32.gmra.mrb[0].mxu0 %v2480
          %v2482 = vpop.f32.mrb[0].mxu0
          %v2483 = vadd.f32 %v2286, %v2482
          %v2484 = vpop.f32.mrb[0].mxu0
          %2485 = vmatprep.mubr.f32.mxu0 0.0
          %v2486 = vand.u32 %v1591, 4294901760
          %2487 = vmatmul.mubr.f32.gmra.mrb[0].mxu0 %v2486
          %v2488 = vpop.f32.mrb[0].mxu0
          %v2489 = vadd.f32 %v2294, %v2488
          %v2490 = vpop.f32.mrb[0].mxu0
          %2491 = vmatprep.mubr.f32.mxu0 0.0
          %v2492 = vand.u32 %v1594, 4294901760
          %2493 = vmatmul.mubr.f32.gmra.mrb[0].mxu0 %v2492
          %v2494 = vpop.f32.mrb[0].mxu0
          %v2495 = vadd.f32 %v2302, %v2494
          %v2496 = vpop.f32.mrb[0].mxu0
          %2497 = vmatprep.mubr.f32.mxu0 0.0
          %v2498 = vand.u32 %v1597, 4294901760
          %2499 = vmatmul.mubr.f32.gmra.mrb[0].mxu0 %v2498
          %v2500 = vpop.f32.mrb[0].mxu0
          %v2501 = vadd.f32 %v2310, %v2500
          %v2502 = vpop.f32.mrb[0].mxu0
          %2503 = vmatprep.mubr.f32.mxu0 0.0
          %v2504 = vand.u32 %v1600, 4294901760
          %2505 = vmatmul.mubr.f32.gmra.mrb[0].mxu0 %v2504
          %v2506 = vpop.f32.mrb[0].mxu0
          %v2507 = vadd.f32 %v2318, %v2506
          %v2508 = vpop.f32.mrb[0].mxu0
          %2509 = vmatprep.mubr.f32.mxu0 0.0
          %v2510 = vand.u32 %v1603, 4294901760
          %2511 = vmatmul.mubr.f32.gmra.mrb[0].mxu0 %v2510
          %v2512 = vpop.f32.mrb[0].mxu0
          %v2513 = vadd.f32 %v2326, %v2512
          %v2514 = vpop.f32.mrb[0].mxu0
          %2515 = vmatprep.mubr.f32.mxu0 0.0
          %v2516 = vand.u32 %v1606, 4294901760
          %2517 = vmatmul.mubr.f32.gmra.mrb[0].mxu0 %v2516
          %v2518 = vpop.f32.mrb[0].mxu0
          %v2519 = vadd.f32 %v2334, %v2518
          %v2520 = vpop.f32.mrb[0].mxu0
          %2521 = vmatprep.mubr.f32.mxu0 0.0
          %v2522 = vand.u32 %v1609, 4294901760
          %2523 = vmatmul.mubr.f32.gmra.mrb[0].mxu0 %v2522
          %v2524 = vpop.f32.mrb[0].mxu0
          %v2525 = vadd.f32 %v2342, %v2524
          %v2526 = vpop.f32.mrb[0].mxu0
          %2527 = vmatprep.mubr.f32.mxu0 0.0
          %v2528 = vand.u32 %v1612, 4294901760
          %2529 = vmatmul.mubr.f32.gmra.mrb[0].mxu0 %v2528
          %v2530 = vpop.f32.mrb[0].mxu0
          %v2531 = vadd.f32 %v2350, %v2530
          %v2532 = vpop.f32.mrb[0].mxu0
          %2533 = vmatprep.mubr.f32.mxu0 0.0
          %v2534 = vand.u32 %v1615, 4294901760
          %2535 = vmatmul.mubr.f32.gmra.mrb[0].mxu0 %v2534
          %v2536 = vpop.f32.mrb[0].mxu0
          %v2537 = vadd.f32 %v2358, %v2536
          %v2538 = vpop.f32.mrb[0].mxu0
          %2539 = vmatprep.mubr.f32.mxu0 0.0
          %v2540 = vand.u32 %v1618, 4294901760
          %2541 = vmatmul.mubr.f32.gmra.mrb[0].mxu0 %v2540
          %v2542 = vpop.f32.mrb[0].mxu0
          %v2543 = vadd.f32 %v2366, %v2542
          %v2544 = vpop.f32.mrb[0].mxu0
          %2545 = vmatprep.mubr.f32.mxu0 0.0
          %v2546 = vand.u32 %v1621, 4294901760
          %2547 = vmatmul.mubr.f32.gmra.mrb[0].mxu0 %v2546
          %v2548 = vpop.f32.mrb[0].mxu0
          %v2549 = vadd.f32 %v2374, %v2548
          %v2550 = vpop.f32.mrb[0].mxu0
          %2551 = vmatprep.mubr.f32.mxu0 0.0
          %v2552 = vand.u32 %v1624, 4294901760
          %2553 = vmatmul.mubr.f32.gmra.mrb[0].mxu0 %v2552
          %v2554 = vpop.f32.mrb[0].mxu0
          %v2555 = vadd.f32 %v2382, %v2554
          %v2556 = vpop.f32.mrb[0].mxu0
          %2557 = vmatprep.mubr.f32.mxu0 0.0
          %v2558 = vand.u32 %v1627, 4294901760
          %2559 = vmatmul.mubr.f32.gmra.mrb[0].mxu0 %v2558
          %v2560 = vpop.f32.mrb[0].mxu0
          %v2561 = vadd.f32 %v2390, %v2560
          %v2562 = vpop.f32.mrb[0].mxu0
          %2563 = vmatprep.mubr.f32.mxu0 0.0
          %v2564 = vand.u32 %v1630, 4294901760
          %2565 = vmatmul.mubr.f32.gmra.mrb[0].mxu0 %v2564
          %v2566 = vpop.f32.mrb[0].mxu0
          %v2567 = vadd.f32 %v2398, %v2566
          %v2568 = vpop.f32.mrb[0].mxu0
          %2569 = vmatprep.mubr.f32.mxu0 0.0
          %v2570 = vand.u32 %v1633, 4294901760
          %2571 = vmatmul.mubr.f32.gmra.mrb[0].mxu0 %v2570
          %v2572 = vpop.f32.mrb[0].mxu0
          %v2573 = vadd.f32 %v2406, %v2572
          %v2574 = vpop.f32.mrb[0].mxu0
          %2575 = vdwg.mxu0
          %2576 = vmatprep.subr.mxu0 0.0
          %v2577 = vand.u32 %v1533, 4294901760
          %2578 = vmatpush1.msra.mxu0 %v2577
          %2579 = vmatprep.subr.mxu0 0.0
          %v2580 = vand.u32 %v1540, 4294901760
          %2581 = vmatpush1.msra.mxu0 %v2580
          %2582 = vmatprep.subr.mxu0 0.0
          %2583 = vmatpush1.msra.mxu0 0.0
          %2584 = vmatprep.subr.mxu0 0.0
          %2585 = vmatpush1.msra.mxu0 0.0
          %2586 = vmatprep.subr.mxu0 0.0
          %2587 = vmatpush1.msra.mxu0 0.0
          %2588 = vmatprep.subr.mxu0 0.0
          %2589 = vmatpush1.msra.mxu0 0.0
          %2590 = vmatprep.subr.mxu0 0.0
          %2591 = vmatpush1.msra.mxu0 0.0
          %2592 = vmatprep.subr.mxu0 0.0
          %2593 = vmatpush1.msra.mxu0 0.0
          %2594 = vmatprep.subr.mxu0 0.0
          %2595 = vmatpush1.msra.mxu0 0.0
          %2596 = vmatprep.subr.mxu0 0.0
          %2597 = vmatpush1.msra.mxu0 0.0
          %2598 = vmatprep.subr.mxu0 0.0
          %2599 = vmatpush1.msra.mxu0 0.0
          %2600 = vmatprep.subr.mxu0 0.0
          %2601 = vmatpush1.msra.mxu0 0.0
          %2602 = vmatprep.subr.mxu0 0.0
          %2603 = vmatpush1.msra.mxu0 0.0
          %2604 = vmatprep.subr.mxu0 0.0
          %2605 = vmatpush1.msra.mxu0 0.0
          %2606 = vmatprep.subr.mxu0 0.0
          %2607 = vmatpush1.msra.mxu0 0.0
          %2608 = vmatprep.subr.mxu0 0.0
          %2609 = vmatpush1.msra.mxu0 0.0
          %2610 = vmatprep.subr.mxu0 0.0
          %2611 = vmatpush1.msra.mxu0 0.0
          %2612 = vmatprep.subr.mxu0 0.0
          %2613 = vmatpush1.msra.mxu0 0.0
          %2614 = vmatprep.subr.mxu0 0.0
          %2615 = vmatpush1.msra.mxu0 0.0
          %2616 = vmatprep.subr.mxu0 0.0
          %2617 = vmatpush1.msra.mxu0 0.0
          %2618 = vmatprep.subr.mxu0 0.0
          %2619 = vmatpush1.msra.mxu0 0.0
          %2620 = vmatprep.subr.mxu0 0.0
          %2621 = vmatpush1.msra.mxu0 0.0
          %2622 = vmatprep.subr.mxu0 0.0
          %2623 = vmatpush1.msra.mxu0 0.0
          %2624 = vmatprep.subr.mxu0 0.0
          %2625 = vmatpush1.msra.mxu0 0.0
          %2626 = vmatprep.subr.mxu0 0.0
          %2627 = vmatpush1.msra.mxu0 0.0
          %2628 = vmatprep.subr.mxu0 0.0
          %2629 = vmatpush1.msra.mxu0 0.0
          %2630 = vmatprep.subr.mxu0 0.0
          %2631 = vmatpush1.msra.mxu0 0.0
          %2632 = vmatprep.subr.mxu0 0.0
          %2633 = vmatpush1.msra.mxu0 0.0
          %2634 = vmatprep.subr.mxu0 0.0
          %2635 = vmatpush1.msra.mxu0 0.0
          %2636 = vmatprep.subr.mxu0 0.0
          %2637 = vmatpush1.msra.mxu0 0.0
          %2638 = vmatprep.subr.mxu0 0.0
          %2639 = vmatpush1.msra.mxu0 0.0
          %2640 = vmatprep.subr.mxu0 0.0
          %2641 = vmatpush1.msra.mxu0 0.0
          %2642 = vmatprep.mubr.f32.mxu0 0.0
          %v2643 = vand.u32 %v1588, 4294901760
          %2644 = vmatmul.mubr.f32.gmra.mrb[0].mxu0 %v2643
          %v2645 = vpop.f32.mrb[0].mxu0
          %v2646 = vadd.f32 %v2483, %v2645
          %v2647 = vpop.f32.mrb[0].mxu0
          %2648 = vmatprep.mubr.f32.mxu0 0.0
          %v2649 = vand.u32 %v1591, 4294901760
          %2650 = vmatmul.mubr.f32.gmra.mrb[0].mxu0 %v2649
          %v2651 = vpop.f32.mrb[0].mxu0
          %v2652 = vadd.f32 %v2489, %v2651
          %v2653 = vpop.f32.mrb[0].mxu0
          %2654 = vmatprep.mubr.f32.mxu0 0.0
          %v2655 = vand.u32 %v1594, 4294901760
          %2656 = vmatmul.mubr.f32.gmra.mrb[0].mxu0 %v2655
          %v2657 = vpop.f32.mrb[0].mxu0
          %v2658 = vadd.f32 %v2495, %v2657
          %v2659 = vpop.f32.mrb[0].mxu0
          %2660 = vmatprep.mubr.f32.mxu0 0.0
          %v2661 = vand.u32 %v1597, 4294901760
          %2662 = vmatmul.mubr.f32.gmra.mrb[0].mxu0 %v2661
          %v2663 = vpop.f32.mrb[0].mxu0
          %v2664 = vadd.f32 %v2501, %v2663
          %v2665 = vpop.f32.mrb[0].mxu0
          %2666 = vmatprep.mubr.f32.mxu0 0.0
          %v2667 = vand.u32 %v1600, 4294901760
          %2668 = vmatmul.mubr.f32.gmra.mrb[0].mxu0 %v2667
          %v2669 = vpop.f32.mrb[0].mxu0
          %v2670 = vadd.f32 %v2507, %v2669
          %v2671 = vpop.f32.mrb[0].mxu0
          %2672 = vmatprep.mubr.f32.mxu0 0.0
          %v2673 = vand.u32 %v1603, 4294901760
          %2674 = vmatmul.mubr.f32.gmra.mrb[0].mxu0 %v2673
          %v2675 = vpop.f32.mrb[0].mxu0
          %v2676 = vadd.f32 %v2513, %v2675
          %v2677 = vpop.f32.mrb[0].mxu0
          %2678 = vmatprep.mubr.f32.mxu0 0.0
          %v2679 = vand.u32 %v1606, 4294901760
          %2680 = vmatmul.mubr.f32.gmra.mrb[0].mxu0 %v2679
          %v2681 = vpop.f32.mrb[0].mxu0
          %v2682 = vadd.f32 %v2519, %v2681
          %v2683 = vpop.f32.mrb[0].mxu0
          %2684 = vmatprep.mubr.f32.mxu0 0.0
          %v2685 = vand.u32 %v1609, 4294901760
          %2686 = vmatmul.mubr.f32.gmra.mrb[0].mxu0 %v2685
          %v2687 = vpop.f32.mrb[0].mxu0
          %v2688 = vadd.f32 %v2525, %v2687
          %v2689 = vpop.f32.mrb[0].mxu0
          %2690 = vmatprep.mubr.f32.mxu0 0.0
          %v2691 = vand.u32 %v1612, 4294901760
          %2692 = vmatmul.mubr.f32.gmra.mrb[0].mxu0 %v2691
          %v2693 = vpop.f32.mrb[0].mxu0
          %v2694 = vadd.f32 %v2531, %v2693
          %v2695 = vpop.f32.mrb[0].mxu0
          %2696 = vmatprep.mubr.f32.mxu0 0.0
          %v2697 = vand.u32 %v1615, 4294901760
          %2698 = vmatmul.mubr.f32.gmra.mrb[0].mxu0 %v2697
          %v2699 = vpop.f32.mrb[0].mxu0
          %v2700 = vadd.f32 %v2537, %v2699
          %v2701 = vpop.f32.mrb[0].mxu0
          %2702 = vmatprep.mubr.f32.mxu0 0.0
          %v2703 = vand.u32 %v1618, 4294901760
          %2704 = vmatmul.mubr.f32.gmra.mrb[0].mxu0 %v2703
          %v2705 = vpop.f32.mrb[0].mxu0
          %v2706 = vadd.f32 %v2543, %v2705
          %v2707 = vpop.f32.mrb[0].mxu0
          %2708 = vmatprep.mubr.f32.mxu0 0.0
          %v2709 = vand.u32 %v1621, 4294901760
          %2710 = vmatmul.mubr.f32.gmra.mrb[0].mxu0 %v2709
          %v2711 = vpop.f32.mrb[0].mxu0
          %v2712 = vadd.f32 %v2549, %v2711
          %v2713 = vpop.f32.mrb[0].mxu0
          %2714 = vmatprep.mubr.f32.mxu0 0.0
          %v2715 = vand.u32 %v1624, 4294901760
          %2716 = vmatmul.mubr.f32.gmra.mrb[0].mxu0 %v2715
          %v2717 = vpop.f32.mrb[0].mxu0
          %v2718 = vadd.f32 %v2555, %v2717
          %v2719 = vpop.f32.mrb[0].mxu0
          %2720 = vmatprep.mubr.f32.mxu0 0.0
          %v2721 = vand.u32 %v1627, 4294901760
          %2722 = vmatmul.mubr.f32.gmra.mrb[0].mxu0 %v2721
          %v2723 = vpop.f32.mrb[0].mxu0
          %v2724 = vadd.f32 %v2561, %v2723
          %v2725 = vpop.f32.mrb[0].mxu0
          %2726 = vmatprep.mubr.f32.mxu0 0.0
          %v2727 = vand.u32 %v1630, 4294901760
          %2728 = vmatmul.mubr.f32.gmra.mrb[0].mxu0 %v2727
          %v2729 = vpop.f32.mrb[0].mxu0
          %v2730 = vadd.f32 %v2567, %v2729
          %v2731 = vpop.f32.mrb[0].mxu0
          %2732 = vmatprep.mubr.f32.mxu0 0.0
          %v2733 = vand.u32 %v1633, 4294901760
          %2734 = vmatmul.mubr.f32.gmra.mrb[0].mxu0 %v2733
          %v2735 = vpop.f32.mrb[0].mxu0
          %v2736 = vadd.f32 %v2573, %v2735
          %v2737 = vpop.f32.mrb[0].mxu0
          %2738 = vdwg.mxu0
          %2739 = vmatprep.subr.mxu0 0.0
          %2740 = vmatpush1.msra.mxu0 1.0
          %2741 = vmatprep.subr.mxu0 0.0
          %2742 = vmatpush1.msra.mxu0 1.0
          %2743 = vmatprep.subr.mxu0 0.0
          %2744 = vmatpush1.msra.mxu0 0.0
          %2745 = vmatprep.subr.mxu0 0.0
          %2746 = vmatpush1.msra.mxu0 0.0
          %2747 = vmatprep.subr.mxu0 0.0
          %2748 = vmatpush1.msra.mxu0 0.0
          %2749 = vmatprep.subr.mxu0 0.0
          %2750 = vmatpush1.msra.mxu0 0.0
          %2751 = vmatprep.subr.mxu0 0.0
          %2752 = vmatpush1.msra.mxu0 0.0
          %2753 = vmatprep.subr.mxu0 0.0
          %2754 = vmatpush1.msra.mxu0 0.0
          %2755 = vmatprep.subr.mxu0 0.0
          %2756 = vmatpush1.msra.mxu0 0.0
          %2757 = vmatprep.subr.mxu0 0.0
          %2758 = vmatpush1.msra.mxu0 0.0
          %2759 = vmatprep.subr.mxu0 0.0
          %2760 = vmatpush1.msra.mxu0 0.0
          %2761 = vmatprep.subr.mxu0 0.0
          %2762 = vmatpush1.msra.mxu0 0.0
          %2763 = vmatprep.subr.mxu0 0.0
          %2764 = vmatpush1.msra.mxu0 0.0
          %2765 = vmatprep.subr.mxu0 0.0
          %2766 = vmatpush1.msra.mxu0 0.0
          %2767 = vmatprep.subr.mxu0 0.0
          %2768 = vmatpush1.msra.mxu0 0.0
          %2769 = vmatprep.subr.mxu0 0.0
          %2770 = vmatpush1.msra.mxu0 0.0
          %2771 = vmatprep.subr.mxu0 0.0
          %2772 = vmatpush1.msra.mxu0 0.0
          %2773 = vmatprep.subr.mxu0 0.0
          %2774 = vmatpush1.msra.mxu0 0.0
          %2775 = vmatprep.subr.mxu0 0.0
          %2776 = vmatpush1.msra.mxu0 0.0
          %2777 = vmatprep.subr.mxu0 0.0
          %2778 = vmatpush1.msra.mxu0 0.0
          %2779 = vmatprep.subr.mxu0 0.0
          %2780 = vmatpush1.msra.mxu0 0.0
          %2781 = vmatprep.subr.mxu0 0.0
          %2782 = vmatpush1.msra.mxu0 0.0
          %2783 = vmatprep.subr.mxu0 0.0
          %2784 = vmatpush1.msra.mxu0 0.0
          %2785 = vmatprep.subr.mxu0 0.0
          %2786 = vmatpush1.msra.mxu0 0.0
          %2787 = vmatprep.subr.mxu0 0.0
          %2788 = vmatpush1.msra.mxu0 0.0
          %2789 = vmatprep.subr.mxu0 0.0
          %2790 = vmatpush1.msra.mxu0 0.0
          %2791 = vmatprep.subr.mxu0 0.0
          %2792 = vmatpush1.msra.mxu0 0.0
          %2793 = vmatprep.subr.mxu0 0.0
          %2794 = vmatpush1.msra.mxu0 0.0
          %2795 = vmatprep.subr.mxu0 0.0
          %2796 = vmatpush1.msra.mxu0 0.0
          %2797 = vmatprep.subr.mxu0 0.0
          %2798 = vmatpush1.msra.mxu0 0.0
          %2799 = vmatprep.subr.mxu0 0.0
          %2800 = vmatpush1.msra.mxu0 0.0
          %2801 = vmatprep.subr.mxu0 0.0
          %2802 = vmatpush1.msra.mxu0 0.0
          %2803 = vmatprep.mubr.f32.mxu0 0.0
          %v2804 = vand.u32 %v1588, 4294901760
          %v2805 = vsub.f32 %v1588, %v2804
          %v2806 = vand.u32 %v2805, 4294901760
          %v2807 = vsub.f32 %v2805, %v2806
          %v2808 = vand.u32 %v2807, 4294901760
          %2809 = vmatmul.mubr.f32.gmra.mrb[0].mxu0 %v2808
          %v2810 = vpop.f32.mrb[0].mxu0
          %v2811 = vadd.f32 0.0, %v2810
          %v2812 = vpop.f32.mrb[0].mxu0
          %2813 = vmatprep.mubr.f32.mxu0 0.0
          %v2814 = vand.u32 %v1591, 4294901760
          %v2815 = vsub.f32 %v1591, %v2814
          %v2816 = vand.u32 %v2815, 4294901760
          %v2817 = vsub.f32 %v2815, %v2816
          %v2818 = vand.u32 %v2817, 4294901760
          %2819 = vmatmul.mubr.f32.gmra.mrb[0].mxu0 %v2818
          %v2820 = vpop.f32.mrb[0].mxu0
          %v2821 = vadd.f32 0.0, %v2820
          %v2822 = vpop.f32.mrb[0].mxu0
          %2823 = vmatprep.mubr.f32.mxu0 0.0
          %v2824 = vand.u32 %v1594, 4294901760
          %v2825 = vsub.f32 %v1594, %v2824
          %v2826 = vand.u32 %v2825, 4294901760
          %v2827 = vsub.f32 %v2825, %v2826
          %v2828 = vand.u32 %v2827, 4294901760
          %2829 = vmatmul.mubr.f32.gmra.mrb[0].mxu0 %v2828
          %v2830 = vpop.f32.mrb[0].mxu0
          %v2831 = vadd.f32 0.0, %v2830
          %v2832 = vpop.f32.mrb[0].mxu0
          %2833 = vmatprep.mubr.f32.mxu0 0.0
          %v2834 = vand.u32 %v1597, 4294901760
          %v2835 = vsub.f32 %v1597, %v2834
          %v2836 = vand.u32 %v2835, 4294901760
          %v2837 = vsub.f32 %v2835, %v2836
          %v2838 = vand.u32 %v2837, 4294901760
          %2839 = vmatmul.mubr.f32.gmra.mrb[0].mxu0 %v2838
          %v2840 = vpop.f32.mrb[0].mxu0
          %v2841 = vadd.f32 0.0, %v2840
          %v2842 = vpop.f32.mrb[0].mxu0
          %2843 = vmatprep.mubr.f32.mxu0 0.0
          %v2844 = vand.u32 %v1600, 4294901760
          %v2845 = vsub.f32 %v1600, %v2844
          %v2846 = vand.u32 %v2845, 4294901760
          %v2847 = vsub.f32 %v2845, %v2846
          %v2848 = vand.u32 %v2847, 4294901760
          %2849 = vmatmul.mubr.f32.gmra.mrb[0].mxu0 %v2848
          %v2850 = vpop.f32.mrb[0].mxu0
          %v2851 = vadd.f32 0.0, %v2850
          %v2852 = vpop.f32.mrb[0].mxu0
          %2853 = vmatprep.mubr.f32.mxu0 0.0
          %v2854 = vand.u32 %v1603, 4294901760
          %v2855 = vsub.f32 %v1603, %v2854
          %v2856 = vand.u32 %v2855, 4294901760
          %v2857 = vsub.f32 %v2855, %v2856
          %v2858 = vand.u32 %v2857, 4294901760
          %2859 = vmatmul.mubr.f32.gmra.mrb[0].mxu0 %v2858
          %v2860 = vpop.f32.mrb[0].mxu0
          %v2861 = vadd.f32 0.0, %v2860
          %v2862 = vpop.f32.mrb[0].mxu0
          %2863 = vmatprep.mubr.f32.mxu0 0.0
          %v2864 = vand.u32 %v1606, 4294901760
          %v2865 = vsub.f32 %v1606, %v2864
          %v2866 = vand.u32 %v2865, 4294901760
          %v2867 = vsub.f32 %v2865, %v2866
          %v2868 = vand.u32 %v2867, 4294901760
          %2869 = vmatmul.mubr.f32.gmra.mrb[0].mxu0 %v2868
          %v2870 = vpop.f32.mrb[0].mxu0
          %v2871 = vadd.f32 0.0, %v2870
          %v2872 = vpop.f32.mrb[0].mxu0
          %2873 = vmatprep.mubr.f32.mxu0 0.0
          %v2874 = vand.u32 %v1609, 4294901760
          %v2875 = vsub.f32 %v1609, %v2874
          %v2876 = vand.u32 %v2875, 4294901760
          %v2877 = vsub.f32 %v2875, %v2876
          %v2878 = vand.u32 %v2877, 4294901760
          %2879 = vmatmul.mubr.f32.gmra.mrb[0].mxu0 %v2878
          %v2880 = vpop.f32.mrb[0].mxu0
          %v2881 = vadd.f32 0.0, %v2880
          %v2882 = vpop.f32.mrb[0].mxu0
          %2883 = vmatprep.mubr.f32.mxu0 0.0
          %v2884 = vand.u32 %v1612, 4294901760
          %v2885 = vsub.f32 %v1612, %v2884
          %v2886 = vand.u32 %v2885, 4294901760
          %v2887 = vsub.f32 %v2885, %v2886
          %v2888 = vand.u32 %v2887, 4294901760
          %2889 = vmatmul.mubr.f32.gmra.mrb[0].mxu0 %v2888
          %v2890 = vpop.f32.mrb[0].mxu0
          %v2891 = vadd.f32 0.0, %v2890
          %v2892 = vpop.f32.mrb[0].mxu0
          %2893 = vmatprep.mubr.f32.mxu0 0.0
          %v2894 = vand.u32 %v1615, 4294901760
          %v2895 = vsub.f32 %v1615, %v2894
          %v2896 = vand.u32 %v2895, 4294901760
          %v2897 = vsub.f32 %v2895, %v2896
          %v2898 = vand.u32 %v2897, 4294901760
          %2899 = vmatmul.mubr.f32.gmra.mrb[0].mxu0 %v2898
          %v2900 = vpop.f32.mrb[0].mxu0
          %v2901 = vadd.f32 0.0, %v2900
          %v2902 = vpop.f32.mrb[0].mxu0
          %2903 = vmatprep.mubr.f32.mxu0 0.0
          %v2904 = vand.u32 %v1618, 4294901760
          %v2905 = vsub.f32 %v1618, %v2904
          %v2906 = vand.u32 %v2905, 4294901760
          %v2907 = vsub.f32 %v2905, %v2906
          %v2908 = vand.u32 %v2907, 4294901760
          %2909 = vmatmul.mubr.f32.gmra.mrb[0].mxu0 %v2908
          %v2910 = vpop.f32.mrb[0].mxu0
          %v2911 = vadd.f32 0.0, %v2910
          %v2912 = vpop.f32.mrb[0].mxu0
          %2913 = vmatprep.mubr.f32.mxu0 0.0
          %v2914 = vand.u32 %v1621, 4294901760
          %v2915 = vsub.f32 %v1621, %v2914
          %v2916 = vand.u32 %v2915, 4294901760
          %v2917 = vsub.f32 %v2915, %v2916
          %v2918 = vand.u32 %v2917, 4294901760
          %2919 = vmatmul.mubr.f32.gmra.mrb[0].mxu0 %v2918
          %v2920 = vpop.f32.mrb[0].mxu0
          %v2921 = vadd.f32 0.0, %v2920
          %v2922 = vpop.f32.mrb[0].mxu0
          %2923 = vmatprep.mubr.f32.mxu0 0.0
          %v2924 = vand.u32 %v1624, 4294901760
          %v2925 = vsub.f32 %v1624, %v2924
          %v2926 = vand.u32 %v2925, 4294901760
          %v2927 = vsub.f32 %v2925, %v2926
          %v2928 = vand.u32 %v2927, 4294901760
          %2929 = vmatmul.mubr.f32.gmra.mrb[0].mxu0 %v2928
          %v2930 = vpop.f32.mrb[0].mxu0
          %v2931 = vadd.f32 0.0, %v2930
          %v2932 = vpop.f32.mrb[0].mxu0
          %2933 = vmatprep.mubr.f32.mxu0 0.0
          %v2934 = vand.u32 %v1627, 4294901760
          %v2935 = vsub.f32 %v1627, %v2934
          %v2936 = vand.u32 %v2935, 4294901760
          %v2937 = vsub.f32 %v2935, %v2936
          %v2938 = vand.u32 %v2937, 4294901760
          %2939 = vmatmul.mubr.f32.gmra.mrb[0].mxu0 %v2938
          %v2940 = vpop.f32.mrb[0].mxu0
          %v2941 = vadd.f32 0.0, %v2940
          %v2942 = vpop.f32.mrb[0].mxu0
          %2943 = vmatprep.mubr.f32.mxu0 0.0
          %v2944 = vand.u32 %v1630, 4294901760
          %v2945 = vsub.f32 %v1630, %v2944
          %v2946 = vand.u32 %v2945, 4294901760
          %v2947 = vsub.f32 %v2945, %v2946
          %v2948 = vand.u32 %v2947, 4294901760
          %2949 = vmatmul.mubr.f32.gmra.mrb[0].mxu0 %v2948
          %v2950 = vpop.f32.mrb[0].mxu0
          %v2951 = vadd.f32 0.0, %v2950
          %v2952 = vpop.f32.mrb[0].mxu0
          %2953 = vmatprep.mubr.f32.mxu0 0.0
          %v2954 = vand.u32 %v1633, 4294901760
          %v2955 = vsub.f32 %v1633, %v2954
          %v2956 = vand.u32 %v2955, 4294901760
          %v2957 = vsub.f32 %v2955, %v2956
          %v2958 = vand.u32 %v2957, 4294901760
          %2959 = vmatmul.mubr.f32.gmra.mrb[0].mxu0 %v2958
          %v2960 = vpop.f32.mrb[0].mxu0
          %v2961 = vadd.f32 0.0, %v2960
          %v2962 = vpop.f32.mrb[0].mxu0
          %2963 = vdwg.mxu0
          %2964 = vmatprep.subr.mxu0 0.0
          %2965 = vmatpush1.msra.mxu0 0.0
          %2966 = vmatprep.subr.mxu0 0.0
          %2967 = vmatpush1.msra.mxu0 0.0
          %2968 = vmatprep.subr.mxu0 0.0
          %2969 = vmatpush1.msra.mxu0 0.0
          %2970 = vmatprep.subr.mxu0 0.0
          %2971 = vmatpush1.msra.mxu0 0.0
          %2972 = vmatprep.subr.mxu0 0.0
          %2973 = vmatpush1.msra.mxu0 0.0
          %2974 = vmatprep.subr.mxu0 0.0
          %2975 = vmatpush1.msra.mxu0 0.0
          %2976 = vmatprep.subr.mxu0 0.0
          %2977 = vmatpush1.msra.mxu0 0.0
          %2978 = vmatprep.subr.mxu0 0.0
          %2979 = vmatpush1.msra.mxu0 0.0
          %2980 = vmatprep.subr.mxu0 0.0
          %2981 = vmatpush1.msra.mxu0 0.0
          %2982 = vmatprep.subr.mxu0 0.0
          %2983 = vmatpush1.msra.mxu0 0.0
          %2984 = vmatprep.subr.mxu0 0.0
          %2985 = vmatpush1.msra.mxu0 0.0
          %2986 = vmatprep.subr.mxu0 0.0
          %2987 = vmatpush1.msra.mxu0 0.0
          %2988 = vmatprep.subr.mxu0 0.0
          %2989 = vmatpush1.msra.mxu0 0.0
          %2990 = vmatprep.subr.mxu0 0.0
          %2991 = vmatpush1.msra.mxu0 0.0
          %2992 = vmatprep.subr.mxu0 0.0
          %2993 = vmatpush1.msra.mxu0 0.0
          %2994 = vmatprep.subr.mxu0 0.0
          %2995 = vmatpush1.msra.mxu0 0.0
          %2996 = vmatprep.subr.mxu0 0.0
          %2997 = vmatpush1.msra.mxu0 0.0
          %2998 = vmatprep.subr.mxu0 0.0
          %2999 = vmatpush1.msra.mxu0 0.0
          %3000 = vmatprep.subr.mxu0 0.0
          %3001 = vmatpush1.msra.mxu0 0.0
          %3002 = vmatprep.subr.mxu0 0.0
          %3003 = vmatpush1.msra.mxu0 0.0
          %3004 = vmatprep.subr.mxu0 0.0
          %3005 = vmatpush1.msra.mxu0 0.0
          %3006 = vmatprep.subr.mxu0 0.0
          %3007 = vmatpush1.msra.mxu0 0.0
          %3008 = vmatprep.subr.mxu0 0.0
          %3009 = vmatpush1.msra.mxu0 0.0
          %3010 = vmatprep.subr.mxu0 0.0
          %3011 = vmatpush1.msra.mxu0 0.0
          %3012 = vmatprep.subr.mxu0 0.0
          %3013 = vmatpush1.msra.mxu0 0.0
          %3014 = vmatprep.subr.mxu0 0.0
          %3015 = vmatpush1.msra.mxu0 0.0
          %3016 = vmatprep.subr.mxu0 0.0
          %3017 = vmatpush1.msra.mxu0 0.0
          %3018 = vmatprep.subr.mxu0 0.0
          %3019 = vmatpush1.msra.mxu0 0.0
          %3020 = vmatprep.subr.mxu0 0.0
          %3021 = vmatpush1.msra.mxu0 0.0
          %3022 = vmatprep.subr.mxu0 0.0
          %3023 = vmatpush1.msra.mxu0 0.0
          %3024 = vmatprep.subr.mxu0 0.0
          %3025 = vmatpush1.msra.mxu0 0.0
          %3026 = vmatprep.subr.mxu0 0.0
          %3027 = vmatpush1.msra.mxu0 0.0
          %3028 = vmatprep.mubr.f32.mxu0 0.0
          %v3029 = vand.u32 %v1588, 4294901760
          %3030 = vmatmul.mubr.f32.gmra.mrb[0].mxu0 %v3029
          %v3031 = vpop.f32.mrb[0].mxu0
          %v3032 = vadd.f32 %v2811, %v3031
          %v3033 = vpop.f32.mrb[0].mxu0
          %3034 = vmatprep.mubr.f32.mxu0 0.0
          %v3035 = vand.u32 %v1591, 4294901760
          %3036 = vmatmul.mubr.f32.gmra.mrb[0].mxu0 %v3035
          %v3037 = vpop.f32.mrb[0].mxu0
          %v3038 = vadd.f32 %v2821, %v3037
          %v3039 = vpop.f32.mrb[0].mxu0
          %3040 = vmatprep.mubr.f32.mxu0 0.0
          %v3041 = vand.u32 %v1594, 4294901760
          %3042 = vmatmul.mubr.f32.gmra.mrb[0].mxu0 %v3041
          %v3043 = vpop.f32.mrb[0].mxu0
          %v3044 = vadd.f32 %v2831, %v3043
          %v3045 = vpop.f32.mrb[0].mxu0
          %3046 = vmatprep.mubr.f32.mxu0 0.0
          %v3047 = vand.u32 %v1597, 4294901760
          %3048 = vmatmul.mubr.f32.gmra.mrb[0].mxu0 %v3047
          %v3049 = vpop.f32.mrb[0].mxu0
          %v3050 = vadd.f32 %v2841, %v3049
          %v3051 = vpop.f32.mrb[0].mxu0
          %3052 = vmatprep.mubr.f32.mxu0 0.0
          %v3053 = vand.u32 %v1600, 4294901760
          %3054 = vmatmul.mubr.f32.gmra.mrb[0].mxu0 %v3053
          %v3055 = vpop.f32.mrb[0].mxu0
          %v3056 = vadd.f32 %v2851, %v3055
          %v3057 = vpop.f32.mrb[0].mxu0
          %3058 = vmatprep.mubr.f32.mxu0 0.0
          %v3059 = vand.u32 %v1603, 4294901760
          %3060 = vmatmul.mubr.f32.gmra.mrb[0].mxu0 %v3059
          %v3061 = vpop.f32.mrb[0].mxu0
          %v3062 = vadd.f32 %v2861, %v3061
          %v3063 = vpop.f32.mrb[0].mxu0
          %3064 = vmatprep.mubr.f32.mxu0 0.0
          %v3065 = vand.u32 %v1606, 4294901760
          %3066 = vmatmul.mubr.f32.gmra.mrb[0].mxu0 %v3065
          %v3067 = vpop.f32.mrb[0].mxu0
          %v3068 = vadd.f32 %v2871, %v3067
          %v3069 = vpop.f32.mrb[0].mxu0
          %3070 = vmatprep.mubr.f32.mxu0 0.0
          %v3071 = vand.u32 %v1609, 4294901760
          %3072 = vmatmul.mubr.f32.gmra.mrb[0].mxu0 %v3071
          %v3073 = vpop.f32.mrb[0].mxu0
          %v3074 = vadd.f32 %v2881, %v3073
          %v3075 = vpop.f32.mrb[0].mxu0
          %3076 = vmatprep.mubr.f32.mxu0 0.0
          %v3077 = vand.u32 %v1612, 4294901760
          %3078 = vmatmul.mubr.f32.gmra.mrb[0].mxu0 %v3077
          %v3079 = vpop.f32.mrb[0].mxu0
          %v3080 = vadd.f32 %v2891, %v3079
          %v3081 = vpop.f32.mrb[0].mxu0
          %3082 = vmatprep.mubr.f32.mxu0 0.0
          %v3083 = vand.u32 %v1615, 4294901760
          %3084 = vmatmul.mubr.f32.gmra.mrb[0].mxu0 %v3083
          %v3085 = vpop.f32.mrb[0].mxu0
          %v3086 = vadd.f32 %v2901, %v3085
          %v3087 = vpop.f32.mrb[0].mxu0
          %3088 = vmatprep.mubr.f32.mxu0 0.0
          %v3089 = vand.u32 %v1618, 4294901760
          %3090 = vmatmul.mubr.f32.gmra.mrb[0].mxu0 %v3089
          %v3091 = vpop.f32.mrb[0].mxu0
          %v3092 = vadd.f32 %v2911, %v3091
          %v3093 = vpop.f32.mrb[0].mxu0
          %3094 = vmatprep.mubr.f32.mxu0 0.0
          %v3095 = vand.u32 %v1621, 4294901760
          %3096 = vmatmul.mubr.f32.gmra.mrb[0].mxu0 %v3095
          %v3097 = vpop.f32.mrb[0].mxu0
          %v3098 = vadd.f32 %v2921, %v3097
          %v3099 = vpop.f32.mrb[0].mxu0
          %3100 = vmatprep.mubr.f32.mxu0 0.0
          %v3101 = vand.u32 %v1624, 4294901760
          %3102 = vmatmul.mubr.f32.gmra.mrb[0].mxu0 %v3101
          %v3103 = vpop.f32.mrb[0].mxu0
          %v3104 = vadd.f32 %v2931, %v3103
          %v3105 = vpop.f32.mrb[0].mxu0
          %3106 = vmatprep.mubr.f32.mxu0 0.0
          %v3107 = vand.u32 %v1627, 4294901760
          %3108 = vmatmul.mubr.f32.gmra.mrb[0].mxu0 %v3107
          %v3109 = vpop.f32.mrb[0].mxu0
          %v3110 = vadd.f32 %v2941, %v3109
          %v3111 = vpop.f32.mrb[0].mxu0
          %3112 = vmatprep.mubr.f32.mxu0 0.0
          %v3113 = vand.u32 %v1630, 4294901760
          %3114 = vmatmul.mubr.f32.gmra.mrb[0].mxu0 %v3113
          %v3115 = vpop.f32.mrb[0].mxu0
          %v3116 = vadd.f32 %v2951, %v3115
          %v3117 = vpop.f32.mrb[0].mxu0
          %3118 = vmatprep.mubr.f32.mxu0 0.0
          %v3119 = vand.u32 %v1633, 4294901760
          %3120 = vmatmul.mubr.f32.gmra.mrb[0].mxu0 %v3119
          %v3121 = vpop.f32.mrb[0].mxu0
          %v3122 = vadd.f32 %v2961, %v3121
          %v3123 = vpop.f32.mrb[0].mxu0
          %3124 = vdwg.mxu0
          %3125 = vmatprep.subr.mxu0 0.0
          %3126 = vmatpush1.msra.mxu0 0.0
          %3127 = vmatprep.subr.mxu0 0.0
          %3128 = vmatpush1.msra.mxu0 0.0
          %3129 = vmatprep.subr.mxu0 0.0
          %3130 = vmatpush1.msra.mxu0 0.0
          %3131 = vmatprep.subr.mxu0 0.0
          %3132 = vmatpush1.msra.mxu0 0.0
          %3133 = vmatprep.subr.mxu0 0.0
          %3134 = vmatpush1.msra.mxu0 0.0
          %3135 = vmatprep.subr.mxu0 0.0
          %3136 = vmatpush1.msra.mxu0 0.0
          %3137 = vmatprep.subr.mxu0 0.0
          %3138 = vmatpush1.msra.mxu0 0.0
          %3139 = vmatprep.subr.mxu0 0.0
          %3140 = vmatpush1.msra.mxu0 0.0
          %3141 = vmatprep.subr.mxu0 0.0
          %3142 = vmatpush1.msra.mxu0 0.0
          %3143 = vmatprep.subr.mxu0 0.0
          %3144 = vmatpush1.msra.mxu0 0.0
          %3145 = vmatprep.subr.mxu0 0.0
          %3146 = vmatpush1.msra.mxu0 0.0
          %3147 = vmatprep.subr.mxu0 0.0
          %3148 = vmatpush1.msra.mxu0 0.0
          %3149 = vmatprep.subr.mxu0 0.0
          %3150 = vmatpush1.msra.mxu0 0.0
          %3151 = vmatprep.subr.mxu0 0.0
          %3152 = vmatpush1.msra.mxu0 0.0
          %3153 = vmatprep.subr.mxu0 0.0
          %3154 = vmatpush1.msra.mxu0 0.0
          %3155 = vmatprep.subr.mxu0 0.0
          %3156 = vmatpush1.msra.mxu0 0.0
          %3157 = vmatprep.subr.mxu0 0.0
          %3158 = vmatpush1.msra.mxu0 0.0
          %3159 = vmatprep.subr.mxu0 0.0
          %3160 = vmatpush1.msra.mxu0 0.0
          %3161 = vmatprep.subr.mxu0 0.0
          %3162 = vmatpush1.msra.mxu0 0.0
          %3163 = vmatprep.subr.mxu0 0.0
          %3164 = vmatpush1.msra.mxu0 0.0
          %3165 = vmatprep.subr.mxu0 0.0
          %3166 = vmatpush1.msra.mxu0 0.0
          %3167 = vmatprep.subr.mxu0 0.0
          %3168 = vmatpush1.msra.mxu0 0.0
          %3169 = vmatprep.subr.mxu0 0.0
          %3170 = vmatpush1.msra.mxu0 0.0
          %3171 = vmatprep.subr.mxu0 0.0
          %3172 = vmatpush1.msra.mxu0 0.0
          %3173 = vmatprep.subr.mxu0 0.0
          %3174 = vmatpush1.msra.mxu0 0.0
          %3175 = vmatprep.subr.mxu0 0.0
          %3176 = vmatpush1.msra.mxu0 0.0
          %3177 = vmatprep.subr.mxu0 0.0
          %3178 = vmatpush1.msra.mxu0 0.0
          %3179 = vmatprep.subr.mxu0 0.0
          %3180 = vmatpush1.msra.mxu0 0.0
          %3181 = vmatprep.subr.mxu0 0.0
          %3182 = vmatpush1.msra.mxu0 0.0
          %3183 = vmatprep.subr.mxu0 0.0
          %3184 = vmatpush1.msra.mxu0 0.0
          %3185 = vmatprep.subr.mxu0 0.0
          %3186 = vmatpush1.msra.mxu0 0.0
          %3187 = vmatprep.subr.mxu0 0.0
          %3188 = vmatpush1.msra.mxu0 0.0
          %3189 = vmatprep.mubr.f32.mxu0 0.0
          %v3190 = vand.u32 %v1588, 4294901760
          %v3191 = vsub.f32 %v1588, %v3190
          %3192 = vmatmul.mubr.f32.gmra.mrb[0].mxu0 %v3191
          %v3193 = vpop.f32.mrb[0].mxu0
          %v3194 = vadd.f32 %v3032, %v3193
          %v3195 = vpop.f32.mrb[0].mxu0
          %3196 = vmatprep.mubr.f32.mxu0 0.0
          %v3197 = vand.u32 %v1591, 4294901760
          %v3198 = vsub.f32 %v1591, %v3197
          %3199 = vmatmul.mubr.f32.gmra.mrb[0].mxu0 %v3198
          %v3200 = vpop.f32.mrb[0].mxu0
          %v3201 = vadd.f32 %v3038, %v3200
          %v3202 = vpop.f32.mrb[0].mxu0
          %3203 = vmatprep.mubr.f32.mxu0 0.0
          %v3204 = vand.u32 %v1594, 4294901760
          %v3205 = vsub.f32 %v1594, %v3204
          %3206 = vmatmul.mubr.f32.gmra.mrb[0].mxu0 %v3205
          %v3207 = vpop.f32.mrb[0].mxu0
          %v3208 = vadd.f32 %v3044, %v3207
          %v3209 = vpop.f32.mrb[0].mxu0
          %3210 = vmatprep.mubr.f32.mxu0 0.0
          %v3211 = vand.u32 %v1597, 4294901760
          %v3212 = vsub.f32 %v1597, %v3211
          %3213 = vmatmul.mubr.f32.gmra.mrb[0].mxu0 %v3212
          %v3214 = vpop.f32.mrb[0].mxu0
          %v3215 = vadd.f32 %v3050, %v3214
          %v3216 = vpop.f32.mrb[0].mxu0
          %3217 = vmatprep.mubr.f32.mxu0 0.0
          %v3218 = vand.u32 %v1600, 4294901760
          %v3219 = vsub.f32 %v1600, %v3218
          %3220 = vmatmul.mubr.f32.gmra.mrb[0].mxu0 %v3219
          %v3221 = vpop.f32.mrb[0].mxu0
          %v3222 = vadd.f32 %v3056, %v3221
          %v3223 = vpop.f32.mrb[0].mxu0
          %3224 = vmatprep.mubr.f32.mxu0 0.0
          %v3225 = vand.u32 %v1603, 4294901760
          %v3226 = vsub.f32 %v1603, %v3225
          %3227 = vmatmul.mubr.f32.gmra.mrb[0].mxu0 %v3226
          %v3228 = vpop.f32.mrb[0].mxu0
          %v3229 = vadd.f32 %v3062, %v3228
          %v3230 = vpop.f32.mrb[0].mxu0
          %3231 = vmatprep.mubr.f32.mxu0 0.0
          %v3232 = vand.u32 %v1606, 4294901760
          %v3233 = vsub.f32 %v1606, %v3232
          %3234 = vmatmul.mubr.f32.gmra.mrb[0].mxu0 %v3233
          %v3235 = vpop.f32.mrb[0].mxu0
          %v3236 = vadd.f32 %v3068, %v3235
          %v3237 = vpop.f32.mrb[0].mxu0
          %3238 = vmatprep.mubr.f32.mxu0 0.0
          %v3239 = vand.u32 %v1609, 4294901760
          %v3240 = vsub.f32 %v1609, %v3239
          %3241 = vmatmul.mubr.f32.gmra.mrb[0].mxu0 %v3240
          %v3242 = vpop.f32.mrb[0].mxu0
          %v3243 = vadd.f32 %v3074, %v3242
          %v3244 = vpop.f32.mrb[0].mxu0
          %3245 = vmatprep.mubr.f32.mxu0 0.0
          %v3246 = vand.u32 %v1612, 4294901760
          %v3247 = vsub.f32 %v1612, %v3246
          %3248 = vmatmul.mubr.f32.gmra.mrb[0].mxu0 %v3247
          %v3249 = vpop.f32.mrb[0].mxu0
          %v3250 = vadd.f32 %v3080, %v3249
          %v3251 = vpop.f32.mrb[0].mxu0
          %3252 = vmatprep.mubr.f32.mxu0 0.0
          %v3253 = vand.u32 %v1615, 4294901760
          %v3254 = vsub.f32 %v1615, %v3253
          %3255 = vmatmul.mubr.f32.gmra.mrb[0].mxu0 %v3254
          %v3256 = vpop.f32.mrb[0].mxu0
          %v3257 = vadd.f32 %v3086, %v3256
          %v3258 = vpop.f32.mrb[0].mxu0
          %3259 = vmatprep.mubr.f32.mxu0 0.0
          %v3260 = vand.u32 %v1618, 4294901760
          %v3261 = vsub.f32 %v1618, %v3260
          %3262 = vmatmul.mubr.f32.gmra.mrb[0].mxu0 %v3261
          %v3263 = vpop.f32.mrb[0].mxu0
          %v3264 = vadd.f32 %v3092, %v3263
          %v3265 = vpop.f32.mrb[0].mxu0
          %3266 = vmatprep.mubr.f32.mxu0 0.0
          %v3267 = vand.u32 %v1621, 4294901760
          %v3268 = vsub.f32 %v1621, %v3267
          %3269 = vmatmul.mubr.f32.gmra.mrb[0].mxu0 %v3268
          %v3270 = vpop.f32.mrb[0].mxu0
          %v3271 = vadd.f32 %v3098, %v3270
          %v3272 = vpop.f32.mrb[0].mxu0
          %3273 = vmatprep.mubr.f32.mxu0 0.0
          %v3274 = vand.u32 %v1624, 4294901760
          %v3275 = vsub.f32 %v1624, %v3274
          %3276 = vmatmul.mubr.f32.gmra.mrb[0].mxu0 %v3275
          %v3277 = vpop.f32.mrb[0].mxu0
          %v3278 = vadd.f32 %v3104, %v3277
          %v3279 = vpop.f32.mrb[0].mxu0
          %3280 = vmatprep.mubr.f32.mxu0 0.0
          %v3281 = vand.u32 %v1627, 4294901760
          %v3282 = vsub.f32 %v1627, %v3281
          %3283 = vmatmul.mubr.f32.gmra.mrb[0].mxu0 %v3282
          %v3284 = vpop.f32.mrb[0].mxu0
          %v3285 = vadd.f32 %v3110, %v3284
          %v3286 = vpop.f32.mrb[0].mxu0
          %3287 = vmatprep.mubr.f32.mxu0 0.0
          %v3288 = vand.u32 %v1630, 4294901760
          %v3289 = vsub.f32 %v1630, %v3288
          %3290 = vmatmul.mubr.f32.gmra.mrb[0].mxu0 %v3289
          %v3291 = vpop.f32.mrb[0].mxu0
          %v3292 = vadd.f32 %v3116, %v3291
          %v3293 = vpop.f32.mrb[0].mxu0
          %3294 = vmatprep.mubr.f32.mxu0 0.0
          %v3295 = vand.u32 %v1633, 4294901760
          %v3296 = vsub.f32 %v1633, %v3295
          %3297 = vmatmul.mubr.f32.gmra.mrb[0].mxu0 %v3296
          %v3298 = vpop.f32.mrb[0].mxu0
          %v3299 = vadd.f32 %v3122, %v3298
          %v3300 = vpop.f32.mrb[0].mxu0
          %3301 = vdwg.mxu0
          %3302 = vmatprep.subr.mxu0 0.0
          %3303 = vmatpush1.msra.mxu0 1.0
          %3304 = vmatprep.subr.mxu0 0.0
          %3305 = vmatpush1.msra.mxu0 1.0
          %3306 = vmatprep.subr.mxu0 0.0
          %3307 = vmatpush1.msra.mxu0 0.0
          %3308 = vmatprep.subr.mxu0 0.0
          %3309 = vmatpush1.msra.mxu0 0.0
          %3310 = vmatprep.subr.mxu0 0.0
          %3311 = vmatpush1.msra.mxu0 0.0
          %3312 = vmatprep.subr.mxu0 0.0
          %3313 = vmatpush1.msra.mxu0 0.0
          %3314 = vmatprep.subr.mxu0 0.0
          %3315 = vmatpush1.msra.mxu0 0.0
          %3316 = vmatprep.subr.mxu0 0.0
          %3317 = vmatpush1.msra.mxu0 0.0
          %3318 = vmatprep.subr.mxu0 0.0
          %3319 = vmatpush1.msra.mxu0 0.0
          %3320 = vmatprep.subr.mxu0 0.0
          %3321 = vmatpush1.msra.mxu0 0.0
          %3322 = vmatprep.subr.mxu0 0.0
          %3323 = vmatpush1.msra.mxu0 0.0
          %3324 = vmatprep.subr.mxu0 0.0
          %3325 = vmatpush1.msra.mxu0 0.0
          %3326 = vmatprep.subr.mxu0 0.0
          %3327 = vmatpush1.msra.mxu0 0.0
          %3328 = vmatprep.subr.mxu0 0.0
          %3329 = vmatpush1.msra.mxu0 0.0
          %3330 = vmatprep.subr.mxu0 0.0
          %3331 = vmatpush1.msra.mxu0 0.0
          %3332 = vmatprep.subr.mxu0 0.0
          %3333 = vmatpush1.msra.mxu0 0.0
          %3334 = vmatprep.subr.mxu0 0.0
          %3335 = vmatpush1.msra.mxu0 0.0
          %3336 = vmatprep.subr.mxu0 0.0
          %3337 = vmatpush1.msra.mxu0 0.0
          %3338 = vmatprep.subr.mxu0 0.0
          %3339 = vmatpush1.msra.mxu0 0.0
          %3340 = vmatprep.subr.mxu0 0.0
          %3341 = vmatpush1.msra.mxu0 0.0
          %3342 = vmatprep.subr.mxu0 0.0
          %3343 = vmatpush1.msra.mxu0 0.0
          %3344 = vmatprep.subr.mxu0 0.0
          %3345 = vmatpush1.msra.mxu0 0.0
          %3346 = vmatprep.subr.mxu0 0.0
          %3347 = vmatpush1.msra.mxu0 0.0
          %3348 = vmatprep.subr.mxu0 0.0
          %3349 = vmatpush1.msra.mxu0 0.0
          %3350 = vmatprep.subr.mxu0 0.0
          %3351 = vmatpush1.msra.mxu0 0.0
          %3352 = vmatprep.subr.mxu0 0.0
          %3353 = vmatpush1.msra.mxu0 0.0
          %3354 = vmatprep.subr.mxu0 0.0
          %3355 = vmatpush1.msra.mxu0 0.0
          %3356 = vmatprep.subr.mxu0 0.0
          %3357 = vmatpush1.msra.mxu0 0.0
          %3358 = vmatprep.subr.mxu0 0.0
          %3359 = vmatpush1.msra.mxu0 0.0
          %3360 = vmatprep.subr.mxu0 0.0
          %3361 = vmatpush1.msra.mxu0 0.0
          %3362 = vmatprep.subr.mxu0 0.0
          %3363 = vmatpush1.msra.mxu0 0.0
          %3364 = vmatprep.subr.mxu0 0.0
          %3365 = vmatpush1.msra.mxu0 0.0
          %3366 = vmatprep.mubr.f32.mxu0 0.0
          %v3367 = vand.u32 %v1588, 4294901760
          %v3368 = vsub.f32 %v1588, %v3367
          %v3369 = vand.u32 %v3368, 4294901760
          %3370 = vmatmul.mubr.f32.gmra.mrb[0].mxu0 %v3369
          %v3371 = vpop.f32.mrb[0].mxu0
          %v3372 = vadd.f32 %v3194, %v3371
          %v3373 = vpop.f32.mrb[0].mxu0
          %3374 = vmatprep.mubr.f32.mxu0 0.0
          %v3375 = vand.u32 %v1591, 4294901760
          %v3376 = vsub.f32 %v1591, %v3375
          %v3377 = vand.u32 %v3376, 4294901760
          %3378 = vmatmul.mubr.f32.gmra.mrb[0].mxu0 %v3377
          %v3379 = vpop.f32.mrb[0].mxu0
          %v3380 = vadd.f32 %v3201, %v3379
          %v3381 = vpop.f32.mrb[0].mxu0
          %3382 = vmatprep.mubr.f32.mxu0 0.0
          %v3383 = vand.u32 %v1594, 4294901760
          %v3384 = vsub.f32 %v1594, %v3383
          %v3385 = vand.u32 %v3384, 4294901760
          %3386 = vmatmul.mubr.f32.gmra.mrb[0].mxu0 %v3385
          %v3387 = vpop.f32.mrb[0].mxu0
          %v3388 = vadd.f32 %v3208, %v3387
          %v3389 = vpop.f32.mrb[0].mxu0
          %3390 = vmatprep.mubr.f32.mxu0 0.0
          %v3391 = vand.u32 %v1597, 4294901760
          %v3392 = vsub.f32 %v1597, %v3391
          %v3393 = vand.u32 %v3392, 4294901760
          %3394 = vmatmul.mubr.f32.gmra.mrb[0].mxu0 %v3393
          %v3395 = vpop.f32.mrb[0].mxu0
          %v3396 = vadd.f32 %v3215, %v3395
          %v3397 = vpop.f32.mrb[0].mxu0
          %3398 = vmatprep.mubr.f32.mxu0 0.0
          %v3399 = vand.u32 %v1600, 4294901760
          %v3400 = vsub.f32 %v1600, %v3399
          %v3401 = vand.u32 %v3400, 4294901760
          %3402 = vmatmul.mubr.f32.gmra.mrb[0].mxu0 %v3401
          %v3403 = vpop.f32.mrb[0].mxu0
          %v3404 = vadd.f32 %v3222, %v3403
          %v3405 = vpop.f32.mrb[0].mxu0
          %3406 = vmatprep.mubr.f32.mxu0 0.0
          %v3407 = vand.u32 %v1603, 4294901760
          %v3408 = vsub.f32 %v1603, %v3407
          %v3409 = vand.u32 %v3408, 4294901760
          %3410 = vmatmul.mubr.f32.gmra.mrb[0].mxu0 %v3409
          %v3411 = vpop.f32.mrb[0].mxu0
          %v3412 = vadd.f32 %v3229, %v3411
          %v3413 = vpop.f32.mrb[0].mxu0
          %3414 = vmatprep.mubr.f32.mxu0 0.0
          %v3415 = vand.u32 %v1606, 4294901760
          %v3416 = vsub.f32 %v1606, %v3415
          %v3417 = vand.u32 %v3416, 4294901760
          %3418 = vmatmul.mubr.f32.gmra.mrb[0].mxu0 %v3417
          %v3419 = vpop.f32.mrb[0].mxu0
          %v3420 = vadd.f32 %v3236, %v3419
          %v3421 = vpop.f32.mrb[0].mxu0
          %3422 = vmatprep.mubr.f32.mxu0 0.0
          %v3423 = vand.u32 %v1609, 4294901760
          %v3424 = vsub.f32 %v1609, %v3423
          %v3425 = vand.u32 %v3424, 4294901760
          %3426 = vmatmul.mubr.f32.gmra.mrb[0].mxu0 %v3425
          %v3427 = vpop.f32.mrb[0].mxu0
          %v3428 = vadd.f32 %v3243, %v3427
          %v3429 = vpop.f32.mrb[0].mxu0
          %3430 = vmatprep.mubr.f32.mxu0 0.0
          %v3431 = vand.u32 %v1612, 4294901760
          %v3432 = vsub.f32 %v1612, %v3431
          %v3433 = vand.u32 %v3432, 4294901760
          %3434 = vmatmul.mubr.f32.gmra.mrb[0].mxu0 %v3433
          %v3435 = vpop.f32.mrb[0].mxu0
          %v3436 = vadd.f32 %v3250, %v3435
          %v3437 = vpop.f32.mrb[0].mxu0
          %3438 = vmatprep.mubr.f32.mxu0 0.0
          %v3439 = vand.u32 %v1615, 4294901760
          %v3440 = vsub.f32 %v1615, %v3439
          %v3441 = vand.u32 %v3440, 4294901760
          %3442 = vmatmul.mubr.f32.gmra.mrb[0].mxu0 %v3441
          %v3443 = vpop.f32.mrb[0].mxu0
          %v3444 = vadd.f32 %v3257, %v3443
          %v3445 = vpop.f32.mrb[0].mxu0
          %3446 = vmatprep.mubr.f32.mxu0 0.0
          %v3447 = vand.u32 %v1618, 4294901760
          %v3448 = vsub.f32 %v1618, %v3447
          %v3449 = vand.u32 %v3448, 4294901760
          %3450 = vmatmul.mubr.f32.gmra.mrb[0].mxu0 %v3449
          %v3451 = vpop.f32.mrb[0].mxu0
          %v3452 = vadd.f32 %v3264, %v3451
          %v3453 = vpop.f32.mrb[0].mxu0
          %3454 = vmatprep.mubr.f32.mxu0 0.0
          %v3455 = vand.u32 %v1621, 4294901760
          %v3456 = vsub.f32 %v1621, %v3455
          %v3457 = vand.u32 %v3456, 4294901760
          %3458 = vmatmul.mubr.f32.gmra.mrb[0].mxu0 %v3457
          %v3459 = vpop.f32.mrb[0].mxu0
          %v3460 = vadd.f32 %v3271, %v3459
          %v3461 = vpop.f32.mrb[0].mxu0
          %3462 = vmatprep.mubr.f32.mxu0 0.0
          %v3463 = vand.u32 %v1624, 4294901760
          %v3464 = vsub.f32 %v1624, %v3463
          %v3465 = vand.u32 %v3464, 4294901760
          %3466 = vmatmul.mubr.f32.gmra.mrb[0].mxu0 %v3465
          %v3467 = vpop.f32.mrb[0].mxu0
          %v3468 = vadd.f32 %v3278, %v3467
          %v3469 = vpop.f32.mrb[0].mxu0
          %3470 = vmatprep.mubr.f32.mxu0 0.0
          %v3471 = vand.u32 %v1627, 4294901760
          %v3472 = vsub.f32 %v1627, %v3471
          %v3473 = vand.u32 %v3472, 4294901760
          %3474 = vmatmul.mubr.f32.gmra.mrb[0].mxu0 %v3473
          %v3475 = vpop.f32.mrb[0].mxu0
          %v3476 = vadd.f32 %v3285, %v3475
          %v3477 = vpop.f32.mrb[0].mxu0
          %3478 = vmatprep.mubr.f32.mxu0 0.0
          %v3479 = vand.u32 %v1630, 4294901760
          %v3480 = vsub.f32 %v1630, %v3479
          %v3481 = vand.u32 %v3480, 4294901760
          %3482 = vmatmul.mubr.f32.gmra.mrb[0].mxu0 %v3481
          %v3483 = vpop.f32.mrb[0].mxu0
          %v3484 = vadd.f32 %v3292, %v3483
          %v3485 = vpop.f32.mrb[0].mxu0
          %3486 = vmatprep.mubr.f32.mxu0 0.0
          %v3487 = vand.u32 %v1633, 4294901760
          %v3488 = vsub.f32 %v1633, %v3487
          %v3489 = vand.u32 %v3488, 4294901760
          %3490 = vmatmul.mubr.f32.gmra.mrb[0].mxu0 %v3489
          %v3491 = vpop.f32.mrb[0].mxu0
          %v3492 = vadd.f32 %v3299, %v3491
          %v3493 = vpop.f32.mrb[0].mxu0
          %3494 = vdwg.mxu0
          %3495 = vmatprep.subr.mxu0 0.0
          %3496 = vmatpush1.msra.mxu0 0.0
          %3497 = vmatprep.subr.mxu0 0.0
          %3498 = vmatpush1.msra.mxu0 0.0
          %3499 = vmatprep.subr.mxu0 0.0
          %3500 = vmatpush1.msra.mxu0 0.0
          %3501 = vmatprep.subr.mxu0 0.0
          %3502 = vmatpush1.msra.mxu0 0.0
          %3503 = vmatprep.subr.mxu0 0.0
          %3504 = vmatpush1.msra.mxu0 0.0
          %3505 = vmatprep.subr.mxu0 0.0
          %3506 = vmatpush1.msra.mxu0 0.0
          %3507 = vmatprep.subr.mxu0 0.0
          %3508 = vmatpush1.msra.mxu0 0.0
          %3509 = vmatprep.subr.mxu0 0.0
          %3510 = vmatpush1.msra.mxu0 0.0
          %3511 = vmatprep.subr.mxu0 0.0
          %3512 = vmatpush1.msra.mxu0 0.0
          %3513 = vmatprep.subr.mxu0 0.0
          %3514 = vmatpush1.msra.mxu0 0.0
          %3515 = vmatprep.subr.mxu0 0.0
          %3516 = vmatpush1.msra.mxu0 0.0
          %3517 = vmatprep.subr.mxu0 0.0
          %3518 = vmatpush1.msra.mxu0 0.0
          %3519 = vmatprep.subr.mxu0 0.0
          %3520 = vmatpush1.msra.mxu0 0.0
          %3521 = vmatprep.subr.mxu0 0.0
          %3522 = vmatpush1.msra.mxu0 0.0
          %3523 = vmatprep.subr.mxu0 0.0
          %3524 = vmatpush1.msra.mxu0 0.0
          %3525 = vmatprep.subr.mxu0 0.0
          %3526 = vmatpush1.msra.mxu0 0.0
          %3527 = vmatprep.subr.mxu0 0.0
          %3528 = vmatpush1.msra.mxu0 0.0
          %3529 = vmatprep.subr.mxu0 0.0
          %3530 = vmatpush1.msra.mxu0 0.0
          %3531 = vmatprep.subr.mxu0 0.0
          %3532 = vmatpush1.msra.mxu0 0.0
          %3533 = vmatprep.subr.mxu0 0.0
          %3534 = vmatpush1.msra.mxu0 0.0
          %3535 = vmatprep.subr.mxu0 0.0
          %3536 = vmatpush1.msra.mxu0 0.0
          %3537 = vmatprep.subr.mxu0 0.0
          %3538 = vmatpush1.msra.mxu0 0.0
          %3539 = vmatprep.subr.mxu0 0.0
          %3540 = vmatpush1.msra.mxu0 0.0
          %3541 = vmatprep.subr.mxu0 0.0
          %3542 = vmatpush1.msra.mxu0 0.0
          %3543 = vmatprep.subr.mxu0 0.0
          %3544 = vmatpush1.msra.mxu0 0.0
          %3545 = vmatprep.subr.mxu0 0.0
          %3546 = vmatpush1.msra.mxu0 0.0
          %3547 = vmatprep.subr.mxu0 0.0
          %3548 = vmatpush1.msra.mxu0 0.0
          %3549 = vmatprep.subr.mxu0 0.0
          %3550 = vmatpush1.msra.mxu0 0.0
          %3551 = vmatprep.subr.mxu0 0.0
          %3552 = vmatpush1.msra.mxu0 0.0
          %3553 = vmatprep.subr.mxu0 0.0
          %3554 = vmatpush1.msra.mxu0 0.0
          %3555 = vmatprep.subr.mxu0 0.0
          %3556 = vmatpush1.msra.mxu0 0.0
          %3557 = vmatprep.subr.mxu0 0.0
          %3558 = vmatpush1.msra.mxu0 0.0
          %3559 = vmatprep.mubr.f32.mxu0 0.0
          %v3560 = vand.u32 %v1588, 4294901760
          %3561 = vmatmul.mubr.f32.gmra.mrb[0].mxu0 %v3560
          %v3562 = vpop.f32.mrb[0].mxu0
          %v3563 = vadd.f32 %v3372, %v3562
          %v3564 = vpop.f32.mrb[0].mxu0
          %3565 = vmatprep.mubr.f32.mxu0 0.0
          %v3566 = vand.u32 %v1591, 4294901760
          %3567 = vmatmul.mubr.f32.gmra.mrb[0].mxu0 %v3566
          %v3568 = vpop.f32.mrb[0].mxu0
          %v3569 = vadd.f32 %v3380, %v3568
          %v3570 = vpop.f32.mrb[0].mxu0
          %3571 = vmatprep.mubr.f32.mxu0 0.0
          %v3572 = vand.u32 %v1594, 4294901760
          %3573 = vmatmul.mubr.f32.gmra.mrb[0].mxu0 %v3572
          %v3574 = vpop.f32.mrb[0].mxu0
          %v3575 = vadd.f32 %v3388, %v3574
          %v3576 = vpop.f32.mrb[0].mxu0
          %3577 = vmatprep.mubr.f32.mxu0 0.0
          %v3578 = vand.u32 %v1597, 4294901760
          %3579 = vmatmul.mubr.f32.gmra.mrb[0].mxu0 %v3578
          %v3580 = vpop.f32.mrb[0].mxu0
          %v3581 = vadd.f32 %v3396, %v3580
          %v3582 = vpop.f32.mrb[0].mxu0
          %3583 = vmatprep.mubr.f32.mxu0 0.0
          %v3584 = vand.u32 %v1600, 4294901760
          %3585 = vmatmul.mubr.f32.gmra.mrb[0].mxu0 %v3584
          %v3586 = vpop.f32.mrb[0].mxu0
          %v3587 = vadd.f32 %v3404, %v3586
          %v3588 = vpop.f32.mrb[0].mxu0
          %3589 = vmatprep.mubr.f32.mxu0 0.0
          %v3590 = vand.u32 %v1603, 4294901760
          %3591 = vmatmul.mubr.f32.gmra.mrb[0].mxu0 %v3590
          %v3592 = vpop.f32.mrb[0].mxu0
          %v3593 = vadd.f32 %v3412, %v3592
          %v3594 = vpop.f32.mrb[0].mxu0
          %3595 = vmatprep.mubr.f32.mxu0 0.0
          %v3596 = vand.u32 %v1606, 4294901760
          %3597 = vmatmul.mubr.f32.gmra.mrb[0].mxu0 %v3596
          %v3598 = vpop.f32.mrb[0].mxu0
          %v3599 = vadd.f32 %v3420, %v3598
          %v3600 = vpop.f32.mrb[0].mxu0
          %3601 = vmatprep.mubr.f32.mxu0 0.0
          %v3602 = vand.u32 %v1609, 4294901760
          %3603 = vmatmul.mubr.f32.gmra.mrb[0].mxu0 %v3602
          %v3604 = vpop.f32.mrb[0].mxu0
          %v3605 = vadd.f32 %v3428, %v3604
          %v3606 = vpop.f32.mrb[0].mxu0
          %3607 = vmatprep.mubr.f32.mxu0 0.0
          %v3608 = vand.u32 %v1612, 4294901760
          %3609 = vmatmul.mubr.f32.gmra.mrb[0].mxu0 %v3608
          %v3610 = vpop.f32.mrb[0].mxu0
          %v3611 = vadd.f32 %v3436, %v3610
          %v3612 = vpop.f32.mrb[0].mxu0
          %3613 = vmatprep.mubr.f32.mxu0 0.0
          %v3614 = vand.u32 %v1615, 4294901760
          %3615 = vmatmul.mubr.f32.gmra.mrb[0].mxu0 %v3614
          %v3616 = vpop.f32.mrb[0].mxu0
          %v3617 = vadd.f32 %v3444, %v3616
          %v3618 = vpop.f32.mrb[0].mxu0
          %3619 = vmatprep.mubr.f32.mxu0 0.0
          %v3620 = vand.u32 %v1618, 4294901760
          %3621 = vmatmul.mubr.f32.gmra.mrb[0].mxu0 %v3620
          %v3622 = vpop.f32.mrb[0].mxu0
          %v3623 = vadd.f32 %v3452, %v3622
          %v3624 = vpop.f32.mrb[0].mxu0
          %3625 = vmatprep.mubr.f32.mxu0 0.0
          %v3626 = vand.u32 %v1621, 4294901760
          %3627 = vmatmul.mubr.f32.gmra.mrb[0].mxu0 %v3626
          %v3628 = vpop.f32.mrb[0].mxu0
          %v3629 = vadd.f32 %v3460, %v3628
          %v3630 = vpop.f32.mrb[0].mxu0
          %3631 = vmatprep.mubr.f32.mxu0 0.0
          %v3632 = vand.u32 %v1624, 4294901760
          %3633 = vmatmul.mubr.f32.gmra.mrb[0].mxu0 %v3632
          %v3634 = vpop.f32.mrb[0].mxu0
          %v3635 = vadd.f32 %v3468, %v3634
          %v3636 = vpop.f32.mrb[0].mxu0
          %3637 = vmatprep.mubr.f32.mxu0 0.0
          %v3638 = vand.u32 %v1627, 4294901760
          %3639 = vmatmul.mubr.f32.gmra.mrb[0].mxu0 %v3638
          %v3640 = vpop.f32.mrb[0].mxu0
          %v3641 = vadd.f32 %v3476, %v3640
          %v3642 = vpop.f32.mrb[0].mxu0
          %3643 = vmatprep.mubr.f32.mxu0 0.0
          %v3644 = vand.u32 %v1630, 4294901760
          %3645 = vmatmul.mubr.f32.gmra.mrb[0].mxu0 %v3644
          %v3646 = vpop.f32.mrb[0].mxu0
          %v3647 = vadd.f32 %v3484, %v3646
          %v3648 = vpop.f32.mrb[0].mxu0
          %3649 = vmatprep.mubr.f32.mxu0 0.0
          %v3650 = vand.u32 %v1633, 4294901760
          %3651 = vmatmul.mubr.f32.gmra.mrb[0].mxu0 %v3650
          %v3652 = vpop.f32.mrb[0].mxu0
          %v3653 = vadd.f32 %v3492, %v3652
          %v3654 = vpop.f32.mrb[0].mxu0
          %3655 = vdwg.mxu0
          %3656 = vmatprep.subr.mxu0 0.0
          %3657 = vmatpush1.msra.mxu0 1.0
          %3658 = vmatprep.subr.mxu0 0.0
          %3659 = vmatpush1.msra.mxu0 1.0
          %3660 = vmatprep.subr.mxu0 0.0
          %3661 = vmatpush1.msra.mxu0 0.0
          %3662 = vmatprep.subr.mxu0 0.0
          %3663 = vmatpush1.msra.mxu0 0.0
          %3664 = vmatprep.subr.mxu0 0.0
          %3665 = vmatpush1.msra.mxu0 0.0
          %3666 = vmatprep.subr.mxu0 0.0
          %3667 = vmatpush1.msra.mxu0 0.0
          %3668 = vmatprep.subr.mxu0 0.0
          %3669 = vmatpush1.msra.mxu0 0.0
          %3670 = vmatprep.subr.mxu0 0.0
          %3671 = vmatpush1.msra.mxu0 0.0
          %3672 = vmatprep.subr.mxu0 0.0
          %3673 = vmatpush1.msra.mxu0 0.0
          %3674 = vmatprep.subr.mxu0 0.0
          %3675 = vmatpush1.msra.mxu0 0.0
          %3676 = vmatprep.subr.mxu0 0.0
          %3677 = vmatpush1.msra.mxu0 0.0
          %3678 = vmatprep.subr.mxu0 0.0
          %3679 = vmatpush1.msra.mxu0 0.0
          %3680 = vmatprep.subr.mxu0 0.0
          %3681 = vmatpush1.msra.mxu0 0.0
          %3682 = vmatprep.subr.mxu0 0.0
          %3683 = vmatpush1.msra.mxu0 0.0
          %3684 = vmatprep.subr.mxu0 0.0
          %3685 = vmatpush1.msra.mxu0 0.0
          %3686 = vmatprep.subr.mxu0 0.0
          %3687 = vmatpush1.msra.mxu0 0.0
          %3688 = vmatprep.subr.mxu0 0.0
          %3689 = vmatpush1.msra.mxu0 0.0
          %3690 = vmatprep.subr.mxu0 0.0
          %3691 = vmatpush1.msra.mxu0 0.0
          %3692 = vmatprep.subr.mxu0 0.0
          %3693 = vmatpush1.msra.mxu0 0.0
          %3694 = vmatprep.subr.mxu0 0.0
          %3695 = vmatpush1.msra.mxu0 0.0
          %3696 = vmatprep.subr.mxu0 0.0
          %3697 = vmatpush1.msra.mxu0 0.0
          %3698 = vmatprep.subr.mxu0 0.0
          %3699 = vmatpush1.msra.mxu0 0.0
          %3700 = vmatprep.subr.mxu0 0.0
          %3701 = vmatpush1.msra.mxu0 0.0
          %3702 = vmatprep.subr.mxu0 0.0
          %3703 = vmatpush1.msra.mxu0 0.0
          %3704 = vmatprep.subr.mxu0 0.0
          %3705 = vmatpush1.msra.mxu0 0.0
          %3706 = vmatprep.subr.mxu0 0.0
          %3707 = vmatpush1.msra.mxu0 0.0
          %3708 = vmatprep.subr.mxu0 0.0
          %3709 = vmatpush1.msra.mxu0 0.0
          %3710 = vmatprep.subr.mxu0 0.0
          %3711 = vmatpush1.msra.mxu0 0.0
          %3712 = vmatprep.subr.mxu0 0.0
          %3713 = vmatpush1.msra.mxu0 0.0
          %3714 = vmatprep.subr.mxu0 0.0
          %3715 = vmatpush1.msra.mxu0 0.0
          %3716 = vmatprep.subr.mxu0 0.0
          %3717 = vmatpush1.msra.mxu0 0.0
          %3718 = vmatprep.subr.mxu0 0.0
          %3719 = vmatpush1.msra.mxu0 0.0
          %3720 = vmatprep.mubr.f32.mxu0 0.0
          %v3721 = vand.u32 %v1588, 4294901760
          %3722 = vmatmul.mubr.f32.gmra.mrb[0].mxu0 %v3721
          %v3723 = vpop.f32.mrb[0].mxu0
          %v3724 = vadd.f32 %v3563, %v3723
          %v3725 = vpop.f32.mrb[0].mxu0
          %3726 = vmatprep.mubr.f32.mxu0 0.0
          %v3727 = vand.u32 %v1591, 4294901760
          %3728 = vmatmul.mubr.f32.gmra.mrb[0].mxu0 %v3727
          %v3729 = vpop.f32.mrb[0].mxu0
          %v3730 = vadd.f32 %v3569, %v3729
          %v3731 = vpop.f32.mrb[0].mxu0
          %3732 = vmatprep.mubr.f32.mxu0 0.0
          %v3733 = vand.u32 %v1594, 4294901760
          %3734 = vmatmul.mubr.f32.gmra.mrb[0].mxu0 %v3733
          %v3735 = vpop.f32.mrb[0].mxu0
          %v3736 = vadd.f32 %v3575, %v3735
          %v3737 = vpop.f32.mrb[0].mxu0
          %3738 = vmatprep.mubr.f32.mxu0 0.0
          %v3739 = vand.u32 %v1597, 4294901760
          %3740 = vmatmul.mubr.f32.gmra.mrb[0].mxu0 %v3739
          %v3741 = vpop.f32.mrb[0].mxu0
          %v3742 = vadd.f32 %v3581, %v3741
          %v3743 = vpop.f32.mrb[0].mxu0
          %3744 = vmatprep.mubr.f32.mxu0 0.0
          %v3745 = vand.u32 %v1600, 4294901760
          %3746 = vmatmul.mubr.f32.gmra.mrb[0].mxu0 %v3745
          %v3747 = vpop.f32.mrb[0].mxu0
          %v3748 = vadd.f32 %v3587, %v3747
          %v3749 = vpop.f32.mrb[0].mxu0
          %3750 = vmatprep.mubr.f32.mxu0 0.0
          %v3751 = vand.u32 %v1603, 4294901760
          %3752 = vmatmul.mubr.f32.gmra.mrb[0].mxu0 %v3751
          %v3753 = vpop.f32.mrb[0].mxu0
          %v3754 = vadd.f32 %v3593, %v3753
          %v3755 = vpop.f32.mrb[0].mxu0
          %3756 = vmatprep.mubr.f32.mxu0 0.0
          %v3757 = vand.u32 %v1606, 4294901760
          %3758 = vmatmul.mubr.f32.gmra.mrb[0].mxu0 %v3757
          %v3759 = vpop.f32.mrb[0].mxu0
          %v3760 = vadd.f32 %v3599, %v3759
          %v3761 = vpop.f32.mrb[0].mxu0
          %3762 = vmatprep.mubr.f32.mxu0 0.0
          %v3763 = vand.u32 %v1609, 4294901760
          %3764 = vmatmul.mubr.f32.gmra.mrb[0].mxu0 %v3763
          %v3765 = vpop.f32.mrb[0].mxu0
          %v3766 = vadd.f32 %v3605, %v3765
          %v3767 = vpop.f32.mrb[0].mxu0
          %3768 = vmatprep.mubr.f32.mxu0 0.0
          %v3769 = vand.u32 %v1612, 4294901760
          %3770 = vmatmul.mubr.f32.gmra.mrb[0].mxu0 %v3769
          %v3771 = vpop.f32.mrb[0].mxu0
          %v3772 = vadd.f32 %v3611, %v3771
          %v3773 = vpop.f32.mrb[0].mxu0
          %3774 = vmatprep.mubr.f32.mxu0 0.0
          %v3775 = vand.u32 %v1615, 4294901760
          %3776 = vmatmul.mubr.f32.gmra.mrb[0].mxu0 %v3775
          %v3777 = vpop.f32.mrb[0].mxu0
          %v3778 = vadd.f32 %v3617, %v3777
          %v3779 = vpop.f32.mrb[0].mxu0
          %3780 = vmatprep.mubr.f32.mxu0 0.0
          %v3781 = vand.u32 %v1618, 4294901760
          %3782 = vmatmul.mubr.f32.gmra.mrb[0].mxu0 %v3781
          %v3783 = vpop.f32.mrb[0].mxu0
          %v3784 = vadd.f32 %v3623, %v3783
          %v3785 = vpop.f32.mrb[0].mxu0
          %3786 = vmatprep.mubr.f32.mxu0 0.0
          %v3787 = vand.u32 %v1621, 4294901760
          %3788 = vmatmul.mubr.f32.gmra.mrb[0].mxu0 %v3787
          %v3789 = vpop.f32.mrb[0].mxu0
          %v3790 = vadd.f32 %v3629, %v3789
          %v3791 = vpop.f32.mrb[0].mxu0
          %3792 = vmatprep.mubr.f32.mxu0 0.0
          %v3793 = vand.u32 %v1624, 4294901760
          %3794 = vmatmul.mubr.f32.gmra.mrb[0].mxu0 %v3793
          %v3795 = vpop.f32.mrb[0].mxu0
          %v3796 = vadd.f32 %v3635, %v3795
          %v3797 = vpop.f32.mrb[0].mxu0
          %3798 = vmatprep.mubr.f32.mxu0 0.0
          %v3799 = vand.u32 %v1627, 4294901760
          %3800 = vmatmul.mubr.f32.gmra.mrb[0].mxu0 %v3799
          %v3801 = vpop.f32.mrb[0].mxu0
          %v3802 = vadd.f32 %v3641, %v3801
          %v3803 = vpop.f32.mrb[0].mxu0
          %3804 = vmatprep.mubr.f32.mxu0 0.0
          %v3805 = vand.u32 %v1630, 4294901760
          %3806 = vmatmul.mubr.f32.gmra.mrb[0].mxu0 %v3805
          %v3807 = vpop.f32.mrb[0].mxu0
          %v3808 = vadd.f32 %v3647, %v3807
          %v3809 = vpop.f32.mrb[0].mxu0
          %3810 = vmatprep.mubr.f32.mxu0 0.0
          %v3811 = vand.u32 %v1633, 4294901760
          %3812 = vmatmul.mubr.f32.gmra.mrb[0].mxu0 %v3811
          %v3813 = vpop.f32.mrb[0].mxu0
          %v3814 = vadd.f32 %v3653, %v3813
          %v3815 = vpop.f32.mrb[0].mxu0
          %3816 = vdwg.mxu0
          %v3817 = vld [vmem:[#allocation8] sm:$0xff]
          %v3818 = vld [vmem:[#allocation8 + $0x8] sm:$0xff]
          %v3819 = vld [vmem:[#allocation8 + $0x10] sm:$0xff]
          %v3820 = vld [vmem:[#allocation8 + $0x18] sm:$0xff]
          %v3821 = vld [vmem:[#allocation8 + $0x20] sm:$0xff]
          %v3822 = vld [vmem:[#allocation8 + $0x28] sm:$0xff]
          %v3823 = vld [vmem:[#allocation8 + $0x30] sm:$0xff]
          %v3824 = vld [vmem:[#allocation8 + $0x38] sm:$0xff]
          %v3825 = vld [vmem:[#allocation8 + $0x40] sm:$0xff]
          %v3826 = vld [vmem:[#allocation8 + $0x48] sm:$0xff]
          %v3827 = vld [vmem:[#allocation8 + $0x50] sm:$0xff]
          %v3828 = vld [vmem:[#allocation8 + $0x58] sm:$0xff]
          %v3829 = vld [vmem:[#allocation8 + $0x60] sm:$0xff]
          %v3830 = vld [vmem:[#allocation8 + $0x68] sm:$0xff]
          %v3831 = vld [vmem:[#allocation8 + $0x70] sm:$0xff]
          %v3832 = vld [vmem:[#allocation8 + $0x78] sm:$0xff]
          %v3833 = vmul.f32 %v2646, %v3817
          %v3834 = vmul.f32 %v2652, %v3818
          %v3835 = vmul.f32 %v2658, %v3819
          %v3836 = vmul.f32 %v2664, %v3820
          %v3837 = vmul.f32 %v2670, %v3821
          %v3838 = vmul.f32 %v2676, %v3822
          %v3839 = vmul.f32 %v2682, %v3823
          %v3840 = vmul.f32 %v2688, %v3824
          %v3841 = vmul.f32 %v2694, %v3825
          %v3842 = vmul.f32 %v2700, %v3826
          %v3843 = vmul.f32 %v2706, %v3827
          %v3844 = vmul.f32 %v2712, %v3828
          %v3845 = vmul.f32 %v2718, %v3829
          %v3846 = vmul.f32 %v2724, %v3830
          %v3847 = vmul.f32 %v2730, %v3831
          %v3848 = vmul.f32 %v2736, %v3832
          %3850 = vset.pattern.permute.xlu0 0
          %3851 = vperm.xlu0 %3850, %v3724
          %v3852 = vpop.permute.xlu0 %3851
          %3855 = vset.pattern.permute.xlu0 0
          %3856 = vperm.xlu0 %3855, %v3730
          %v3857 = vpop.permute.xlu0 %3856
          %3860 = vset.pattern.permute.xlu0 0
          %3861 = vperm.xlu0 %3860, %v3736
          %v3862 = vpop.permute.xlu0 %3861
          %3865 = vset.pattern.permute.xlu0 0
          %3866 = vperm.xlu0 %3865, %v3742
          %v3867 = vpop.permute.xlu0 %3866
          %3870 = vset.pattern.permute.xlu0 0
          %3871 = vperm.xlu0 %3870, %v3748
          %v3872 = vpop.permute.xlu0 %3871
          %3875 = vset.pattern.permute.xlu0 0
          %3876 = vperm.xlu0 %3875, %v3754
          %v3877 = vpop.permute.xlu0 %3876
          %3880 = vset.pattern.permute.xlu0 0
          %3881 = vperm.xlu0 %3880, %v3760
          %v3882 = vpop.permute.xlu0 %3881
          %3885 = vset.pattern.permute.xlu0 0
          %3886 = vperm.xlu0 %3885, %v3766
          %v3887 = vpop.permute.xlu0 %3886
          %3890 = vset.pattern.permute.xlu0 0
          %3891 = vperm.xlu0 %3890, %v3772
          %v3892 = vpop.permute.xlu0 %3891
          %3895 = vset.pattern.permute.xlu0 0
          %3896 = vperm.xlu0 %3895, %v3778
          %v3897 = vpop.permute.xlu0 %3896
          %3900 = vset.pattern.permute.xlu0 0
          %3901 = vperm.xlu0 %3900, %v3784
          %v3902 = vpop.permute.xlu0 %3901
          %3905 = vset.pattern.permute.xlu0 0
          %3906 = vperm.xlu0 %3905, %v3790
          %v3907 = vpop.permute.xlu0 %3906
          %3910 = vset.pattern.permute.xlu0 0
          %3911 = vperm.xlu0 %3910, %v3796
          %v3912 = vpop.permute.xlu0 %3911
          %3915 = vset.pattern.permute.xlu0 0
          %3916 = vperm.xlu0 %3915, %v3802
          %v3917 = vpop.permute.xlu0 %3916
          %3920 = vset.pattern.permute.xlu0 0
          %3921 = vperm.xlu0 %3920, %v3808
          %v3922 = vpop.permute.xlu0 %3921
          %3925 = vset.pattern.permute.xlu0 0
          %3926 = vperm.xlu0 %3925, %v3814
          %v3927 = vpop.permute.xlu0 %3926
          %v3929 = vmul.f32 %v3852, %v3817
          %v3930 = vmul.f32 %v3857, %v3818
          %v3931 = vmul.f32 %v3862, %v3819
          %v3932 = vmul.f32 %v3867, %v3820
          %v3933 = vmul.f32 %v3872, %v3821
          %v3934 = vmul.f32 %v3877, %v3822
          %v3935 = vmul.f32 %v3882, %v3823
          %v3936 = vmul.f32 %v3887, %v3824
          %v3937 = vmul.f32 %v3892, %v3825
          %v3938 = vmul.f32 %v3897, %v3826
          %v3939 = vmul.f32 %v3902, %v3827
          %v3940 = vmul.f32 %v3907, %v3828
          %v3941 = vmul.f32 %v3912, %v3829
          %v3942 = vmul.f32 %v3917, %v3830
          %v3943 = vmul.f32 %v3922, %v3831
          %v3944 = vmul.f32 %v3927, %v3832
          %3945 = vst [vmem:[#allocation2] sm:$0xff] %v3833
          %3946 = vst [vmem:[#allocation2 + $0x8] sm:$0xff] %v3929
          %3947 = vst [vmem:[#allocation2 + $0x10] sm:$0xff] %v3834
          %3948 = vst [vmem:[#allocation2 + $0x18] sm:$0xff] %v3930
          %3949 = vst [vmem:[#allocation2 + $0x20] sm:$0xff] %v3835
          %3950 = vst [vmem:[#allocation2 + $0x28] sm:$0xff] %v3931
          %3951 = vst [vmem:[#allocation2 + $0x30] sm:$0xff] %v3836
          %3952 = vst [vmem:[#allocation2 + $0x38] sm:$0xff] %v3932
          %3953 = vst [vmem:[#allocation2 + $0x40] sm:$0xff] %v3837
          %3954 = vst [vmem:[#allocation2 + $0x48] sm:$0xff] %v3933
          %3955 = vst [vmem:[#allocation2 + $0x50] sm:$0xff] %v3838
          %3956 = vst [vmem:[#allocation2 + $0x58] sm:$0xff] %v3934
          %3957 = vst [vmem:[#allocation2 + $0x60] sm:$0xff] %v3839
          %3958 = vst [vmem:[#allocation2 + $0x68] sm:$0xff] %v3935
          %3959 = vst [vmem:[#allocation2 + $0x70] sm:$0xff] %v3840
          %3960 = vst [vmem:[#allocation2 + $0x78] sm:$0xff] %v3936
          %3961 = vst [vmem:[#allocation2 + $0x80] sm:$0xff] %v3841
          %3962 = vst [vmem:[#allocation2 + $0x88] sm:$0xff] %v3937
          %3963 = vst [vmem:[#allocation2 + $0x90] sm:$0xff] %v3842
          %3964 = vst [vmem:[#allocation2 + $0x98] sm:$0xff] %v3938
          %3965 = vst [vmem:[#allocation2 + $0xa0] sm:$0xff] %v3843
          %3966 = vst [vmem:[#allocation2 + $0xa8] sm:$0xff] %v3939
          %3967 = vst [vmem:[#allocation2 + $0xb0] sm:$0xff] %v3844
          %3968 = vst [vmem:[#allocation2 + $0xb8] sm:$0xff] %v3940
          %3969 = vst [vmem:[#allocation2 + $0xc0] sm:$0xff] %v3845
          %3970 = vst [vmem:[#allocation2 + $0xc8] sm:$0xff] %v3941
          %3971 = vst [vmem:[#allocation2 + $0xd0] sm:$0xff] %v3846
          %3972 = vst [vmem:[#allocation2 + $0xd8] sm:$0xff] %v3942
          %3973 = vst [vmem:[#allocation2 + $0xe0] sm:$0xff] %v3847
          %3974 = vst [vmem:[#allocation2 + $0xe8] sm:$0xff] %v3943
          %3975 = vst [vmem:[#allocation2 + $0xf0] sm:$0xff] %v3848
          %3976 = vst [vmem:[#allocation2 + $0xf8] sm:$0xff] %v3944
        $region104: #{tpu_custom_call.1} parent=67 // pred_fallthru
          _
        %v3977 = vld [vmem:[%s515] sm:$0xff]
        %v3978 = vld [vmem:[%s515 + $0x8] sm:$0xff]
        %v3979 = vld [vmem:[#allocation9] sm:$0xff]
        %v3980 = vld [vmem:[#allocation9 + $0x8] sm:$0xff]
        %v3981 = vld [vmem:[#allocation9 + $0x10] sm:$0xff]
        %v3982 = vld [vmem:[#allocation9 + $0x18] sm:$0xff]
        %v3983 = vld [vmem:[#allocation9 + $0x20] sm:$0xff]
        %v3984 = vld [vmem:[#allocation9 + $0x28] sm:$0xff]
        %v3985 = vld [vmem:[#allocation9 + $0x30] sm:$0xff]
        %v3986 = vld [vmem:[#allocation9 + $0x38] sm:$0xff]
        %v3987 = vld [vmem:[#allocation9 + $0x40] sm:$0xff]
        %v3988 = vld [vmem:[#allocation9 + $0x48] sm:$0xff]
        %v3989 = vld [vmem:[#allocation9 + $0x50] sm:$0xff]
        %v3990 = vld [vmem:[#allocation9 + $0x58] sm:$0xff]
        %v3991 = vld [vmem:[#allocation9 + $0x60] sm:$0xff]
        %v3992 = vld [vmem:[#allocation9 + $0x68] sm:$0xff]
        %v3993 = vld [vmem:[#allocation9 + $0x70] sm:$0xff]
        %v3994 = vld [vmem:[#allocation9 + $0x78] sm:$0xff]
        %v3995 = vld [vmem:[#allocation9 + $0x80] sm:$0xff]
        %v3996 = vld [vmem:[#allocation9 + $0x88] sm:$0xff]
        %v3997 = vld [vmem:[#allocation9 + $0x90] sm:$0xff]
        %v3998 = vld [vmem:[#allocation9 + $0x98] sm:$0xff]
        %v3999 = vld [vmem:[#allocation9 + $0xa0] sm:$0xff]
        %v4000 = vld [vmem:[#allocation9 + $0xa8] sm:$0xff]
        %v4001 = vld [vmem:[#allocation9 + $0xb0] sm:$0xff]
        %v4002 = vld [vmem:[#allocation9 + $0xb8] sm:$0xff]
        %v4003 = vld [vmem:[#allocation9 + $0xc0] sm:$0xff]
        %v4004 = vld [vmem:[#allocation9 + $0xc8] sm:$0xff]
        %v4005 = vld [vmem:[#allocation9 + $0xd0] sm:$0xff]
        %v4006 = vld [vmem:[#allocation9 + $0xd8] sm:$0xff]
        %v4007 = vld [vmem:[#allocation9 + $0xe0] sm:$0xff]
        %v4008 = vld [vmem:[#allocation9 + $0xe8] sm:$0xff]
        %v4009 = vld [vmem:[#allocation9 + $0xf0] sm:$0xff]
        %v4010 = vld [vmem:[#allocation9 + $0xf8] sm:$0xff]
        %v4011 = vld [vmem:[#allocation9 + $0x100] sm:$0xff]
        %v4012 = vld [vmem:[#allocation9 + $0x108] sm:$0xff]
        %v4013 = vld [vmem:[#allocation9 + $0x110] sm:$0xff]
        %v4014 = vld [vmem:[#allocation9 + $0x118] sm:$0xff]
        %v4015 = vld [vmem:[#allocation9 + $0x120] sm:$0xff]
        %v4016 = vld [vmem:[#allocation9 + $0x128] sm:$0xff]
        %v4017 = vld [vmem:[#allocation9 + $0x130] sm:$0xff]
        %v4018 = vld [vmem:[#allocation9 + $0x138] sm:$0xff]
        %v4019 = vld [vmem:[#allocation9 + $0x140] sm:$0xff]
        %v4020 = vld [vmem:[#allocation9 + $0x148] sm:$0xff]
        %v4021 = vld [vmem:[#allocation9 + $0x150] sm:$0xff]
        %v4022 = vld [vmem:[#allocation9 + $0x158] sm:$0xff]
        %v4023 = vld [vmem:[#allocation9 + $0x160] sm:$0xff]
        %v4024 = vld [vmem:[#allocation9 + $0x168] sm:$0xff]
        %v4025 = vld [vmem:[#allocation9 + $0x170] sm:$0xff]
        %v4026 = vld [vmem:[#allocation9 + $0x178] sm:$0xff]
        %v4027 = vand.u32 %v3980, 4294901760
        %4028 = vmatprep.subr.mxu0 %v4027
        %v4029 = vand.u32 %v3979, 4294901760
        %4030 = vmatpush1.msra.mxu0 %v4029
        %v4031 = vand.u32 %v3983, 4294901760
        %4032 = vmatprep.subr.mxu0 %v4031
        %v4033 = vand.u32 %v3982, 4294901760
        %4034 = vmatpush1.msra.mxu0 %v4033
        %v4035 = vand.u32 %v3986, 4294901760
        %4036 = vmatprep.subr.mxu0 %v4035
        %v4037 = vand.u32 %v3985, 4294901760
        %4038 = vmatpush1.msra.mxu0 %v4037
        %v4039 = vand.u32 %v3989, 4294901760
        %4040 = vmatprep.subr.mxu0 %v4039
        %v4041 = vand.u32 %v3988, 4294901760
        %4042 = vmatpush1.msra.mxu0 %v4041
        %v4043 = vand.u32 %v3992, 4294901760
        %4044 = vmatprep.subr.mxu0 %v4043
        %v4045 = vand.u32 %v3991, 4294901760
        %4046 = vmatpush1.msra.mxu0 %v4045
        %v4047 = vand.u32 %v3995, 4294901760
        %4048 = vmatprep.subr.mxu0 %v4047
        %v4049 = vand.u32 %v3994, 4294901760
        %4050 = vmatpush1.msra.mxu0 %v4049
        %v4051 = vand.u32 %v3998, 4294901760
        %4052 = vmatprep.subr.mxu0 %v4051
        %v4053 = vand.u32 %v3997, 4294901760
        %4054 = vmatpush1.msra.mxu0 %v4053
        %v4055 = vand.u32 %v4001, 4294901760
        %4056 = vmatprep.subr.mxu0 %v4055
        %v4057 = vand.u32 %v4000, 4294901760
        %4058 = vmatpush1.msra.mxu0 %v4057
        %v4059 = vand.u32 %v4004, 4294901760
        %4060 = vmatprep.subr.mxu0 %v4059
        %v4061 = vand.u32 %v4003, 4294901760
        %4062 = vmatpush1.msra.mxu0 %v4061
        %v4063 = vand.u32 %v4007, 4294901760
        %4064 = vmatprep.subr.mxu0 %v4063
        %v4065 = vand.u32 %v4006, 4294901760
        %4066 = vmatpush1.msra.mxu0 %v4065
        %v4067 = vand.u32 %v4010, 4294901760
        %4068 = vmatprep.subr.mxu0 %v4067
        %v4069 = vand.u32 %v4009, 4294901760
        %4070 = vmatpush1.msra.mxu0 %v4069
        %v4071 = vand.u32 %v4013, 4294901760
        %4072 = vmatprep.subr.mxu0 %v4071
        %v4073 = vand.u32 %v4012, 4294901760
        %4074 = vmatpush1.msra.mxu0 %v4073
        %v4075 = vand.u32 %v4016, 4294901760
        %4076 = vmatprep.subr.mxu0 %v4075
        %v4077 = vand.u32 %v4015, 4294901760
        %4078 = vmatpush1.msra.mxu0 %v4077
        %v4079 = vand.u32 %v4019, 4294901760
        %4080 = vmatprep.subr.mxu0 %v4079
        %v4081 = vand.u32 %v4018, 4294901760
        %4082 = vmatpush1.msra.mxu0 %v4081
        %v4083 = vand.u32 %v4022, 4294901760
        %4084 = vmatprep.subr.mxu0 %v4083
        %v4085 = vand.u32 %v4021, 4294901760
        %4086 = vmatpush1.msra.mxu0 %v4085
        %v4087 = vand.u32 %v4025, 4294901760
        %4088 = vmatprep.subr.mxu0 %v4087
        %v4089 = vand.u32 %v4024, 4294901760
        %4090 = vmatpush1.msra.mxu0 %v4089
        %4091 = vmatprep.subr.mxu0 0.0
        %4092 = vmatpush1.msra.mxu0 0.0
        %4093 = vmatprep.subr.mxu0 0.0
        %4094 = vmatpush1.msra.mxu0 0.0
        %4095 = vmatprep.subr.mxu0 0.0
        %4096 = vmatpush1.msra.mxu0 0.0
        %4097 = vmatprep.subr.mxu0 0.0
        %4098 = vmatpush1.msra.mxu0 0.0
        %4099 = vmatprep.subr.mxu0 0.0
        %4100 = vmatpush1.msra.mxu0 0.0
        %4101 = vmatprep.subr.mxu0 0.0
        %4102 = vmatpush1.msra.mxu0 0.0
        %4103 = vmatprep.subr.mxu0 0.0
        %4104 = vmatpush1.msra.mxu0 0.0
        %4105 = vmatprep.subr.mxu0 0.0
        %4106 = vmatpush1.msra.mxu0 0.0
        %4107 = vmatprep.subr.mxu0 0.0
        %4108 = vmatpush1.msra.mxu0 0.0
        %4109 = vmatprep.subr.mxu0 0.0
        %4110 = vmatpush1.msra.mxu0 0.0
        %4111 = vmatprep.subr.mxu0 0.0
        %4112 = vmatpush1.msra.mxu0 0.0
        %4113 = vmatprep.subr.mxu0 0.0
        %4114 = vmatpush1.msra.mxu0 0.0
        %4115 = vmatprep.subr.mxu0 0.0
        %4116 = vmatpush1.msra.mxu0 0.0
        %4117 = vmatprep.subr.mxu0 0.0
        %4118 = vmatpush1.msra.mxu0 0.0
        %4119 = vmatprep.subr.mxu0 0.0
        %4120 = vmatpush1.msra.mxu0 0.0
        %4121 = vmatprep.subr.mxu0 0.0
        %4122 = vmatpush1.msra.mxu0 0.0
        %4123 = vmatprep.mubr.f32.mxu0 0.0
        %v4124 = vand.u32 %v3977, 4294901760
        %v4125 = vsub.f32 %v3977, %v4124
        %v4126 = vand.u32 %v4125, 4294901760
        %v4127 = vsub.f32 %v4125, %v4126
        %v4128 = vand.u32 %v4127, 4294901760
        %4129 = vmatmul.mubr.f32.gmra.mrb[0].mxu0 %v4128
        %v4130 = vpop.f32.mrb[0].mxu0
        %v4131 = vadd.f32 0.0, %v4130
        %v4132 = vpop.f32.mrb[0].mxu0
        %v4133 = vadd.f32 0.0, %v4132
        %4134 = vmatprep.mubr.f32.mxu0 0.0
        %v4135 = vand.u32 %v3978, 4294901760
        %v4136 = vsub.f32 %v3978, %v4135
        %v4137 = vand.u32 %v4136, 4294901760
        %v4138 = vsub.f32 %v4136, %v4137
        %v4139 = vand.u32 %v4138, 4294901760
        %4140 = vmatmul.mubr.f32.gmra.mrb[0].mxu0 %v4139
        %v4141 = vpop.f32.mrb[0].mxu0
        %v4142 = vadd.f32 0.0, %v4141
        %v4143 = vpop.f32.mrb[0].mxu0
        %v4144 = vadd.f32 0.0, %v4143
        %4145 = vdwg.mxu0
        %v4146 = vand.u32 %v3980, 4294901760
        %v4147 = vsub.f32 %v3980, %v4146
        %v4148 = vand.u32 %v4147, 4294901760
        %v4149 = vsub.f32 %v4147, %v4148
        %v4150 = vand.u32 %v4149, 4294901760
        %4151 = vmatprep.subr.mxu0 %v4150
        %v4152 = vand.u32 %v3979, 4294901760
        %v4153 = vsub.f32 %v3979, %v4152
        %v4154 = vand.u32 %v4153, 4294901760
        %v4155 = vsub.f32 %v4153, %v4154
        %v4156 = vand.u32 %v4155, 4294901760
        %4157 = vmatpush1.msra.mxu0 %v4156
        %v4158 = vand.u32 %v3983, 4294901760
        %v4159 = vsub.f32 %v3983, %v4158
        %v4160 = vand.u32 %v4159, 4294901760
        %v4161 = vsub.f32 %v4159, %v4160
        %v4162 = vand.u32 %v4161, 4294901760
        %4163 = vmatprep.subr.mxu0 %v4162
        %v4164 = vand.u32 %v3982, 4294901760
        %v4165 = vsub.f32 %v3982, %v4164
        %v4166 = vand.u32 %v4165, 4294901760
        %v4167 = vsub.f32 %v4165, %v4166
        %v4168 = vand.u32 %v4167, 4294901760
        %4169 = vmatpush1.msra.mxu0 %v4168
        %v4170 = vand.u32 %v3986, 4294901760
        %v4171 = vsub.f32 %v3986, %v4170
        %v4172 = vand.u32 %v4171, 4294901760
        %v4173 = vsub.f32 %v4171, %v4172
        %v4174 = vand.u32 %v4173, 4294901760
        %4175 = vmatprep.subr.mxu0 %v4174
        %v4176 = vand.u32 %v3985, 4294901760
        %v4177 = vsub.f32 %v3985, %v4176
        %v4178 = vand.u32 %v4177, 4294901760
        %v4179 = vsub.f32 %v4177, %v4178
        %v4180 = vand.u32 %v4179, 4294901760
        %4181 = vmatpush1.msra.mxu0 %v4180
        %v4182 = vand.u32 %v3989, 4294901760
        %v4183 = vsub.f32 %v3989, %v4182
        %v4184 = vand.u32 %v4183, 4294901760
        %v4185 = vsub.f32 %v4183, %v4184
        %v4186 = vand.u32 %v4185, 4294901760
        %4187 = vmatprep.subr.mxu0 %v4186
        %v4188 = vand.u32 %v3988, 4294901760
        %v4189 = vsub.f32 %v3988, %v4188
        %v4190 = vand.u32 %v4189, 4294901760
        %v4191 = vsub.f32 %v4189, %v4190
        %v4192 = vand.u32 %v4191, 4294901760
        %4193 = vmatpush1.msra.mxu0 %v4192
        %v4194 = vand.u32 %v3992, 4294901760
        %v4195 = vsub.f32 %v3992, %v4194
        %v4196 = vand.u32 %v4195, 4294901760
        %v4197 = vsub.f32 %v4195, %v4196
        %v4198 = vand.u32 %v4197, 4294901760
        %4199 = vmatprep.subr.mxu0 %v4198
        %v4200 = vand.u32 %v3991, 4294901760
        %v4201 = vsub.f32 %v3991, %v4200
        %v4202 = vand.u32 %v4201, 4294901760
        %v4203 = vsub.f32 %v4201, %v4202
        %v4204 = vand.u32 %v4203, 4294901760
        %4205 = vmatpush1.msra.mxu0 %v4204
        %v4206 = vand.u32 %v3995, 4294901760
        %v4207 = vsub.f32 %v3995, %v4206
        %v4208 = vand.u32 %v4207, 4294901760
        %v4209 = vsub.f32 %v4207, %v4208
        %v4210 = vand.u32 %v4209, 4294901760
        %4211 = vmatprep.subr.mxu0 %v4210
        %v4212 = vand.u32 %v3994, 4294901760
        %v4213 = vsub.f32 %v3994, %v4212
        %v4214 = vand.u32 %v4213, 4294901760
        %v4215 = vsub.f32 %v4213, %v4214
        %v4216 = vand.u32 %v4215, 4294901760
        %4217 = vmatpush1.msra.mxu0 %v4216
        %v4218 = vand.u32 %v3998, 4294901760
        %v4219 = vsub.f32 %v3998, %v4218
        %v4220 = vand.u32 %v4219, 4294901760
        %v4221 = vsub.f32 %v4219, %v4220
        %v4222 = vand.u32 %v4221, 4294901760
        %4223 = vmatprep.subr.mxu0 %v4222
        %v4224 = vand.u32 %v3997, 4294901760
        %v4225 = vsub.f32 %v3997, %v4224
        %v4226 = vand.u32 %v4225, 4294901760
        %v4227 = vsub.f32 %v4225, %v4226
        %v4228 = vand.u32 %v4227, 4294901760
        %4229 = vmatpush1.msra.mxu0 %v4228
        %v4230 = vand.u32 %v4001, 4294901760
        %v4231 = vsub.f32 %v4001, %v4230
        %v4232 = vand.u32 %v4231, 4294901760
        %v4233 = vsub.f32 %v4231, %v4232
        %v4234 = vand.u32 %v4233, 4294901760
        %4235 = vmatprep.subr.mxu0 %v4234
        %v4236 = vand.u32 %v4000, 4294901760
        %v4237 = vsub.f32 %v4000, %v4236
        %v4238 = vand.u32 %v4237, 4294901760
        %v4239 = vsub.f32 %v4237, %v4238
        %v4240 = vand.u32 %v4239, 4294901760
        %4241 = vmatpush1.msra.mxu0 %v4240
        %v4242 = vand.u32 %v4004, 4294901760
        %v4243 = vsub.f32 %v4004, %v4242
        %v4244 = vand.u32 %v4243, 4294901760
        %v4245 = vsub.f32 %v4243, %v4244
        %v4246 = vand.u32 %v4245, 4294901760
        %4247 = vmatprep.subr.mxu0 %v4246
        %v4248 = vand.u32 %v4003, 4294901760
        %v4249 = vsub.f32 %v4003, %v4248
        %v4250 = vand.u32 %v4249, 4294901760
        %v4251 = vsub.f32 %v4249, %v4250
        %v4252 = vand.u32 %v4251, 4294901760
        %4253 = vmatpush1.msra.mxu0 %v4252
        %v4254 = vand.u32 %v4007, 4294901760
        %v4255 = vsub.f32 %v4007, %v4254
        %v4256 = vand.u32 %v4255, 4294901760
        %v4257 = vsub.f32 %v4255, %v4256
        %v4258 = vand.u32 %v4257, 4294901760
        %4259 = vmatprep.subr.mxu0 %v4258
        %v4260 = vand.u32 %v4006, 4294901760
        %v4261 = vsub.f32 %v4006, %v4260
        %v4262 = vand.u32 %v4261, 4294901760
        %v4263 = vsub.f32 %v4261, %v4262
        %v4264 = vand.u32 %v4263, 4294901760
        %4265 = vmatpush1.msra.mxu0 %v4264
        %v4266 = vand.u32 %v4010, 4294901760
        %v4267 = vsub.f32 %v4010, %v4266
        %v4268 = vand.u32 %v4267, 4294901760
        %v4269 = vsub.f32 %v4267, %v4268
        %v4270 = vand.u32 %v4269, 4294901760
        %4271 = vmatprep.subr.mxu0 %v4270
        %v4272 = vand.u32 %v4009, 4294901760
        %v4273 = vsub.f32 %v4009, %v4272
        %v4274 = vand.u32 %v4273, 4294901760
        %v4275 = vsub.f32 %v4273, %v4274
        %v4276 = vand.u32 %v4275, 4294901760
        %4277 = vmatpush1.msra.mxu0 %v4276
        %v4278 = vand.u32 %v4013, 4294901760
        %v4279 = vsub.f32 %v4013, %v4278
        %v4280 = vand.u32 %v4279, 4294901760
        %v4281 = vsub.f32 %v4279, %v4280
        %v4282 = vand.u32 %v4281, 4294901760
        %4283 = vmatprep.subr.mxu0 %v4282
        %v4284 = vand.u32 %v4012, 4294901760
        %v4285 = vsub.f32 %v4012, %v4284
        %v4286 = vand.u32 %v4285, 4294901760
        %v4287 = vsub.f32 %v4285, %v4286
        %v4288 = vand.u32 %v4287, 4294901760
        %4289 = vmatpush1.msra.mxu0 %v4288
        %v4290 = vand.u32 %v4016, 4294901760
        %v4291 = vsub.f32 %v4016, %v4290
        %v4292 = vand.u32 %v4291, 4294901760
        %v4293 = vsub.f32 %v4291, %v4292
        %v4294 = vand.u32 %v4293, 4294901760
        %4295 = vmatprep.subr.mxu0 %v4294
        %v4296 = vand.u32 %v4015, 4294901760
        %v4297 = vsub.f32 %v4015, %v4296
        %v4298 = vand.u32 %v4297, 4294901760
        %v4299 = vsub.f32 %v4297, %v4298
        %v4300 = vand.u32 %v4299, 4294901760
        %4301 = vmatpush1.msra.mxu0 %v4300
        %v4302 = vand.u32 %v4019, 4294901760
        %v4303 = vsub.f32 %v4019, %v4302
        %v4304 = vand.u32 %v4303, 4294901760
        %v4305 = vsub.f32 %v4303, %v4304
        %v4306 = vand.u32 %v4305, 4294901760
        %4307 = vmatprep.subr.mxu0 %v4306
        %v4308 = vand.u32 %v4018, 4294901760
        %v4309 = vsub.f32 %v4018, %v4308
        %v4310 = vand.u32 %v4309, 4294901760
        %v4311 = vsub.f32 %v4309, %v4310
        %v4312 = vand.u32 %v4311, 4294901760
        %4313 = vmatpush1.msra.mxu0 %v4312
        %v4314 = vand.u32 %v4022, 4294901760
        %v4315 = vsub.f32 %v4022, %v4314
        %v4316 = vand.u32 %v4315, 4294901760
        %v4317 = vsub.f32 %v4315, %v4316
        %v4318 = vand.u32 %v4317, 4294901760
        %4319 = vmatprep.subr.mxu0 %v4318
        %v4320 = vand.u32 %v4021, 4294901760
        %v4321 = vsub.f32 %v4021, %v4320
        %v4322 = vand.u32 %v4321, 4294901760
        %v4323 = vsub.f32 %v4321, %v4322
        %v4324 = vand.u32 %v4323, 4294901760
        %4325 = vmatpush1.msra.mxu0 %v4324
        %v4326 = vand.u32 %v4025, 4294901760
        %v4327 = vsub.f32 %v4025, %v4326
        %v4328 = vand.u32 %v4327, 4294901760
        %v4329 = vsub.f32 %v4327, %v4328
        %v4330 = vand.u32 %v4329, 4294901760
        %4331 = vmatprep.subr.mxu0 %v4330
        %v4332 = vand.u32 %v4024, 4294901760
        %v4333 = vsub.f32 %v4024, %v4332
        %v4334 = vand.u32 %v4333, 4294901760
        %v4335 = vsub.f32 %v4333, %v4334
        %v4336 = vand.u32 %v4335, 4294901760
        %4337 = vmatpush1.msra.mxu0 %v4336
        %4338 = vmatprep.subr.mxu0 0.0
        %4339 = vmatpush1.msra.mxu0 0.0
        %4340 = vmatprep.subr.mxu0 0.0
        %4341 = vmatpush1.msra.mxu0 0.0
        %4342 = vmatprep.subr.mxu0 0.0
        %4343 = vmatpush1.msra.mxu0 0.0
        %4344 = vmatprep.subr.mxu0 0.0
        %4345 = vmatpush1.msra.mxu0 0.0
        %4346 = vmatprep.subr.mxu0 0.0
        %4347 = vmatpush1.msra.mxu0 0.0
        %4348 = vmatprep.subr.mxu0 0.0
        %4349 = vmatpush1.msra.mxu0 0.0
        %4350 = vmatprep.subr.mxu0 0.0
        %4351 = vmatpush1.msra.mxu0 0.0
        %4352 = vmatprep.subr.mxu0 0.0
        %4353 = vmatpush1.msra.mxu0 0.0
        %4354 = vmatprep.subr.mxu0 0.0
        %4355 = vmatpush1.msra.mxu0 0.0
        %4356 = vmatprep.subr.mxu0 0.0
        %4357 = vmatpush1.msra.mxu0 0.0
        %4358 = vmatprep.subr.mxu0 0.0
        %4359 = vmatpush1.msra.mxu0 0.0
        %4360 = vmatprep.subr.mxu0 0.0
        %4361 = vmatpush1.msra.mxu0 0.0
        %4362 = vmatprep.subr.mxu0 0.0
        %4363 = vmatpush1.msra.mxu0 0.0
        %4364 = vmatprep.subr.mxu0 0.0
        %4365 = vmatpush1.msra.mxu0 0.0
        %4366 = vmatprep.subr.mxu0 0.0
        %4367 = vmatpush1.msra.mxu0 0.0
        %4368 = vmatprep.subr.mxu0 0.0
        %4369 = vmatpush1.msra.mxu0 0.0
        %4370 = vmatprep.mubr.f32.mxu0 0.0
        %v4371 = vand.u32 %v3977, 4294901760
        %4372 = vmatmul.mubr.f32.gmra.mrb[0].mxu0 %v4371
        %v4373 = vpop.f32.mrb[0].mxu0
        %v4374 = vadd.f32 %v4131, %v4373
        %v4375 = vpop.f32.mrb[0].mxu0
        %v4376 = vadd.f32 %v4133, %v4375
        %4377 = vmatprep.mubr.f32.mxu0 0.0
        %v4378 = vand.u32 %v3978, 4294901760
        %4379 = vmatmul.mubr.f32.gmra.mrb[0].mxu0 %v4378
        %v4380 = vpop.f32.mrb[0].mxu0
        %v4381 = vadd.f32 %v4142, %v4380
        %v4382 = vpop.f32.mrb[0].mxu0
        %v4383 = vadd.f32 %v4144, %v4382
        %4384 = vdwg.mxu0
        %v4385 = vand.u32 %v3980, 4294901760
        %v4386 = vsub.f32 %v3980, %v4385
        %4387 = vmatprep.subr.mxu0 %v4386
        %v4388 = vand.u32 %v3979, 4294901760
        %v4389 = vsub.f32 %v3979, %v4388
        %4390 = vmatpush1.msra.mxu0 %v4389
        %v4391 = vand.u32 %v3983, 4294901760
        %v4392 = vsub.f32 %v3983, %v4391
        %4393 = vmatprep.subr.mxu0 %v4392
        %v4394 = vand.u32 %v3982, 4294901760
        %v4395 = vsub.f32 %v3982, %v4394
        %4396 = vmatpush1.msra.mxu0 %v4395
        %v4397 = vand.u32 %v3986, 4294901760
        %v4398 = vsub.f32 %v3986, %v4397
        %4399 = vmatprep.subr.mxu0 %v4398
        %v4400 = vand.u32 %v3985, 4294901760
        %v4401 = vsub.f32 %v3985, %v4400
        %4402 = vmatpush1.msra.mxu0 %v4401
        %v4403 = vand.u32 %v3989, 4294901760
        %v4404 = vsub.f32 %v3989, %v4403
        %4405 = vmatprep.subr.mxu0 %v4404
        %v4406 = vand.u32 %v3988, 4294901760
        %v4407 = vsub.f32 %v3988, %v4406
        %4408 = vmatpush1.msra.mxu0 %v4407
        %v4409 = vand.u32 %v3992, 4294901760
        %v4410 = vsub.f32 %v3992, %v4409
        %4411 = vmatprep.subr.mxu0 %v4410
        %v4412 = vand.u32 %v3991, 4294901760
        %v4413 = vsub.f32 %v3991, %v4412
        %4414 = vmatpush1.msra.mxu0 %v4413
        %v4415 = vand.u32 %v3995, 4294901760
        %v4416 = vsub.f32 %v3995, %v4415
        %4417 = vmatprep.subr.mxu0 %v4416
        %v4418 = vand.u32 %v3994, 4294901760
        %v4419 = vsub.f32 %v3994, %v4418
        %4420 = vmatpush1.msra.mxu0 %v4419
        %v4421 = vand.u32 %v3998, 4294901760
        %v4422 = vsub.f32 %v3998, %v4421
        %4423 = vmatprep.subr.mxu0 %v4422
        %v4424 = vand.u32 %v3997, 4294901760
        %v4425 = vsub.f32 %v3997, %v4424
        %4426 = vmatpush1.msra.mxu0 %v4425
        %v4427 = vand.u32 %v4001, 4294901760
        %v4428 = vsub.f32 %v4001, %v4427
        %4429 = vmatprep.subr.mxu0 %v4428
        %v4430 = vand.u32 %v4000, 4294901760
        %v4431 = vsub.f32 %v4000, %v4430
        %4432 = vmatpush1.msra.mxu0 %v4431
        %v4433 = vand.u32 %v4004, 4294901760
        %v4434 = vsub.f32 %v4004, %v4433
        %4435 = vmatprep.subr.mxu0 %v4434
        %v4436 = vand.u32 %v4003, 4294901760
        %v4437 = vsub.f32 %v4003, %v4436
        %4438 = vmatpush1.msra.mxu0 %v4437
        %v4439 = vand.u32 %v4007, 4294901760
        %v4440 = vsub.f32 %v4007, %v4439
        %4441 = vmatprep.subr.mxu0 %v4440
        %v4442 = vand.u32 %v4006, 4294901760
        %v4443 = vsub.f32 %v4006, %v4442
        %4444 = vmatpush1.msra.mxu0 %v4443
        %v4445 = vand.u32 %v4010, 4294901760
        %v4446 = vsub.f32 %v4010, %v4445
        %4447 = vmatprep.subr.mxu0 %v4446
        %v4448 = vand.u32 %v4009, 4294901760
        %v4449 = vsub.f32 %v4009, %v4448
        %4450 = vmatpush1.msra.mxu0 %v4449
        %v4451 = vand.u32 %v4013, 4294901760
        %v4452 = vsub.f32 %v4013, %v4451
        %4453 = vmatprep.subr.mxu0 %v4452
        %v4454 = vand.u32 %v4012, 4294901760
        %v4455 = vsub.f32 %v4012, %v4454
        %4456 = vmatpush1.msra.mxu0 %v4455
        %v4457 = vand.u32 %v4016, 4294901760
        %v4458 = vsub.f32 %v4016, %v4457
        %4459 = vmatprep.subr.mxu0 %v4458
        %v4460 = vand.u32 %v4015, 4294901760
        %v4461 = vsub.f32 %v4015, %v4460
        %4462 = vmatpush1.msra.mxu0 %v4461
        %v4463 = vand.u32 %v4019, 4294901760
        %v4464 = vsub.f32 %v4019, %v4463
        %4465 = vmatprep.subr.mxu0 %v4464
        %v4466 = vand.u32 %v4018, 4294901760
        %v4467 = vsub.f32 %v4018, %v4466
        %4468 = vmatpush1.msra.mxu0 %v4467
        %v4469 = vand.u32 %v4022, 4294901760
        %v4470 = vsub.f32 %v4022, %v4469
        %4471 = vmatprep.subr.mxu0 %v4470
        %v4472 = vand.u32 %v4021, 4294901760
        %v4473 = vsub.f32 %v4021, %v4472
        %4474 = vmatpush1.msra.mxu0 %v4473
        %v4475 = vand.u32 %v4025, 4294901760
        %v4476 = vsub.f32 %v4025, %v4475
        %4477 = vmatprep.subr.mxu0 %v4476
        %v4478 = vand.u32 %v4024, 4294901760
        %v4479 = vsub.f32 %v4024, %v4478
        %4480 = vmatpush1.msra.mxu0 %v4479
        %4481 = vmatprep.subr.mxu0 0.0
        %4482 = vmatpush1.msra.mxu0 0.0
        %4483 = vmatprep.subr.mxu0 0.0
        %4484 = vmatpush1.msra.mxu0 0.0
        %4485 = vmatprep.subr.mxu0 0.0
        %4486 = vmatpush1.msra.mxu0 0.0
        %4487 = vmatprep.subr.mxu0 0.0
        %4488 = vmatpush1.msra.mxu0 0.0
        %4489 = vmatprep.subr.mxu0 0.0
        %4490 = vmatpush1.msra.mxu0 0.0
        %4491 = vmatprep.subr.mxu0 0.0
        %4492 = vmatpush1.msra.mxu0 0.0
        %4493 = vmatprep.subr.mxu0 0.0
        %4494 = vmatpush1.msra.mxu0 0.0
        %4495 = vmatprep.subr.mxu0 0.0
        %4496 = vmatpush1.msra.mxu0 0.0
        %4497 = vmatprep.subr.mxu0 0.0
        %4498 = vmatpush1.msra.mxu0 0.0
        %4499 = vmatprep.subr.mxu0 0.0
        %4500 = vmatpush1.msra.mxu0 0.0
        %4501 = vmatprep.subr.mxu0 0.0
        %4502 = vmatpush1.msra.mxu0 0.0
        %4503 = vmatprep.subr.mxu0 0.0
        %4504 = vmatpush1.msra.mxu0 0.0
        %4505 = vmatprep.subr.mxu0 0.0
        %4506 = vmatpush1.msra.mxu0 0.0
        %4507 = vmatprep.subr.mxu0 0.0
        %4508 = vmatpush1.msra.mxu0 0.0
        %4509 = vmatprep.subr.mxu0 0.0
        %4510 = vmatpush1.msra.mxu0 0.0
        %4511 = vmatprep.subr.mxu0 0.0
        %4512 = vmatpush1.msra.mxu0 0.0
        %4513 = vmatprep.mubr.f32.mxu0 0.0
        %v4514 = vand.u32 %v3977, 4294901760
        %v4515 = vsub.f32 %v3977, %v4514
        %4516 = vmatmul.mubr.f32.gmra.mrb[0].mxu0 %v4515
        %v4517 = vpop.f32.mrb[0].mxu0
        %v4518 = vadd.f32 %v4374, %v4517
        %v4519 = vpop.f32.mrb[0].mxu0
        %v4520 = vadd.f32 %v4376, %v4519
        %4521 = vmatprep.mubr.f32.mxu0 0.0
        %v4522 = vand.u32 %v3978, 4294901760
        %v4523 = vsub.f32 %v3978, %v4522
        %4524 = vmatmul.mubr.f32.gmra.mrb[0].mxu0 %v4523
        %v4525 = vpop.f32.mrb[0].mxu0
        %v4526 = vadd.f32 %v4381, %v4525
        %v4527 = vpop.f32.mrb[0].mxu0
        %v4528 = vadd.f32 %v4383, %v4527
        %4529 = vdwg.mxu0
        %v4530 = vand.u32 %v3980, 4294901760
        %4531 = vmatprep.subr.mxu0 %v4530
        %v4532 = vand.u32 %v3979, 4294901760
        %4533 = vmatpush1.msra.mxu0 %v4532
        %v4534 = vand.u32 %v3983, 4294901760
        %4535 = vmatprep.subr.mxu0 %v4534
        %v4536 = vand.u32 %v3982, 4294901760
        %4537 = vmatpush1.msra.mxu0 %v4536
        %v4538 = vand.u32 %v3986, 4294901760
        %4539 = vmatprep.subr.mxu0 %v4538
        %v4540 = vand.u32 %v3985, 4294901760
        %4541 = vmatpush1.msra.mxu0 %v4540
        %v4542 = vand.u32 %v3989, 4294901760
        %4543 = vmatprep.subr.mxu0 %v4542
        %v4544 = vand.u32 %v3988, 4294901760
        %4545 = vmatpush1.msra.mxu0 %v4544
        %v4546 = vand.u32 %v3992, 4294901760
        %4547 = vmatprep.subr.mxu0 %v4546
        %v4548 = vand.u32 %v3991, 4294901760
        %4549 = vmatpush1.msra.mxu0 %v4548
        %v4550 = vand.u32 %v3995, 4294901760
        %4551 = vmatprep.subr.mxu0 %v4550
        %v4552 = vand.u32 %v3994, 4294901760
        %4553 = vmatpush1.msra.mxu0 %v4552
        %v4554 = vand.u32 %v3998, 4294901760
        %4555 = vmatprep.subr.mxu0 %v4554
        %v4556 = vand.u32 %v3997, 4294901760
        %4557 = vmatpush1.msra.mxu0 %v4556
        %v4558 = vand.u32 %v4001, 4294901760
        %4559 = vmatprep.subr.mxu0 %v4558
        %v4560 = vand.u32 %v4000, 4294901760
        %4561 = vmatpush1.msra.mxu0 %v4560
        %v4562 = vand.u32 %v4004, 4294901760
        %4563 = vmatprep.subr.mxu0 %v4562
        %v4564 = vand.u32 %v4003, 4294901760
        %4565 = vmatpush1.msra.mxu0 %v4564
        %v4566 = vand.u32 %v4007, 4294901760
        %4567 = vmatprep.subr.mxu0 %v4566
        %v4568 = vand.u32 %v4006, 4294901760
        %4569 = vmatpush1.msra.mxu0 %v4568
        %v4570 = vand.u32 %v4010, 4294901760
        %4571 = vmatprep.subr.mxu0 %v4570
        %v4572 = vand.u32 %v4009, 4294901760
        %4573 = vmatpush1.msra.mxu0 %v4572
        %v4574 = vand.u32 %v4013, 4294901760
        %4575 = vmatprep.subr.mxu0 %v4574
        %v4576 = vand.u32 %v4012, 4294901760
        %4577 = vmatpush1.msra.mxu0 %v4576
        %v4578 = vand.u32 %v4016, 4294901760
        %4579 = vmatprep.subr.mxu0 %v4578
        %v4580 = vand.u32 %v4015, 4294901760
        %4581 = vmatpush1.msra.mxu0 %v4580
        %v4582 = vand.u32 %v4019, 4294901760
        %4583 = vmatprep.subr.mxu0 %v4582
        %v4584 = vand.u32 %v4018, 4294901760
        %4585 = vmatpush1.msra.mxu0 %v4584
        %v4586 = vand.u32 %v4022, 4294901760
        %4587 = vmatprep.subr.mxu0 %v4586
        %v4588 = vand.u32 %v4021, 4294901760
        %4589 = vmatpush1.msra.mxu0 %v4588
        %v4590 = vand.u32 %v4025, 4294901760
        %4591 = vmatprep.subr.mxu0 %v4590
        %v4592 = vand.u32 %v4024, 4294901760
        %4593 = vmatpush1.msra.mxu0 %v4592
        %4594 = vmatprep.subr.mxu0 0.0
        %4595 = vmatpush1.msra.mxu0 0.0
        %4596 = vmatprep.subr.mxu0 0.0
        %4597 = vmatpush1.msra.mxu0 0.0
        %4598 = vmatprep.subr.mxu0 0.0
        %4599 = vmatpush1.msra.mxu0 0.0
        %4600 = vmatprep.subr.mxu0 0.0
        %4601 = vmatpush1.msra.mxu0 0.0
        %4602 = vmatprep.subr.mxu0 0.0
        %4603 = vmatpush1.msra.mxu0 0.0
        %4604 = vmatprep.subr.mxu0 0.0
        %4605 = vmatpush1.msra.mxu0 0.0
        %4606 = vmatprep.subr.mxu0 0.0
        %4607 = vmatpush1.msra.mxu0 0.0
        %4608 = vmatprep.subr.mxu0 0.0
        %4609 = vmatpush1.msra.mxu0 0.0
        %4610 = vmatprep.subr.mxu0 0.0
        %4611 = vmatpush1.msra.mxu0 0.0
        %4612 = vmatprep.subr.mxu0 0.0
        %4613 = vmatpush1.msra.mxu0 0.0
        %4614 = vmatprep.subr.mxu0 0.0
        %4615 = vmatpush1.msra.mxu0 0.0
        %4616 = vmatprep.subr.mxu0 0.0
        %4617 = vmatpush1.msra.mxu0 0.0
        %4618 = vmatprep.subr.mxu0 0.0
        %4619 = vmatpush1.msra.mxu0 0.0
        %4620 = vmatprep.subr.mxu0 0.0
        %4621 = vmatpush1.msra.mxu0 0.0
        %4622 = vmatprep.subr.mxu0 0.0
        %4623 = vmatpush1.msra.mxu0 0.0
        %4624 = vmatprep.subr.mxu0 0.0
        %4625 = vmatpush1.msra.mxu0 0.0
        %4626 = vmatprep.mubr.f32.mxu0 0.0
        %v4627 = vand.u32 %v3977, 4294901760
        %v4628 = vsub.f32 %v3977, %v4627
        %v4629 = vand.u32 %v4628, 4294901760
        %4630 = vmatmul.mubr.f32.gmra.mrb[0].mxu0 %v4629
        %v4631 = vpop.f32.mrb[0].mxu0
        %v4632 = vadd.f32 %v4518, %v4631
        %v4633 = vpop.f32.mrb[0].mxu0
        %v4634 = vadd.f32 %v4520, %v4633
        %4635 = vmatprep.mubr.f32.mxu0 0.0
        %v4636 = vand.u32 %v3978, 4294901760
        %v4637 = vsub.f32 %v3978, %v4636
        %v4638 = vand.u32 %v4637, 4294901760
        %4639 = vmatmul.mubr.f32.gmra.mrb[0].mxu0 %v4638
        %v4640 = vpop.f32.mrb[0].mxu0
        %v4641 = vadd.f32 %v4526, %v4640
        %v4642 = vpop.f32.mrb[0].mxu0
        %v4643 = vadd.f32 %v4528, %v4642
        %4644 = vdwg.mxu0
        %v4645 = vand.u32 %v3980, 4294901760
        %v4646 = vsub.f32 %v3980, %v4645
        %v4647 = vand.u32 %v4646, 4294901760
        %4648 = vmatprep.subr.mxu0 %v4647
        %v4649 = vand.u32 %v3979, 4294901760
        %v4650 = vsub.f32 %v3979, %v4649
        %v4651 = vand.u32 %v4650, 4294901760
        %4652 = vmatpush1.msra.mxu0 %v4651
        %v4653 = vand.u32 %v3983, 4294901760
        %v4654 = vsub.f32 %v3983, %v4653
        %v4655 = vand.u32 %v4654, 4294901760
        %4656 = vmatprep.subr.mxu0 %v4655
        %v4657 = vand.u32 %v3982, 4294901760
        %v4658 = vsub.f32 %v3982, %v4657
        %v4659 = vand.u32 %v4658, 4294901760
        %4660 = vmatpush1.msra.mxu0 %v4659
        %v4661 = vand.u32 %v3986, 4294901760
        %v4662 = vsub.f32 %v3986, %v4661
        %v4663 = vand.u32 %v4662, 4294901760
        %4664 = vmatprep.subr.mxu0 %v4663
        %v4665 = vand.u32 %v3985, 4294901760
        %v4666 = vsub.f32 %v3985, %v4665
        %v4667 = vand.u32 %v4666, 4294901760
        %4668 = vmatpush1.msra.mxu0 %v4667
        %v4669 = vand.u32 %v3989, 4294901760
        %v4670 = vsub.f32 %v3989, %v4669
        %v4671 = vand.u32 %v4670, 4294901760
        %4672 = vmatprep.subr.mxu0 %v4671
        %v4673 = vand.u32 %v3988, 4294901760
        %v4674 = vsub.f32 %v3988, %v4673
        %v4675 = vand.u32 %v4674, 4294901760
        %4676 = vmatpush1.msra.mxu0 %v4675
        %v4677 = vand.u32 %v3992, 4294901760
        %v4678 = vsub.f32 %v3992, %v4677
        %v4679 = vand.u32 %v4678, 4294901760
        %4680 = vmatprep.subr.mxu0 %v4679
        %v4681 = vand.u32 %v3991, 4294901760
        %v4682 = vsub.f32 %v3991, %v4681
        %v4683 = vand.u32 %v4682, 4294901760
        %4684 = vmatpush1.msra.mxu0 %v4683
        %v4685 = vand.u32 %v3995, 4294901760
        %v4686 = vsub.f32 %v3995, %v4685
        %v4687 = vand.u32 %v4686, 4294901760
        %4688 = vmatprep.subr.mxu0 %v4687
        %v4689 = vand.u32 %v3994, 4294901760
        %v4690 = vsub.f32 %v3994, %v4689
        %v4691 = vand.u32 %v4690, 4294901760
        %4692 = vmatpush1.msra.mxu0 %v4691
        %v4693 = vand.u32 %v3998, 4294901760
        %v4694 = vsub.f32 %v3998, %v4693
        %v4695 = vand.u32 %v4694, 4294901760
        %4696 = vmatprep.subr.mxu0 %v4695
        %v4697 = vand.u32 %v3997, 4294901760
        %v4698 = vsub.f32 %v3997, %v4697
        %v4699 = vand.u32 %v4698, 4294901760
        %4700 = vmatpush1.msra.mxu0 %v4699
        %v4701 = vand.u32 %v4001, 4294901760
        %v4702 = vsub.f32 %v4001, %v4701
        %v4703 = vand.u32 %v4702, 4294901760
        %4704 = vmatprep.subr.mxu0 %v4703
        %v4705 = vand.u32 %v4000, 4294901760
        %v4706 = vsub.f32 %v4000, %v4705
        %v4707 = vand.u32 %v4706, 4294901760
        %4708 = vmatpush1.msra.mxu0 %v4707
        %v4709 = vand.u32 %v4004, 4294901760
        %v4710 = vsub.f32 %v4004, %v4709
        %v4711 = vand.u32 %v4710, 4294901760
        %4712 = vmatprep.subr.mxu0 %v4711
        %v4713 = vand.u32 %v4003, 4294901760
        %v4714 = vsub.f32 %v4003, %v4713
        %v4715 = vand.u32 %v4714, 4294901760
        %4716 = vmatpush1.msra.mxu0 %v4715
        %v4717 = vand.u32 %v4007, 4294901760
        %v4718 = vsub.f32 %v4007, %v4717
        %v4719 = vand.u32 %v4718, 4294901760
        %4720 = vmatprep.subr.mxu0 %v4719
        %v4721 = vand.u32 %v4006, 4294901760
        %v4722 = vsub.f32 %v4006, %v4721
        %v4723 = vand.u32 %v4722, 4294901760
        %4724 = vmatpush1.msra.mxu0 %v4723
        %v4725 = vand.u32 %v4010, 4294901760
        %v4726 = vsub.f32 %v4010, %v4725
        %v4727 = vand.u32 %v4726, 4294901760
        %4728 = vmatprep.subr.mxu0 %v4727
        %v4729 = vand.u32 %v4009, 4294901760
        %v4730 = vsub.f32 %v4009, %v4729
        %v4731 = vand.u32 %v4730, 4294901760
        %4732 = vmatpush1.msra.mxu0 %v4731
        %v4733 = vand.u32 %v4013, 4294901760
        %v4734 = vsub.f32 %v4013, %v4733
        %v4735 = vand.u32 %v4734, 4294901760
        %4736 = vmatprep.subr.mxu0 %v4735
        %v4737 = vand.u32 %v4012, 4294901760
        %v4738 = vsub.f32 %v4012, %v4737
        %v4739 = vand.u32 %v4738, 4294901760
        %4740 = vmatpush1.msra.mxu0 %v4739
        %v4741 = vand.u32 %v4016, 4294901760
        %v4742 = vsub.f32 %v4016, %v4741
        %v4743 = vand.u32 %v4742, 4294901760
        %4744 = vmatprep.subr.mxu0 %v4743
        %v4745 = vand.u32 %v4015, 4294901760
        %v4746 = vsub.f32 %v4015, %v4745
        %v4747 = vand.u32 %v4746, 4294901760
        %4748 = vmatpush1.msra.mxu0 %v4747
        %v4749 = vand.u32 %v4019, 4294901760
        %v4750 = vsub.f32 %v4019, %v4749
        %v4751 = vand.u32 %v4750, 4294901760
        %4752 = vmatprep.subr.mxu0 %v4751
        %v4753 = vand.u32 %v4018, 4294901760
        %v4754 = vsub.f32 %v4018, %v4753
        %v4755 = vand.u32 %v4754, 4294901760
        %4756 = vmatpush1.msra.mxu0 %v4755
        %v4757 = vand.u32 %v4022, 4294901760
        %v4758 = vsub.f32 %v4022, %v4757
        %v4759 = vand.u32 %v4758, 4294901760
        %4760 = vmatprep.subr.mxu0 %v4759
        %v4761 = vand.u32 %v4021, 4294901760
        %v4762 = vsub.f32 %v4021, %v4761
        %v4763 = vand.u32 %v4762, 4294901760
        %4764 = vmatpush1.msra.mxu0 %v4763
        %v4765 = vand.u32 %v4025, 4294901760
        %v4766 = vsub.f32 %v4025, %v4765
        %v4767 = vand.u32 %v4766, 4294901760
        %4768 = vmatprep.subr.mxu0 %v4767
        %v4769 = vand.u32 %v4024, 4294901760
        %v4770 = vsub.f32 %v4024, %v4769
        %v4771 = vand.u32 %v4770, 4294901760
        %4772 = vmatpush1.msra.mxu0 %v4771
        %4773 = vmatprep.subr.mxu0 0.0
        %4774 = vmatpush1.msra.mxu0 0.0
        %4775 = vmatprep.subr.mxu0 0.0
        %4776 = vmatpush1.msra.mxu0 0.0
        %4777 = vmatprep.subr.mxu0 0.0
        %4778 = vmatpush1.msra.mxu0 0.0
        %4779 = vmatprep.subr.mxu0 0.0
        %4780 = vmatpush1.msra.mxu0 0.0
        %4781 = vmatprep.subr.mxu0 0.0
        %4782 = vmatpush1.msra.mxu0 0.0
        %4783 = vmatprep.subr.mxu0 0.0
        %4784 = vmatpush1.msra.mxu0 0.0
        %4785 = vmatprep.subr.mxu0 0.0
        %4786 = vmatpush1.msra.mxu0 0.0
        %4787 = vmatprep.subr.mxu0 0.0
        %4788 = vmatpush1.msra.mxu0 0.0
        %4789 = vmatprep.subr.mxu0 0.0
        %4790 = vmatpush1.msra.mxu0 0.0
        %4791 = vmatprep.subr.mxu0 0.0
        %4792 = vmatpush1.msra.mxu0 0.0
        %4793 = vmatprep.subr.mxu0 0.0
        %4794 = vmatpush1.msra.mxu0 0.0
        %4795 = vmatprep.subr.mxu0 0.0
        %4796 = vmatpush1.msra.mxu0 0.0
        %4797 = vmatprep.subr.mxu0 0.0
        %4798 = vmatpush1.msra.mxu0 0.0
        %4799 = vmatprep.subr.mxu0 0.0
        %4800 = vmatpush1.msra.mxu0 0.0
        %4801 = vmatprep.subr.mxu0 0.0
        %4802 = vmatpush1.msra.mxu0 0.0
        %4803 = vmatprep.subr.mxu0 0.0
        %4804 = vmatpush1.msra.mxu0 0.0
        %4805 = vmatprep.mubr.f32.mxu0 0.0
        %v4806 = vand.u32 %v3977, 4294901760
        %4807 = vmatmul.mubr.f32.gmra.mrb[0].mxu0 %v4806
        %v4808 = vpop.f32.mrb[0].mxu0
        %v4809 = vadd.f32 %v4632, %v4808
        %v4810 = vpop.f32.mrb[0].mxu0
        %v4811 = vadd.f32 %v4634, %v4810
        %4812 = vmatprep.mubr.f32.mxu0 0.0
        %v4813 = vand.u32 %v3978, 4294901760
        %4814 = vmatmul.mubr.f32.gmra.mrb[0].mxu0 %v4813
        %v4815 = vpop.f32.mrb[0].mxu0
        %v4816 = vadd.f32 %v4641, %v4815
        %v4817 = vpop.f32.mrb[0].mxu0
        %v4818 = vadd.f32 %v4643, %v4817
        %4819 = vdwg.mxu0
        %v4820 = vand.u32 %v3980, 4294901760
        %4821 = vmatprep.subr.mxu0 %v4820
        %v4822 = vand.u32 %v3979, 4294901760
        %4823 = vmatpush1.msra.mxu0 %v4822
        %v4824 = vand.u32 %v3983, 4294901760
        %4825 = vmatprep.subr.mxu0 %v4824
        %v4826 = vand.u32 %v3982, 4294901760
        %4827 = vmatpush1.msra.mxu0 %v4826
        %v4828 = vand.u32 %v3986, 4294901760
        %4829 = vmatprep.subr.mxu0 %v4828
        %v4830 = vand.u32 %v3985, 4294901760
        %4831 = vmatpush1.msra.mxu0 %v4830
        %v4832 = vand.u32 %v3989, 4294901760
        %4833 = vmatprep.subr.mxu0 %v4832
        %v4834 = vand.u32 %v3988, 4294901760
        %4835 = vmatpush1.msra.mxu0 %v4834
        %v4836 = vand.u32 %v3992, 4294901760
        %4837 = vmatprep.subr.mxu0 %v4836
        %v4838 = vand.u32 %v3991, 4294901760
        %4839 = vmatpush1.msra.mxu0 %v4838
        %v4840 = vand.u32 %v3995, 4294901760
        %4841 = vmatprep.subr.mxu0 %v4840
        %v4842 = vand.u32 %v3994, 4294901760
        %4843 = vmatpush1.msra.mxu0 %v4842
        %v4844 = vand.u32 %v3998, 4294901760
        %4845 = vmatprep.subr.mxu0 %v4844
        %v4846 = vand.u32 %v3997, 4294901760
        %4847 = vmatpush1.msra.mxu0 %v4846
        %v4848 = vand.u32 %v4001, 4294901760
        %4849 = vmatprep.subr.mxu0 %v4848
        %v4850 = vand.u32 %v4000, 4294901760
        %4851 = vmatpush1.msra.mxu0 %v4850
        %v4852 = vand.u32 %v4004, 4294901760
        %4853 = vmatprep.subr.mxu0 %v4852
        %v4854 = vand.u32 %v4003, 4294901760
        %4855 = vmatpush1.msra.mxu0 %v4854
        %v4856 = vand.u32 %v4007, 4294901760
        %4857 = vmatprep.subr.mxu0 %v4856
        %v4858 = vand.u32 %v4006, 4294901760
        %4859 = vmatpush1.msra.mxu0 %v4858
        %v4860 = vand.u32 %v4010, 4294901760
        %4861 = vmatprep.subr.mxu0 %v4860
        %v4862 = vand.u32 %v4009, 4294901760
        %4863 = vmatpush1.msra.mxu0 %v4862
        %v4864 = vand.u32 %v4013, 4294901760
        %4865 = vmatprep.subr.mxu0 %v4864
        %v4866 = vand.u32 %v4012, 4294901760
        %4867 = vmatpush1.msra.mxu0 %v4866
        %v4868 = vand.u32 %v4016, 4294901760
        %4869 = vmatprep.subr.mxu0 %v4868
        %v4870 = vand.u32 %v4015, 4294901760
        %4871 = vmatpush1.msra.mxu0 %v4870
        %v4872 = vand.u32 %v4019, 4294901760
        %4873 = vmatprep.subr.mxu0 %v4872
        %v4874 = vand.u32 %v4018, 4294901760
        %4875 = vmatpush1.msra.mxu0 %v4874
        %v4876 = vand.u32 %v4022, 4294901760
        %4877 = vmatprep.subr.mxu0 %v4876
        %v4878 = vand.u32 %v4021, 4294901760
        %4879 = vmatpush1.msra.mxu0 %v4878
        %v4880 = vand.u32 %v4025, 4294901760
        %4881 = vmatprep.subr.mxu0 %v4880
        %v4882 = vand.u32 %v4024, 4294901760
        %4883 = vmatpush1.msra.mxu0 %v4882
        %4884 = vmatprep.subr.mxu0 0.0
        %4885 = vmatpush1.msra.mxu0 0.0
        %4886 = vmatprep.subr.mxu0 0.0
        %4887 = vmatpush1.msra.mxu0 0.0
        %4888 = vmatprep.subr.mxu0 0.0
        %4889 = vmatpush1.msra.mxu0 0.0
        %4890 = vmatprep.subr.mxu0 0.0
        %4891 = vmatpush1.msra.mxu0 0.0
        %4892 = vmatprep.subr.mxu0 0.0
        %4893 = vmatpush1.msra.mxu0 0.0
        %4894 = vmatprep.subr.mxu0 0.0
        %4895 = vmatpush1.msra.mxu0 0.0
        %4896 = vmatprep.subr.mxu0 0.0
        %4897 = vmatpush1.msra.mxu0 0.0
        %4898 = vmatprep.subr.mxu0 0.0
        %4899 = vmatpush1.msra.mxu0 0.0
        %4900 = vmatprep.subr.mxu0 0.0
        %4901 = vmatpush1.msra.mxu0 0.0
        %4902 = vmatprep.subr.mxu0 0.0
        %4903 = vmatpush1.msra.mxu0 0.0
        %4904 = vmatprep.subr.mxu0 0.0
        %4905 = vmatpush1.msra.mxu0 0.0
        %4906 = vmatprep.subr.mxu0 0.0
        %4907 = vmatpush1.msra.mxu0 0.0
        %4908 = vmatprep.subr.mxu0 0.0
        %4909 = vmatpush1.msra.mxu0 0.0
        %4910 = vmatprep.subr.mxu0 0.0
        %4911 = vmatpush1.msra.mxu0 0.0
        %4912 = vmatprep.subr.mxu0 0.0
        %4913 = vmatpush1.msra.mxu0 0.0
        %4914 = vmatprep.subr.mxu0 0.0
        %4915 = vmatpush1.msra.mxu0 0.0
        %4916 = vmatprep.mubr.f32.mxu0 0.0
        %v4917 = vand.u32 %v3977, 4294901760
        %4918 = vmatmul.mubr.f32.gmra.mrb[0].mxu0 %v4917
        %v4919 = vpop.f32.mrb[0].mxu0
        %v4920 = vadd.f32 %v4809, %v4919
        %v4921 = vpop.f32.mrb[0].mxu0
        %v4922 = vadd.f32 %v4811, %v4921
        %4923 = vmatprep.mubr.f32.mxu0 0.0
        %v4924 = vand.u32 %v3978, 4294901760
        %4925 = vmatmul.mubr.f32.gmra.mrb[0].mxu0 %v4924
        %v4926 = vpop.f32.mrb[0].mxu0
        %v4927 = vadd.f32 %v4816, %v4926
        %v4928 = vpop.f32.mrb[0].mxu0
        %v4929 = vadd.f32 %v4818, %v4928
        %4930 = vdwg.mxu0
        %4931 = vmatprep.subr.mxu0 0.0
        %v4932 = vand.u32 %v3981, 4294901760
        %4933 = vmatpush1.msra.mxu0 %v4932
        %4934 = vmatprep.subr.mxu0 0.0
        %v4935 = vand.u32 %v3984, 4294901760
        %4936 = vmatpush1.msra.mxu0 %v4935
        %4937 = vmatprep.subr.mxu0 0.0
        %v4938 = vand.u32 %v3987, 4294901760
        %4939 = vmatpush1.msra.mxu0 %v4938
        %4940 = vmatprep.subr.mxu0 0.0
        %v4941 = vand.u32 %v3990, 4294901760
        %4942 = vmatpush1.msra.mxu0 %v4941
        %4943 = vmatprep.subr.mxu0 0.0
        %v4944 = vand.u32 %v3993, 4294901760
        %4945 = vmatpush1.msra.mxu0 %v4944
        %4946 = vmatprep.subr.mxu0 0.0
        %v4947 = vand.u32 %v3996, 4294901760
        %4948 = vmatpush1.msra.mxu0 %v4947
        %4949 = vmatprep.subr.mxu0 0.0
        %v4950 = vand.u32 %v3999, 4294901760
        %4951 = vmatpush1.msra.mxu0 %v4950
        %4952 = vmatprep.subr.mxu0 0.0
        %v4953 = vand.u32 %v4002, 4294901760
        %4954 = vmatpush1.msra.mxu0 %v4953
        %4955 = vmatprep.subr.mxu0 0.0
        %v4956 = vand.u32 %v4005, 4294901760
        %4957 = vmatpush1.msra.mxu0 %v4956
        %4958 = vmatprep.subr.mxu0 0.0
        %v4959 = vand.u32 %v4008, 4294901760
        %4960 = vmatpush1.msra.mxu0 %v4959
        %4961 = vmatprep.subr.mxu0 0.0
        %v4962 = vand.u32 %v4011, 4294901760
        %4963 = vmatpush1.msra.mxu0 %v4962
        %4964 = vmatprep.subr.mxu0 0.0
        %v4965 = vand.u32 %v4014, 4294901760
        %4966 = vmatpush1.msra.mxu0 %v4965
        %4967 = vmatprep.subr.mxu0 0.0
        %v4968 = vand.u32 %v4017, 4294901760
        %4969 = vmatpush1.msra.mxu0 %v4968
        %4970 = vmatprep.subr.mxu0 0.0
        %v4971 = vand.u32 %v4020, 4294901760
        %4972 = vmatpush1.msra.mxu0 %v4971
        %4973 = vmatprep.subr.mxu0 0.0
        %v4974 = vand.u32 %v4023, 4294901760
        %4975 = vmatpush1.msra.mxu0 %v4974
        %4976 = vmatprep.subr.mxu0 0.0
        %v4977 = vand.u32 %v4026, 4294901760
        %4978 = vmatpush1.msra.mxu0 %v4977
        %4979 = vmatprep.subr.mxu0 0.0
        %4980 = vmatpush1.msra.mxu0 0.0
        %4981 = vmatprep.subr.mxu0 0.0
        %4982 = vmatpush1.msra.mxu0 0.0
        %4983 = vmatprep.subr.mxu0 0.0
        %4984 = vmatpush1.msra.mxu0 0.0
        %4985 = vmatprep.subr.mxu0 0.0
        %4986 = vmatpush1.msra.mxu0 0.0
        %4987 = vmatprep.subr.mxu0 0.0
        %4988 = vmatpush1.msra.mxu0 0.0
        %4989 = vmatprep.subr.mxu0 0.0
        %4990 = vmatpush1.msra.mxu0 0.0
        %4991 = vmatprep.subr.mxu0 0.0
        %4992 = vmatpush1.msra.mxu0 0.0
        %4993 = vmatprep.subr.mxu0 0.0
        %4994 = vmatpush1.msra.mxu0 0.0
        %4995 = vmatprep.subr.mxu0 0.0
        %4996 = vmatpush1.msra.mxu0 0.0
        %4997 = vmatprep.subr.mxu0 0.0
        %4998 = vmatpush1.msra.mxu0 0.0
        %4999 = vmatprep.subr.mxu0 0.0
        %5000 = vmatpush1.msra.mxu0 0.0
        %5001 = vmatprep.subr.mxu0 0.0
        %5002 = vmatpush1.msra.mxu0 0.0
        %5003 = vmatprep.subr.mxu0 0.0
        %5004 = vmatpush1.msra.mxu0 0.0
        %5005 = vmatprep.subr.mxu0 0.0
        %5006 = vmatpush1.msra.mxu0 0.0
        %5007 = vmatprep.subr.mxu0 0.0
        %5008 = vmatpush1.msra.mxu0 0.0
        %5009 = vmatprep.subr.mxu0 0.0
        %5010 = vmatpush1.msra.mxu0 0.0
        %5011 = vmatprep.mubr.f32.mxu0 0.0
        %v5012 = vand.u32 %v3977, 4294901760
        %v5013 = vsub.f32 %v3977, %v5012
        %v5014 = vand.u32 %v5013, 4294901760
        %v5015 = vsub.f32 %v5013, %v5014
        %v5016 = vand.u32 %v5015, 4294901760
        %5017 = vmatmul.mubr.f32.gmra.mrb[0].mxu0 %v5016
        %v5018 = vpop.f32.mrb[0].mxu0
        %v5019 = vadd.f32 0.0, %v5018
        %v5020 = vpop.f32.mrb[0].mxu0
        %5021 = vmatprep.mubr.f32.mxu0 0.0
        %v5022 = vand.u32 %v3978, 4294901760
        %v5023 = vsub.f32 %v3978, %v5022
        %v5024 = vand.u32 %v5023, 4294901760
        %v5025 = vsub.f32 %v5023, %v5024
        %v5026 = vand.u32 %v5025, 4294901760
        %5027 = vmatmul.mubr.f32.gmra.mrb[0].mxu0 %v5026
        %v5028 = vpop.f32.mrb[0].mxu0
        %v5029 = vadd.f32 0.0, %v5028
        %v5030 = vpop.f32.mrb[0].mxu0
        %5031 = vdwg.mxu0
        %5032 = vmatprep.subr.mxu0 0.0
        %v5033 = vand.u32 %v3981, 4294901760
        %v5034 = vsub.f32 %v3981, %v5033
        %v5035 = vand.u32 %v5034, 4294901760
        %v5036 = vsub.f32 %v5034, %v5035
        %v5037 = vand.u32 %v5036, 4294901760
        %5038 = vmatpush1.msra.mxu0 %v5037
        %5039 = vmatprep.subr.mxu0 0.0
        %v5040 = vand.u32 %v3984, 4294901760
        %v5041 = vsub.f32 %v3984, %v5040
        %v5042 = vand.u32 %v5041, 4294901760
        %v5043 = vsub.f32 %v5041, %v5042
        %v5044 = vand.u32 %v5043, 4294901760
        %5045 = vmatpush1.msra.mxu0 %v5044
        %5046 = vmatprep.subr.mxu0 0.0
        %v5047 = vand.u32 %v3987, 4294901760
        %v5048 = vsub.f32 %v3987, %v5047
        %v5049 = vand.u32 %v5048, 4294901760
        %v5050 = vsub.f32 %v5048, %v5049
        %v5051 = vand.u32 %v5050, 4294901760
        %5052 = vmatpush1.msra.mxu0 %v5051
        %5053 = vmatprep.subr.mxu0 0.0
        %v5054 = vand.u32 %v3990, 4294901760
        %v5055 = vsub.f32 %v3990, %v5054
        %v5056 = vand.u32 %v5055, 4294901760
        %v5057 = vsub.f32 %v5055, %v5056
        %v5058 = vand.u32 %v5057, 4294901760
        %5059 = vmatpush1.msra.mxu0 %v5058
        %5060 = vmatprep.subr.mxu0 0.0
        %v5061 = vand.u32 %v3993, 4294901760
        %v5062 = vsub.f32 %v3993, %v5061
        %v5063 = vand.u32 %v5062, 4294901760
        %v5064 = vsub.f32 %v5062, %v5063
        %v5065 = vand.u32 %v5064, 4294901760
        %5066 = vmatpush1.msra.mxu0 %v5065
        %5067 = vmatprep.subr.mxu0 0.0
        %v5068 = vand.u32 %v3996, 4294901760
        %v5069 = vsub.f32 %v3996, %v5068
        %v5070 = vand.u32 %v5069, 4294901760
        %v5071 = vsub.f32 %v5069, %v5070
        %v5072 = vand.u32 %v5071, 4294901760
        %5073 = vmatpush1.msra.mxu0 %v5072
        %5074 = vmatprep.subr.mxu0 0.0
        %v5075 = vand.u32 %v3999, 4294901760
        %v5076 = vsub.f32 %v3999, %v5075
        %v5077 = vand.u32 %v5076, 4294901760
        %v5078 = vsub.f32 %v5076, %v5077
        %v5079 = vand.u32 %v5078, 4294901760
        %5080 = vmatpush1.msra.mxu0 %v5079
        %5081 = vmatprep.subr.mxu0 0.0
        %v5082 = vand.u32 %v4002, 4294901760
        %v5083 = vsub.f32 %v4002, %v5082
        %v5084 = vand.u32 %v5083, 4294901760
        %v5085 = vsub.f32 %v5083, %v5084
        %v5086 = vand.u32 %v5085, 4294901760
        %5087 = vmatpush1.msra.mxu0 %v5086
        %5088 = vmatprep.subr.mxu0 0.0
        %v5089 = vand.u32 %v4005, 4294901760
        %v5090 = vsub.f32 %v4005, %v5089
        %v5091 = vand.u32 %v5090, 4294901760
        %v5092 = vsub.f32 %v5090, %v5091
        %v5093 = vand.u32 %v5092, 4294901760
        %5094 = vmatpush1.msra.mxu0 %v5093
        %5095 = vmatprep.subr.mxu0 0.0
        %v5096 = vand.u32 %v4008, 4294901760
        %v5097 = vsub.f32 %v4008, %v5096
        %v5098 = vand.u32 %v5097, 4294901760
        %v5099 = vsub.f32 %v5097, %v5098
        %v5100 = vand.u32 %v5099, 4294901760
        %5101 = vmatpush1.msra.mxu0 %v5100
        %5102 = vmatprep.subr.mxu0 0.0
        %v5103 = vand.u32 %v4011, 4294901760
        %v5104 = vsub.f32 %v4011, %v5103
        %v5105 = vand.u32 %v5104, 4294901760
        %v5106 = vsub.f32 %v5104, %v5105
        %v5107 = vand.u32 %v5106, 4294901760
        %5108 = vmatpush1.msra.mxu0 %v5107
        %5109 = vmatprep.subr.mxu0 0.0
        %v5110 = vand.u32 %v4014, 4294901760
        %v5111 = vsub.f32 %v4014, %v5110
        %v5112 = vand.u32 %v5111, 4294901760
        %v5113 = vsub.f32 %v5111, %v5112
        %v5114 = vand.u32 %v5113, 4294901760
        %5115 = vmatpush1.msra.mxu0 %v5114
        %5116 = vmatprep.subr.mxu0 0.0
        %v5117 = vand.u32 %v4017, 4294901760
        %v5118 = vsub.f32 %v4017, %v5117
        %v5119 = vand.u32 %v5118, 4294901760
        %v5120 = vsub.f32 %v5118, %v5119
        %v5121 = vand.u32 %v5120, 4294901760
        %5122 = vmatpush1.msra.mxu0 %v5121
        %5123 = vmatprep.subr.mxu0 0.0
        %v5124 = vand.u32 %v4020, 4294901760
        %v5125 = vsub.f32 %v4020, %v5124
        %v5126 = vand.u32 %v5125, 4294901760
        %v5127 = vsub.f32 %v5125, %v5126
        %v5128 = vand.u32 %v5127, 4294901760
        %5129 = vmatpush1.msra.mxu0 %v5128
        %5130 = vmatprep.subr.mxu0 0.0
        %v5131 = vand.u32 %v4023, 4294901760
        %v5132 = vsub.f32 %v4023, %v5131
        %v5133 = vand.u32 %v5132, 4294901760
        %v5134 = vsub.f32 %v5132, %v5133
        %v5135 = vand.u32 %v5134, 4294901760
        %5136 = vmatpush1.msra.mxu0 %v5135
        %5137 = vmatprep.subr.mxu0 0.0
        %v5138 = vand.u32 %v4026, 4294901760
        %v5139 = vsub.f32 %v4026, %v5138
        %v5140 = vand.u32 %v5139, 4294901760
        %v5141 = vsub.f32 %v5139, %v5140
        %v5142 = vand.u32 %v5141, 4294901760
        %5143 = vmatpush1.msra.mxu0 %v5142
        %5144 = vmatprep.subr.mxu0 0.0
        %5145 = vmatpush1.msra.mxu0 0.0
        %5146 = vmatprep.subr.mxu0 0.0
        %5147 = vmatpush1.msra.mxu0 0.0
        %5148 = vmatprep.subr.mxu0 0.0
        %5149 = vmatpush1.msra.mxu0 0.0
        %5150 = vmatprep.subr.mxu0 0.0
        %5151 = vmatpush1.msra.mxu0 0.0
        %5152 = vmatprep.subr.mxu0 0.0
        %5153 = vmatpush1.msra.mxu0 0.0
        %5154 = vmatprep.subr.mxu0 0.0
        %5155 = vmatpush1.msra.mxu0 0.0
        %5156 = vmatprep.subr.mxu0 0.0
        %5157 = vmatpush1.msra.mxu0 0.0
        %5158 = vmatprep.subr.mxu0 0.0
        %5159 = vmatpush1.msra.mxu0 0.0
        %5160 = vmatprep.subr.mxu0 0.0
        %5161 = vmatpush1.msra.mxu0 0.0
        %5162 = vmatprep.subr.mxu0 0.0
        %5163 = vmatpush1.msra.mxu0 0.0
        %5164 = vmatprep.subr.mxu0 0.0
        %5165 = vmatpush1.msra.mxu0 0.0
        %5166 = vmatprep.subr.mxu0 0.0
        %5167 = vmatpush1.msra.mxu0 0.0
        %5168 = vmatprep.subr.mxu0 0.0
        %5169 = vmatpush1.msra.mxu0 0.0
        %5170 = vmatprep.subr.mxu0 0.0
        %5171 = vmatpush1.msra.mxu0 0.0
        %5172 = vmatprep.subr.mxu0 0.0
        %5173 = vmatpush1.msra.mxu0 0.0
        %5174 = vmatprep.subr.mxu0 0.0
        %5175 = vmatpush1.msra.mxu0 0.0
        %5176 = vmatprep.mubr.f32.mxu0 0.0
        %v5177 = vand.u32 %v3977, 4294901760
        %5178 = vmatmul.mubr.f32.gmra.mrb[0].mxu0 %v5177
        %v5179 = vpop.f32.mrb[0].mxu0
        %v5180 = vadd.f32 %v5019, %v5179
        %v5181 = vpop.f32.mrb[0].mxu0
        %5182 = vmatprep.mubr.f32.mxu0 0.0
        %v5183 = vand.u32 %v3978, 4294901760
        %5184 = vmatmul.mubr.f32.gmra.mrb[0].mxu0 %v5183
        %v5185 = vpop.f32.mrb[0].mxu0
        %v5186 = vadd.f32 %v5029, %v5185
        %v5187 = vpop.f32.mrb[0].mxu0
        %5188 = vdwg.mxu0
        %5189 = vmatprep.subr.mxu0 0.0
        %v5190 = vand.u32 %v3981, 4294901760
        %v5191 = vsub.f32 %v3981, %v5190
        %5192 = vmatpush1.msra.mxu0 %v5191
        %5193 = vmatprep.subr.mxu0 0.0
        %v5194 = vand.u32 %v3984, 4294901760
        %v5195 = vsub.f32 %v3984, %v5194
        %5196 = vmatpush1.msra.mxu0 %v5195
        %5197 = vmatprep.subr.mxu0 0.0
        %v5198 = vand.u32 %v3987, 4294901760
        %v5199 = vsub.f32 %v3987, %v5198
        %5200 = vmatpush1.msra.mxu0 %v5199
        %5201 = vmatprep.subr.mxu0 0.0
        %v5202 = vand.u32 %v3990, 4294901760
        %v5203 = vsub.f32 %v3990, %v5202
        %5204 = vmatpush1.msra.mxu0 %v5203
        %5205 = vmatprep.subr.mxu0 0.0
        %v5206 = vand.u32 %v3993, 4294901760
        %v5207 = vsub.f32 %v3993, %v5206
        %5208 = vmatpush1.msra.mxu0 %v5207
        %5209 = vmatprep.subr.mxu0 0.0
        %v5210 = vand.u32 %v3996, 4294901760
        %v5211 = vsub.f32 %v3996, %v5210
        %5212 = vmatpush1.msra.mxu0 %v5211
        %5213 = vmatprep.subr.mxu0 0.0
        %v5214 = vand.u32 %v3999, 4294901760
        %v5215 = vsub.f32 %v3999, %v5214
        %5216 = vmatpush1.msra.mxu0 %v5215
        %5217 = vmatprep.subr.mxu0 0.0
        %v5218 = vand.u32 %v4002, 4294901760
        %v5219 = vsub.f32 %v4002, %v5218
        %5220 = vmatpush1.msra.mxu0 %v5219
        %5221 = vmatprep.subr.mxu0 0.0
        %v5222 = vand.u32 %v4005, 4294901760
        %v5223 = vsub.f32 %v4005, %v5222
        %5224 = vmatpush1.msra.mxu0 %v5223
        %5225 = vmatprep.subr.mxu0 0.0
        %v5226 = vand.u32 %v4008, 4294901760
        %v5227 = vsub.f32 %v4008, %v5226
        %5228 = vmatpush1.msra.mxu0 %v5227
        %5229 = vmatprep.subr.mxu0 0.0
        %v5230 = vand.u32 %v4011, 4294901760
        %v5231 = vsub.f32 %v4011, %v5230
        %5232 = vmatpush1.msra.mxu0 %v5231
        %5233 = vmatprep.subr.mxu0 0.0
        %v5234 = vand.u32 %v4014, 4294901760
        %v5235 = vsub.f32 %v4014, %v5234
        %5236 = vmatpush1.msra.mxu0 %v5235
        %5237 = vmatprep.subr.mxu0 0.0
        %v5238 = vand.u32 %v4017, 4294901760
        %v5239 = vsub.f32 %v4017, %v5238
        %5240 = vmatpush1.msra.mxu0 %v5239
        %5241 = vmatprep.subr.mxu0 0.0
        %v5242 = vand.u32 %v4020, 4294901760
        %v5243 = vsub.f32 %v4020, %v5242
        %5244 = vmatpush1.msra.mxu0 %v5243
        %5245 = vmatprep.subr.mxu0 0.0
        %v5246 = vand.u32 %v4023, 4294901760
        %v5247 = vsub.f32 %v4023, %v5246
        %5248 = vmatpush1.msra.mxu0 %v5247
        %5249 = vmatprep.subr.mxu0 0.0
        %v5250 = vand.u32 %v4026, 4294901760
        %v5251 = vsub.f32 %v4026, %v5250
        %5252 = vmatpush1.msra.mxu0 %v5251
        %5253 = vmatprep.subr.mxu0 0.0
        %5254 = vmatpush1.msra.mxu0 0.0
        %5255 = vmatprep.subr.mxu0 0.0
        %5256 = vmatpush1.msra.mxu0 0.0
        %5257 = vmatprep.subr.mxu0 0.0
        %5258 = vmatpush1.msra.mxu0 0.0
        %5259 = vmatprep.subr.mxu0 0.0
        %5260 = vmatpush1.msra.mxu0 0.0
        %5261 = vmatprep.subr.mxu0 0.0
        %5262 = vmatpush1.msra.mxu0 0.0
        %5263 = vmatprep.subr.mxu0 0.0
        %5264 = vmatpush1.msra.mxu0 0.0
        %5265 = vmatprep.subr.mxu0 0.0
        %5266 = vmatpush1.msra.mxu0 0.0
        %5267 = vmatprep.subr.mxu0 0.0
        %5268 = vmatpush1.msra.mxu0 0.0
        %5269 = vmatprep.subr.mxu0 0.0
        %5270 = vmatpush1.msra.mxu0 0.0
        %5271 = vmatprep.subr.mxu0 0.0
        %5272 = vmatpush1.msra.mxu0 0.0
        %5273 = vmatprep.subr.mxu0 0.0
        %5274 = vmatpush1.msra.mxu0 0.0
        %5275 = vmatprep.subr.mxu0 0.0
        %5276 = vmatpush1.msra.mxu0 0.0
        %5277 = vmatprep.subr.mxu0 0.0
        %5278 = vmatpush1.msra.mxu0 0.0
        %5279 = vmatprep.subr.mxu0 0.0
        %5280 = vmatpush1.msra.mxu0 0.0
        %5281 = vmatprep.subr.mxu0 0.0
        %5282 = vmatpush1.msra.mxu0 0.0
        %5283 = vmatprep.subr.mxu0 0.0
        %5284 = vmatpush1.msra.mxu0 0.0
        %5285 = vmatprep.mubr.f32.mxu0 0.0
        %v5286 = vand.u32 %v3977, 4294901760
        %v5287 = vsub.f32 %v3977, %v5286
        %5288 = vmatmul.mubr.f32.gmra.mrb[0].mxu0 %v5287
        %v5289 = vpop.f32.mrb[0].mxu0
        %v5290 = vadd.f32 %v5180, %v5289
        %v5291 = vpop.f32.mrb[0].mxu0
        %5292 = vmatprep.mubr.f32.mxu0 0.0
        %v5293 = vand.u32 %v3978, 4294901760
        %v5294 = vsub.f32 %v3978, %v5293
        %5295 = vmatmul.mubr.f32.gmra.mrb[0].mxu0 %v5294
        %v5296 = vpop.f32.mrb[0].mxu0
        %v5297 = vadd.f32 %v5186, %v5296
        %v5298 = vpop.f32.mrb[0].mxu0
        %5299 = vdwg.mxu0
        %5300 = vmatprep.subr.mxu0 0.0
        %v5301 = vand.u32 %v3981, 4294901760
        %5302 = vmatpush1.msra.mxu0 %v5301
        %5303 = vmatprep.subr.mxu0 0.0
        %v5304 = vand.u32 %v3984, 4294901760
        %5305 = vmatpush1.msra.mxu0 %v5304
        %5306 = vmatprep.subr.mxu0 0.0
        %v5307 = vand.u32 %v3987, 4294901760
        %5308 = vmatpush1.msra.mxu0 %v5307
        %5309 = vmatprep.subr.mxu0 0.0
        %v5310 = vand.u32 %v3990, 4294901760
        %5311 = vmatpush1.msra.mxu0 %v5310
        %5312 = vmatprep.subr.mxu0 0.0
        %v5313 = vand.u32 %v3993, 4294901760
        %5314 = vmatpush1.msra.mxu0 %v5313
        %5315 = vmatprep.subr.mxu0 0.0
        %v5316 = vand.u32 %v3996, 4294901760
        %5317 = vmatpush1.msra.mxu0 %v5316
        %5318 = vmatprep.subr.mxu0 0.0
        %v5319 = vand.u32 %v3999, 4294901760
        %5320 = vmatpush1.msra.mxu0 %v5319
        %5321 = vmatprep.subr.mxu0 0.0
        %v5322 = vand.u32 %v4002, 4294901760
        %5323 = vmatpush1.msra.mxu0 %v5322
        %5324 = vmatprep.subr.mxu0 0.0
        %v5325 = vand.u32 %v4005, 4294901760
        %5326 = vmatpush1.msra.mxu0 %v5325
        %5327 = vmatprep.subr.mxu0 0.0
        %v5328 = vand.u32 %v4008, 4294901760
        %5329 = vmatpush1.msra.mxu0 %v5328
        %5330 = vmatprep.subr.mxu0 0.0
        %v5331 = vand.u32 %v4011, 4294901760
        %5332 = vmatpush1.msra.mxu0 %v5331
        %5333 = vmatprep.subr.mxu0 0.0
        %v5334 = vand.u32 %v4014, 4294901760
        %5335 = vmatpush1.msra.mxu0 %v5334
        %5336 = vmatprep.subr.mxu0 0.0
        %v5337 = vand.u32 %v4017, 4294901760
        %5338 = vmatpush1.msra.mxu0 %v5337
        %5339 = vmatprep.subr.mxu0 0.0
        %v5340 = vand.u32 %v4020, 4294901760
        %5341 = vmatpush1.msra.mxu0 %v5340
        %5342 = vmatprep.subr.mxu0 0.0
        %v5343 = vand.u32 %v4023, 4294901760
        %5344 = vmatpush1.msra.mxu0 %v5343
        %5345 = vmatprep.subr.mxu0 0.0
        %v5346 = vand.u32 %v4026, 4294901760
        %5347 = vmatpush1.msra.mxu0 %v5346
        %5348 = vmatprep.subr.mxu0 0.0
        %5349 = vmatpush1.msra.mxu0 0.0
        %5350 = vmatprep.subr.mxu0 0.0
        %5351 = vmatpush1.msra.mxu0 0.0
        %5352 = vmatprep.subr.mxu0 0.0
        %5353 = vmatpush1.msra.mxu0 0.0
        %5354 = vmatprep.subr.mxu0 0.0
        %5355 = vmatpush1.msra.mxu0 0.0
        %5356 = vmatprep.subr.mxu0 0.0
        %5357 = vmatpush1.msra.mxu0 0.0
        %5358 = vmatprep.subr.mxu0 0.0
        %5359 = vmatpush1.msra.mxu0 0.0
        %5360 = vmatprep.subr.mxu0 0.0
        %5361 = vmatpush1.msra.mxu0 0.0
        %5362 = vmatprep.subr.mxu0 0.0
        %5363 = vmatpush1.msra.mxu0 0.0
        %5364 = vmatprep.subr.mxu0 0.0
        %5365 = vmatpush1.msra.mxu0 0.0
        %5366 = vmatprep.subr.mxu0 0.0
        %5367 = vmatpush1.msra.mxu0 0.0
        %5368 = vmatprep.subr.mxu0 0.0
        %5369 = vmatpush1.msra.mxu0 0.0
        %5370 = vmatprep.subr.mxu0 0.0
        %5371 = vmatpush1.msra.mxu0 0.0
        %5372 = vmatprep.subr.mxu0 0.0
        %5373 = vmatpush1.msra.mxu0 0.0
        %5374 = vmatprep.subr.mxu0 0.0
        %5375 = vmatpush1.msra.mxu0 0.0
        %5376 = vmatprep.subr.mxu0 0.0
        %5377 = vmatpush1.msra.mxu0 0.0
        %5378 = vmatprep.subr.mxu0 0.0
        %5379 = vmatpush1.msra.mxu0 0.0
        %5380 = vmatprep.mubr.f32.mxu0 0.0
        %v5381 = vand.u32 %v3977, 4294901760
        %v5382 = vsub.f32 %v3977, %v5381
        %v5383 = vand.u32 %v5382, 4294901760
        %5384 = vmatmul.mubr.f32.gmra.mrb[0].mxu0 %v5383
        %v5385 = vpop.f32.mrb[0].mxu0
        %v5386 = vadd.f32 %v5290, %v5385
        %v5387 = vpop.f32.mrb[0].mxu0
        %5388 = vmatprep.mubr.f32.mxu0 0.0
        %v5389 = vand.u32 %v3978, 4294901760
        %v5390 = vsub.f32 %v3978, %v5389
        %v5391 = vand.u32 %v5390, 4294901760
        %5392 = vmatmul.mubr.f32.gmra.mrb[0].mxu0 %v5391
        %v5393 = vpop.f32.mrb[0].mxu0
        %v5394 = vadd.f32 %v5297, %v5393
        %v5395 = vpop.f32.mrb[0].mxu0
        %5396 = vdwg.mxu0
        %5397 = vmatprep.subr.mxu0 0.0
        %v5398 = vand.u32 %v3981, 4294901760
        %v5399 = vsub.f32 %v3981, %v5398
        %v5400 = vand.u32 %v5399, 4294901760
        %5401 = vmatpush1.msra.mxu0 %v5400
        %5402 = vmatprep.subr.mxu0 0.0
        %v5403 = vand.u32 %v3984, 4294901760
        %v5404 = vsub.f32 %v3984, %v5403
        %v5405 = vand.u32 %v5404, 4294901760
        %5406 = vmatpush1.msra.mxu0 %v5405
        %5407 = vmatprep.subr.mxu0 0.0
        %v5408 = vand.u32 %v3987, 4294901760
        %v5409 = vsub.f32 %v3987, %v5408
        %v5410 = vand.u32 %v5409, 4294901760
        %5411 = vmatpush1.msra.mxu0 %v5410
        %5412 = vmatprep.subr.mxu0 0.0
        %v5413 = vand.u32 %v3990, 4294901760
        %v5414 = vsub.f32 %v3990, %v5413
        %v5415 = vand.u32 %v5414, 4294901760
        %5416 = vmatpush1.msra.mxu0 %v5415
        %5417 = vmatprep.subr.mxu0 0.0
        %v5418 = vand.u32 %v3993, 4294901760
        %v5419 = vsub.f32 %v3993, %v5418
        %v5420 = vand.u32 %v5419, 4294901760
        %5421 = vmatpush1.msra.mxu0 %v5420
        %5422 = vmatprep.subr.mxu0 0.0
        %v5423 = vand.u32 %v3996, 4294901760
        %v5424 = vsub.f32 %v3996, %v5423
        %v5425 = vand.u32 %v5424, 4294901760
        %5426 = vmatpush1.msra.mxu0 %v5425
        %5427 = vmatprep.subr.mxu0 0.0
        %v5428 = vand.u32 %v3999, 4294901760
        %v5429 = vsub.f32 %v3999, %v5428
        %v5430 = vand.u32 %v5429, 4294901760
        %5431 = vmatpush1.msra.mxu0 %v5430
        %5432 = vmatprep.subr.mxu0 0.0
        %v5433 = vand.u32 %v4002, 4294901760
        %v5434 = vsub.f32 %v4002, %v5433
        %v5435 = vand.u32 %v5434, 4294901760
        %5436 = vmatpush1.msra.mxu0 %v5435
        %5437 = vmatprep.subr.mxu0 0.0
        %v5438 = vand.u32 %v4005, 4294901760
        %v5439 = vsub.f32 %v4005, %v5438
        %v5440 = vand.u32 %v5439, 4294901760
        %5441 = vmatpush1.msra.mxu0 %v5440
        %5442 = vmatprep.subr.mxu0 0.0
        %v5443 = vand.u32 %v4008, 4294901760
        %v5444 = vsub.f32 %v4008, %v5443
        %v5445 = vand.u32 %v5444, 4294901760
        %5446 = vmatpush1.msra.mxu0 %v5445
        %5447 = vmatprep.subr.mxu0 0.0
        %v5448 = vand.u32 %v4011, 4294901760
        %v5449 = vsub.f32 %v4011, %v5448
        %v5450 = vand.u32 %v5449, 4294901760
        %5451 = vmatpush1.msra.mxu0 %v5450
        %5452 = vmatprep.subr.mxu0 0.0
        %v5453 = vand.u32 %v4014, 4294901760
        %v5454 = vsub.f32 %v4014, %v5453
        %v5455 = vand.u32 %v5454, 4294901760
        %5456 = vmatpush1.msra.mxu0 %v5455
        %5457 = vmatprep.subr.mxu0 0.0
        %v5458 = vand.u32 %v4017, 4294901760
        %v5459 = vsub.f32 %v4017, %v5458
        %v5460 = vand.u32 %v5459, 4294901760
        %5461 = vmatpush1.msra.mxu0 %v5460
        %5462 = vmatprep.subr.mxu0 0.0
        %v5463 = vand.u32 %v4020, 4294901760
        %v5464 = vsub.f32 %v4020, %v5463
        %v5465 = vand.u32 %v5464, 4294901760
        %5466 = vmatpush1.msra.mxu0 %v5465
        %5467 = vmatprep.subr.mxu0 0.0
        %v5468 = vand.u32 %v4023, 4294901760
        %v5469 = vsub.f32 %v4023, %v5468
        %v5470 = vand.u32 %v5469, 4294901760
        %5471 = vmatpush1.msra.mxu0 %v5470
        %5472 = vmatprep.subr.mxu0 0.0
        %v5473 = vand.u32 %v4026, 4294901760
        %v5474 = vsub.f32 %v4026, %v5473
        %v5475 = vand.u32 %v5474, 4294901760
        %5476 = vmatpush1.msra.mxu0 %v5475
        %5477 = vmatprep.subr.mxu0 0.0
        %5478 = vmatpush1.msra.mxu0 0.0
        %5479 = vmatprep.subr.mxu0 0.0
        %5480 = vmatpush1.msra.mxu0 0.0
        %5481 = vmatprep.subr.mxu0 0.0
        %5482 = vmatpush1.msra.mxu0 0.0
        %5483 = vmatprep.subr.mxu0 0.0
        %5484 = vmatpush1.msra.mxu0 0.0
        %5485 = vmatprep.subr.mxu0 0.0
        %5486 = vmatpush1.msra.mxu0 0.0
        %5487 = vmatprep.subr.mxu0 0.0
        %5488 = vmatpush1.msra.mxu0 0.0
        %5489 = vmatprep.subr.mxu0 0.0
        %5490 = vmatpush1.msra.mxu0 0.0
        %5491 = vmatprep.subr.mxu0 0.0
        %5492 = vmatpush1.msra.mxu0 0.0
        %5493 = vmatprep.subr.mxu0 0.0
        %5494 = vmatpush1.msra.mxu0 0.0
        %5495 = vmatprep.subr.mxu0 0.0
        %5496 = vmatpush1.msra.mxu0 0.0
        %5497 = vmatprep.subr.mxu0 0.0
        %5498 = vmatpush1.msra.mxu0 0.0
        %5499 = vmatprep.subr.mxu0 0.0
        %5500 = vmatpush1.msra.mxu0 0.0
        %5501 = vmatprep.subr.mxu0 0.0
        %5502 = vmatpush1.msra.mxu0 0.0
        %5503 = vmatprep.subr.mxu0 0.0
        %5504 = vmatpush1.msra.mxu0 0.0
        %5505 = vmatprep.subr.mxu0 0.0
        %5506 = vmatpush1.msra.mxu0 0.0
        %5507 = vmatprep.subr.mxu0 0.0
        %5508 = vmatpush1.msra.mxu0 0.0
        %5509 = vmatprep.mubr.f32.mxu0 0.0
        %v5510 = vand.u32 %v3977, 4294901760
        %5511 = vmatmul.mubr.f32.gmra.mrb[0].mxu0 %v5510
        %v5512 = vpop.f32.mrb[0].mxu0
        %v5513 = vadd.f32 %v5386, %v5512
        %v5514 = vpop.f32.mrb[0].mxu0
        %5515 = vmatprep.mubr.f32.mxu0 0.0
        %v5516 = vand.u32 %v3978, 4294901760
        %5517 = vmatmul.mubr.f32.gmra.mrb[0].mxu0 %v5516
        %v5518 = vpop.f32.mrb[0].mxu0
        %v5519 = vadd.f32 %v5394, %v5518
        %v5520 = vpop.f32.mrb[0].mxu0
        %5521 = vdwg.mxu0
        %5522 = vmatprep.subr.mxu0 0.0
        %v5523 = vand.u32 %v3981, 4294901760
        %5524 = vmatpush1.msra.mxu0 %v5523
        %5525 = vmatprep.subr.mxu0 0.0
        %v5526 = vand.u32 %v3984, 4294901760
        %5527 = vmatpush1.msra.mxu0 %v5526
        %5528 = vmatprep.subr.mxu0 0.0
        %v5529 = vand.u32 %v3987, 4294901760
        %5530 = vmatpush1.msra.mxu0 %v5529
        %5531 = vmatprep.subr.mxu0 0.0
        %v5532 = vand.u32 %v3990, 4294901760
        %5533 = vmatpush1.msra.mxu0 %v5532
        %5534 = vmatprep.subr.mxu0 0.0
        %v5535 = vand.u32 %v3993, 4294901760
        %5536 = vmatpush1.msra.mxu0 %v5535
        %5537 = vmatprep.subr.mxu0 0.0
        %v5538 = vand.u32 %v3996, 4294901760
        %5539 = vmatpush1.msra.mxu0 %v5538
        %5540 = vmatprep.subr.mxu0 0.0
        %v5541 = vand.u32 %v3999, 4294901760
        %5542 = vmatpush1.msra.mxu0 %v5541
        %5543 = vmatprep.subr.mxu0 0.0
        %v5544 = vand.u32 %v4002, 4294901760
        %5545 = vmatpush1.msra.mxu0 %v5544
        %5546 = vmatprep.subr.mxu0 0.0
        %v5547 = vand.u32 %v4005, 4294901760
        %5548 = vmatpush1.msra.mxu0 %v5547
        %5549 = vmatprep.subr.mxu0 0.0
        %v5550 = vand.u32 %v4008, 4294901760
        %5551 = vmatpush1.msra.mxu0 %v5550
        %5552 = vmatprep.subr.mxu0 0.0
        %v5553 = vand.u32 %v4011, 4294901760
        %5554 = vmatpush1.msra.mxu0 %v5553
        %5555 = vmatprep.subr.mxu0 0.0
        %v5556 = vand.u32 %v4014, 4294901760
        %5557 = vmatpush1.msra.mxu0 %v5556
        %5558 = vmatprep.subr.mxu0 0.0
        %v5559 = vand.u32 %v4017, 4294901760
        %5560 = vmatpush1.msra.mxu0 %v5559
        %5561 = vmatprep.subr.mxu0 0.0
        %v5562 = vand.u32 %v4020, 4294901760
        %5563 = vmatpush1.msra.mxu0 %v5562
        %5564 = vmatprep.subr.mxu0 0.0
        %v5565 = vand.u32 %v4023, 4294901760
        %5566 = vmatpush1.msra.mxu0 %v5565
        %5567 = vmatprep.subr.mxu0 0.0
        %v5568 = vand.u32 %v4026, 4294901760
        %5569 = vmatpush1.msra.mxu0 %v5568
        %5570 = vmatprep.subr.mxu0 0.0
        %5571 = vmatpush1.msra.mxu0 0.0
        %5572 = vmatprep.subr.mxu0 0.0
        %5573 = vmatpush1.msra.mxu0 0.0
        %5574 = vmatprep.subr.mxu0 0.0
        %5575 = vmatpush1.msra.mxu0 0.0
        %5576 = vmatprep.subr.mxu0 0.0
        %5577 = vmatpush1.msra.mxu0 0.0
        %5578 = vmatprep.subr.mxu0 0.0
        %5579 = vmatpush1.msra.mxu0 0.0
        %5580 = vmatprep.subr.mxu0 0.0
        %5581 = vmatpush1.msra.mxu0 0.0
        %5582 = vmatprep.subr.mxu0 0.0
        %5583 = vmatpush1.msra.mxu0 0.0
        %5584 = vmatprep.subr.mxu0 0.0
        %5585 = vmatpush1.msra.mxu0 0.0
        %5586 = vmatprep.subr.mxu0 0.0
        %5587 = vmatpush1.msra.mxu0 0.0
        %5588 = vmatprep.subr.mxu0 0.0
        %5589 = vmatpush1.msra.mxu0 0.0
        %5590 = vmatprep.subr.mxu0 0.0
        %5591 = vmatpush1.msra.mxu0 0.0
        %5592 = vmatprep.subr.mxu0 0.0
        %5593 = vmatpush1.msra.mxu0 0.0
        %5594 = vmatprep.subr.mxu0 0.0
        %5595 = vmatpush1.msra.mxu0 0.0
        %5596 = vmatprep.subr.mxu0 0.0
        %5597 = vmatpush1.msra.mxu0 0.0
        %5598 = vmatprep.subr.mxu0 0.0
        %5599 = vmatpush1.msra.mxu0 0.0
        %5600 = vmatprep.subr.mxu0 0.0
        %5601 = vmatpush1.msra.mxu0 0.0
        %5602 = vmatprep.mubr.f32.mxu0 0.0
        %v5603 = vand.u32 %v3977, 4294901760
        %5604 = vmatmul.mubr.f32.gmra.mrb[0].mxu0 %v5603
        %v5605 = vpop.f32.mrb[0].mxu0
        %v5606 = vadd.f32 %v5513, %v5605
        %v5607 = vpop.f32.mrb[0].mxu0
        %5608 = vmatprep.mubr.f32.mxu0 0.0
        %v5609 = vand.u32 %v3978, 4294901760
        %5610 = vmatmul.mubr.f32.gmra.mrb[0].mxu0 %v5609
        %v5611 = vpop.f32.mrb[0].mxu0
        %v5612 = vadd.f32 %v5519, %v5611
        %v5613 = vpop.f32.mrb[0].mxu0
        %5614 = vdwg.mxu0
        %vm5615 = vcmp.gt.f32.partialorder %v4920, 0.0
        %vm5616 = vcmp.gt.f32.partialorder %v4927, 0.0
        %v5617 = vadd.f32 %v4920, 1.0
        %v5618 = vadd.f32 %v4927, 1.0
        %v5619 = vmin.f32 %v4920, 0.0
        %v5620 = vmin.f32 %v4927, 0.0
        %v5621 = vmul.f32 %v5619, 1.442695
        %v5622 = vpow.pop %v5621
        %v5623 = vmul.f32 %v5620, 1.442695
        %v5624 = vpow.pop %v5623
        %v5625 = vsel %vm5615, %v5617, %v5622
        %v5626 = vsel %vm5616, %v5618, %v5624
        %v5627 = vld [vmem:[#allocation2] sm:$0xff]
        %v5628 = vld [vmem:[#allocation2 + $0x8] sm:$0xff]
        %v5629 = vld [vmem:[#allocation2 + $0x10] sm:$0xff]
        %v5630 = vld [vmem:[#allocation2 + $0x18] sm:$0xff]
        %v5631 = vld [vmem:[#allocation2 + $0x20] sm:$0xff]
        %v5632 = vld [vmem:[#allocation2 + $0x28] sm:$0xff]
        %v5633 = vld [vmem:[#allocation2 + $0x30] sm:$0xff]
        %v5634 = vld [vmem:[#allocation2 + $0x38] sm:$0xff]
        %v5635 = vld [vmem:[#allocation2 + $0x40] sm:$0xff]
        %v5636 = vld [vmem:[#allocation2 + $0x48] sm:$0xff]
        %v5637 = vld [vmem:[#allocation2 + $0x50] sm:$0xff]
        %v5638 = vld [vmem:[#allocation2 + $0x58] sm:$0xff]
        %v5639 = vld [vmem:[#allocation2 + $0x60] sm:$0xff]
        %v5640 = vld [vmem:[#allocation2 + $0x68] sm:$0xff]
        %v5641 = vld [vmem:[#allocation2 + $0x70] sm:$0xff]
        %v5642 = vld [vmem:[#allocation2 + $0x78] sm:$0xff]
        %v5643 = vld [vmem:[#allocation2 + $0x80] sm:$0xff]
        %v5644 = vld [vmem:[#allocation2 + $0x88] sm:$0xff]
        %v5645 = vld [vmem:[#allocation2 + $0x90] sm:$0xff]
        %v5646 = vld [vmem:[#allocation2 + $0x98] sm:$0xff]
        %v5647 = vld [vmem:[#allocation2 + $0xa0] sm:$0xff]
        %v5648 = vld [vmem:[#allocation2 + $0xa8] sm:$0xff]
        %v5649 = vld [vmem:[#allocation2 + $0xb0] sm:$0xff]
        %v5650 = vld [vmem:[#allocation2 + $0xb8] sm:$0xff]
        %v5651 = vld [vmem:[#allocation2 + $0xc0] sm:$0xff]
        %v5652 = vld [vmem:[#allocation2 + $0xc8] sm:$0xff]
        %v5653 = vld [vmem:[#allocation2 + $0xd0] sm:$0xff]
        %v5654 = vld [vmem:[#allocation2 + $0xd8] sm:$0xff]
        %v5655 = vld [vmem:[#allocation2 + $0xe0] sm:$0xff]
        %v5656 = vld [vmem:[#allocation2 + $0xe8] sm:$0xff]
        %v5657 = vld [vmem:[#allocation2 + $0xf0] sm:$0xff]
        %v5658 = vld [vmem:[#allocation2 + $0xf8] sm:$0xff]
        %v5659 = vand.u32 %v5628, 4294901760
        %5660 = vmatprep.subr.mxu0 %v5659
        %v5661 = vand.u32 %v5627, 4294901760
        %5662 = vmatpush1.msra.mxu0 %v5661
        %v5663 = vand.u32 %v5630, 4294901760
        %5664 = vmatprep.subr.mxu0 %v5663
        %v5665 = vand.u32 %v5629, 4294901760
        %5666 = vmatpush1.msra.mxu0 %v5665
        %v5667 = vand.u32 %v5632, 4294901760
        %5668 = vmatprep.subr.mxu0 %v5667
        %v5669 = vand.u32 %v5631, 4294901760
        %5670 = vmatpush1.msra.mxu0 %v5669
        %v5671 = vand.u32 %v5634, 4294901760
        %5672 = vmatprep.subr.mxu0 %v5671
        %v5673 = vand.u32 %v5633, 4294901760
        %5674 = vmatpush1.msra.mxu0 %v5673
        %v5675 = vand.u32 %v5636, 4294901760
        %5676 = vmatprep.subr.mxu0 %v5675
        %v5677 = vand.u32 %v5635, 4294901760
        %5678 = vmatpush1.msra.mxu0 %v5677
        %v5679 = vand.u32 %v5638, 4294901760
        %5680 = vmatprep.subr.mxu0 %v5679
        %v5681 = vand.u32 %v5637, 4294901760
        %5682 = vmatpush1.msra.mxu0 %v5681
        %v5683 = vand.u32 %v5640, 4294901760
        %5684 = vmatprep.subr.mxu0 %v5683
        %v5685 = vand.u32 %v5639, 4294901760
        %5686 = vmatpush1.msra.mxu0 %v5685
        %v5687 = vand.u32 %v5642, 4294901760
        %5688 = vmatprep.subr.mxu0 %v5687
        %v5689 = vand.u32 %v5641, 4294901760
        %5690 = vmatpush1.msra.mxu0 %v5689
        %v5691 = vand.u32 %v5644, 4294901760
        %5692 = vmatprep.subr.mxu0 %v5691
        %v5693 = vand.u32 %v5643, 4294901760
        %5694 = vmatpush1.msra.mxu0 %v5693
        %v5695 = vand.u32 %v5646, 4294901760
        %5696 = vmatprep.subr.mxu0 %v5695
        %v5697 = vand.u32 %v5645, 4294901760
        %5698 = vmatpush1.msra.mxu0 %v5697
        %v5699 = vand.u32 %v5648, 4294901760
        %5700 = vmatprep.subr.mxu0 %v5699
        %v5701 = vand.u32 %v5647, 4294901760
        %5702 = vmatpush1.msra.mxu0 %v5701
        %v5703 = vand.u32 %v5650, 4294901760
        %5704 = vmatprep.subr.mxu0 %v5703
        %v5705 = vand.u32 %v5649, 4294901760
        %5706 = vmatpush1.msra.mxu0 %v5705
        %v5707 = vand.u32 %v5652, 4294901760
        %5708 = vmatprep.subr.mxu0 %v5707
        %v5709 = vand.u32 %v5651, 4294901760
        %5710 = vmatpush1.msra.mxu0 %v5709
        %v5711 = vand.u32 %v5654, 4294901760
        %5712 = vmatprep.subr.mxu0 %v5711
        %v5713 = vand.u32 %v5653, 4294901760
        %5714 = vmatpush1.msra.mxu0 %v5713
        %v5715 = vand.u32 %v5656, 4294901760
        %5716 = vmatprep.subr.mxu0 %v5715
        %v5717 = vand.u32 %v5655, 4294901760
        %5718 = vmatpush1.msra.mxu0 %v5717
        %v5719 = vand.u32 %v5658, 4294901760
        %5720 = vmatprep.subr.mxu0 %v5719
        %v5721 = vand.u32 %v5657, 4294901760
        %5722 = vmatpush1.msra.mxu0 %v5721
        %5723 = vmatprep.subr.mxu0 0.0
        %5724 = vmatpush1.msra.mxu0 0.0
        %5725 = vmatprep.subr.mxu0 0.0
        %5726 = vmatpush1.msra.mxu0 0.0
        %5727 = vmatprep.subr.mxu0 0.0
        %5728 = vmatpush1.msra.mxu0 0.0
        %5729 = vmatprep.subr.mxu0 0.0
        %5730 = vmatpush1.msra.mxu0 0.0
        %5731 = vmatprep.subr.mxu0 0.0
        %5732 = vmatpush1.msra.mxu0 0.0
        %5733 = vmatprep.subr.mxu0 0.0
        %5734 = vmatpush1.msra.mxu0 0.0
        %5735 = vmatprep.subr.mxu0 0.0
        %5736 = vmatpush1.msra.mxu0 0.0
        %5737 = vmatprep.subr.mxu0 0.0
        %5738 = vmatpush1.msra.mxu0 0.0
        %5739 = vmatprep.subr.mxu0 0.0
        %5740 = vmatpush1.msra.mxu0 0.0
        %5741 = vmatprep.subr.mxu0 0.0
        %5742 = vmatpush1.msra.mxu0 0.0
        %5743 = vmatprep.subr.mxu0 0.0
        %5744 = vmatpush1.msra.mxu0 0.0
        %5745 = vmatprep.subr.mxu0 0.0
        %5746 = vmatpush1.msra.mxu0 0.0
        %5747 = vmatprep.subr.mxu0 0.0
        %5748 = vmatpush1.msra.mxu0 0.0
        %5749 = vmatprep.subr.mxu0 0.0
        %5750 = vmatpush1.msra.mxu0 0.0
        %5751 = vmatprep.subr.mxu0 0.0
        %5752 = vmatpush1.msra.mxu0 0.0
        %5753 = vmatprep.subr.mxu0 0.0
        %5754 = vmatpush1.msra.mxu0 0.0
        %5755 = vmatprep.mubr.f32.mxu0 0.0
        %v5756 = vand.u32 %v5625, 4294901760
        %v5757 = vsub.f32 %v5625, %v5756
        %v5758 = vand.u32 %v5757, 4294901760
        %v5759 = vsub.f32 %v5757, %v5758
        %v5760 = vand.u32 %v5759, 4294901760
        %5761 = vmatmul.mubr.f32.gmra.mrb[0].mxu0 %v5760
        %v5762 = vpop.f32.mrb[0].mxu0
        %v5763 = vadd.f32 0.0, %v5762
        %v5764 = vpop.f32.mrb[0].mxu0
        %v5765 = vadd.f32 0.0, %v5764
        %5766 = vmatprep.mubr.f32.mxu0 0.0
        %v5767 = vand.u32 %v5626, 4294901760
        %v5768 = vsub.f32 %v5626, %v5767
        %v5769 = vand.u32 %v5768, 4294901760
        %v5770 = vsub.f32 %v5768, %v5769
        %v5771 = vand.u32 %v5770, 4294901760
        %5772 = vmatmul.mubr.f32.gmra.mrb[0].mxu0 %v5771
        %v5773 = vpop.f32.mrb[0].mxu0
        %v5774 = vadd.f32 0.0, %v5773
        %v5775 = vpop.f32.mrb[0].mxu0
        %v5776 = vadd.f32 0.0, %v5775
        %5777 = vdwg.mxu0
        %v5778 = vand.u32 %v5628, 4294901760
        %v5779 = vsub.f32 %v5628, %v5778
        %v5780 = vand.u32 %v5779, 4294901760
        %v5781 = vsub.f32 %v5779, %v5780
        %v5782 = vand.u32 %v5781, 4294901760
        %5783 = vmatprep.subr.mxu0 %v5782
        %v5784 = vand.u32 %v5627, 4294901760
        %v5785 = vsub.f32 %v5627, %v5784
        %v5786 = vand.u32 %v5785, 4294901760
        %v5787 = vsub.f32 %v5785, %v5786
        %v5788 = vand.u32 %v5787, 4294901760
        %5789 = vmatpush1.msra.mxu0 %v5788
        %v5790 = vand.u32 %v5630, 4294901760
        %v5791 = vsub.f32 %v5630, %v5790
        %v5792 = vand.u32 %v5791, 4294901760
        %v5793 = vsub.f32 %v5791, %v5792
        %v5794 = vand.u32 %v5793, 4294901760
        %5795 = vmatprep.subr.mxu0 %v5794
        %v5796 = vand.u32 %v5629, 4294901760
        %v5797 = vsub.f32 %v5629, %v5796
        %v5798 = vand.u32 %v5797, 4294901760
        %v5799 = vsub.f32 %v5797, %v5798
        %v5800 = vand.u32 %v5799, 4294901760
        %5801 = vmatpush1.msra.mxu0 %v5800
        %v5802 = vand.u32 %v5632, 4294901760
        %v5803 = vsub.f32 %v5632, %v5802
        %v5804 = vand.u32 %v5803, 4294901760
        %v5805 = vsub.f32 %v5803, %v5804
        %v5806 = vand.u32 %v5805, 4294901760
        %5807 = vmatprep.subr.mxu0 %v5806
        %v5808 = vand.u32 %v5631, 4294901760
        %v5809 = vsub.f32 %v5631, %v5808
        %v5810 = vand.u32 %v5809, 4294901760
        %v5811 = vsub.f32 %v5809, %v5810
        %v5812 = vand.u32 %v5811, 4294901760
        %5813 = vmatpush1.msra.mxu0 %v5812
        %v5814 = vand.u32 %v5634, 4294901760
        %v5815 = vsub.f32 %v5634, %v5814
        %v5816 = vand.u32 %v5815, 4294901760
        %v5817 = vsub.f32 %v5815, %v5816
        %v5818 = vand.u32 %v5817, 4294901760
        %5819 = vmatprep.subr.mxu0 %v5818
        %v5820 = vand.u32 %v5633, 4294901760
        %v5821 = vsub.f32 %v5633, %v5820
        %v5822 = vand.u32 %v5821, 4294901760
        %v5823 = vsub.f32 %v5821, %v5822
        %v5824 = vand.u32 %v5823, 4294901760
        %5825 = vmatpush1.msra.mxu0 %v5824
        %v5826 = vand.u32 %v5636, 4294901760
        %v5827 = vsub.f32 %v5636, %v5826
        %v5828 = vand.u32 %v5827, 4294901760
        %v5829 = vsub.f32 %v5827, %v5828
        %v5830 = vand.u32 %v5829, 4294901760
        %5831 = vmatprep.subr.mxu0 %v5830
        %v5832 = vand.u32 %v5635, 4294901760
        %v5833 = vsub.f32 %v5635, %v5832
        %v5834 = vand.u32 %v5833, 4294901760
        %v5835 = vsub.f32 %v5833, %v5834
        %v5836 = vand.u32 %v5835, 4294901760
        %5837 = vmatpush1.msra.mxu0 %v5836
        %v5838 = vand.u32 %v5638, 4294901760
        %v5839 = vsub.f32 %v5638, %v5838
        %v5840 = vand.u32 %v5839, 4294901760
        %v5841 = vsub.f32 %v5839, %v5840
        %v5842 = vand.u32 %v5841, 4294901760
        %5843 = vmatprep.subr.mxu0 %v5842
        %v5844 = vand.u32 %v5637, 4294901760
        %v5845 = vsub.f32 %v5637, %v5844
        %v5846 = vand.u32 %v5845, 4294901760
        %v5847 = vsub.f32 %v5845, %v5846
        %v5848 = vand.u32 %v5847, 4294901760
        %5849 = vmatpush1.msra.mxu0 %v5848
        %v5850 = vand.u32 %v5640, 4294901760
        %v5851 = vsub.f32 %v5640, %v5850
        %v5852 = vand.u32 %v5851, 4294901760
        %v5853 = vsub.f32 %v5851, %v5852
        %v5854 = vand.u32 %v5853, 4294901760
        %5855 = vmatprep.subr.mxu0 %v5854
        %v5856 = vand.u32 %v5639, 4294901760
        %v5857 = vsub.f32 %v5639, %v5856
        %v5858 = vand.u32 %v5857, 4294901760
        %v5859 = vsub.f32 %v5857, %v5858
        %v5860 = vand.u32 %v5859, 4294901760
        %5861 = vmatpush1.msra.mxu0 %v5860
        %v5862 = vand.u32 %v5642, 4294901760
        %v5863 = vsub.f32 %v5642, %v5862
        %v5864 = vand.u32 %v5863, 4294901760
        %v5865 = vsub.f32 %v5863, %v5864
        %v5866 = vand.u32 %v5865, 4294901760
        %5867 = vmatprep.subr.mxu0 %v5866
        %v5868 = vand.u32 %v5641, 4294901760
        %v5869 = vsub.f32 %v5641, %v5868
        %v5870 = vand.u32 %v5869, 4294901760
        %v5871 = vsub.f32 %v5869, %v5870
        %v5872 = vand.u32 %v5871, 4294901760
        %5873 = vmatpush1.msra.mxu0 %v5872
        %v5874 = vand.u32 %v5644, 4294901760
        %v5875 = vsub.f32 %v5644, %v5874
        %v5876 = vand.u32 %v5875, 4294901760
        %v5877 = vsub.f32 %v5875, %v5876
        %v5878 = vand.u32 %v5877, 4294901760
        %5879 = vmatprep.subr.mxu0 %v5878
        %v5880 = vand.u32 %v5643, 4294901760
        %v5881 = vsub.f32 %v5643, %v5880
        %v5882 = vand.u32 %v5881, 4294901760
        %v5883 = vsub.f32 %v5881, %v5882
        %v5884 = vand.u32 %v5883, 4294901760
        %5885 = vmatpush1.msra.mxu0 %v5884
        %v5886 = vand.u32 %v5646, 4294901760
        %v5887 = vsub.f32 %v5646, %v5886
        %v5888 = vand.u32 %v5887, 4294901760
        %v5889 = vsub.f32 %v5887, %v5888
        %v5890 = vand.u32 %v5889, 4294901760
        %5891 = vmatprep.subr.mxu0 %v5890
        %v5892 = vand.u32 %v5645, 4294901760
        %v5893 = vsub.f32 %v5645, %v5892
        %v5894 = vand.u32 %v5893, 4294901760
        %v5895 = vsub.f32 %v5893, %v5894
        %v5896 = vand.u32 %v5895, 4294901760
        %5897 = vmatpush1.msra.mxu0 %v5896
        %v5898 = vand.u32 %v5648, 4294901760
        %v5899 = vsub.f32 %v5648, %v5898
        %v5900 = vand.u32 %v5899, 4294901760
        %v5901 = vsub.f32 %v5899, %v5900
        %v5902 = vand.u32 %v5901, 4294901760
        %5903 = vmatprep.subr.mxu0 %v5902
        %v5904 = vand.u32 %v5647, 4294901760
        %v5905 = vsub.f32 %v5647, %v5904
        %v5906 = vand.u32 %v5905, 4294901760
        %v5907 = vsub.f32 %v5905, %v5906
        %v5908 = vand.u32 %v5907, 4294901760
        %5909 = vmatpush1.msra.mxu0 %v5908
        %v5910 = vand.u32 %v5650, 4294901760
        %v5911 = vsub.f32 %v5650, %v5910
        %v5912 = vand.u32 %v5911, 4294901760
        %v5913 = vsub.f32 %v5911, %v5912
        %v5914 = vand.u32 %v5913, 4294901760
        %5915 = vmatprep.subr.mxu0 %v5914
        %v5916 = vand.u32 %v5649, 4294901760
        %v5917 = vsub.f32 %v5649, %v5916
        %v5918 = vand.u32 %v5917, 4294901760
        %v5919 = vsub.f32 %v5917, %v5918
        %v5920 = vand.u32 %v5919, 4294901760
        %5921 = vmatpush1.msra.mxu0 %v5920
        %v5922 = vand.u32 %v5652, 4294901760
        %v5923 = vsub.f32 %v5652, %v5922
        %v5924 = vand.u32 %v5923, 4294901760
        %v5925 = vsub.f32 %v5923, %v5924
        %v5926 = vand.u32 %v5925, 4294901760
        %5927 = vmatprep.subr.mxu0 %v5926
        %v5928 = vand.u32 %v5651, 4294901760
        %v5929 = vsub.f32 %v5651, %v5928
        %v5930 = vand.u32 %v5929, 4294901760
        %v5931 = vsub.f32 %v5929, %v5930
        %v5932 = vand.u32 %v5931, 4294901760
        %5933 = vmatpush1.msra.mxu0 %v5932
        %v5934 = vand.u32 %v5654, 4294901760
        %v5935 = vsub.f32 %v5654, %v5934
        %v5936 = vand.u32 %v5935, 4294901760
        %v5937 = vsub.f32 %v5935, %v5936
        %v5938 = vand.u32 %v5937, 4294901760
        %5939 = vmatprep.subr.mxu0 %v5938
        %v5940 = vand.u32 %v5653, 4294901760
        %v5941 = vsub.f32 %v5653, %v5940
        %v5942 = vand.u32 %v5941, 4294901760
        %v5943 = vsub.f32 %v5941, %v5942
        %v5944 = vand.u32 %v5943, 4294901760
        %5945 = vmatpush1.msra.mxu0 %v5944
        %v5946 = vand.u32 %v5656, 4294901760
        %v5947 = vsub.f32 %v5656, %v5946
        %v5948 = vand.u32 %v5947, 4294901760
        %v5949 = vsub.f32 %v5947, %v5948
        %v5950 = vand.u32 %v5949, 4294901760
        %5951 = vmatprep.subr.mxu0 %v5950
        %v5952 = vand.u32 %v5655, 4294901760
        %v5953 = vsub.f32 %v5655, %v5952
        %v5954 = vand.u32 %v5953, 4294901760
        %v5955 = vsub.f32 %v5953, %v5954
        %v5956 = vand.u32 %v5955, 4294901760
        %5957 = vmatpush1.msra.mxu0 %v5956
        %v5958 = vand.u32 %v5658, 4294901760
        %v5959 = vsub.f32 %v5658, %v5958
        %v5960 = vand.u32 %v5959, 4294901760
        %v5961 = vsub.f32 %v5959, %v5960
        %v5962 = vand.u32 %v5961, 4294901760
        %5963 = vmatprep.subr.mxu0 %v5962
        %v5964 = vand.u32 %v5657, 4294901760
        %v5965 = vsub.f32 %v5657, %v5964
        %v5966 = vand.u32 %v5965, 4294901760
        %v5967 = vsub.f32 %v5965, %v5966
        %v5968 = vand.u32 %v5967, 4294901760
        %5969 = vmatpush1.msra.mxu0 %v5968
        %5970 = vmatprep.subr.mxu0 0.0
        %5971 = vmatpush1.msra.mxu0 0.0
        %5972 = vmatprep.subr.mxu0 0.0
        %5973 = vmatpush1.msra.mxu0 0.0
        %5974 = vmatprep.subr.mxu0 0.0
        %5975 = vmatpush1.msra.mxu0 0.0
        %5976 = vmatprep.subr.mxu0 0.0
        %5977 = vmatpush1.msra.mxu0 0.0
        %5978 = vmatprep.subr.mxu0 0.0
        %5979 = vmatpush1.msra.mxu0 0.0
        %5980 = vmatprep.subr.mxu0 0.0
        %5981 = vmatpush1.msra.mxu0 0.0
        %5982 = vmatprep.subr.mxu0 0.0
        %5983 = vmatpush1.msra.mxu0 0.0
        %5984 = vmatprep.subr.mxu0 0.0
        %5985 = vmatpush1.msra.mxu0 0.0
        %5986 = vmatprep.subr.mxu0 0.0
        %5987 = vmatpush1.msra.mxu0 0.0
        %5988 = vmatprep.subr.mxu0 0.0
        %5989 = vmatpush1.msra.mxu0 0.0
        %5990 = vmatprep.subr.mxu0 0.0
        %5991 = vmatpush1.msra.mxu0 0.0
        %5992 = vmatprep.subr.mxu0 0.0
        %5993 = vmatpush1.msra.mxu0 0.0
        %5994 = vmatprep.subr.mxu0 0.0
        %5995 = vmatpush1.msra.mxu0 0.0
        %5996 = vmatprep.subr.mxu0 0.0
        %5997 = vmatpush1.msra.mxu0 0.0
        %5998 = vmatprep.subr.mxu0 0.0
        %5999 = vmatpush1.msra.mxu0 0.0
        %6000 = vmatprep.subr.mxu0 0.0
        %6001 = vmatpush1.msra.mxu0 0.0
        %6002 = vmatprep.mubr.f32.mxu0 0.0
        %v6003 = vand.u32 %v5625, 4294901760
        %6004 = vmatmul.mubr.f32.gmra.mrb[0].mxu0 %v6003
        %v6005 = vpop.f32.mrb[0].mxu0
        %v6006 = vadd.f32 %v5763, %v6005
        %v6007 = vpop.f32.mrb[0].mxu0
        %v6008 = vadd.f32 %v5765, %v6007
        %6009 = vmatprep.mubr.f32.mxu0 0.0
        %v6010 = vand.u32 %v5626, 4294901760
        %6011 = vmatmul.mubr.f32.gmra.mrb[0].mxu0 %v6010
        %v6012 = vpop.f32.mrb[0].mxu0
        %v6013 = vadd.f32 %v5774, %v6012
        %v6014 = vpop.f32.mrb[0].mxu0
        %v6015 = vadd.f32 %v5776, %v6014
        %6016 = vdwg.mxu0
        %v6017 = vand.u32 %v5628, 4294901760
        %v6018 = vsub.f32 %v5628, %v6017
        %6019 = vmatprep.subr.mxu0 %v6018
        %v6020 = vand.u32 %v5627, 4294901760
        %v6021 = vsub.f32 %v5627, %v6020
        %6022 = vmatpush1.msra.mxu0 %v6021
        %v6023 = vand.u32 %v5630, 4294901760
        %v6024 = vsub.f32 %v5630, %v6023
        %6025 = vmatprep.subr.mxu0 %v6024
        %v6026 = vand.u32 %v5629, 4294901760
        %v6027 = vsub.f32 %v5629, %v6026
        %6028 = vmatpush1.msra.mxu0 %v6027
        %v6029 = vand.u32 %v5632, 4294901760
        %v6030 = vsub.f32 %v5632, %v6029
        %6031 = vmatprep.subr.mxu0 %v6030
        %v6032 = vand.u32 %v5631, 4294901760
        %v6033 = vsub.f32 %v5631, %v6032
        %6034 = vmatpush1.msra.mxu0 %v6033
        %v6035 = vand.u32 %v5634, 4294901760
        %v6036 = vsub.f32 %v5634, %v6035
        %6037 = vmatprep.subr.mxu0 %v6036
        %v6038 = vand.u32 %v5633, 4294901760
        %v6039 = vsub.f32 %v5633, %v6038
        %6040 = vmatpush1.msra.mxu0 %v6039
        %v6041 = vand.u32 %v5636, 4294901760
        %v6042 = vsub.f32 %v5636, %v6041
        %6043 = vmatprep.subr.mxu0 %v6042
        %v6044 = vand.u32 %v5635, 4294901760
        %v6045 = vsub.f32 %v5635, %v6044
        %6046 = vmatpush1.msra.mxu0 %v6045
        %v6047 = vand.u32 %v5638, 4294901760
        %v6048 = vsub.f32 %v5638, %v6047
        %6049 = vmatprep.subr.mxu0 %v6048
        %v6050 = vand.u32 %v5637, 4294901760
        %v6051 = vsub.f32 %v5637, %v6050
        %6052 = vmatpush1.msra.mxu0 %v6051
        %v6053 = vand.u32 %v5640, 4294901760
        %v6054 = vsub.f32 %v5640, %v6053
        %6055 = vmatprep.subr.mxu0 %v6054
        %v6056 = vand.u32 %v5639, 4294901760
        %v6057 = vsub.f32 %v5639, %v6056
        %6058 = vmatpush1.msra.mxu0 %v6057
        %v6059 = vand.u32 %v5642, 4294901760
        %v6060 = vsub.f32 %v5642, %v6059
        %6061 = vmatprep.subr.mxu0 %v6060
        %v6062 = vand.u32 %v5641, 4294901760
        %v6063 = vsub.f32 %v5641, %v6062
        %6064 = vmatpush1.msra.mxu0 %v6063
        %v6065 = vand.u32 %v5644, 4294901760
        %v6066 = vsub.f32 %v5644, %v6065
        %6067 = vmatprep.subr.mxu0 %v6066
        %v6068 = vand.u32 %v5643, 4294901760
        %v6069 = vsub.f32 %v5643, %v6068
        %6070 = vmatpush1.msra.mxu0 %v6069
        %v6071 = vand.u32 %v5646, 4294901760
        %v6072 = vsub.f32 %v5646, %v6071
        %6073 = vmatprep.subr.mxu0 %v6072
        %v6074 = vand.u32 %v5645, 4294901760
        %v6075 = vsub.f32 %v5645, %v6074
        %6076 = vmatpush1.msra.mxu0 %v6075
        %v6077 = vand.u32 %v5648, 4294901760
        %v6078 = vsub.f32 %v5648, %v6077
        %6079 = vmatprep.subr.mxu0 %v6078
        %v6080 = vand.u32 %v5647, 4294901760
        %v6081 = vsub.f32 %v5647, %v6080
        %6082 = vmatpush1.msra.mxu0 %v6081
        %v6083 = vand.u32 %v5650, 4294901760
        %v6084 = vsub.f32 %v5650, %v6083
        %6085 = vmatprep.subr.mxu0 %v6084
        %v6086 = vand.u32 %v5649, 4294901760
        %v6087 = vsub.f32 %v5649, %v6086
        %6088 = vmatpush1.msra.mxu0 %v6087
        %v6089 = vand.u32 %v5652, 4294901760
        %v6090 = vsub.f32 %v5652, %v6089
        %6091 = vmatprep.subr.mxu0 %v6090
        %v6092 = vand.u32 %v5651, 4294901760
        %v6093 = vsub.f32 %v5651, %v6092
        %6094 = vmatpush1.msra.mxu0 %v6093
        %v6095 = vand.u32 %v5654, 4294901760
        %v6096 = vsub.f32 %v5654, %v6095
        %6097 = vmatprep.subr.mxu0 %v6096
        %v6098 = vand.u32 %v5653, 4294901760
        %v6099 = vsub.f32 %v5653, %v6098
        %6100 = vmatpush1.msra.mxu0 %v6099
        %v6101 = vand.u32 %v5656, 4294901760
        %v6102 = vsub.f32 %v5656, %v6101
        %6103 = vmatprep.subr.mxu0 %v6102
        %v6104 = vand.u32 %v5655, 4294901760
        %v6105 = vsub.f32 %v5655, %v6104
        %6106 = vmatpush1.msra.mxu0 %v6105
        %v6107 = vand.u32 %v5658, 4294901760
        %v6108 = vsub.f32 %v5658, %v6107
        %6109 = vmatprep.subr.mxu0 %v6108
        %v6110 = vand.u32 %v5657, 4294901760
        %v6111 = vsub.f32 %v5657, %v6110
        %6112 = vmatpush1.msra.mxu0 %v6111
        %6113 = vmatprep.subr.mxu0 0.0
        %6114 = vmatpush1.msra.mxu0 0.0
        %6115 = vmatprep.subr.mxu0 0.0
        %6116 = vmatpush1.msra.mxu0 0.0
        %6117 = vmatprep.subr.mxu0 0.0
        %6118 = vmatpush1.msra.mxu0 0.0
        %6119 = vmatprep.subr.mxu0 0.0
        %6120 = vmatpush1.msra.mxu0 0.0
        %6121 = vmatprep.subr.mxu0 0.0
        %6122 = vmatpush1.msra.mxu0 0.0
        %6123 = vmatprep.subr.mxu0 0.0
        %6124 = vmatpush1.msra.mxu0 0.0
        %6125 = vmatprep.subr.mxu0 0.0
        %6126 = vmatpush1.msra.mxu0 0.0
        %6127 = vmatprep.subr.mxu0 0.0
        %6128 = vmatpush1.msra.mxu0 0.0
        %6129 = vmatprep.subr.mxu0 0.0
        %6130 = vmatpush1.msra.mxu0 0.0
        %6131 = vmatprep.subr.mxu0 0.0
        %6132 = vmatpush1.msra.mxu0 0.0
        %6133 = vmatprep.subr.mxu0 0.0
        %6134 = vmatpush1.msra.mxu0 0.0
        %6135 = vmatprep.subr.mxu0 0.0
        %6136 = vmatpush1.msra.mxu0 0.0
        %6137 = vmatprep.subr.mxu0 0.0
        %6138 = vmatpush1.msra.mxu0 0.0
        %6139 = vmatprep.subr.mxu0 0.0
        %6140 = vmatpush1.msra.mxu0 0.0
        %6141 = vmatprep.subr.mxu0 0.0
        %6142 = vmatpush1.msra.mxu0 0.0
        %6143 = vmatprep.subr.mxu0 0.0
        %6144 = vmatpush1.msra.mxu0 0.0
        %6145 = vmatprep.mubr.f32.mxu0 0.0
        %v6146 = vand.u32 %v5625, 4294901760
        %v6147 = vsub.f32 %v5625, %v6146
        %6148 = vmatmul.mubr.f32.gmra.mrb[0].mxu0 %v6147
        %v6149 = vpop.f32.mrb[0].mxu0
        %v6150 = vadd.f32 %v6006, %v6149
        %v6151 = vpop.f32.mrb[0].mxu0
        %v6152 = vadd.f32 %v6008, %v6151
        %6153 = vmatprep.mubr.f32.mxu0 0.0
        %v6154 = vand.u32 %v5626, 4294901760
        %v6155 = vsub.f32 %v5626, %v6154
        %6156 = vmatmul.mubr.f32.gmra.mrb[0].mxu0 %v6155
        %v6157 = vpop.f32.mrb[0].mxu0
        %v6158 = vadd.f32 %v6013, %v6157
        %v6159 = vpop.f32.mrb[0].mxu0
        %v6160 = vadd.f32 %v6015, %v6159
        %6161 = vdwg.mxu0
        %v6162 = vand.u32 %v5628, 4294901760
        %6163 = vmatprep.subr.mxu0 %v6162
        %v6164 = vand.u32 %v5627, 4294901760
        %6165 = vmatpush1.msra.mxu0 %v6164
        %v6166 = vand.u32 %v5630, 4294901760
        %6167 = vmatprep.subr.mxu0 %v6166
        %v6168 = vand.u32 %v5629, 4294901760
        %6169 = vmatpush1.msra.mxu0 %v6168
        %v6170 = vand.u32 %v5632, 4294901760
        %6171 = vmatprep.subr.mxu0 %v6170
        %v6172 = vand.u32 %v5631, 4294901760
        %6173 = vmatpush1.msra.mxu0 %v6172
        %v6174 = vand.u32 %v5634, 4294901760
        %6175 = vmatprep.subr.mxu0 %v6174
        %v6176 = vand.u32 %v5633, 4294901760
        %6177 = vmatpush1.msra.mxu0 %v6176
        %v6178 = vand.u32 %v5636, 4294901760
        %6179 = vmatprep.subr.mxu0 %v6178
        %v6180 = vand.u32 %v5635, 4294901760
        %6181 = vmatpush1.msra.mxu0 %v6180
        %v6182 = vand.u32 %v5638, 4294901760
        %6183 = vmatprep.subr.mxu0 %v6182
        %v6184 = vand.u32 %v5637, 4294901760
        %6185 = vmatpush1.msra.mxu0 %v6184
        %v6186 = vand.u32 %v5640, 4294901760
        %6187 = vmatprep.subr.mxu0 %v6186
        %v6188 = vand.u32 %v5639, 4294901760
        %6189 = vmatpush1.msra.mxu0 %v6188
        %v6190 = vand.u32 %v5642, 4294901760
        %6191 = vmatprep.subr.mxu0 %v6190
        %v6192 = vand.u32 %v5641, 4294901760
        %6193 = vmatpush1.msra.mxu0 %v6192
        %v6194 = vand.u32 %v5644, 4294901760
        %6195 = vmatprep.subr.mxu0 %v6194
        %v6196 = vand.u32 %v5643, 4294901760
        %6197 = vmatpush1.msra.mxu0 %v6196
        %v6198 = vand.u32 %v5646, 4294901760
        %6199 = vmatprep.subr.mxu0 %v6198
        %v6200 = vand.u32 %v5645, 4294901760
        %6201 = vmatpush1.msra.mxu0 %v6200
        %v6202 = vand.u32 %v5648, 4294901760
        %6203 = vmatprep.subr.mxu0 %v6202
        %v6204 = vand.u32 %v5647, 4294901760
        %6205 = vmatpush1.msra.mxu0 %v6204
        %v6206 = vand.u32 %v5650, 4294901760
        %6207 = vmatprep.subr.mxu0 %v6206
        %v6208 = vand.u32 %v5649, 4294901760
        %6209 = vmatpush1.msra.mxu0 %v6208
        %v6210 = vand.u32 %v5652, 4294901760
        %6211 = vmatprep.subr.mxu0 %v6210
        %v6212 = vand.u32 %v5651, 4294901760
        %6213 = vmatpush1.msra.mxu0 %v6212
        %v6214 = vand.u32 %v5654, 4294901760
        %6215 = vmatprep.subr.mxu0 %v6214
        %v6216 = vand.u32 %v5653, 4294901760
        %6217 = vmatpush1.msra.mxu0 %v6216
        %v6218 = vand.u32 %v5656, 4294901760
        %6219 = vmatprep.subr.mxu0 %v6218
        %v6220 = vand.u32 %v5655, 4294901760
        %6221 = vmatpush1.msra.mxu0 %v6220
        %v6222 = vand.u32 %v5658, 4294901760
        %6223 = vmatprep.subr.mxu0 %v6222
        %v6224 = vand.u32 %v5657, 4294901760
        %6225 = vmatpush1.msra.mxu0 %v6224
        %6226 = vmatprep.subr.mxu0 0.0
        %6227 = vmatpush1.msra.mxu0 0.0
        %6228 = vmatprep.subr.mxu0 0.0
        %6229 = vmatpush1.msra.mxu0 0.0
        %6230 = vmatprep.subr.mxu0 0.0
        %6231 = vmatpush1.msra.mxu0 0.0
        %6232 = vmatprep.subr.mxu0 0.0
        %6233 = vmatpush1.msra.mxu0 0.0
        %6234 = vmatprep.subr.mxu0 0.0
        %6235 = vmatpush1.msra.mxu0 0.0
        %6236 = vmatprep.subr.mxu0 0.0
        %6237 = vmatpush1.msra.mxu0 0.0
        %6238 = vmatprep.subr.mxu0 0.0
        %6239 = vmatpush1.msra.mxu0 0.0
        %6240 = vmatprep.subr.mxu0 0.0
        %6241 = vmatpush1.msra.mxu0 0.0
        %6242 = vmatprep.subr.mxu0 0.0
        %6243 = vmatpush1.msra.mxu0 0.0
        %6244 = vmatprep.subr.mxu0 0.0
        %6245 = vmatpush1.msra.mxu0 0.0
        %6246 = vmatprep.subr.mxu0 0.0
        %6247 = vmatpush1.msra.mxu0 0.0
        %6248 = vmatprep.subr.mxu0 0.0
        %6249 = vmatpush1.msra.mxu0 0.0
        %6250 = vmatprep.subr.mxu0 0.0
        %6251 = vmatpush1.msra.mxu0 0.0
        %6252 = vmatprep.subr.mxu0 0.0
        %6253 = vmatpush1.msra.mxu0 0.0
        %6254 = vmatprep.subr.mxu0 0.0
        %6255 = vmatpush1.msra.mxu0 0.0
        %6256 = vmatprep.subr.mxu0 0.0
        %6257 = vmatpush1.msra.mxu0 0.0
        %6258 = vmatprep.mubr.f32.mxu0 0.0
        %v6259 = vand.u32 %v5625, 4294901760
        %v6260 = vsub.f32 %v5625, %v6259
        %v6261 = vand.u32 %v6260, 4294901760
        %6262 = vmatmul.mubr.f32.gmra.mrb[0].mxu0 %v6261
        %v6263 = vpop.f32.mrb[0].mxu0
        %v6264 = vadd.f32 %v6150, %v6263
        %v6265 = vpop.f32.mrb[0].mxu0
        %v6266 = vadd.f32 %v6152, %v6265
        %6267 = vmatprep.mubr.f32.mxu0 0.0
        %v6268 = vand.u32 %v5626, 4294901760
        %v6269 = vsub.f32 %v5626, %v6268
        %v6270 = vand.u32 %v6269, 4294901760
        %6271 = vmatmul.mubr.f32.gmra.mrb[0].mxu0 %v6270
        %v6272 = vpop.f32.mrb[0].mxu0
        %v6273 = vadd.f32 %v6158, %v6272
        %v6274 = vpop.f32.mrb[0].mxu0
        %v6275 = vadd.f32 %v6160, %v6274
        %6276 = vdwg.mxu0
        %v6277 = vand.u32 %v5628, 4294901760
        %v6278 = vsub.f32 %v5628, %v6277
        %v6279 = vand.u32 %v6278, 4294901760
        %6280 = vmatprep.subr.mxu0 %v6279
        %v6281 = vand.u32 %v5627, 4294901760
        %v6282 = vsub.f32 %v5627, %v6281
        %v6283 = vand.u32 %v6282, 4294901760
        %6284 = vmatpush1.msra.mxu0 %v6283
        %v6285 = vand.u32 %v5630, 4294901760
        %v6286 = vsub.f32 %v5630, %v6285
        %v6287 = vand.u32 %v6286, 4294901760
        %6288 = vmatprep.subr.mxu0 %v6287
        %v6289 = vand.u32 %v5629, 4294901760
        %v6290 = vsub.f32 %v5629, %v6289
        %v6291 = vand.u32 %v6290, 4294901760
        %6292 = vmatpush1.msra.mxu0 %v6291
        %v6293 = vand.u32 %v5632, 4294901760
        %v6294 = vsub.f32 %v5632, %v6293
        %v6295 = vand.u32 %v6294, 4294901760
        %6296 = vmatprep.subr.mxu0 %v6295
        %v6297 = vand.u32 %v5631, 4294901760
        %v6298 = vsub.f32 %v5631, %v6297
        %v6299 = vand.u32 %v6298, 4294901760
        %6300 = vmatpush1.msra.mxu0 %v6299
        %v6301 = vand.u32 %v5634, 4294901760
        %v6302 = vsub.f32 %v5634, %v6301
        %v6303 = vand.u32 %v6302, 4294901760
        %6304 = vmatprep.subr.mxu0 %v6303
        %v6305 = vand.u32 %v5633, 4294901760
        %v6306 = vsub.f32 %v5633, %v6305
        %v6307 = vand.u32 %v6306, 4294901760
        %6308 = vmatpush1.msra.mxu0 %v6307
        %v6309 = vand.u32 %v5636, 4294901760
        %v6310 = vsub.f32 %v5636, %v6309
        %v6311 = vand.u32 %v6310, 4294901760
        %6312 = vmatprep.subr.mxu0 %v6311
        %v6313 = vand.u32 %v5635, 4294901760
        %v6314 = vsub.f32 %v5635, %v6313
        %v6315 = vand.u32 %v6314, 4294901760
        %6316 = vmatpush1.msra.mxu0 %v6315
        %v6317 = vand.u32 %v5638, 4294901760
        %v6318 = vsub.f32 %v5638, %v6317
        %v6319 = vand.u32 %v6318, 4294901760
        %6320 = vmatprep.subr.mxu0 %v6319
        %v6321 = vand.u32 %v5637, 4294901760
        %v6322 = vsub.f32 %v5637, %v6321
        %v6323 = vand.u32 %v6322, 4294901760
        %6324 = vmatpush1.msra.mxu0 %v6323
        %v6325 = vand.u32 %v5640, 4294901760
        %v6326 = vsub.f32 %v5640, %v6325
        %v6327 = vand.u32 %v6326, 4294901760
        %6328 = vmatprep.subr.mxu0 %v6327
        %v6329 = vand.u32 %v5639, 4294901760
        %v6330 = vsub.f32 %v5639, %v6329
        %v6331 = vand.u32 %v6330, 4294901760
        %6332 = vmatpush1.msra.mxu0 %v6331
        %v6333 = vand.u32 %v5642, 4294901760
        %v6334 = vsub.f32 %v5642, %v6333
        %v6335 = vand.u32 %v6334, 4294901760
        %6336 = vmatprep.subr.mxu0 %v6335
        %v6337 = vand.u32 %v5641, 4294901760
        %v6338 = vsub.f32 %v5641, %v6337
        %v6339 = vand.u32 %v6338, 4294901760
        %6340 = vmatpush1.msra.mxu0 %v6339
        %v6341 = vand.u32 %v5644, 4294901760
        %v6342 = vsub.f32 %v5644, %v6341
        %v6343 = vand.u32 %v6342, 4294901760
        %6344 = vmatprep.subr.mxu0 %v6343
        %v6345 = vand.u32 %v5643, 4294901760
        %v6346 = vsub.f32 %v5643, %v6345
        %v6347 = vand.u32 %v6346, 4294901760
        %6348 = vmatpush1.msra.mxu0 %v6347
        %v6349 = vand.u32 %v5646, 4294901760
        %v6350 = vsub.f32 %v5646, %v6349
        %v6351 = vand.u32 %v6350, 4294901760
        %6352 = vmatprep.subr.mxu0 %v6351
        %v6353 = vand.u32 %v5645, 4294901760
        %v6354 = vsub.f32 %v5645, %v6353
        %v6355 = vand.u32 %v6354, 4294901760
        %6356 = vmatpush1.msra.mxu0 %v6355
        %v6357 = vand.u32 %v5648, 4294901760
        %v6358 = vsub.f32 %v5648, %v6357
        %v6359 = vand.u32 %v6358, 4294901760
        %6360 = vmatprep.subr.mxu0 %v6359
        %v6361 = vand.u32 %v5647, 4294901760
        %v6362 = vsub.f32 %v5647, %v6361
        %v6363 = vand.u32 %v6362, 4294901760
        %6364 = vmatpush1.msra.mxu0 %v6363
        %v6365 = vand.u32 %v5650, 4294901760
        %v6366 = vsub.f32 %v5650, %v6365
        %v6367 = vand.u32 %v6366, 4294901760
        %6368 = vmatprep.subr.mxu0 %v6367
        %v6369 = vand.u32 %v5649, 4294901760
        %v6370 = vsub.f32 %v5649, %v6369
        %v6371 = vand.u32 %v6370, 4294901760
        %6372 = vmatpush1.msra.mxu0 %v6371
        %v6373 = vand.u32 %v5652, 4294901760
        %v6374 = vsub.f32 %v5652, %v6373
        %v6375 = vand.u32 %v6374, 4294901760
        %6376 = vmatprep.subr.mxu0 %v6375
        %v6377 = vand.u32 %v5651, 4294901760
        %v6378 = vsub.f32 %v5651, %v6377
        %v6379 = vand.u32 %v6378, 4294901760
        %6380 = vmatpush1.msra.mxu0 %v6379
        %v6381 = vand.u32 %v5654, 4294901760
        %v6382 = vsub.f32 %v5654, %v6381
        %v6383 = vand.u32 %v6382, 4294901760
        %6384 = vmatprep.subr.mxu0 %v6383
        %v6385 = vand.u32 %v5653, 4294901760
        %v6386 = vsub.f32 %v5653, %v6385
        %v6387 = vand.u32 %v6386, 4294901760
        %6388 = vmatpush1.msra.mxu0 %v6387
        %v6389 = vand.u32 %v5656, 4294901760
        %v6390 = vsub.f32 %v5656, %v6389
        %v6391 = vand.u32 %v6390, 4294901760
        %6392 = vmatprep.subr.mxu0 %v6391
        %v6393 = vand.u32 %v5655, 4294901760
        %v6394 = vsub.f32 %v5655, %v6393
        %v6395 = vand.u32 %v6394, 4294901760
        %6396 = vmatpush1.msra.mxu0 %v6395
        %v6397 = vand.u32 %v5658, 4294901760
        %v6398 = vsub.f32 %v5658, %v6397
        %v6399 = vand.u32 %v6398, 4294901760
        %6400 = vmatprep.subr.mxu0 %v6399
        %v6401 = vand.u32 %v5657, 4294901760
        %v6402 = vsub.f32 %v5657, %v6401
        %v6403 = vand.u32 %v6402, 4294901760
        %6404 = vmatpush1.msra.mxu0 %v6403
        %6405 = vmatprep.subr.mxu0 0.0
        %6406 = vmatpush1.msra.mxu0 0.0
        %6407 = vmatprep.subr.mxu0 0.0
        %6408 = vmatpush1.msra.mxu0 0.0
        %6409 = vmatprep.subr.mxu0 0.0
        %6410 = vmatpush1.msra.mxu0 0.0
        %6411 = vmatprep.subr.mxu0 0.0
        %6412 = vmatpush1.msra.mxu0 0.0
        %6413 = vmatprep.subr.mxu0 0.0
        %6414 = vmatpush1.msra.mxu0 0.0
        %6415 = vmatprep.subr.mxu0 0.0
        %6416 = vmatpush1.msra.mxu0 0.0
        %6417 = vmatprep.subr.mxu0 0.0
        %6418 = vmatpush1.msra.mxu0 0.0
        %6419 = vmatprep.subr.mxu0 0.0
        %6420 = vmatpush1.msra.mxu0 0.0
        %6421 = vmatprep.subr.mxu0 0.0
        %6422 = vmatpush1.msra.mxu0 0.0
        %6423 = vmatprep.subr.mxu0 0.0
        %6424 = vmatpush1.msra.mxu0 0.0
        %6425 = vmatprep.subr.mxu0 0.0
        %6426 = vmatpush1.msra.mxu0 0.0
        %6427 = vmatprep.subr.mxu0 0.0
        %6428 = vmatpush1.msra.mxu0 0.0
        %6429 = vmatprep.subr.mxu0 0.0
        %6430 = vmatpush1.msra.mxu0 0.0
        %6431 = vmatprep.subr.mxu0 0.0
        %6432 = vmatpush1.msra.mxu0 0.0
        %6433 = vmatprep.subr.mxu0 0.0
        %6434 = vmatpush1.msra.mxu0 0.0
        %6435 = vmatprep.subr.mxu0 0.0
        %6436 = vmatpush1.msra.mxu0 0.0
        %6437 = vmatprep.mubr.f32.mxu0 0.0
        %v6438 = vand.u32 %v5625, 4294901760
        %6439 = vmatmul.mubr.f32.gmra.mrb[0].mxu0 %v6438
        %v6440 = vpop.f32.mrb[0].mxu0
        %v6441 = vadd.f32 %v6264, %v6440
        %v6442 = vpop.f32.mrb[0].mxu0
        %v6443 = vadd.f32 %v6266, %v6442
        %6444 = vmatprep.mubr.f32.mxu0 0.0
        %v6445 = vand.u32 %v5626, 4294901760
        %6446 = vmatmul.mubr.f32.gmra.mrb[0].mxu0 %v6445
        %v6447 = vpop.f32.mrb[0].mxu0
        %v6448 = vadd.f32 %v6273, %v6447
        %v6449 = vpop.f32.mrb[0].mxu0
        %v6450 = vadd.f32 %v6275, %v6449
        %6451 = vdwg.mxu0
        %v6452 = vand.u32 %v5628, 4294901760
        %6453 = vmatprep.subr.mxu0 %v6452
        %v6454 = vand.u32 %v5627, 4294901760
        %6455 = vmatpush1.msra.mxu0 %v6454
        %v6456 = vand.u32 %v5630, 4294901760
        %6457 = vmatprep.subr.mxu0 %v6456
        %v6458 = vand.u32 %v5629, 4294901760
        %6459 = vmatpush1.msra.mxu0 %v6458
        %v6460 = vand.u32 %v5632, 4294901760
        %6461 = vmatprep.subr.mxu0 %v6460
        %v6462 = vand.u32 %v5631, 4294901760
        %6463 = vmatpush1.msra.mxu0 %v6462
        %v6464 = vand.u32 %v5634, 4294901760
        %6465 = vmatprep.subr.mxu0 %v6464
        %v6466 = vand.u32 %v5633, 4294901760
        %6467 = vmatpush1.msra.mxu0 %v6466
        %v6468 = vand.u32 %v5636, 4294901760
        %6469 = vmatprep.subr.mxu0 %v6468
        %v6470 = vand.u32 %v5635, 4294901760
        %6471 = vmatpush1.msra.mxu0 %v6470
        %v6472 = vand.u32 %v5638, 4294901760
        %6473 = vmatprep.subr.mxu0 %v6472
        %v6474 = vand.u32 %v5637, 4294901760
        %6475 = vmatpush1.msra.mxu0 %v6474
        %v6476 = vand.u32 %v5640, 4294901760
        %6477 = vmatprep.subr.mxu0 %v6476
        %v6478 = vand.u32 %v5639, 4294901760
        %6479 = vmatpush1.msra.mxu0 %v6478
        %v6480 = vand.u32 %v5642, 4294901760
        %6481 = vmatprep.subr.mxu0 %v6480
        %v6482 = vand.u32 %v5641, 4294901760
        %6483 = vmatpush1.msra.mxu0 %v6482
        %v6484 = vand.u32 %v5644, 4294901760
        %6485 = vmatprep.subr.mxu0 %v6484
        %v6486 = vand.u32 %v5643, 4294901760
        %6487 = vmatpush1.msra.mxu0 %v6486
        %v6488 = vand.u32 %v5646, 4294901760
        %6489 = vmatprep.subr.mxu0 %v6488
        %v6490 = vand.u32 %v5645, 4294901760
        %6491 = vmatpush1.msra.mxu0 %v6490
        %v6492 = vand.u32 %v5648, 4294901760
        %6493 = vmatprep.subr.mxu0 %v6492
        %v6494 = vand.u32 %v5647, 4294901760
        %6495 = vmatpush1.msra.mxu0 %v6494
        %v6496 = vand.u32 %v5650, 4294901760
        %6497 = vmatprep.subr.mxu0 %v6496
        %v6498 = vand.u32 %v5649, 4294901760
        %6499 = vmatpush1.msra.mxu0 %v6498
        %v6500 = vand.u32 %v5652, 4294901760
        %6501 = vmatprep.subr.mxu0 %v6500
        %v6502 = vand.u32 %v5651, 4294901760
        %6503 = vmatpush1.msra.mxu0 %v6502
        %v6504 = vand.u32 %v5654, 4294901760
        %6505 = vmatprep.subr.mxu0 %v6504
        %v6506 = vand.u32 %v5653, 4294901760
        %6507 = vmatpush1.msra.mxu0 %v6506
        %v6508 = vand.u32 %v5656, 4294901760
        %6509 = vmatprep.subr.mxu0 %v6508
        %v6510 = vand.u32 %v5655, 4294901760
        %6511 = vmatpush1.msra.mxu0 %v6510
        %v6512 = vand.u32 %v5658, 4294901760
        %6513 = vmatprep.subr.mxu0 %v6512
        %v6514 = vand.u32 %v5657, 4294901760
        %6515 = vmatpush1.msra.mxu0 %v6514
        %6516 = vmatprep.subr.mxu0 0.0
        %6517 = vmatpush1.msra.mxu0 0.0
        %6518 = vmatprep.subr.mxu0 0.0
        %6519 = vmatpush1.msra.mxu0 0.0
        %6520 = vmatprep.subr.mxu0 0.0
        %6521 = vmatpush1.msra.mxu0 0.0
        %6522 = vmatprep.subr.mxu0 0.0
        %6523 = vmatpush1.msra.mxu0 0.0
        %6524 = vmatprep.subr.mxu0 0.0
        %6525 = vmatpush1.msra.mxu0 0.0
        %6526 = vmatprep.subr.mxu0 0.0
        %6527 = vmatpush1.msra.mxu0 0.0
        %6528 = vmatprep.subr.mxu0 0.0
        %6529 = vmatpush1.msra.mxu0 0.0
        %6530 = vmatprep.subr.mxu0 0.0
        %6531 = vmatpush1.msra.mxu0 0.0
        %6532 = vmatprep.subr.mxu0 0.0
        %6533 = vmatpush1.msra.mxu0 0.0
        %6534 = vmatprep.subr.mxu0 0.0
        %6535 = vmatpush1.msra.mxu0 0.0
        %6536 = vmatprep.subr.mxu0 0.0
        %6537 = vmatpush1.msra.mxu0 0.0
        %6538 = vmatprep.subr.mxu0 0.0
        %6539 = vmatpush1.msra.mxu0 0.0
        %6540 = vmatprep.subr.mxu0 0.0
        %6541 = vmatpush1.msra.mxu0 0.0
        %6542 = vmatprep.subr.mxu0 0.0
        %6543 = vmatpush1.msra.mxu0 0.0
        %6544 = vmatprep.subr.mxu0 0.0
        %6545 = vmatpush1.msra.mxu0 0.0
        %6546 = vmatprep.subr.mxu0 0.0
        %6547 = vmatpush1.msra.mxu0 0.0
        %6548 = vmatprep.mubr.f32.mxu0 0.0
        %v6549 = vand.u32 %v5625, 4294901760
        %6550 = vmatmul.mubr.f32.gmra.mrb[0].mxu0 %v6549
        %v6551 = vpop.f32.mrb[0].mxu0
        %v6552 = vadd.f32 %v6441, %v6551
        %v6553 = vpop.f32.mrb[0].mxu0
        %v6554 = vadd.f32 %v6443, %v6553
        %6555 = vmatprep.mubr.f32.mxu0 0.0
        %v6556 = vand.u32 %v5626, 4294901760
        %6557 = vmatmul.mubr.f32.gmra.mrb[0].mxu0 %v6556
        %v6558 = vpop.f32.mrb[0].mxu0
        %v6559 = vadd.f32 %v6448, %v6558
        %v6560 = vpop.f32.mrb[0].mxu0
        %v6561 = vadd.f32 %v6450, %v6560
        %6562 = vdwg.mxu0
        %v6563 = vadd.f32 %v6554, 1e-06
        %v6564 = vadd.f32 %v6561, 1e-06
        %v6565 = vrcp.pop %v6563
        %v6566 = vmul.f32 1.0, %v6565
        %v6567 = vrcp.pop %v6564
        %v6568 = vmul.f32 1.0, %v6567
        %v6569 = vmul.f32 %v6552, %v6566
        %v6570 = vmul.f32 %v6559, %v6568
        %v6571 = vld [vmem:[#allocation12] sm:$0xff]
        %v6572 = vld [vmem:[#allocation12 + $0x8] sm:$0xff]
        %v6573 = vld [vmem:[#allocation12 + $0x10] sm:$0xff]
        %v6574 = vld [vmem:[#allocation12 + $0x18] sm:$0xff]
        %v6575 = vld [vmem:[#allocation12 + $0x20] sm:$0xff]
        %v6576 = vld [vmem:[#allocation12 + $0x28] sm:$0xff]
        %v6577 = vld [vmem:[#allocation12 + $0x30] sm:$0xff]
        %v6578 = vld [vmem:[#allocation12 + $0x38] sm:$0xff]
        %v6579 = vld [vmem:[#allocation12 + $0x40] sm:$0xff]
        %v6580 = vld [vmem:[#allocation12 + $0x48] sm:$0xff]
        %v6581 = vld [vmem:[#allocation12 + $0x50] sm:$0xff]
        %v6582 = vld [vmem:[#allocation12 + $0x58] sm:$0xff]
        %v6583 = vld [vmem:[#allocation12 + $0x60] sm:$0xff]
        %v6584 = vld [vmem:[#allocation12 + $0x68] sm:$0xff]
        %v6585 = vld [vmem:[#allocation12 + $0x70] sm:$0xff]
        %v6586 = vld [vmem:[#allocation12 + $0x78] sm:$0xff]
        %6587 = vmatprep.subr.mxu0 0.0
        %v6588 = vand.u32 %v6571, 4294901760
        %6589 = vmatpush1.msra.mxu0 %v6588
        %6590 = vmatprep.subr.mxu0 0.0
        %v6591 = vand.u32 %v6572, 4294901760
        %6592 = vmatpush1.msra.mxu0 %v6591
        %6593 = vmatprep.subr.mxu0 0.0
        %v6594 = vand.u32 %v6573, 4294901760
        %6595 = vmatpush1.msra.mxu0 %v6594
        %6596 = vmatprep.subr.mxu0 0.0
        %v6597 = vand.u32 %v6574, 4294901760
        %6598 = vmatpush1.msra.mxu0 %v6597
        %6599 = vmatprep.subr.mxu0 0.0
        %v6600 = vand.u32 %v6575, 4294901760
        %6601 = vmatpush1.msra.mxu0 %v6600
        %6602 = vmatprep.subr.mxu0 0.0
        %v6603 = vand.u32 %v6576, 4294901760
        %6604 = vmatpush1.msra.mxu0 %v6603
        %6605 = vmatprep.subr.mxu0 0.0
        %v6606 = vand.u32 %v6577, 4294901760
        %6607 = vmatpush1.msra.mxu0 %v6606
        %6608 = vmatprep.subr.mxu0 0.0
        %v6609 = vand.u32 %v6578, 4294901760
        %6610 = vmatpush1.msra.mxu0 %v6609
        %6611 = vmatprep.subr.mxu0 0.0
        %v6612 = vand.u32 %v6579, 4294901760
        %6613 = vmatpush1.msra.mxu0 %v6612
        %6614 = vmatprep.subr.mxu0 0.0
        %v6615 = vand.u32 %v6580, 4294901760
        %6616 = vmatpush1.msra.mxu0 %v6615
        %6617 = vmatprep.subr.mxu0 0.0
        %v6618 = vand.u32 %v6581, 4294901760
        %6619 = vmatpush1.msra.mxu0 %v6618
        %6620 = vmatprep.subr.mxu0 0.0
        %v6621 = vand.u32 %v6582, 4294901760
        %6622 = vmatpush1.msra.mxu0 %v6621
        %6623 = vmatprep.subr.mxu0 0.0
        %v6624 = vand.u32 %v6583, 4294901760
        %6625 = vmatpush1.msra.mxu0 %v6624
        %6626 = vmatprep.subr.mxu0 0.0
        %v6627 = vand.u32 %v6584, 4294901760
        %6628 = vmatpush1.msra.mxu0 %v6627
        %6629 = vmatprep.subr.mxu0 0.0
        %v6630 = vand.u32 %v6585, 4294901760
        %6631 = vmatpush1.msra.mxu0 %v6630
        %6632 = vmatprep.subr.mxu0 0.0
        %v6633 = vand.u32 %v6586, 4294901760
        %6634 = vmatpush1.msra.mxu0 %v6633
        %6635 = vmatprep.subr.mxu0 0.0
        %6636 = vmatpush1.msra.mxu0 0.0
        %6637 = vmatprep.subr.mxu0 0.0
        %6638 = vmatpush1.msra.mxu0 0.0
        %6639 = vmatprep.subr.mxu0 0.0
        %6640 = vmatpush1.msra.mxu0 0.0
        %6641 = vmatprep.subr.mxu0 0.0
        %6642 = vmatpush1.msra.mxu0 0.0
        %6643 = vmatprep.subr.mxu0 0.0
        %6644 = vmatpush1.msra.mxu0 0.0
        %6645 = vmatprep.subr.mxu0 0.0
        %6646 = vmatpush1.msra.mxu0 0.0
        %6647 = vmatprep.subr.mxu0 0.0
        %6648 = vmatpush1.msra.mxu0 0.0
        %6649 = vmatprep.subr.mxu0 0.0
        %6650 = vmatpush1.msra.mxu0 0.0
        %6651 = vmatprep.subr.mxu0 0.0
        %6652 = vmatpush1.msra.mxu0 0.0
        %6653 = vmatprep.subr.mxu0 0.0
        %6654 = vmatpush1.msra.mxu0 0.0
        %6655 = vmatprep.subr.mxu0 0.0
        %6656 = vmatpush1.msra.mxu0 0.0
        %6657 = vmatprep.subr.mxu0 0.0
        %6658 = vmatpush1.msra.mxu0 0.0
        %6659 = vmatprep.subr.mxu0 0.0
        %6660 = vmatpush1.msra.mxu0 0.0
        %6661 = vmatprep.subr.mxu0 0.0
        %6662 = vmatpush1.msra.mxu0 0.0
        %6663 = vmatprep.subr.mxu0 0.0
        %6664 = vmatpush1.msra.mxu0 0.0
        %6665 = vmatprep.subr.mxu0 0.0
        %6666 = vmatpush1.msra.mxu0 0.0
        %6667 = vmatprep.mubr.f32.mxu0 0.0
        %v6668 = vand.u32 %v6569, 4294901760
        %v6669 = vsub.f32 %v6569, %v6668
        %v6670 = vand.u32 %v6669, 4294901760
        %v6671 = vsub.f32 %v6669, %v6670
        %v6672 = vand.u32 %v6671, 4294901760
        %6673 = vmatmul.mubr.f32.gmra.mrb[0].mxu0 %v6672
        %v6674 = vpop.f32.mrb[0].mxu0
        %v6675 = vadd.f32 0.0, %v6674
        %v6676 = vpop.f32.mrb[0].mxu0
        %6677 = vmatprep.mubr.f32.mxu0 0.0
        %v6678 = vand.u32 %v6570, 4294901760
        %v6679 = vsub.f32 %v6570, %v6678
        %v6680 = vand.u32 %v6679, 4294901760
        %v6681 = vsub.f32 %v6679, %v6680
        %v6682 = vand.u32 %v6681, 4294901760
        %6683 = vmatmul.mubr.f32.gmra.mrb[0].mxu0 %v6682
        %v6684 = vpop.f32.mrb[0].mxu0
        %v6685 = vadd.f32 0.0, %v6684
        %v6686 = vpop.f32.mrb[0].mxu0
        %6687 = vdwg.mxu0
        %6688 = vmatprep.subr.mxu0 0.0
        %v6689 = vand.u32 %v6571, 4294901760
        %v6690 = vsub.f32 %v6571, %v6689
        %v6691 = vand.u32 %v6690, 4294901760
        %v6692 = vsub.f32 %v6690, %v6691
        %v6693 = vand.u32 %v6692, 4294901760
        %6694 = vmatpush1.msra.mxu0 %v6693
        %6695 = vmatprep.subr.mxu0 0.0
        %v6696 = vand.u32 %v6572, 4294901760
        %v6697 = vsub.f32 %v6572, %v6696
        %v6698 = vand.u32 %v6697, 4294901760
        %v6699 = vsub.f32 %v6697, %v6698
        %v6700 = vand.u32 %v6699, 4294901760
        %6701 = vmatpush1.msra.mxu0 %v6700
        %6702 = vmatprep.subr.mxu0 0.0
        %v6703 = vand.u32 %v6573, 4294901760
        %v6704 = vsub.f32 %v6573, %v6703
        %v6705 = vand.u32 %v6704, 4294901760
        %v6706 = vsub.f32 %v6704, %v6705
        %v6707 = vand.u32 %v6706, 4294901760
        %6708 = vmatpush1.msra.mxu0 %v6707
        %6709 = vmatprep.subr.mxu0 0.0
        %v6710 = vand.u32 %v6574, 4294901760
        %v6711 = vsub.f32 %v6574, %v6710
        %v6712 = vand.u32 %v6711, 4294901760
        %v6713 = vsub.f32 %v6711, %v6712
        %v6714 = vand.u32 %v6713, 4294901760
        %6715 = vmatpush1.msra.mxu0 %v6714
        %6716 = vmatprep.subr.mxu0 0.0
        %v6717 = vand.u32 %v6575, 4294901760
        %v6718 = vsub.f32 %v6575, %v6717
        %v6719 = vand.u32 %v6718, 4294901760
        %v6720 = vsub.f32 %v6718, %v6719
        %v6721 = vand.u32 %v6720, 4294901760
        %6722 = vmatpush1.msra.mxu0 %v6721
        %6723 = vmatprep.subr.mxu0 0.0
        %v6724 = vand.u32 %v6576, 4294901760
        %v6725 = vsub.f32 %v6576, %v6724
        %v6726 = vand.u32 %v6725, 4294901760
        %v6727 = vsub.f32 %v6725, %v6726
        %v6728 = vand.u32 %v6727, 4294901760
        %6729 = vmatpush1.msra.mxu0 %v6728
        %6730 = vmatprep.subr.mxu0 0.0
        %v6731 = vand.u32 %v6577, 4294901760
        %v6732 = vsub.f32 %v6577, %v6731
        %v6733 = vand.u32 %v6732, 4294901760
        %v6734 = vsub.f32 %v6732, %v6733
        %v6735 = vand.u32 %v6734, 4294901760
        %6736 = vmatpush1.msra.mxu0 %v6735
        %6737 = vmatprep.subr.mxu0 0.0
        %v6738 = vand.u32 %v6578, 4294901760
        %v6739 = vsub.f32 %v6578, %v6738
        %v6740 = vand.u32 %v6739, 4294901760
        %v6741 = vsub.f32 %v6739, %v6740
        %v6742 = vand.u32 %v6741, 4294901760
        %6743 = vmatpush1.msra.mxu0 %v6742
        %6744 = vmatprep.subr.mxu0 0.0
        %v6745 = vand.u32 %v6579, 4294901760
        %v6746 = vsub.f32 %v6579, %v6745
        %v6747 = vand.u32 %v6746, 4294901760
        %v6748 = vsub.f32 %v6746, %v6747
        %v6749 = vand.u32 %v6748, 4294901760
        %6750 = vmatpush1.msra.mxu0 %v6749
        %6751 = vmatprep.subr.mxu0 0.0
        %v6752 = vand.u32 %v6580, 4294901760
        %v6753 = vsub.f32 %v6580, %v6752
        %v6754 = vand.u32 %v6753, 4294901760
        %v6755 = vsub.f32 %v6753, %v6754
        %v6756 = vand.u32 %v6755, 4294901760
        %6757 = vmatpush1.msra.mxu0 %v6756
        %6758 = vmatprep.subr.mxu0 0.0
        %v6759 = vand.u32 %v6581, 4294901760
        %v6760 = vsub.f32 %v6581, %v6759
        %v6761 = vand.u32 %v6760, 4294901760
        %v6762 = vsub.f32 %v6760, %v6761
        %v6763 = vand.u32 %v6762, 4294901760
        %6764 = vmatpush1.msra.mxu0 %v6763
        %6765 = vmatprep.subr.mxu0 0.0
        %v6766 = vand.u32 %v6582, 4294901760
        %v6767 = vsub.f32 %v6582, %v6766
        %v6768 = vand.u32 %v6767, 4294901760
        %v6769 = vsub.f32 %v6767, %v6768
        %v6770 = vand.u32 %v6769, 4294901760
        %6771 = vmatpush1.msra.mxu0 %v6770
        %6772 = vmatprep.subr.mxu0 0.0
        %v6773 = vand.u32 %v6583, 4294901760
        %v6774 = vsub.f32 %v6583, %v6773
        %v6775 = vand.u32 %v6774, 4294901760
        %v6776 = vsub.f32 %v6774, %v6775
        %v6777 = vand.u32 %v6776, 4294901760
        %6778 = vmatpush1.msra.mxu0 %v6777
        %6779 = vmatprep.subr.mxu0 0.0
        %v6780 = vand.u32 %v6584, 4294901760
        %v6781 = vsub.f32 %v6584, %v6780
        %v6782 = vand.u32 %v6781, 4294901760
        %v6783 = vsub.f32 %v6781, %v6782
        %v6784 = vand.u32 %v6783, 4294901760
        %6785 = vmatpush1.msra.mxu0 %v6784
        %6786 = vmatprep.subr.mxu0 0.0
        %v6787 = vand.u32 %v6585, 4294901760
        %v6788 = vsub.f32 %v6585, %v6787
        %v6789 = vand.u32 %v6788, 4294901760
        %v6790 = vsub.f32 %v6788, %v6789
        %v6791 = vand.u32 %v6790, 4294901760
        %6792 = vmatpush1.msra.mxu0 %v6791
        %6793 = vmatprep.subr.mxu0 0.0
        %v6794 = vand.u32 %v6586, 4294901760
        %v6795 = vsub.f32 %v6586, %v6794
        %v6796 = vand.u32 %v6795, 4294901760
        %v6797 = vsub.f32 %v6795, %v6796
        %v6798 = vand.u32 %v6797, 4294901760
        %6799 = vmatpush1.msra.mxu0 %v6798
        %6800 = vmatprep.subr.mxu0 0.0
        %6801 = vmatpush1.msra.mxu0 0.0
        %6802 = vmatprep.subr.mxu0 0.0
        %6803 = vmatpush1.msra.mxu0 0.0
        %6804 = vmatprep.subr.mxu0 0.0
        %6805 = vmatpush1.msra.mxu0 0.0
        %6806 = vmatprep.subr.mxu0 0.0
        %6807 = vmatpush1.msra.mxu0 0.0
        %6808 = vmatprep.subr.mxu0 0.0
        %6809 = vmatpush1.msra.mxu0 0.0
        %6810 = vmatprep.subr.mxu0 0.0
        %6811 = vmatpush1.msra.mxu0 0.0
        %6812 = vmatprep.subr.mxu0 0.0
        %6813 = vmatpush1.msra.mxu0 0.0
        %6814 = vmatprep.subr.mxu0 0.0
        %6815 = vmatpush1.msra.mxu0 0.0
        %6816 = vmatprep.subr.mxu0 0.0
        %6817 = vmatpush1.msra.mxu0 0.0
        %6818 = vmatprep.subr.mxu0 0.0
        %6819 = vmatpush1.msra.mxu0 0.0
        %6820 = vmatprep.subr.mxu0 0.0
        %6821 = vmatpush1.msra.mxu0 0.0
        %6822 = vmatprep.subr.mxu0 0.0
        %6823 = vmatpush1.msra.mxu0 0.0
        %6824 = vmatprep.subr.mxu0 0.0
        %6825 = vmatpush1.msra.mxu0 0.0
        %6826 = vmatprep.subr.mxu0 0.0
        %6827 = vmatpush1.msra.mxu0 0.0
        %6828 = vmatprep.subr.mxu0 0.0
        %6829 = vmatpush1.msra.mxu0 0.0
        %6830 = vmatprep.subr.mxu0 0.0
        %6831 = vmatpush1.msra.mxu0 0.0
        %6832 = vmatprep.mubr.f32.mxu0 0.0
        %v6833 = vand.u32 %v6569, 4294901760
        %6834 = vmatmul.mubr.f32.gmra.mrb[0].mxu0 %v6833
        %v6835 = vpop.f32.mrb[0].mxu0
        %v6836 = vadd.f32 %v6675, %v6835
        %v6837 = vpop.f32.mrb[0].mxu0
        %6838 = vmatprep.mubr.f32.mxu0 0.0
        %v6839 = vand.u32 %v6570, 4294901760
        %6840 = vmatmul.mubr.f32.gmra.mrb[0].mxu0 %v6839
        %v6841 = vpop.f32.mrb[0].mxu0
        %v6842 = vadd.f32 %v6685, %v6841
        %v6843 = vpop.f32.mrb[0].mxu0
        %6844 = vdwg.mxu0
        %6845 = vmatprep.subr.mxu0 0.0
        %v6846 = vand.u32 %v6571, 4294901760
        %v6847 = vsub.f32 %v6571, %v6846
        %6848 = vmatpush1.msra.mxu0 %v6847
        %6849 = vmatprep.subr.mxu0 0.0
        %v6850 = vand.u32 %v6572, 4294901760
        %v6851 = vsub.f32 %v6572, %v6850
        %6852 = vmatpush1.msra.mxu0 %v6851
        %6853 = vmatprep.subr.mxu0 0.0
        %v6854 = vand.u32 %v6573, 4294901760
        %v6855 = vsub.f32 %v6573, %v6854
        %6856 = vmatpush1.msra.mxu0 %v6855
        %6857 = vmatprep.subr.mxu0 0.0
        %v6858 = vand.u32 %v6574, 4294901760
        %v6859 = vsub.f32 %v6574, %v6858
        %6860 = vmatpush1.msra.mxu0 %v6859
        %6861 = vmatprep.subr.mxu0 0.0
        %v6862 = vand.u32 %v6575, 4294901760
        %v6863 = vsub.f32 %v6575, %v6862
        %6864 = vmatpush1.msra.mxu0 %v6863
        %6865 = vmatprep.subr.mxu0 0.0
        %v6866 = vand.u32 %v6576, 4294901760
        %v6867 = vsub.f32 %v6576, %v6866
        %6868 = vmatpush1.msra.mxu0 %v6867
        %6869 = vmatprep.subr.mxu0 0.0
        %v6870 = vand.u32 %v6577, 4294901760
        %v6871 = vsub.f32 %v6577, %v6870
        %6872 = vmatpush1.msra.mxu0 %v6871
        %6873 = vmatprep.subr.mxu0 0.0
        %v6874 = vand.u32 %v6578, 4294901760
        %v6875 = vsub.f32 %v6578, %v6874
        %6876 = vmatpush1.msra.mxu0 %v6875
        %6877 = vmatprep.subr.mxu0 0.0
        %v6878 = vand.u32 %v6579, 4294901760
        %v6879 = vsub.f32 %v6579, %v6878
        %6880 = vmatpush1.msra.mxu0 %v6879
        %6881 = vmatprep.subr.mxu0 0.0
        %v6882 = vand.u32 %v6580, 4294901760
        %v6883 = vsub.f32 %v6580, %v6882
        %6884 = vmatpush1.msra.mxu0 %v6883
        %6885 = vmatprep.subr.mxu0 0.0
        %v6886 = vand.u32 %v6581, 4294901760
        %v6887 = vsub.f32 %v6581, %v6886
        %6888 = vmatpush1.msra.mxu0 %v6887
        %6889 = vmatprep.subr.mxu0 0.0
        %v6890 = vand.u32 %v6582, 4294901760
        %v6891 = vsub.f32 %v6582, %v6890
        %6892 = vmatpush1.msra.mxu0 %v6891
        %6893 = vmatprep.subr.mxu0 0.0
        %v6894 = vand.u32 %v6583, 4294901760
        %v6895 = vsub.f32 %v6583, %v6894
        %6896 = vmatpush1.msra.mxu0 %v6895
        %6897 = vmatprep.subr.mxu0 0.0
        %v6898 = vand.u32 %v6584, 4294901760
        %v6899 = vsub.f32 %v6584, %v6898
        %6900 = vmatpush1.msra.mxu0 %v6899
        %6901 = vmatprep.subr.mxu0 0.0
        %v6902 = vand.u32 %v6585, 4294901760
        %v6903 = vsub.f32 %v6585, %v6902
        %6904 = vmatpush1.msra.mxu0 %v6903
        %6905 = vmatprep.subr.mxu0 0.0
        %v6906 = vand.u32 %v6586, 4294901760
        %v6907 = vsub.f32 %v6586, %v6906
        %6908 = vmatpush1.msra.mxu0 %v6907
        %6909 = vmatprep.subr.mxu0 0.0
        %6910 = vmatpush1.msra.mxu0 0.0
        %6911 = vmatprep.subr.mxu0 0.0
        %6912 = vmatpush1.msra.mxu0 0.0
        %6913 = vmatprep.subr.mxu0 0.0
        %6914 = vmatpush1.msra.mxu0 0.0
        %6915 = vmatprep.subr.mxu0 0.0
        %6916 = vmatpush1.msra.mxu0 0.0
        %6917 = vmatprep.subr.mxu0 0.0
        %6918 = vmatpush1.msra.mxu0 0.0
        %6919 = vmatprep.subr.mxu0 0.0
        %6920 = vmatpush1.msra.mxu0 0.0
        %6921 = vmatprep.subr.mxu0 0.0
        %6922 = vmatpush1.msra.mxu0 0.0
        %6923 = vmatprep.subr.mxu0 0.0
        %6924 = vmatpush1.msra.mxu0 0.0
        %6925 = vmatprep.subr.mxu0 0.0
        %6926 = vmatpush1.msra.mxu0 0.0
        %6927 = vmatprep.subr.mxu0 0.0
        %6928 = vmatpush1.msra.mxu0 0.0
        %6929 = vmatprep.subr.mxu0 0.0
        %6930 = vmatpush1.msra.mxu0 0.0
        %6931 = vmatprep.subr.mxu0 0.0
        %6932 = vmatpush1.msra.mxu0 0.0
        %6933 = vmatprep.subr.mxu0 0.0
        %6934 = vmatpush1.msra.mxu0 0.0
        %6935 = vmatprep.subr.mxu0 0.0
        %6936 = vmatpush1.msra.mxu0 0.0
        %6937 = vmatprep.subr.mxu0 0.0
        %6938 = vmatpush1.msra.mxu0 0.0
        %6939 = vmatprep.subr.mxu0 0.0
        %6940 = vmatpush1.msra.mxu0 0.0
        %6941 = vmatprep.mubr.f32.mxu0 0.0
        %v6942 = vand.u32 %v6569, 4294901760
        %v6943 = vsub.f32 %v6569, %v6942
        %6944 = vmatmul.mubr.f32.gmra.mrb[0].mxu0 %v6943
        %v6945 = vpop.f32.mrb[0].mxu0
        %v6946 = vadd.f32 %v6836, %v6945
        %v6947 = vpop.f32.mrb[0].mxu0
        %6948 = vmatprep.mubr.f32.mxu0 0.0
        %v6949 = vand.u32 %v6570, 4294901760
        %v6950 = vsub.f32 %v6570, %v6949
        %6951 = vmatmul.mubr.f32.gmra.mrb[0].mxu0 %v6950
        %v6952 = vpop.f32.mrb[0].mxu0
        %v6953 = vadd.f32 %v6842, %v6952
        %v6954 = vpop.f32.mrb[0].mxu0
        %6955 = vdwg.mxu0
        %6956 = vmatprep.subr.mxu0 0.0
        %v6957 = vand.u32 %v6571, 4294901760
        %6958 = vmatpush1.msra.mxu0 %v6957
        %6959 = vmatprep.subr.mxu0 0.0
        %v6960 = vand.u32 %v6572, 4294901760
        %6961 = vmatpush1.msra.mxu0 %v6960
        %6962 = vmatprep.subr.mxu0 0.0
        %v6963 = vand.u32 %v6573, 4294901760
        %6964 = vmatpush1.msra.mxu0 %v6963
        %6965 = vmatprep.subr.mxu0 0.0
        %v6966 = vand.u32 %v6574, 4294901760
        %6967 = vmatpush1.msra.mxu0 %v6966
        %6968 = vmatprep.subr.mxu0 0.0
        %v6969 = vand.u32 %v6575, 4294901760
        %6970 = vmatpush1.msra.mxu0 %v6969
        %6971 = vmatprep.subr.mxu0 0.0
        %v6972 = vand.u32 %v6576, 4294901760
        %6973 = vmatpush1.msra.mxu0 %v6972
        %6974 = vmatprep.subr.mxu0 0.0
        %v6975 = vand.u32 %v6577, 4294901760
        %6976 = vmatpush1.msra.mxu0 %v6975
        %6977 = vmatprep.subr.mxu0 0.0
        %v6978 = vand.u32 %v6578, 4294901760
        %6979 = vmatpush1.msra.mxu0 %v6978
        %6980 = vmatprep.subr.mxu0 0.0
        %v6981 = vand.u32 %v6579, 4294901760
        %6982 = vmatpush1.msra.mxu0 %v6981
        %6983 = vmatprep.subr.mxu0 0.0
        %v6984 = vand.u32 %v6580, 4294901760
        %6985 = vmatpush1.msra.mxu0 %v6984
        %6986 = vmatprep.subr.mxu0 0.0
        %v6987 = vand.u32 %v6581, 4294901760
        %6988 = vmatpush1.msra.mxu0 %v6987
        %6989 = vmatprep.subr.mxu0 0.0
        %v6990 = vand.u32 %v6582, 4294901760
        %6991 = vmatpush1.msra.mxu0 %v6990
        %6992 = vmatprep.subr.mxu0 0.0
        %v6993 = vand.u32 %v6583, 4294901760
        %6994 = vmatpush1.msra.mxu0 %v6993
        %6995 = vmatprep.subr.mxu0 0.0
        %v6996 = vand.u32 %v6584, 4294901760
        %6997 = vmatpush1.msra.mxu0 %v6996
        %6998 = vmatprep.subr.mxu0 0.0
        %v6999 = vand.u32 %v6585, 4294901760
        %7000 = vmatpush1.msra.mxu0 %v6999
        %7001 = vmatprep.subr.mxu0 0.0
        %v7002 = vand.u32 %v6586, 4294901760
        %7003 = vmatpush1.msra.mxu0 %v7002
        %7004 = vmatprep.subr.mxu0 0.0
        %7005 = vmatpush1.msra.mxu0 0.0
        %7006 = vmatprep.subr.mxu0 0.0
        %7007 = vmatpush1.msra.mxu0 0.0
        %7008 = vmatprep.subr.mxu0 0.0
        %7009 = vmatpush1.msra.mxu0 0.0
        %7010 = vmatprep.subr.mxu0 0.0
        %7011 = vmatpush1.msra.mxu0 0.0
        %7012 = vmatprep.subr.mxu0 0.0
        %7013 = vmatpush1.msra.mxu0 0.0
        %7014 = vmatprep.subr.mxu0 0.0
        %7015 = vmatpush1.msra.mxu0 0.0
        %7016 = vmatprep.subr.mxu0 0.0
        %7017 = vmatpush1.msra.mxu0 0.0
        %7018 = vmatprep.subr.mxu0 0.0
        %7019 = vmatpush1.msra.mxu0 0.0
        %7020 = vmatprep.subr.mxu0 0.0
        %7021 = vmatpush1.msra.mxu0 0.0
        %7022 = vmatprep.subr.mxu0 0.0
        %7023 = vmatpush1.msra.mxu0 0.0
        %7024 = vmatprep.subr.mxu0 0.0
        %7025 = vmatpush1.msra.mxu0 0.0
        %7026 = vmatprep.subr.mxu0 0.0
        %7027 = vmatpush1.msra.mxu0 0.0
        %7028 = vmatprep.subr.mxu0 0.0
        %7029 = vmatpush1.msra.mxu0 0.0
        %7030 = vmatprep.subr.mxu0 0.0
        %7031 = vmatpush1.msra.mxu0 0.0
        %7032 = vmatprep.subr.mxu0 0.0
        %7033 = vmatpush1.msra.mxu0 0.0
        %7034 = vmatprep.subr.mxu0 0.0
        %7035 = vmatpush1.msra.mxu0 0.0
        %7036 = vmatprep.mubr.f32.mxu0 0.0
        %v7037 = vand.u32 %v6569, 4294901760
        %v7038 = vsub.f32 %v6569, %v7037
        %v7039 = vand.u32 %v7038, 4294901760
        %7040 = vmatmul.mubr.f32.gmra.mrb[0].mxu0 %v7039
        %v7041 = vpop.f32.mrb[0].mxu0
        %v7042 = vadd.f32 %v6946, %v7041
        %v7043 = vpop.f32.mrb[0].mxu0
        %7044 = vmatprep.mubr.f32.mxu0 0.0
        %v7045 = vand.u32 %v6570, 4294901760
        %v7046 = vsub.f32 %v6570, %v7045
        %v7047 = vand.u32 %v7046, 4294901760
        %7048 = vmatmul.mubr.f32.gmra.mrb[0].mxu0 %v7047
        %v7049 = vpop.f32.mrb[0].mxu0
        %v7050 = vadd.f32 %v6953, %v7049
        %v7051 = vpop.f32.mrb[0].mxu0
        %7052 = vdwg.mxu0
        %7053 = vmatprep.subr.mxu0 0.0
        %v7054 = vand.u32 %v6571, 4294901760
        %v7055 = vsub.f32 %v6571, %v7054
        %v7056 = vand.u32 %v7055, 4294901760
        %7057 = vmatpush1.msra.mxu0 %v7056
        %7058 = vmatprep.subr.mxu0 0.0
        %v7059 = vand.u32 %v6572, 4294901760
        %v7060 = vsub.f32 %v6572, %v7059
        %v7061 = vand.u32 %v7060, 4294901760
        %7062 = vmatpush1.msra.mxu0 %v7061
        %7063 = vmatprep.subr.mxu0 0.0
        %v7064 = vand.u32 %v6573, 4294901760
        %v7065 = vsub.f32 %v6573, %v7064
        %v7066 = vand.u32 %v7065, 4294901760
        %7067 = vmatpush1.msra.mxu0 %v7066
        %7068 = vmatprep.subr.mxu0 0.0
        %v7069 = vand.u32 %v6574, 4294901760
        %v7070 = vsub.f32 %v6574, %v7069
        %v7071 = vand.u32 %v7070, 4294901760
        %7072 = vmatpush1.msra.mxu0 %v7071
        %7073 = vmatprep.subr.mxu0 0.0
        %v7074 = vand.u32 %v6575, 4294901760
        %v7075 = vsub.f32 %v6575, %v7074
        %v7076 = vand.u32 %v7075, 4294901760
        %7077 = vmatpush1.msra.mxu0 %v7076
        %7078 = vmatprep.subr.mxu0 0.0
        %v7079 = vand.u32 %v6576, 4294901760
        %v7080 = vsub.f32 %v6576, %v7079
        %v7081 = vand.u32 %v7080, 4294901760
        %7082 = vmatpush1.msra.mxu0 %v7081
        %7083 = vmatprep.subr.mxu0 0.0
        %v7084 = vand.u32 %v6577, 4294901760
        %v7085 = vsub.f32 %v6577, %v7084
        %v7086 = vand.u32 %v7085, 4294901760
        %7087 = vmatpush1.msra.mxu0 %v7086
        %7088 = vmatprep.subr.mxu0 0.0
        %v7089 = vand.u32 %v6578, 4294901760
        %v7090 = vsub.f32 %v6578, %v7089
        %v7091 = vand.u32 %v7090, 4294901760
        %7092 = vmatpush1.msra.mxu0 %v7091
        %7093 = vmatprep.subr.mxu0 0.0
        %v7094 = vand.u32 %v6579, 4294901760
        %v7095 = vsub.f32 %v6579, %v7094
        %v7096 = vand.u32 %v7095, 4294901760
        %7097 = vmatpush1.msra.mxu0 %v7096
        %7098 = vmatprep.subr.mxu0 0.0
        %v7099 = vand.u32 %v6580, 4294901760
        %v7100 = vsub.f32 %v6580, %v7099
        %v7101 = vand.u32 %v7100, 4294901760
        %7102 = vmatpush1.msra.mxu0 %v7101
        %7103 = vmatprep.subr.mxu0 0.0
        %v7104 = vand.u32 %v6581, 4294901760
        %v7105 = vsub.f32 %v6581, %v7104
        %v7106 = vand.u32 %v7105, 4294901760
        %7107 = vmatpush1.msra.mxu0 %v7106
        %7108 = vmatprep.subr.mxu0 0.0
        %v7109 = vand.u32 %v6582, 4294901760
        %v7110 = vsub.f32 %v6582, %v7109
        %v7111 = vand.u32 %v7110, 4294901760
        %7112 = vmatpush1.msra.mxu0 %v7111
        %7113 = vmatprep.subr.mxu0 0.0
        %v7114 = vand.u32 %v6583, 4294901760
        %v7115 = vsub.f32 %v6583, %v7114
        %v7116 = vand.u32 %v7115, 4294901760
        %7117 = vmatpush1.msra.mxu0 %v7116
        %7118 = vmatprep.subr.mxu0 0.0
        %v7119 = vand.u32 %v6584, 4294901760
        %v7120 = vsub.f32 %v6584, %v7119
        %v7121 = vand.u32 %v7120, 4294901760
        %7122 = vmatpush1.msra.mxu0 %v7121
        %7123 = vmatprep.subr.mxu0 0.0
        %v7124 = vand.u32 %v6585, 4294901760
        %v7125 = vsub.f32 %v6585, %v7124
        %v7126 = vand.u32 %v7125, 4294901760
        %7127 = vmatpush1.msra.mxu0 %v7126
        %7128 = vmatprep.subr.mxu0 0.0
        %v7129 = vand.u32 %v6586, 4294901760
        %v7130 = vsub.f32 %v6586, %v7129
        %v7131 = vand.u32 %v7130, 4294901760
        %7132 = vmatpush1.msra.mxu0 %v7131
        %7133 = vmatprep.subr.mxu0 0.0
        %7134 = vmatpush1.msra.mxu0 0.0
        %7135 = vmatprep.subr.mxu0 0.0
        %7136 = vmatpush1.msra.mxu0 0.0
        %7137 = vmatprep.subr.mxu0 0.0
        %7138 = vmatpush1.msra.mxu0 0.0
        %7139 = vmatprep.subr.mxu0 0.0
        %7140 = vmatpush1.msra.mxu0 0.0
        %7141 = vmatprep.subr.mxu0 0.0
        %7142 = vmatpush1.msra.mxu0 0.0
        %7143 = vmatprep.subr.mxu0 0.0
        %7144 = vmatpush1.msra.mxu0 0.0
        %7145 = vmatprep.subr.mxu0 0.0
        %7146 = vmatpush1.msra.mxu0 0.0
        %7147 = vmatprep.subr.mxu0 0.0
        %7148 = vmatpush1.msra.mxu0 0.0
        %7149 = vmatprep.subr.mxu0 0.0
        %7150 = vmatpush1.msra.mxu0 0.0
        %7151 = vmatprep.subr.mxu0 0.0
        %7152 = vmatpush1.msra.mxu0 0.0
        %7153 = vmatprep.subr.mxu0 0.0
        %7154 = vmatpush1.msra.mxu0 0.0
        %7155 = vmatprep.subr.mxu0 0.0
        %7156 = vmatpush1.msra.mxu0 0.0
        %7157 = vmatprep.subr.mxu0 0.0
        %7158 = vmatpush1.msra.mxu0 0.0
        %7159 = vmatprep.subr.mxu0 0.0
        %7160 = vmatpush1.msra.mxu0 0.0
        %7161 = vmatprep.subr.mxu0 0.0
        %7162 = vmatpush1.msra.mxu0 0.0
        %7163 = vmatprep.subr.mxu0 0.0
        %7164 = vmatpush1.msra.mxu0 0.0
        %7165 = vmatprep.mubr.f32.mxu0 0.0
        %v7166 = vand.u32 %v6569, 4294901760
        %7167 = vmatmul.mubr.f32.gmra.mrb[0].mxu0 %v7166
        %v7168 = vpop.f32.mrb[0].mxu0
        %v7169 = vadd.f32 %v7042, %v7168
        %v7170 = vpop.f32.mrb[0].mxu0
        %7171 = vmatprep.mubr.f32.mxu0 0.0
        %v7172 = vand.u32 %v6570, 4294901760
        %7173 = vmatmul.mubr.f32.gmra.mrb[0].mxu0 %v7172
        %v7174 = vpop.f32.mrb[0].mxu0
        %v7175 = vadd.f32 %v7050, %v7174
        %v7176 = vpop.f32.mrb[0].mxu0
        %7177 = vdwg.mxu0
        %7178 = vmatprep.subr.mxu0 0.0
        %v7179 = vand.u32 %v6571, 4294901760
        %7180 = vmatpush1.msra.mxu0 %v7179
        %7181 = vmatprep.subr.mxu0 0.0
        %v7182 = vand.u32 %v6572, 4294901760
        %7183 = vmatpush1.msra.mxu0 %v7182
        %7184 = vmatprep.subr.mxu0 0.0
        %v7185 = vand.u32 %v6573, 4294901760
        %7186 = vmatpush1.msra.mxu0 %v7185
        %7187 = vmatprep.subr.mxu0 0.0
        %v7188 = vand.u32 %v6574, 4294901760
        %7189 = vmatpush1.msra.mxu0 %v7188
        %7190 = vmatprep.subr.mxu0 0.0
        %v7191 = vand.u32 %v6575, 4294901760
        %7192 = vmatpush1.msra.mxu0 %v7191
        %7193 = vmatprep.subr.mxu0 0.0
        %v7194 = vand.u32 %v6576, 4294901760
        %7195 = vmatpush1.msra.mxu0 %v7194
        %7196 = vmatprep.subr.mxu0 0.0
        %v7197 = vand.u32 %v6577, 4294901760
        %7198 = vmatpush1.msra.mxu0 %v7197
        %7199 = vmatprep.subr.mxu0 0.0
        %v7200 = vand.u32 %v6578, 4294901760
        %7201 = vmatpush1.msra.mxu0 %v7200
        %7202 = vmatprep.subr.mxu0 0.0
        %v7203 = vand.u32 %v6579, 4294901760
        %7204 = vmatpush1.msra.mxu0 %v7203
        %7205 = vmatprep.subr.mxu0 0.0
        %v7206 = vand.u32 %v6580, 4294901760
        %7207 = vmatpush1.msra.mxu0 %v7206
        %7208 = vmatprep.subr.mxu0 0.0
        %v7209 = vand.u32 %v6581, 4294901760
        %7210 = vmatpush1.msra.mxu0 %v7209
        %7211 = vmatprep.subr.mxu0 0.0
        %v7212 = vand.u32 %v6582, 4294901760
        %7213 = vmatpush1.msra.mxu0 %v7212
        %7214 = vmatprep.subr.mxu0 0.0
        %v7215 = vand.u32 %v6583, 4294901760
        %7216 = vmatpush1.msra.mxu0 %v7215
        %7217 = vmatprep.subr.mxu0 0.0
        %v7218 = vand.u32 %v6584, 4294901760
        %7219 = vmatpush1.msra.mxu0 %v7218
        %7220 = vmatprep.subr.mxu0 0.0
        %v7221 = vand.u32 %v6585, 4294901760
        %7222 = vmatpush1.msra.mxu0 %v7221
        %7223 = vmatprep.subr.mxu0 0.0
        %v7224 = vand.u32 %v6586, 4294901760
        %7225 = vmatpush1.msra.mxu0 %v7224
        %7226 = vmatprep.subr.mxu0 0.0
        %7227 = vmatpush1.msra.mxu0 0.0
        %7228 = vmatprep.subr.mxu0 0.0
        %7229 = vmatpush1.msra.mxu0 0.0
        %7230 = vmatprep.subr.mxu0 0.0
        %7231 = vmatpush1.msra.mxu0 0.0
        %7232 = vmatprep.subr.mxu0 0.0
        %7233 = vmatpush1.msra.mxu0 0.0
        %7234 = vmatprep.subr.mxu0 0.0
        %7235 = vmatpush1.msra.mxu0 0.0
        %7236 = vmatprep.subr.mxu0 0.0
        %7237 = vmatpush1.msra.mxu0 0.0
        %7238 = vmatprep.subr.mxu0 0.0
        %7239 = vmatpush1.msra.mxu0 0.0
        %7240 = vmatprep.subr.mxu0 0.0
        %7241 = vmatpush1.msra.mxu0 0.0
        %7242 = vmatprep.subr.mxu0 0.0
        %7243 = vmatpush1.msra.mxu0 0.0
        %7244 = vmatprep.subr.mxu0 0.0
        %7245 = vmatpush1.msra.mxu0 0.0
        %7246 = vmatprep.subr.mxu0 0.0
        %7247 = vmatpush1.msra.mxu0 0.0
        %7248 = vmatprep.subr.mxu0 0.0
        %7249 = vmatpush1.msra.mxu0 0.0
        %7250 = vmatprep.subr.mxu0 0.0
        %7251 = vmatpush1.msra.mxu0 0.0
        %7252 = vmatprep.subr.mxu0 0.0
        %7253 = vmatpush1.msra.mxu0 0.0
        %7254 = vmatprep.subr.mxu0 0.0
        %7255 = vmatpush1.msra.mxu0 0.0
        %7256 = vmatprep.subr.mxu0 0.0
        %7257 = vmatpush1.msra.mxu0 0.0
        %7258 = vmatprep.mubr.f32.mxu0 0.0
        %v7259 = vand.u32 %v6569, 4294901760
        %7260 = vmatmul.mubr.f32.gmra.mrb[0].mxu0 %v7259
        %v7261 = vpop.f32.mrb[0].mxu0
        %v7262 = vadd.f32 %v7169, %v7261
        %v7263 = vpop.f32.mrb[0].mxu0
        %7264 = vmatprep.mubr.f32.mxu0 0.0
        %v7265 = vand.u32 %v6570, 4294901760
        %7266 = vmatmul.mubr.f32.gmra.mrb[0].mxu0 %v7265
        %v7267 = vpop.f32.mrb[0].mxu0
        %v7268 = vadd.f32 %v7175, %v7267
        %v7269 = vpop.f32.mrb[0].mxu0
        %7270 = vdwg.mxu0
        %v7271 = vld [vmem:[%s6] sm:$0x1]
        %v7272 = vld [vmem:[%s7] sm:$0x1]
        %7273 = vadd.xlane.f32.xlu0 %v7262
        %v7274 = vpop.xlane.xlu0 %7273
        %7275 = vadd.xlane.f32.xlu0 %v7268
        %v7276 = vpop.xlane.xlu0 %7275
        %v7277 = vrcp.pop 128.0
        %v7278 = vmul.f32 %v7274, %v7277
        %v7279 = vmul.f32 %v7276, %v7277
        %v7280 = vmul.f32 %v7262, %v7262
        %v7281 = vmul.f32 %v7268, %v7268
        %7282 = vadd.xlane.f32.xlu0 %v7280
        %v7283 = vpop.xlane.xlu0 %7282
        %7284 = vadd.xlane.f32.xlu0 %v7281
        %v7285 = vpop.xlane.xlu0 %7284
        %v7286 = vmul.f32 %v7283, %v7277
        %v7287 = vmul.f32 %v7285, %v7277
        %v7288 = vmul.f32 %v7278, %v7278
        %v7289 = vmul.f32 %v7279, %v7279
        %v7290 = vsub.f32 %v7286, %v7288
        %v7291 = vsub.f32 %v7287, %v7289
        %v7292 = vmax.f32 %v7290, 0.0
        %v7293 = vmax.f32 %v7291, 0.0
        %v7294 = vsub.f32 %v7262, %v7278
        %v7295 = vsub.f32 %v7268, %v7279
        %v7296 = vadd.f32 %v7292, 1e-05
        %v7297 = vadd.f32 %v7293, 1e-05
        %v7298 = vrsqrt.pop %v7296
        %v7299 = vrsqrt.pop %v7297
        %v7300 = vmul.f32 %v7294, %v7298
        %v7301 = vmul.f32 %v7295, %v7299
        %v7303 = vlaneseq
        %v7304 = vshrl.u32 %v7303, 7
        %v7305 = vsub.s32 0, %v7304
        %v7306 = vrot.slane %v7271, %v7305
        %v7308 = vmul.f32 %v7300, %v7306
        %v7309 = vmul.f32 %v7301, %v7306
        %v7311 = vlaneseq
        %v7312 = vshrl.u32 %v7311, 7
        %v7313 = vsub.s32 0, %v7312
        %v7314 = vrot.slane %v7272, %v7313
        %v7316 = vadd.f32 %v7308, %v7314
        %v7317 = vadd.f32 %v7309, %v7314
        %v7318 = vld [vmem:[#allocation14] sm:$0xff]
        %v7319 = vld [vmem:[#allocation14 + $0x8] sm:$0xff]
        %v7320 = vld [vmem:[#allocation14 + $0x10] sm:$0xff]
        %v7321 = vld [vmem:[#allocation14 + $0x18] sm:$0xff]
        %v7322 = vld [vmem:[#allocation14 + $0x20] sm:$0xff]
        %v7323 = vld [vmem:[#allocation14 + $0x28] sm:$0xff]
        %v7324 = vld [vmem:[#allocation14 + $0x30] sm:$0xff]
        %v7325 = vld [vmem:[#allocation14 + $0x38] sm:$0xff]
        %v7326 = vld [vmem:[#allocation14 + $0x40] sm:$0xff]
        %v7327 = vld [vmem:[#allocation14 + $0x48] sm:$0xff]
        %v7328 = vld [vmem:[#allocation14 + $0x50] sm:$0xff]
        %v7329 = vld [vmem:[#allocation14 + $0x58] sm:$0xff]
        %v7330 = vld [vmem:[#allocation14 + $0x60] sm:$0xff]
        %v7331 = vld [vmem:[#allocation14 + $0x68] sm:$0xff]
        %v7332 = vld [vmem:[#allocation14 + $0x70] sm:$0xff]
        %v7333 = vld [vmem:[#allocation14 + $0x78] sm:$0xff]
        %v7334 = vld [vmem:[#allocation14 + $0x80] sm:$0xff]
        %v7335 = vld [vmem:[#allocation14 + $0x88] sm:$0xff]
        %v7336 = vld [vmem:[#allocation14 + $0x90] sm:$0xff]
        %v7337 = vld [vmem:[#allocation14 + $0x98] sm:$0xff]
        %v7338 = vld [vmem:[#allocation14 + $0xa0] sm:$0xff]
        %v7339 = vld [vmem:[#allocation14 + $0xa8] sm:$0xff]
        %v7340 = vld [vmem:[#allocation14 + $0xb0] sm:$0xff]
        %v7341 = vld [vmem:[#allocation14 + $0xb8] sm:$0xff]
        %v7342 = vld [vmem:[#allocation14 + $0xc0] sm:$0xff]
        %v7343 = vld [vmem:[#allocation14 + $0xc8] sm:$0xff]
        %v7344 = vld [vmem:[#allocation14 + $0xd0] sm:$0xff]
        %v7345 = vld [vmem:[#allocation14 + $0xd8] sm:$0xff]
        %v7346 = vld [vmem:[#allocation14 + $0xe0] sm:$0xff]
        %v7347 = vld [vmem:[#allocation14 + $0xe8] sm:$0xff]
        %v7348 = vld [vmem:[#allocation14 + $0xf0] sm:$0xff]
        %v7349 = vld [vmem:[#allocation14 + $0xf8] sm:$0xff]
        %v7350 = vand.u32 %v7319, 4294901760
        %7351 = vmatprep.subr.mxu0 %v7350
        %v7352 = vand.u32 %v7318, 4294901760
        %7353 = vmatpush1.msra.mxu0 %v7352
        %v7354 = vand.u32 %v7321, 4294901760
        %7355 = vmatprep.subr.mxu0 %v7354
        %v7356 = vand.u32 %v7320, 4294901760
        %7357 = vmatpush1.msra.mxu0 %v7356
        %v7358 = vand.u32 %v7323, 4294901760
        %7359 = vmatprep.subr.mxu0 %v7358
        %v7360 = vand.u32 %v7322, 4294901760
        %7361 = vmatpush1.msra.mxu0 %v7360
        %v7362 = vand.u32 %v7325, 4294901760
        %7363 = vmatprep.subr.mxu0 %v7362
        %v7364 = vand.u32 %v7324, 4294901760
        %7365 = vmatpush1.msra.mxu0 %v7364
        %v7366 = vand.u32 %v7327, 4294901760
        %7367 = vmatprep.subr.mxu0 %v7366
        %v7368 = vand.u32 %v7326, 4294901760
        %7369 = vmatpush1.msra.mxu0 %v7368
        %v7370 = vand.u32 %v7329, 4294901760
        %7371 = vmatprep.subr.mxu0 %v7370
        %v7372 = vand.u32 %v7328, 4294901760
        %7373 = vmatpush1.msra.mxu0 %v7372
        %v7374 = vand.u32 %v7331, 4294901760
        %7375 = vmatprep.subr.mxu0 %v7374
        %v7376 = vand.u32 %v7330, 4294901760
        %7377 = vmatpush1.msra.mxu0 %v7376
        %v7378 = vand.u32 %v7333, 4294901760
        %7379 = vmatprep.subr.mxu0 %v7378
        %v7380 = vand.u32 %v7332, 4294901760
        %7381 = vmatpush1.msra.mxu0 %v7380
        %v7382 = vand.u32 %v7335, 4294901760
        %7383 = vmatprep.subr.mxu0 %v7382
        %v7384 = vand.u32 %v7334, 4294901760
        %7385 = vmatpush1.msra.mxu0 %v7384
        %v7386 = vand.u32 %v7337, 4294901760
        %7387 = vmatprep.subr.mxu0 %v7386
        %v7388 = vand.u32 %v7336, 4294901760
        %7389 = vmatpush1.msra.mxu0 %v7388
        %v7390 = vand.u32 %v7339, 4294901760
        %7391 = vmatprep.subr.mxu0 %v7390
        %v7392 = vand.u32 %v7338, 4294901760
        %7393 = vmatpush1.msra.mxu0 %v7392
        %v7394 = vand.u32 %v7341, 4294901760
        %7395 = vmatprep.subr.mxu0 %v7394
        %v7396 = vand.u32 %v7340, 4294901760
        %7397 = vmatpush1.msra.mxu0 %v7396
        %v7398 = vand.u32 %v7343, 4294901760
        %7399 = vmatprep.subr.mxu0 %v7398
        %v7400 = vand.u32 %v7342, 4294901760
        %7401 = vmatpush1.msra.mxu0 %v7400
        %v7402 = vand.u32 %v7345, 4294901760
        %7403 = vmatprep.subr.mxu0 %v7402
        %v7404 = vand.u32 %v7344, 4294901760
        %7405 = vmatpush1.msra.mxu0 %v7404
        %v7406 = vand.u32 %v7347, 4294901760
        %7407 = vmatprep.subr.mxu0 %v7406
        %v7408 = vand.u32 %v7346, 4294901760
        %7409 = vmatpush1.msra.mxu0 %v7408
        %v7410 = vand.u32 %v7349, 4294901760
        %7411 = vmatprep.subr.mxu0 %v7410
        %v7412 = vand.u32 %v7348, 4294901760
        %7413 = vmatpush1.msra.mxu0 %v7412
        %7414 = vmatprep.subr.mxu0 0.0
        %7415 = vmatpush1.msra.mxu0 0.0
        %7416 = vmatprep.subr.mxu0 0.0
        %7417 = vmatpush1.msra.mxu0 0.0
        %7418 = vmatprep.subr.mxu0 0.0
        %7419 = vmatpush1.msra.mxu0 0.0
        %7420 = vmatprep.subr.mxu0 0.0
        %7421 = vmatpush1.msra.mxu0 0.0
        %7422 = vmatprep.subr.mxu0 0.0
        %7423 = vmatpush1.msra.mxu0 0.0
        %7424 = vmatprep.subr.mxu0 0.0
        %7425 = vmatpush1.msra.mxu0 0.0
        %7426 = vmatprep.subr.mxu0 0.0
        %7427 = vmatpush1.msra.mxu0 0.0
        %7428 = vmatprep.subr.mxu0 0.0
        %7429 = vmatpush1.msra.mxu0 0.0
        %7430 = vmatprep.subr.mxu0 0.0
        %7431 = vmatpush1.msra.mxu0 0.0
        %7432 = vmatprep.subr.mxu0 0.0
        %7433 = vmatpush1.msra.mxu0 0.0
        %7434 = vmatprep.subr.mxu0 0.0
        %7435 = vmatpush1.msra.mxu0 0.0
        %7436 = vmatprep.subr.mxu0 0.0
        %7437 = vmatpush1.msra.mxu0 0.0
        %7438 = vmatprep.subr.mxu0 0.0
        %7439 = vmatpush1.msra.mxu0 0.0
        %7440 = vmatprep.subr.mxu0 0.0
        %7441 = vmatpush1.msra.mxu0 0.0
        %7442 = vmatprep.subr.mxu0 0.0
        %7443 = vmatpush1.msra.mxu0 0.0
        %7444 = vmatprep.subr.mxu0 0.0
        %7445 = vmatpush1.msra.mxu0 0.0
        %7446 = vmatprep.mubr.f32.mxu0 0.0
        %v7447 = vand.u32 %v7316, 4294901760
        %v7448 = vsub.f32 %v7316, %v7447
        %v7449 = vand.u32 %v7448, 4294901760
        %v7450 = vsub.f32 %v7448, %v7449
        %v7451 = vand.u32 %v7450, 4294901760
        %7452 = vmatmul.mubr.f32.gmra.mrb[0].mxu0 %v7451
        %v7453 = vpop.f32.mrb[0].mxu0
        %v7454 = vadd.f32 0.0, %v7453
        %v7455 = vpop.f32.mrb[0].mxu0
        %v7456 = vadd.f32 0.0, %v7455
        %7457 = vmatprep.mubr.f32.mxu0 0.0
        %v7458 = vand.u32 %v7317, 4294901760
        %v7459 = vsub.f32 %v7317, %v7458
        %v7460 = vand.u32 %v7459, 4294901760
        %v7461 = vsub.f32 %v7459, %v7460
        %v7462 = vand.u32 %v7461, 4294901760
        %7463 = vmatmul.mubr.f32.gmra.mrb[0].mxu0 %v7462
        %v7464 = vpop.f32.mrb[0].mxu0
        %v7465 = vadd.f32 0.0, %v7464
        %v7466 = vpop.f32.mrb[0].mxu0
        %v7467 = vadd.f32 0.0, %v7466
        %7468 = vdwg.mxu0
        %v7469 = vand.u32 %v7319, 4294901760
        %v7470 = vsub.f32 %v7319, %v7469
        %v7471 = vand.u32 %v7470, 4294901760
        %v7472 = vsub.f32 %v7470, %v7471
        %v7473 = vand.u32 %v7472, 4294901760
        %7474 = vmatprep.subr.mxu0 %v7473
        %v7475 = vand.u32 %v7318, 4294901760
        %v7476 = vsub.f32 %v7318, %v7475
        %v7477 = vand.u32 %v7476, 4294901760
        %v7478 = vsub.f32 %v7476, %v7477
        %v7479 = vand.u32 %v7478, 4294901760
        %7480 = vmatpush1.msra.mxu0 %v7479
        %v7481 = vand.u32 %v7321, 4294901760
        %v7482 = vsub.f32 %v7321, %v7481
        %v7483 = vand.u32 %v7482, 4294901760
        %v7484 = vsub.f32 %v7482, %v7483
        %v7485 = vand.u32 %v7484, 4294901760
        %7486 = vmatprep.subr.mxu0 %v7485
        %v7487 = vand.u32 %v7320, 4294901760
        %v7488 = vsub.f32 %v7320, %v7487
        %v7489 = vand.u32 %v7488, 4294901760
        %v7490 = vsub.f32 %v7488, %v7489
        %v7491 = vand.u32 %v7490, 4294901760
        %7492 = vmatpush1.msra.mxu0 %v7491
        %v7493 = vand.u32 %v7323, 4294901760
        %v7494 = vsub.f32 %v7323, %v7493
        %v7495 = vand.u32 %v7494, 4294901760
        %v7496 = vsub.f32 %v7494, %v7495
        %v7497 = vand.u32 %v7496, 4294901760
        %7498 = vmatprep.subr.mxu0 %v7497
        %v7499 = vand.u32 %v7322, 4294901760
        %v7500 = vsub.f32 %v7322, %v7499
        %v7501 = vand.u32 %v7500, 4294901760
        %v7502 = vsub.f32 %v7500, %v7501
        %v7503 = vand.u32 %v7502, 4294901760
        %7504 = vmatpush1.msra.mxu0 %v7503
        %v7505 = vand.u32 %v7325, 4294901760
        %v7506 = vsub.f32 %v7325, %v7505
        %v7507 = vand.u32 %v7506, 4294901760
        %v7508 = vsub.f32 %v7506, %v7507
        %v7509 = vand.u32 %v7508, 4294901760
        %7510 = vmatprep.subr.mxu0 %v7509
        %v7511 = vand.u32 %v7324, 4294901760
        %v7512 = vsub.f32 %v7324, %v7511
        %v7513 = vand.u32 %v7512, 4294901760
        %v7514 = vsub.f32 %v7512, %v7513
        %v7515 = vand.u32 %v7514, 4294901760
        %7516 = vmatpush1.msra.mxu0 %v7515
        %v7517 = vand.u32 %v7327, 4294901760
        %v7518 = vsub.f32 %v7327, %v7517
        %v7519 = vand.u32 %v7518, 4294901760
        %v7520 = vsub.f32 %v7518, %v7519
        %v7521 = vand.u32 %v7520, 4294901760
        %7522 = vmatprep.subr.mxu0 %v7521
        %v7523 = vand.u32 %v7326, 4294901760
        %v7524 = vsub.f32 %v7326, %v7523
        %v7525 = vand.u32 %v7524, 4294901760
        %v7526 = vsub.f32 %v7524, %v7525
        %v7527 = vand.u32 %v7526, 4294901760
        %7528 = vmatpush1.msra.mxu0 %v7527
        %v7529 = vand.u32 %v7329, 4294901760
        %v7530 = vsub.f32 %v7329, %v7529
        %v7531 = vand.u32 %v7530, 4294901760
        %v7532 = vsub.f32 %v7530, %v7531
        %v7533 = vand.u32 %v7532, 4294901760
        %7534 = vmatprep.subr.mxu0 %v7533
        %v7535 = vand.u32 %v7328, 4294901760
        %v7536 = vsub.f32 %v7328, %v7535
        %v7537 = vand.u32 %v7536, 4294901760
        %v7538 = vsub.f32 %v7536, %v7537
        %v7539 = vand.u32 %v7538, 4294901760
        %7540 = vmatpush1.msra.mxu0 %v7539
        %v7541 = vand.u32 %v7331, 4294901760
        %v7542 = vsub.f32 %v7331, %v7541
        %v7543 = vand.u32 %v7542, 4294901760
        %v7544 = vsub.f32 %v7542, %v7543
        %v7545 = vand.u32 %v7544, 4294901760
        %7546 = vmatprep.subr.mxu0 %v7545
        %v7547 = vand.u32 %v7330, 4294901760
        %v7548 = vsub.f32 %v7330, %v7547
        %v7549 = vand.u32 %v7548, 4294901760
        %v7550 = vsub.f32 %v7548, %v7549
        %v7551 = vand.u32 %v7550, 4294901760
        %7552 = vmatpush1.msra.mxu0 %v7551
        %v7553 = vand.u32 %v7333, 4294901760
        %v7554 = vsub.f32 %v7333, %v7553
        %v7555 = vand.u32 %v7554, 4294901760
        %v7556 = vsub.f32 %v7554, %v7555
        %v7557 = vand.u32 %v7556, 4294901760
        %7558 = vmatprep.subr.mxu0 %v7557
        %v7559 = vand.u32 %v7332, 4294901760
        %v7560 = vsub.f32 %v7332, %v7559
        %v7561 = vand.u32 %v7560, 4294901760
        %v7562 = vsub.f32 %v7560, %v7561
        %v7563 = vand.u32 %v7562, 4294901760
        %7564 = vmatpush1.msra.mxu0 %v7563
        %v7565 = vand.u32 %v7335, 4294901760
        %v7566 = vsub.f32 %v7335, %v7565
        %v7567 = vand.u32 %v7566, 4294901760
        %v7568 = vsub.f32 %v7566, %v7567
        %v7569 = vand.u32 %v7568, 4294901760
        %7570 = vmatprep.subr.mxu0 %v7569
        %v7571 = vand.u32 %v7334, 4294901760
        %v7572 = vsub.f32 %v7334, %v7571
        %v7573 = vand.u32 %v7572, 4294901760
        %v7574 = vsub.f32 %v7572, %v7573
        %v7575 = vand.u32 %v7574, 4294901760
        %7576 = vmatpush1.msra.mxu0 %v7575
        %v7577 = vand.u32 %v7337, 4294901760
        %v7578 = vsub.f32 %v7337, %v7577
        %v7579 = vand.u32 %v7578, 4294901760
        %v7580 = vsub.f32 %v7578, %v7579
        %v7581 = vand.u32 %v7580, 4294901760
        %7582 = vmatprep.subr.mxu0 %v7581
        %v7583 = vand.u32 %v7336, 4294901760
        %v7584 = vsub.f32 %v7336, %v7583
        %v7585 = vand.u32 %v7584, 4294901760
        %v7586 = vsub.f32 %v7584, %v7585
        %v7587 = vand.u32 %v7586, 4294901760
        %7588 = vmatpush1.msra.mxu0 %v7587
        %v7589 = vand.u32 %v7339, 4294901760
        %v7590 = vsub.f32 %v7339, %v7589
        %v7591 = vand.u32 %v7590, 4294901760
        %v7592 = vsub.f32 %v7590, %v7591
        %v7593 = vand.u32 %v7592, 4294901760
        %7594 = vmatprep.subr.mxu0 %v7593
        %v7595 = vand.u32 %v7338, 4294901760
        %v7596 = vsub.f32 %v7338, %v7595
        %v7597 = vand.u32 %v7596, 4294901760
        %v7598 = vsub.f32 %v7596, %v7597
        %v7599 = vand.u32 %v7598, 4294901760
        %7600 = vmatpush1.msra.mxu0 %v7599
        %v7601 = vand.u32 %v7341, 4294901760
        %v7602 = vsub.f32 %v7341, %v7601
        %v7603 = vand.u32 %v7602, 4294901760
        %v7604 = vsub.f32 %v7602, %v7603
        %v7605 = vand.u32 %v7604, 4294901760
        %7606 = vmatprep.subr.mxu0 %v7605
        %v7607 = vand.u32 %v7340, 4294901760
        %v7608 = vsub.f32 %v7340, %v7607
        %v7609 = vand.u32 %v7608, 4294901760
        %v7610 = vsub.f32 %v7608, %v7609
        %v7611 = vand.u32 %v7610, 4294901760
        %7612 = vmatpush1.msra.mxu0 %v7611
        %v7613 = vand.u32 %v7343, 4294901760
        %v7614 = vsub.f32 %v7343, %v7613
        %v7615 = vand.u32 %v7614, 4294901760
        %v7616 = vsub.f32 %v7614, %v7615
        %v7617 = vand.u32 %v7616, 4294901760
        %7618 = vmatprep.subr.mxu0 %v7617
        %v7619 = vand.u32 %v7342, 4294901760
        %v7620 = vsub.f32 %v7342, %v7619
        %v7621 = vand.u32 %v7620, 4294901760
        %v7622 = vsub.f32 %v7620, %v7621
        %v7623 = vand.u32 %v7622, 4294901760
        %7624 = vmatpush1.msra.mxu0 %v7623
        %v7625 = vand.u32 %v7345, 4294901760
        %v7626 = vsub.f32 %v7345, %v7625
        %v7627 = vand.u32 %v7626, 4294901760
        %v7628 = vsub.f32 %v7626, %v7627
        %v7629 = vand.u32 %v7628, 4294901760
        %7630 = vmatprep.subr.mxu0 %v7629
        %v7631 = vand.u32 %v7344, 4294901760
        %v7632 = vsub.f32 %v7344, %v7631
        %v7633 = vand.u32 %v7632, 4294901760
        %v7634 = vsub.f32 %v7632, %v7633
        %v7635 = vand.u32 %v7634, 4294901760
        %7636 = vmatpush1.msra.mxu0 %v7635
        %v7637 = vand.u32 %v7347, 4294901760
        %v7638 = vsub.f32 %v7347, %v7637
        %v7639 = vand.u32 %v7638, 4294901760
        %v7640 = vsub.f32 %v7638, %v7639
        %v7641 = vand.u32 %v7640, 4294901760
        %7642 = vmatprep.subr.mxu0 %v7641
        %v7643 = vand.u32 %v7346, 4294901760
        %v7644 = vsub.f32 %v7346, %v7643
        %v7645 = vand.u32 %v7644, 4294901760
        %v7646 = vsub.f32 %v7644, %v7645
        %v7647 = vand.u32 %v7646, 4294901760
        %7648 = vmatpush1.msra.mxu0 %v7647
        %v7649 = vand.u32 %v7349, 4294901760
        %v7650 = vsub.f32 %v7349, %v7649
        %v7651 = vand.u32 %v7650, 4294901760
        %v7652 = vsub.f32 %v7650, %v7651
        %v7653 = vand.u32 %v7652, 4294901760
        %7654 = vmatprep.subr.mxu0 %v7653
        %v7655 = vand.u32 %v7348, 4294901760
        %v7656 = vsub.f32 %v7348, %v7655
        %v7657 = vand.u32 %v7656, 4294901760
        %v7658 = vsub.f32 %v7656, %v7657
        %v7659 = vand.u32 %v7658, 4294901760
        %7660 = vmatpush1.msra.mxu0 %v7659
        %7661 = vmatprep.subr.mxu0 0.0
        %7662 = vmatpush1.msra.mxu0 0.0
        %7663 = vmatprep.subr.mxu0 0.0
        %7664 = vmatpush1.msra.mxu0 0.0
        %7665 = vmatprep.subr.mxu0 0.0
        %7666 = vmatpush1.msra.mxu0 0.0
        %7667 = vmatprep.subr.mxu0 0.0
        %7668 = vmatpush1.msra.mxu0 0.0
        %7669 = vmatprep.subr.mxu0 0.0
        %7670 = vmatpush1.msra.mxu0 0.0
        %7671 = vmatprep.subr.mxu0 0.0
        %7672 = vmatpush1.msra.mxu0 0.0
        %7673 = vmatprep.subr.mxu0 0.0
        %7674 = vmatpush1.msra.mxu0 0.0
        %7675 = vmatprep.subr.mxu0 0.0
        %7676 = vmatpush1.msra.mxu0 0.0
        %7677 = vmatprep.subr.mxu0 0.0
        %7678 = vmatpush1.msra.mxu0 0.0
        %7679 = vmatprep.subr.mxu0 0.0
        %7680 = vmatpush1.msra.mxu0 0.0
        %7681 = vmatprep.subr.mxu0 0.0
        %7682 = vmatpush1.msra.mxu0 0.0
        %7683 = vmatprep.subr.mxu0 0.0
        %7684 = vmatpush1.msra.mxu0 0.0
        %7685 = vmatprep.subr.mxu0 0.0
        %7686 = vmatpush1.msra.mxu0 0.0
        %7687 = vmatprep.subr.mxu0 0.0
        %7688 = vmatpush1.msra.mxu0 0.0
        %7689 = vmatprep.subr.mxu0 0.0
        %7690 = vmatpush1.msra.mxu0 0.0
        %7691 = vmatprep.subr.mxu0 0.0
        %7692 = vmatpush1.msra.mxu0 0.0
        %7693 = vmatprep.mubr.f32.mxu0 0.0
        %v7694 = vand.u32 %v7316, 4294901760
        %7695 = vmatmul.mubr.f32.gmra.mrb[0].mxu0 %v7694
        %v7696 = vpop.f32.mrb[0].mxu0
        %v7697 = vadd.f32 %v7454, %v7696
        %v7698 = vpop.f32.mrb[0].mxu0
        %v7699 = vadd.f32 %v7456, %v7698
        %7700 = vmatprep.mubr.f32.mxu0 0.0
        %v7701 = vand.u32 %v7317, 4294901760
        %7702 = vmatmul.mubr.f32.gmra.mrb[0].mxu0 %v7701
        %v7703 = vpop.f32.mrb[0].mxu0
        %v7704 = vadd.f32 %v7465, %v7703
        %v7705 = vpop.f32.mrb[0].mxu0
        %v7706 = vadd.f32 %v7467, %v7705
        %7707 = vdwg.mxu0
        %v7708 = vand.u32 %v7319, 4294901760
        %v7709 = vsub.f32 %v7319, %v7708
        %7710 = vmatprep.subr.mxu0 %v7709
        %v7711 = vand.u32 %v7318, 4294901760
        %v7712 = vsub.f32 %v7318, %v7711
        %7713 = vmatpush1.msra.mxu0 %v7712
        %v7714 = vand.u32 %v7321, 4294901760
        %v7715 = vsub.f32 %v7321, %v7714
        %7716 = vmatprep.subr.mxu0 %v7715
        %v7717 = vand.u32 %v7320, 4294901760
        %v7718 = vsub.f32 %v7320, %v7717
        %7719 = vmatpush1.msra.mxu0 %v7718
        %v7720 = vand.u32 %v7323, 4294901760
        %v7721 = vsub.f32 %v7323, %v7720
        %7722 = vmatprep.subr.mxu0 %v7721
        %v7723 = vand.u32 %v7322, 4294901760
        %v7724 = vsub.f32 %v7322, %v7723
        %7725 = vmatpush1.msra.mxu0 %v7724
        %v7726 = vand.u32 %v7325, 4294901760
        %v7727 = vsub.f32 %v7325, %v7726
        %7728 = vmatprep.subr.mxu0 %v7727
        %v7729 = vand.u32 %v7324, 4294901760
        %v7730 = vsub.f32 %v7324, %v7729
        %7731 = vmatpush1.msra.mxu0 %v7730
        %v7732 = vand.u32 %v7327, 4294901760
        %v7733 = vsub.f32 %v7327, %v7732
        %7734 = vmatprep.subr.mxu0 %v7733
        %v7735 = vand.u32 %v7326, 4294901760
        %v7736 = vsub.f32 %v7326, %v7735
        %7737 = vmatpush1.msra.mxu0 %v7736
        %v7738 = vand.u32 %v7329, 4294901760
        %v7739 = vsub.f32 %v7329, %v7738
        %7740 = vmatprep.subr.mxu0 %v7739
        %v7741 = vand.u32 %v7328, 4294901760
        %v7742 = vsub.f32 %v7328, %v7741
        %7743 = vmatpush1.msra.mxu0 %v7742
        %v7744 = vand.u32 %v7331, 4294901760
        %v7745 = vsub.f32 %v7331, %v7744
        %7746 = vmatprep.subr.mxu0 %v7745
        %v7747 = vand.u32 %v7330, 4294901760
        %v7748 = vsub.f32 %v7330, %v7747
        %7749 = vmatpush1.msra.mxu0 %v7748
        %v7750 = vand.u32 %v7333, 4294901760
        %v7751 = vsub.f32 %v7333, %v7750
        %7752 = vmatprep.subr.mxu0 %v7751
        %v7753 = vand.u32 %v7332, 4294901760
        %v7754 = vsub.f32 %v7332, %v7753
        %7755 = vmatpush1.msra.mxu0 %v7754
        %v7756 = vand.u32 %v7335, 4294901760
        %v7757 = vsub.f32 %v7335, %v7756
        %7758 = vmatprep.subr.mxu0 %v7757
        %v7759 = vand.u32 %v7334, 4294901760
        %v7760 = vsub.f32 %v7334, %v7759
        %7761 = vmatpush1.msra.mxu0 %v7760
        %v7762 = vand.u32 %v7337, 4294901760
        %v7763 = vsub.f32 %v7337, %v7762
        %7764 = vmatprep.subr.mxu0 %v7763
        %v7765 = vand.u32 %v7336, 4294901760
        %v7766 = vsub.f32 %v7336, %v7765
        %7767 = vmatpush1.msra.mxu0 %v7766
        %v7768 = vand.u32 %v7339, 4294901760
        %v7769 = vsub.f32 %v7339, %v7768
        %7770 = vmatprep.subr.mxu0 %v7769
        %v7771 = vand.u32 %v7338, 4294901760
        %v7772 = vsub.f32 %v7338, %v7771
        %7773 = vmatpush1.msra.mxu0 %v7772
        %v7774 = vand.u32 %v7341, 4294901760
        %v7775 = vsub.f32 %v7341, %v7774
        %7776 = vmatprep.subr.mxu0 %v7775
        %v7777 = vand.u32 %v7340, 4294901760
        %v7778 = vsub.f32 %v7340, %v7777
        %7779 = vmatpush1.msra.mxu0 %v7778
        %v7780 = vand.u32 %v7343, 4294901760
        %v7781 = vsub.f32 %v7343, %v7780
        %7782 = vmatprep.subr.mxu0 %v7781
        %v7783 = vand.u32 %v7342, 4294901760
        %v7784 = vsub.f32 %v7342, %v7783
        %7785 = vmatpush1.msra.mxu0 %v7784
        %v7786 = vand.u32 %v7345, 4294901760
        %v7787 = vsub.f32 %v7345, %v7786
        %7788 = vmatprep.subr.mxu0 %v7787
        %v7789 = vand.u32 %v7344, 4294901760
        %v7790 = vsub.f32 %v7344, %v7789
        %7791 = vmatpush1.msra.mxu0 %v7790
        %v7792 = vand.u32 %v7347, 4294901760
        %v7793 = vsub.f32 %v7347, %v7792
        %7794 = vmatprep.subr.mxu0 %v7793
        %v7795 = vand.u32 %v7346, 4294901760
        %v7796 = vsub.f32 %v7346, %v7795
        %7797 = vmatpush1.msra.mxu0 %v7796
        %v7798 = vand.u32 %v7349, 4294901760
        %v7799 = vsub.f32 %v7349, %v7798
        %7800 = vmatprep.subr.mxu0 %v7799
        %v7801 = vand.u32 %v7348, 4294901760
        %v7802 = vsub.f32 %v7348, %v7801
        %7803 = vmatpush1.msra.mxu0 %v7802
        %7804 = vmatprep.subr.mxu0 0.0
        %7805 = vmatpush1.msra.mxu0 0.0
        %7806 = vmatprep.subr.mxu0 0.0
        %7807 = vmatpush1.msra.mxu0 0.0
        %7808 = vmatprep.subr.mxu0 0.0
        %7809 = vmatpush1.msra.mxu0 0.0
        %7810 = vmatprep.subr.mxu0 0.0
        %7811 = vmatpush1.msra.mxu0 0.0
        %7812 = vmatprep.subr.mxu0 0.0
        %7813 = vmatpush1.msra.mxu0 0.0
        %7814 = vmatprep.subr.mxu0 0.0
        %7815 = vmatpush1.msra.mxu0 0.0
        %7816 = vmatprep.subr.mxu0 0.0
        %7817 = vmatpush1.msra.mxu0 0.0
        %7818 = vmatprep.subr.mxu0 0.0
        %7819 = vmatpush1.msra.mxu0 0.0
        %7820 = vmatprep.subr.mxu0 0.0
        %7821 = vmatpush1.msra.mxu0 0.0
        %7822 = vmatprep.subr.mxu0 0.0
        %7823 = vmatpush1.msra.mxu0 0.0
        %7824 = vmatprep.subr.mxu0 0.0
        %7825 = vmatpush1.msra.mxu0 0.0
        %7826 = vmatprep.subr.mxu0 0.0
        %7827 = vmatpush1.msra.mxu0 0.0
        %7828 = vmatprep.subr.mxu0 0.0
        %7829 = vmatpush1.msra.mxu0 0.0
        %7830 = vmatprep.subr.mxu0 0.0
        %7831 = vmatpush1.msra.mxu0 0.0
        %7832 = vmatprep.subr.mxu0 0.0
        %7833 = vmatpush1.msra.mxu0 0.0
        %7834 = vmatprep.subr.mxu0 0.0
        %7835 = vmatpush1.msra.mxu0 0.0
        %7836 = vmatprep.mubr.f32.mxu0 0.0
        %v7837 = vand.u32 %v7316, 4294901760
        %v7838 = vsub.f32 %v7316, %v7837
        %7839 = vmatmul.mubr.f32.gmra.mrb[0].mxu0 %v7838
        %v7840 = vpop.f32.mrb[0].mxu0
        %v7841 = vadd.f32 %v7697, %v7840
        %v7842 = vpop.f32.mrb[0].mxu0
        %v7843 = vadd.f32 %v7699, %v7842
        %7844 = vmatprep.mubr.f32.mxu0 0.0
        %v7845 = vand.u32 %v7317, 4294901760
        %v7846 = vsub.f32 %v7317, %v7845
        %7847 = vmatmul.mubr.f32.gmra.mrb[0].mxu0 %v7846
        %v7848 = vpop.f32.mrb[0].mxu0
        %v7849 = vadd.f32 %v7704, %v7848
        %v7850 = vpop.f32.mrb[0].mxu0
        %v7851 = vadd.f32 %v7706, %v7850
        %7852 = vdwg.mxu0
        %v7853 = vand.u32 %v7319, 4294901760
        %7854 = vmatprep.subr.mxu0 %v7853
        %v7855 = vand.u32 %v7318, 4294901760
        %7856 = vmatpush1.msra.mxu0 %v7855
        %v7857 = vand.u32 %v7321, 4294901760
        %7858 = vmatprep.subr.mxu0 %v7857
        %v7859 = vand.u32 %v7320, 4294901760
        %7860 = vmatpush1.msra.mxu0 %v7859
        %v7861 = vand.u32 %v7323, 4294901760
        %7862 = vmatprep.subr.mxu0 %v7861
        %v7863 = vand.u32 %v7322, 4294901760
        %7864 = vmatpush1.msra.mxu0 %v7863
        %v7865 = vand.u32 %v7325, 4294901760
        %7866 = vmatprep.subr.mxu0 %v7865
        %v7867 = vand.u32 %v7324, 4294901760
        %7868 = vmatpush1.msra.mxu0 %v7867
        %v7869 = vand.u32 %v7327, 4294901760
        %7870 = vmatprep.subr.mxu0 %v7869
        %v7871 = vand.u32 %v7326, 4294901760
        %7872 = vmatpush1.msra.mxu0 %v7871
        %v7873 = vand.u32 %v7329, 4294901760
        %7874 = vmatprep.subr.mxu0 %v7873
        %v7875 = vand.u32 %v7328, 4294901760
        %7876 = vmatpush1.msra.mxu0 %v7875
        %v7877 = vand.u32 %v7331, 4294901760
        %7878 = vmatprep.subr.mxu0 %v7877
        %v7879 = vand.u32 %v7330, 4294901760
        %7880 = vmatpush1.msra.mxu0 %v7879
        %v7881 = vand.u32 %v7333, 4294901760
        %7882 = vmatprep.subr.mxu0 %v7881
        %v7883 = vand.u32 %v7332, 4294901760
        %7884 = vmatpush1.msra.mxu0 %v7883
        %v7885 = vand.u32 %v7335, 4294901760
        %7886 = vmatprep.subr.mxu0 %v7885
        %v7887 = vand.u32 %v7334, 4294901760
        %7888 = vmatpush1.msra.mxu0 %v7887
        %v7889 = vand.u32 %v7337, 4294901760
        %7890 = vmatprep.subr.mxu0 %v7889
        %v7891 = vand.u32 %v7336, 4294901760
        %7892 = vmatpush1.msra.mxu0 %v7891
        %v7893 = vand.u32 %v7339, 4294901760
        %7894 = vmatprep.subr.mxu0 %v7893
        %v7895 = vand.u32 %v7338, 4294901760
        %7896 = vmatpush1.msra.mxu0 %v7895
        %v7897 = vand.u32 %v7341, 4294901760
        %7898 = vmatprep.subr.mxu0 %v7897
        %v7899 = vand.u32 %v7340, 4294901760
        %7900 = vmatpush1.msra.mxu0 %v7899
        %v7901 = vand.u32 %v7343, 4294901760
        %7902 = vmatprep.subr.mxu0 %v7901
        %v7903 = vand.u32 %v7342, 4294901760
        %7904 = vmatpush1.msra.mxu0 %v7903
        %v7905 = vand.u32 %v7345, 4294901760
        %7906 = vmatprep.subr.mxu0 %v7905
        %v7907 = vand.u32 %v7344, 4294901760
        %7908 = vmatpush1.msra.mxu0 %v7907
        %v7909 = vand.u32 %v7347, 4294901760
        %7910 = vmatprep.subr.mxu0 %v7909
        %v7911 = vand.u32 %v7346, 4294901760
        %7912 = vmatpush1.msra.mxu0 %v7911
        %v7913 = vand.u32 %v7349, 4294901760
        %7914 = vmatprep.subr.mxu0 %v7913
        %v7915 = vand.u32 %v7348, 4294901760
        %7916 = vmatpush1.msra.mxu0 %v7915
        %7917 = vmatprep.subr.mxu0 0.0
        %7918 = vmatpush1.msra.mxu0 0.0
        %7919 = vmatprep.subr.mxu0 0.0
        %7920 = vmatpush1.msra.mxu0 0.0
        %7921 = vmatprep.subr.mxu0 0.0
        %7922 = vmatpush1.msra.mxu0 0.0
        %7923 = vmatprep.subr.mxu0 0.0
        %7924 = vmatpush1.msra.mxu0 0.0
        %7925 = vmatprep.subr.mxu0 0.0
        %7926 = vmatpush1.msra.mxu0 0.0
        %7927 = vmatprep.subr.mxu0 0.0
        %7928 = vmatpush1.msra.mxu0 0.0
        %7929 = vmatprep.subr.mxu0 0.0
        %7930 = vmatpush1.msra.mxu0 0.0
        %7931 = vmatprep.subr.mxu0 0.0
        %7932 = vmatpush1.msra.mxu0 0.0
        %7933 = vmatprep.subr.mxu0 0.0
        %7934 = vmatpush1.msra.mxu0 0.0
        %7935 = vmatprep.subr.mxu0 0.0
        %7936 = vmatpush1.msra.mxu0 0.0
        %7937 = vmatprep.subr.mxu0 0.0
        %7938 = vmatpush1.msra.mxu0 0.0
        %7939 = vmatprep.subr.mxu0 0.0
        %7940 = vmatpush1.msra.mxu0 0.0
        %7941 = vmatprep.subr.mxu0 0.0
        %7942 = vmatpush1.msra.mxu0 0.0
        %7943 = vmatprep.subr.mxu0 0.0
        %7944 = vmatpush1.msra.mxu0 0.0
        %7945 = vmatprep.subr.mxu0 0.0
        %7946 = vmatpush1.msra.mxu0 0.0
        %7947 = vmatprep.subr.mxu0 0.0
        %7948 = vmatpush1.msra.mxu0 0.0
        %7949 = vmatprep.mubr.f32.mxu0 0.0
        %v7950 = vand.u32 %v7316, 4294901760
        %v7951 = vsub.f32 %v7316, %v7950
        %v7952 = vand.u32 %v7951, 4294901760
        %7953 = vmatmul.mubr.f32.gmra.mrb[0].mxu0 %v7952
        %v7954 = vpop.f32.mrb[0].mxu0
        %v7955 = vadd.f32 %v7841, %v7954
        %v7956 = vpop.f32.mrb[0].mxu0
        %v7957 = vadd.f32 %v7843, %v7956
        %7958 = vmatprep.mubr.f32.mxu0 0.0
        %v7959 = vand.u32 %v7317, 4294901760
        %v7960 = vsub.f32 %v7317, %v7959
        %v7961 = vand.u32 %v7960, 4294901760
        %7962 = vmatmul.mubr.f32.gmra.mrb[0].mxu0 %v7961
        %v7963 = vpop.f32.mrb[0].mxu0
        %v7964 = vadd.f32 %v7849, %v7963
        %v7965 = vpop.f32.mrb[0].mxu0
        %v7966 = vadd.f32 %v7851, %v7965
        %7967 = vdwg.mxu0
        %v7968 = vand.u32 %v7319, 4294901760
        %v7969 = vsub.f32 %v7319, %v7968
        %v7970 = vand.u32 %v7969, 4294901760
        %7971 = vmatprep.subr.mxu0 %v7970
        %v7972 = vand.u32 %v7318, 4294901760
        %v7973 = vsub.f32 %v7318, %v7972
        %v7974 = vand.u32 %v7973, 4294901760
        %7975 = vmatpush1.msra.mxu0 %v7974
        %v7976 = vand.u32 %v7321, 4294901760
        %v7977 = vsub.f32 %v7321, %v7976
        %v7978 = vand.u32 %v7977, 4294901760
        %7979 = vmatprep.subr.mxu0 %v7978
        %v7980 = vand.u32 %v7320, 4294901760
        %v7981 = vsub.f32 %v7320, %v7980
        %v7982 = vand.u32 %v7981, 4294901760
        %7983 = vmatpush1.msra.mxu0 %v7982
        %v7984 = vand.u32 %v7323, 4294901760
        %v7985 = vsub.f32 %v7323, %v7984
        %v7986 = vand.u32 %v7985, 4294901760
        %7987 = vmatprep.subr.mxu0 %v7986
        %v7988 = vand.u32 %v7322, 4294901760
        %v7989 = vsub.f32 %v7322, %v7988
        %v7990 = vand.u32 %v7989, 4294901760
        %7991 = vmatpush1.msra.mxu0 %v7990
        %v7992 = vand.u32 %v7325, 4294901760
        %v7993 = vsub.f32 %v7325, %v7992
        %v7994 = vand.u32 %v7993, 4294901760
        %7995 = vmatprep.subr.mxu0 %v7994
        %v7996 = vand.u32 %v7324, 4294901760
        %v7997 = vsub.f32 %v7324, %v7996
        %v7998 = vand.u32 %v7997, 4294901760
        %7999 = vmatpush1.msra.mxu0 %v7998
        %v8000 = vand.u32 %v7327, 4294901760
        %v8001 = vsub.f32 %v7327, %v8000
        %v8002 = vand.u32 %v8001, 4294901760
        %8003 = vmatprep.subr.mxu0 %v8002
        %v8004 = vand.u32 %v7326, 4294901760
        %v8005 = vsub.f32 %v7326, %v8004
        %v8006 = vand.u32 %v8005, 4294901760
        %8007 = vmatpush1.msra.mxu0 %v8006
        %v8008 = vand.u32 %v7329, 4294901760
        %v8009 = vsub.f32 %v7329, %v8008
        %v8010 = vand.u32 %v8009, 4294901760
        %8011 = vmatprep.subr.mxu0 %v8010
        %v8012 = vand.u32 %v7328, 4294901760
        %v8013 = vsub.f32 %v7328, %v8012
        %v8014 = vand.u32 %v8013, 4294901760
        %8015 = vmatpush1.msra.mxu0 %v8014
        %v8016 = vand.u32 %v7331, 4294901760
        %v8017 = vsub.f32 %v7331, %v8016
        %v8018 = vand.u32 %v8017, 4294901760
        %8019 = vmatprep.subr.mxu0 %v8018
        %v8020 = vand.u32 %v7330, 4294901760
        %v8021 = vsub.f32 %v7330, %v8020
        %v8022 = vand.u32 %v8021, 4294901760
        %8023 = vmatpush1.msra.mxu0 %v8022
        %v8024 = vand.u32 %v7333, 4294901760
        %v8025 = vsub.f32 %v7333, %v8024
        %v8026 = vand.u32 %v8025, 4294901760
        %8027 = vmatprep.subr.mxu0 %v8026
        %v8028 = vand.u32 %v7332, 4294901760
        %v8029 = vsub.f32 %v7332, %v8028
        %v8030 = vand.u32 %v8029, 4294901760
        %8031 = vmatpush1.msra.mxu0 %v8030
        %v8032 = vand.u32 %v7335, 4294901760
        %v8033 = vsub.f32 %v7335, %v8032
        %v8034 = vand.u32 %v8033, 4294901760
        %8035 = vmatprep.subr.mxu0 %v8034
        %v8036 = vand.u32 %v7334, 4294901760
        %v8037 = vsub.f32 %v7334, %v8036
        %v8038 = vand.u32 %v8037, 4294901760
        %8039 = vmatpush1.msra.mxu0 %v8038
        %v8040 = vand.u32 %v7337, 4294901760
        %v8041 = vsub.f32 %v7337, %v8040
        %v8042 = vand.u32 %v8041, 4294901760
        %8043 = vmatprep.subr.mxu0 %v8042
        %v8044 = vand.u32 %v7336, 4294901760
        %v8045 = vsub.f32 %v7336, %v8044
        %v8046 = vand.u32 %v8045, 4294901760
        %8047 = vmatpush1.msra.mxu0 %v8046
        %v8048 = vand.u32 %v7339, 4294901760
        %v8049 = vsub.f32 %v7339, %v8048
        %v8050 = vand.u32 %v8049, 4294901760
        %8051 = vmatprep.subr.mxu0 %v8050
        %v8052 = vand.u32 %v7338, 4294901760
        %v8053 = vsub.f32 %v7338, %v8052
        %v8054 = vand.u32 %v8053, 4294901760
        %8055 = vmatpush1.msra.mxu0 %v8054
        %v8056 = vand.u32 %v7341, 4294901760
        %v8057 = vsub.f32 %v7341, %v8056
        %v8058 = vand.u32 %v8057, 4294901760
        %8059 = vmatprep.subr.mxu0 %v8058
        %v8060 = vand.u32 %v7340, 4294901760
        %v8061 = vsub.f32 %v7340, %v8060
        %v8062 = vand.u32 %v8061, 4294901760
        %8063 = vmatpush1.msra.mxu0 %v8062
        %v8064 = vand.u32 %v7343, 4294901760
        %v8065 = vsub.f32 %v7343, %v8064
        %v8066 = vand.u32 %v8065, 4294901760
        %8067 = vmatprep.subr.mxu0 %v8066
        %v8068 = vand.u32 %v7342, 4294901760
        %v8069 = vsub.f32 %v7342, %v8068
        %v8070 = vand.u32 %v8069, 4294901760
        %8071 = vmatpush1.msra.mxu0 %v8070
        %v8072 = vand.u32 %v7345, 4294901760
        %v8073 = vsub.f32 %v7345, %v8072
        %v8074 = vand.u32 %v8073, 4294901760
        %8075 = vmatprep.subr.mxu0 %v8074
        %v8076 = vand.u32 %v7344, 4294901760
        %v8077 = vsub.f32 %v7344, %v8076
        %v8078 = vand.u32 %v8077, 4294901760
        %8079 = vmatpush1.msra.mxu0 %v8078
        %v8080 = vand.u32 %v7347, 4294901760
        %v8081 = vsub.f32 %v7347, %v8080
        %v8082 = vand.u32 %v8081, 4294901760
        %8083 = vmatprep.subr.mxu0 %v8082
        %v8084 = vand.u32 %v7346, 4294901760
        %v8085 = vsub.f32 %v7346, %v8084
        %v8086 = vand.u32 %v8085, 4294901760
        %8087 = vmatpush1.msra.mxu0 %v8086
        %v8088 = vand.u32 %v7349, 4294901760
        %v8089 = vsub.f32 %v7349, %v8088
        %v8090 = vand.u32 %v8089, 4294901760
        %8091 = vmatprep.subr.mxu0 %v8090
        %v8092 = vand.u32 %v7348, 4294901760
        %v8093 = vsub.f32 %v7348, %v8092
        %v8094 = vand.u32 %v8093, 4294901760
        %8095 = vmatpush1.msra.mxu0 %v8094
        %8096 = vmatprep.subr.mxu0 0.0
        %8097 = vmatpush1.msra.mxu0 0.0
        %8098 = vmatprep.subr.mxu0 0.0
        %8099 = vmatpush1.msra.mxu0 0.0
        %8100 = vmatprep.subr.mxu0 0.0
        %8101 = vmatpush1.msra.mxu0 0.0
        %8102 = vmatprep.subr.mxu0 0.0
        %8103 = vmatpush1.msra.mxu0 0.0
        %8104 = vmatprep.subr.mxu0 0.0
        %8105 = vmatpush1.msra.mxu0 0.0
        %8106 = vmatprep.subr.mxu0 0.0
        %8107 = vmatpush1.msra.mxu0 0.0
        %8108 = vmatprep.subr.mxu0 0.0
        %8109 = vmatpush1.msra.mxu0 0.0
        %8110 = vmatprep.subr.mxu0 0.0
        %8111 = vmatpush1.msra.mxu0 0.0
        %8112 = vmatprep.subr.mxu0 0.0
        %8113 = vmatpush1.msra.mxu0 0.0
        %8114 = vmatprep.subr.mxu0 0.0
        %8115 = vmatpush1.msra.mxu0 0.0
        %8116 = vmatprep.subr.mxu0 0.0
        %8117 = vmatpush1.msra.mxu0 0.0
        %8118 = vmatprep.subr.mxu0 0.0
        %8119 = vmatpush1.msra.mxu0 0.0
        %8120 = vmatprep.subr.mxu0 0.0
        %8121 = vmatpush1.msra.mxu0 0.0
        %8122 = vmatprep.subr.mxu0 0.0
        %8123 = vmatpush1.msra.mxu0 0.0
        %8124 = vmatprep.subr.mxu0 0.0
        %8125 = vmatpush1.msra.mxu0 0.0
        %8126 = vmatprep.subr.mxu0 0.0
        %8127 = vmatpush1.msra.mxu0 0.0
        %8128 = vmatprep.mubr.f32.mxu0 0.0
        %v8129 = vand.u32 %v7316, 4294901760
        %8130 = vmatmul.mubr.f32.gmra.mrb[0].mxu0 %v8129
        %v8131 = vpop.f32.mrb[0].mxu0
        %v8132 = vadd.f32 %v7955, %v8131
        %v8133 = vpop.f32.mrb[0].mxu0
        %v8134 = vadd.f32 %v7957, %v8133
        %8135 = vmatprep.mubr.f32.mxu0 0.0
        %v8136 = vand.u32 %v7317, 4294901760
        %8137 = vmatmul.mubr.f32.gmra.mrb[0].mxu0 %v8136
        %v8138 = vpop.f32.mrb[0].mxu0
        %v8139 = vadd.f32 %v7964, %v8138
        %v8140 = vpop.f32.mrb[0].mxu0
        %v8141 = vadd.f32 %v7966, %v8140
        %8142 = vdwg.mxu0
        %v8143 = vand.u32 %v7319, 4294901760
        %8144 = vmatprep.subr.mxu0 %v8143
        %v8145 = vand.u32 %v7318, 4294901760
        %8146 = vmatpush1.msra.mxu0 %v8145
        %v8147 = vand.u32 %v7321, 4294901760
        %8148 = vmatprep.subr.mxu0 %v8147
        %v8149 = vand.u32 %v7320, 4294901760
        %8150 = vmatpush1.msra.mxu0 %v8149
        %v8151 = vand.u32 %v7323, 4294901760
        %8152 = vmatprep.subr.mxu0 %v8151
        %v8153 = vand.u32 %v7322, 4294901760
        %8154 = vmatpush1.msra.mxu0 %v8153
        %v8155 = vand.u32 %v7325, 4294901760
        %8156 = vmatprep.subr.mxu0 %v8155
        %v8157 = vand.u32 %v7324, 4294901760
        %8158 = vmatpush1.msra.mxu0 %v8157
        %v8159 = vand.u32 %v7327, 4294901760
        %8160 = vmatprep.subr.mxu0 %v8159
        %v8161 = vand.u32 %v7326, 4294901760
        %8162 = vmatpush1.msra.mxu0 %v8161
        %v8163 = vand.u32 %v7329, 4294901760
        %8164 = vmatprep.subr.mxu0 %v8163
        %v8165 = vand.u32 %v7328, 4294901760
        %8166 = vmatpush1.msra.mxu0 %v8165
        %v8167 = vand.u32 %v7331, 4294901760
        %8168 = vmatprep.subr.mxu0 %v8167
        %v8169 = vand.u32 %v7330, 4294901760
        %8170 = vmatpush1.msra.mxu0 %v8169
        %v8171 = vand.u32 %v7333, 4294901760
        %8172 = vmatprep.subr.mxu0 %v8171
        %v8173 = vand.u32 %v7332, 4294901760
        %8174 = vmatpush1.msra.mxu0 %v8173
        %v8175 = vand.u32 %v7335, 4294901760
        %8176 = vmatprep.subr.mxu0 %v8175
        %v8177 = vand.u32 %v7334, 4294901760
        %8178 = vmatpush1.msra.mxu0 %v8177
        %v8179 = vand.u32 %v7337, 4294901760
        %8180 = vmatprep.subr.mxu0 %v8179
        %v8181 = vand.u32 %v7336, 4294901760
        %8182 = vmatpush1.msra.mxu0 %v8181
        %v8183 = vand.u32 %v7339, 4294901760
        %8184 = vmatprep.subr.mxu0 %v8183
        %v8185 = vand.u32 %v7338, 4294901760
        %8186 = vmatpush1.msra.mxu0 %v8185
        %v8187 = vand.u32 %v7341, 4294901760
        %8188 = vmatprep.subr.mxu0 %v8187
        %v8189 = vand.u32 %v7340, 4294901760
        %8190 = vmatpush1.msra.mxu0 %v8189
        %v8191 = vand.u32 %v7343, 4294901760
        %8192 = vmatprep.subr.mxu0 %v8191
        %v8193 = vand.u32 %v7342, 4294901760
        %8194 = vmatpush1.msra.mxu0 %v8193
        %v8195 = vand.u32 %v7345, 4294901760
        %8196 = vmatprep.subr.mxu0 %v8195
        %v8197 = vand.u32 %v7344, 4294901760
        %8198 = vmatpush1.msra.mxu0 %v8197
        %v8199 = vand.u32 %v7347, 4294901760
        %8200 = vmatprep.subr.mxu0 %v8199
        %v8201 = vand.u32 %v7346, 4294901760
        %8202 = vmatpush1.msra.mxu0 %v8201
        %v8203 = vand.u32 %v7349, 4294901760
        %8204 = vmatprep.subr.mxu0 %v8203
        %v8205 = vand.u32 %v7348, 4294901760
        %8206 = vmatpush1.msra.mxu0 %v8205
        %8207 = vmatprep.subr.mxu0 0.0
        %8208 = vmatpush1.msra.mxu0 0.0
        %8209 = vmatprep.subr.mxu0 0.0
        %8210 = vmatpush1.msra.mxu0 0.0
        %8211 = vmatprep.subr.mxu0 0.0
        %8212 = vmatpush1.msra.mxu0 0.0
        %8213 = vmatprep.subr.mxu0 0.0
        %8214 = vmatpush1.msra.mxu0 0.0
        %8215 = vmatprep.subr.mxu0 0.0
        %8216 = vmatpush1.msra.mxu0 0.0
        %8217 = vmatprep.subr.mxu0 0.0
        %8218 = vmatpush1.msra.mxu0 0.0
        %8219 = vmatprep.subr.mxu0 0.0
        %8220 = vmatpush1.msra.mxu0 0.0
        %8221 = vmatprep.subr.mxu0 0.0
        %8222 = vmatpush1.msra.mxu0 0.0
        %8223 = vmatprep.subr.mxu0 0.0
        %8224 = vmatpush1.msra.mxu0 0.0
        %8225 = vmatprep.subr.mxu0 0.0
        %8226 = vmatpush1.msra.mxu0 0.0
        %8227 = vmatprep.subr.mxu0 0.0
        %8228 = vmatpush1.msra.mxu0 0.0
        %8229 = vmatprep.subr.mxu0 0.0
        %8230 = vmatpush1.msra.mxu0 0.0
        %8231 = vmatprep.subr.mxu0 0.0
        %8232 = vmatpush1.msra.mxu0 0.0
        %8233 = vmatprep.subr.mxu0 0.0
        %8234 = vmatpush1.msra.mxu0 0.0
        %8235 = vmatprep.subr.mxu0 0.0
        %8236 = vmatpush1.msra.mxu0 0.0
        %8237 = vmatprep.subr.mxu0 0.0
        %8238 = vmatpush1.msra.mxu0 0.0
        %8239 = vmatprep.mubr.f32.mxu0 0.0
        %v8240 = vand.u32 %v7316, 4294901760
        %8241 = vmatmul.mubr.f32.gmra.mrb[0].mxu0 %v8240
        %v8242 = vpop.f32.mrb[0].mxu0
        %v8243 = vadd.f32 %v8132, %v8242
        %v8244 = vpop.f32.mrb[0].mxu0
        %v8245 = vadd.f32 %v8134, %v8244
        %8246 = vmatprep.mubr.f32.mxu0 0.0
        %v8247 = vand.u32 %v7317, 4294901760
        %8248 = vmatmul.mubr.f32.gmra.mrb[0].mxu0 %v8247
        %v8249 = vpop.f32.mrb[0].mxu0
        %v8250 = vadd.f32 %v8139, %v8249
        %v8251 = vpop.f32.mrb[0].mxu0
        %v8252 = vadd.f32 %v8141, %v8251
        %8253 = vdwg.mxu0
        %v8254 = vadd.f32 %v4922, %v8243
        %v8255 = vadd.f32 %v5606, %v8245
        %v8256 = vadd.f32 %v4929, %v8250
        %v8257 = vadd.f32 %v5612, %v8252
        %v8258 = vmax.f32 %v8254, 0.0
        %v8259 = vmax.f32 %v8255, 0.0
        %v8260 = vmax.f32 %v8256, 0.0
        %v8261 = vmax.f32 %v8257, 0.0
        %v8262 = vld [vmem:[#allocation15] sm:$0xff]
        %v8263 = vld [vmem:[#allocation15 + $0x8] sm:$0xff]
        %v8264 = vld [vmem:[#allocation15 + $0x10] sm:$0xff]
        %v8265 = vld [vmem:[#allocation15 + $0x18] sm:$0xff]
        %v8266 = vld [vmem:[#allocation15 + $0x20] sm:$0xff]
        %v8267 = vld [vmem:[#allocation15 + $0x28] sm:$0xff]
        %v8268 = vld [vmem:[#allocation15 + $0x30] sm:$0xff]
        %v8269 = vld [vmem:[#allocation15 + $0x38] sm:$0xff]
        %v8270 = vld [vmem:[#allocation15 + $0x40] sm:$0xff]
        %v8271 = vld [vmem:[#allocation15 + $0x48] sm:$0xff]
        %v8272 = vld [vmem:[#allocation15 + $0x50] sm:$0xff]
        %v8273 = vld [vmem:[#allocation15 + $0x58] sm:$0xff]
        %v8274 = vld [vmem:[#allocation15 + $0x60] sm:$0xff]
        %v8275 = vld [vmem:[#allocation15 + $0x68] sm:$0xff]
        %v8276 = vld [vmem:[#allocation15 + $0x70] sm:$0xff]
        %v8277 = vld [vmem:[#allocation15 + $0x78] sm:$0xff]
        %v8278 = vld [vmem:[#allocation15 + $0x80] sm:$0xff]
        %v8279 = vld [vmem:[#allocation15 + $0x88] sm:$0xff]
        %v8280 = vld [vmem:[#allocation15 + $0x90] sm:$0xff]
        %v8281 = vld [vmem:[#allocation15 + $0x98] sm:$0xff]
        %v8282 = vld [vmem:[#allocation15 + $0xa0] sm:$0xff]
        %v8283 = vld [vmem:[#allocation15 + $0xa8] sm:$0xff]
        %v8284 = vld [vmem:[#allocation15 + $0xb0] sm:$0xff]
        %v8285 = vld [vmem:[#allocation15 + $0xb8] sm:$0xff]
        %v8286 = vld [vmem:[#allocation15 + $0xc0] sm:$0xff]
        %v8287 = vld [vmem:[#allocation15 + $0xc8] sm:$0xff]
        %v8288 = vld [vmem:[#allocation15 + $0xd0] sm:$0xff]
        %v8289 = vld [vmem:[#allocation15 + $0xd8] sm:$0xff]
        %v8290 = vld [vmem:[#allocation15 + $0xe0] sm:$0xff]
        %v8291 = vld [vmem:[#allocation15 + $0xe8] sm:$0xff]
        %v8292 = vld [vmem:[#allocation15 + $0xf0] sm:$0xff]
        %v8293 = vld [vmem:[#allocation15 + $0xf8] sm:$0xff]
        %8294 = vmatprep.subr.mxu0 0.0
        %v8295 = vand.u32 %v8262, 4294901760
        %8296 = vmatpush1.msra.mxu0 %v8295
        %8297 = vmatprep.subr.mxu0 0.0
        %v8298 = vand.u32 %v8263, 4294901760
        %8299 = vmatpush1.msra.mxu0 %v8298
        %8300 = vmatprep.subr.mxu0 0.0
        %v8301 = vand.u32 %v8264, 4294901760
        %8302 = vmatpush1.msra.mxu0 %v8301
        %8303 = vmatprep.subr.mxu0 0.0
        %v8304 = vand.u32 %v8265, 4294901760
        %8305 = vmatpush1.msra.mxu0 %v8304
        %8306 = vmatprep.subr.mxu0 0.0
        %v8307 = vand.u32 %v8266, 4294901760
        %8308 = vmatpush1.msra.mxu0 %v8307
        %8309 = vmatprep.subr.mxu0 0.0
        %v8310 = vand.u32 %v8267, 4294901760
        %8311 = vmatpush1.msra.mxu0 %v8310
        %8312 = vmatprep.subr.mxu0 0.0
        %v8313 = vand.u32 %v8268, 4294901760
        %8314 = vmatpush1.msra.mxu0 %v8313
        %8315 = vmatprep.subr.mxu0 0.0
        %v8316 = vand.u32 %v8269, 4294901760
        %8317 = vmatpush1.msra.mxu0 %v8316
        %8318 = vmatprep.subr.mxu0 0.0
        %v8319 = vand.u32 %v8270, 4294901760
        %8320 = vmatpush1.msra.mxu0 %v8319
        %8321 = vmatprep.subr.mxu0 0.0
        %v8322 = vand.u32 %v8271, 4294901760
        %8323 = vmatpush1.msra.mxu0 %v8322
        %8324 = vmatprep.subr.mxu0 0.0
        %v8325 = vand.u32 %v8272, 4294901760
        %8326 = vmatpush1.msra.mxu0 %v8325
        %8327 = vmatprep.subr.mxu0 0.0
        %v8328 = vand.u32 %v8273, 4294901760
        %8329 = vmatpush1.msra.mxu0 %v8328
        %8330 = vmatprep.subr.mxu0 0.0
        %v8331 = vand.u32 %v8274, 4294901760
        %8332 = vmatpush1.msra.mxu0 %v8331
        %8333 = vmatprep.subr.mxu0 0.0
        %v8334 = vand.u32 %v8275, 4294901760
        %8335 = vmatpush1.msra.mxu0 %v8334
        %8336 = vmatprep.subr.mxu0 0.0
        %v8337 = vand.u32 %v8276, 4294901760
        %8338 = vmatpush1.msra.mxu0 %v8337
        %8339 = vmatprep.subr.mxu0 0.0
        %v8340 = vand.u32 %v8277, 4294901760
        %8341 = vmatpush1.msra.mxu0 %v8340
        %8342 = vmatprep.subr.mxu0 0.0
        %v8343 = vand.u32 %v8278, 4294901760
        %8344 = vmatpush1.msra.mxu0 %v8343
        %8345 = vmatprep.subr.mxu0 0.0
        %v8346 = vand.u32 %v8279, 4294901760
        %8347 = vmatpush1.msra.mxu0 %v8346
        %8348 = vmatprep.subr.mxu0 0.0
        %v8349 = vand.u32 %v8280, 4294901760
        %8350 = vmatpush1.msra.mxu0 %v8349
        %8351 = vmatprep.subr.mxu0 0.0
        %v8352 = vand.u32 %v8281, 4294901760
        %8353 = vmatpush1.msra.mxu0 %v8352
        %8354 = vmatprep.subr.mxu0 0.0
        %v8355 = vand.u32 %v8282, 4294901760
        %8356 = vmatpush1.msra.mxu0 %v8355
        %8357 = vmatprep.subr.mxu0 0.0
        %v8358 = vand.u32 %v8283, 4294901760
        %8359 = vmatpush1.msra.mxu0 %v8358
        %8360 = vmatprep.subr.mxu0 0.0
        %v8361 = vand.u32 %v8284, 4294901760
        %8362 = vmatpush1.msra.mxu0 %v8361
        %8363 = vmatprep.subr.mxu0 0.0
        %v8364 = vand.u32 %v8285, 4294901760
        %8365 = vmatpush1.msra.mxu0 %v8364
        %8366 = vmatprep.subr.mxu0 0.0
        %v8367 = vand.u32 %v8286, 4294901760
        %8368 = vmatpush1.msra.mxu0 %v8367
        %8369 = vmatprep.subr.mxu0 0.0
        %v8370 = vand.u32 %v8287, 4294901760
        %8371 = vmatpush1.msra.mxu0 %v8370
        %8372 = vmatprep.subr.mxu0 0.0
        %v8373 = vand.u32 %v8288, 4294901760
        %8374 = vmatpush1.msra.mxu0 %v8373
        %8375 = vmatprep.subr.mxu0 0.0
        %v8376 = vand.u32 %v8289, 4294901760
        %8377 = vmatpush1.msra.mxu0 %v8376
        %8378 = vmatprep.subr.mxu0 0.0
        %v8379 = vand.u32 %v8290, 4294901760
        %8380 = vmatpush1.msra.mxu0 %v8379
        %8381 = vmatprep.subr.mxu0 0.0
        %v8382 = vand.u32 %v8291, 4294901760
        %8383 = vmatpush1.msra.mxu0 %v8382
        %8384 = vmatprep.subr.mxu0 0.0
        %v8385 = vand.u32 %v8292, 4294901760
        %8386 = vmatpush1.msra.mxu0 %v8385
        %8387 = vmatprep.subr.mxu0 0.0
        %v8388 = vand.u32 %v8293, 4294901760
        %8389 = vmatpush1.msra.mxu0 %v8388
        %v8390 = vand.u32 %v8259, 4294901760
        %v8391 = vsub.f32 %v8259, %v8390
        %v8392 = vand.u32 %v8391, 4294901760
        %v8393 = vsub.f32 %v8391, %v8392
        %v8394 = vand.u32 %v8393, 4294901760
        %8395 = vmatprep.mubr.f32.mxu0 %v8394
        %v8396 = vand.u32 %v8258, 4294901760
        %v8397 = vsub.f32 %v8258, %v8396
        %v8398 = vand.u32 %v8397, 4294901760
        %v8399 = vsub.f32 %v8397, %v8398
        %v8400 = vand.u32 %v8399, 4294901760
        %8401 = vmatmul.mubr.f32.gmra.mrb[0].mxu0 %v8400
        %v8402 = vpop.f32.mrb[0].mxu0
        %v8403 = vadd.f32 0.0, %v8402
        %v8404 = vpop.f32.mrb[0].mxu0
        %v8405 = vand.u32 %v8261, 4294901760
        %v8406 = vsub.f32 %v8261, %v8405
        %v8407 = vand.u32 %v8406, 4294901760
        %v8408 = vsub.f32 %v8406, %v8407
        %v8409 = vand.u32 %v8408, 4294901760
        %8410 = vmatprep.mubr.f32.mxu0 %v8409
        %v8411 = vand.u32 %v8260, 4294901760
        %v8412 = vsub.f32 %v8260, %v8411
        %v8413 = vand.u32 %v8412, 4294901760
        %v8414 = vsub.f32 %v8412, %v8413
        %v8415 = vand.u32 %v8414, 4294901760
        %8416 = vmatmul.mubr.f32.gmra.mrb[0].mxu0 %v8415
        %v8417 = vpop.f32.mrb[0].mxu0
        %v8418 = vadd.f32 0.0, %v8417
        %v8419 = vpop.f32.mrb[0].mxu0
        %8420 = vdwg.mxu0
        %8421 = vmatprep.subr.mxu0 0.0
        %v8422 = vand.u32 %v8262, 4294901760
        %v8423 = vsub.f32 %v8262, %v8422
        %v8424 = vand.u32 %v8423, 4294901760
        %v8425 = vsub.f32 %v8423, %v8424
        %v8426 = vand.u32 %v8425, 4294901760
        %8427 = vmatpush1.msra.mxu0 %v8426
        %8428 = vmatprep.subr.mxu0 0.0
        %v8429 = vand.u32 %v8263, 4294901760
        %v8430 = vsub.f32 %v8263, %v8429
        %v8431 = vand.u32 %v8430, 4294901760
        %v8432 = vsub.f32 %v8430, %v8431
        %v8433 = vand.u32 %v8432, 4294901760
        %8434 = vmatpush1.msra.mxu0 %v8433
        %8435 = vmatprep.subr.mxu0 0.0
        %v8436 = vand.u32 %v8264, 4294901760
        %v8437 = vsub.f32 %v8264, %v8436
        %v8438 = vand.u32 %v8437, 4294901760
        %v8439 = vsub.f32 %v8437, %v8438
        %v8440 = vand.u32 %v8439, 4294901760
        %8441 = vmatpush1.msra.mxu0 %v8440
        %8442 = vmatprep.subr.mxu0 0.0
        %v8443 = vand.u32 %v8265, 4294901760
        %v8444 = vsub.f32 %v8265, %v8443
        %v8445 = vand.u32 %v8444, 4294901760
        %v8446 = vsub.f32 %v8444, %v8445
        %v8447 = vand.u32 %v8446, 4294901760
        %8448 = vmatpush1.msra.mxu0 %v8447
        %8449 = vmatprep.subr.mxu0 0.0
        %v8450 = vand.u32 %v8266, 4294901760
        %v8451 = vsub.f32 %v8266, %v8450
        %v8452 = vand.u32 %v8451, 4294901760
        %v8453 = vsub.f32 %v8451, %v8452
        %v8454 = vand.u32 %v8453, 4294901760
        %8455 = vmatpush1.msra.mxu0 %v8454
        %8456 = vmatprep.subr.mxu0 0.0
        %v8457 = vand.u32 %v8267, 4294901760
        %v8458 = vsub.f32 %v8267, %v8457
        %v8459 = vand.u32 %v8458, 4294901760
        %v8460 = vsub.f32 %v8458, %v8459
        %v8461 = vand.u32 %v8460, 4294901760
        %8462 = vmatpush1.msra.mxu0 %v8461
        %8463 = vmatprep.subr.mxu0 0.0
        %v8464 = vand.u32 %v8268, 4294901760
        %v8465 = vsub.f32 %v8268, %v8464
        %v8466 = vand.u32 %v8465, 4294901760
        %v8467 = vsub.f32 %v8465, %v8466
        %v8468 = vand.u32 %v8467, 4294901760
        %8469 = vmatpush1.msra.mxu0 %v8468
        %8470 = vmatprep.subr.mxu0 0.0
        %v8471 = vand.u32 %v8269, 4294901760
        %v8472 = vsub.f32 %v8269, %v8471
        %v8473 = vand.u32 %v8472, 4294901760
        %v8474 = vsub.f32 %v8472, %v8473
        %v8475 = vand.u32 %v8474, 4294901760
        %8476 = vmatpush1.msra.mxu0 %v8475
        %8477 = vmatprep.subr.mxu0 0.0
        %v8478 = vand.u32 %v8270, 4294901760
        %v8479 = vsub.f32 %v8270, %v8478
        %v8480 = vand.u32 %v8479, 4294901760
        %v8481 = vsub.f32 %v8479, %v8480
        %v8482 = vand.u32 %v8481, 4294901760
        %8483 = vmatpush1.msra.mxu0 %v8482
        %8484 = vmatprep.subr.mxu0 0.0
        %v8485 = vand.u32 %v8271, 4294901760
        %v8486 = vsub.f32 %v8271, %v8485
        %v8487 = vand.u32 %v8486, 4294901760
        %v8488 = vsub.f32 %v8486, %v8487
        %v8489 = vand.u32 %v8488, 4294901760
        %8490 = vmatpush1.msra.mxu0 %v8489
        %8491 = vmatprep.subr.mxu0 0.0
        %v8492 = vand.u32 %v8272, 4294901760
        %v8493 = vsub.f32 %v8272, %v8492
        %v8494 = vand.u32 %v8493, 4294901760
        %v8495 = vsub.f32 %v8493, %v8494
        %v8496 = vand.u32 %v8495, 4294901760
        %8497 = vmatpush1.msra.mxu0 %v8496
        %8498 = vmatprep.subr.mxu0 0.0
        %v8499 = vand.u32 %v8273, 4294901760
        %v8500 = vsub.f32 %v8273, %v8499
        %v8501 = vand.u32 %v8500, 4294901760
        %v8502 = vsub.f32 %v8500, %v8501
        %v8503 = vand.u32 %v8502, 4294901760
        %8504 = vmatpush1.msra.mxu0 %v8503
        %8505 = vmatprep.subr.mxu0 0.0
        %v8506 = vand.u32 %v8274, 4294901760
        %v8507 = vsub.f32 %v8274, %v8506
        %v8508 = vand.u32 %v8507, 4294901760
        %v8509 = vsub.f32 %v8507, %v8508
        %v8510 = vand.u32 %v8509, 4294901760
        %8511 = vmatpush1.msra.mxu0 %v8510
        %8512 = vmatprep.subr.mxu0 0.0
        %v8513 = vand.u32 %v8275, 4294901760
        %v8514 = vsub.f32 %v8275, %v8513
        %v8515 = vand.u32 %v8514, 4294901760
        %v8516 = vsub.f32 %v8514, %v8515
        %v8517 = vand.u32 %v8516, 4294901760
        %8518 = vmatpush1.msra.mxu0 %v8517
        %8519 = vmatprep.subr.mxu0 0.0
        %v8520 = vand.u32 %v8276, 4294901760
        %v8521 = vsub.f32 %v8276, %v8520
        %v8522 = vand.u32 %v8521, 4294901760
        %v8523 = vsub.f32 %v8521, %v8522
        %v8524 = vand.u32 %v8523, 4294901760
        %8525 = vmatpush1.msra.mxu0 %v8524
        %8526 = vmatprep.subr.mxu0 0.0
        %v8527 = vand.u32 %v8277, 4294901760
        %v8528 = vsub.f32 %v8277, %v8527
        %v8529 = vand.u32 %v8528, 4294901760
        %v8530 = vsub.f32 %v8528, %v8529
        %v8531 = vand.u32 %v8530, 4294901760
        %8532 = vmatpush1.msra.mxu0 %v8531
        %8533 = vmatprep.subr.mxu0 0.0
        %v8534 = vand.u32 %v8278, 4294901760
        %v8535 = vsub.f32 %v8278, %v8534
        %v8536 = vand.u32 %v8535, 4294901760
        %v8537 = vsub.f32 %v8535, %v8536
        %v8538 = vand.u32 %v8537, 4294901760
        %8539 = vmatpush1.msra.mxu0 %v8538
        %8540 = vmatprep.subr.mxu0 0.0
        %v8541 = vand.u32 %v8279, 4294901760
        %v8542 = vsub.f32 %v8279, %v8541
        %v8543 = vand.u32 %v8542, 4294901760
        %v8544 = vsub.f32 %v8542, %v8543
        %v8545 = vand.u32 %v8544, 4294901760
        %8546 = vmatpush1.msra.mxu0 %v8545
        %8547 = vmatprep.subr.mxu0 0.0
        %v8548 = vand.u32 %v8280, 4294901760
        %v8549 = vsub.f32 %v8280, %v8548
        %v8550 = vand.u32 %v8549, 4294901760
        %v8551 = vsub.f32 %v8549, %v8550
        %v8552 = vand.u32 %v8551, 4294901760
        %8553 = vmatpush1.msra.mxu0 %v8552
        %8554 = vmatprep.subr.mxu0 0.0
        %v8555 = vand.u32 %v8281, 4294901760
        %v8556 = vsub.f32 %v8281, %v8555
        %v8557 = vand.u32 %v8556, 4294901760
        %v8558 = vsub.f32 %v8556, %v8557
        %v8559 = vand.u32 %v8558, 4294901760
        %8560 = vmatpush1.msra.mxu0 %v8559
        %8561 = vmatprep.subr.mxu0 0.0
        %v8562 = vand.u32 %v8282, 4294901760
        %v8563 = vsub.f32 %v8282, %v8562
        %v8564 = vand.u32 %v8563, 4294901760
        %v8565 = vsub.f32 %v8563, %v8564
        %v8566 = vand.u32 %v8565, 4294901760
        %8567 = vmatpush1.msra.mxu0 %v8566
        %8568 = vmatprep.subr.mxu0 0.0
        %v8569 = vand.u32 %v8283, 4294901760
        %v8570 = vsub.f32 %v8283, %v8569
        %v8571 = vand.u32 %v8570, 4294901760
        %v8572 = vsub.f32 %v8570, %v8571
        %v8573 = vand.u32 %v8572, 4294901760
        %8574 = vmatpush1.msra.mxu0 %v8573
        %8575 = vmatprep.subr.mxu0 0.0
        %v8576 = vand.u32 %v8284, 4294901760
        %v8577 = vsub.f32 %v8284, %v8576
        %v8578 = vand.u32 %v8577, 4294901760
        %v8579 = vsub.f32 %v8577, %v8578
        %v8580 = vand.u32 %v8579, 4294901760
        %8581 = vmatpush1.msra.mxu0 %v8580
        %8582 = vmatprep.subr.mxu0 0.0
        %v8583 = vand.u32 %v8285, 4294901760
        %v8584 = vsub.f32 %v8285, %v8583
        %v8585 = vand.u32 %v8584, 4294901760
        %v8586 = vsub.f32 %v8584, %v8585
        %v8587 = vand.u32 %v8586, 4294901760
        %8588 = vmatpush1.msra.mxu0 %v8587
        %8589 = vmatprep.subr.mxu0 0.0
        %v8590 = vand.u32 %v8286, 4294901760
        %v8591 = vsub.f32 %v8286, %v8590
        %v8592 = vand.u32 %v8591, 4294901760
        %v8593 = vsub.f32 %v8591, %v8592
        %v8594 = vand.u32 %v8593, 4294901760
        %8595 = vmatpush1.msra.mxu0 %v8594
        %8596 = vmatprep.subr.mxu0 0.0
        %v8597 = vand.u32 %v8287, 4294901760
        %v8598 = vsub.f32 %v8287, %v8597
        %v8599 = vand.u32 %v8598, 4294901760
        %v8600 = vsub.f32 %v8598, %v8599
        %v8601 = vand.u32 %v8600, 4294901760
        %8602 = vmatpush1.msra.mxu0 %v8601
        %8603 = vmatprep.subr.mxu0 0.0
        %v8604 = vand.u32 %v8288, 4294901760
        %v8605 = vsub.f32 %v8288, %v8604
        %v8606 = vand.u32 %v8605, 4294901760
        %v8607 = vsub.f32 %v8605, %v8606
        %v8608 = vand.u32 %v8607, 4294901760
        %8609 = vmatpush1.msra.mxu0 %v8608
        %8610 = vmatprep.subr.mxu0 0.0
        %v8611 = vand.u32 %v8289, 4294901760
        %v8612 = vsub.f32 %v8289, %v8611
        %v8613 = vand.u32 %v8612, 4294901760
        %v8614 = vsub.f32 %v8612, %v8613
        %v8615 = vand.u32 %v8614, 4294901760
        %8616 = vmatpush1.msra.mxu0 %v8615
        %8617 = vmatprep.subr.mxu0 0.0
        %v8618 = vand.u32 %v8290, 4294901760
        %v8619 = vsub.f32 %v8290, %v8618
        %v8620 = vand.u32 %v8619, 4294901760
        %v8621 = vsub.f32 %v8619, %v8620
        %v8622 = vand.u32 %v8621, 4294901760
        %8623 = vmatpush1.msra.mxu0 %v8622
        %8624 = vmatprep.subr.mxu0 0.0
        %v8625 = vand.u32 %v8291, 4294901760
        %v8626 = vsub.f32 %v8291, %v8625
        %v8627 = vand.u32 %v8626, 4294901760
        %v8628 = vsub.f32 %v8626, %v8627
        %v8629 = vand.u32 %v8628, 4294901760
        %8630 = vmatpush1.msra.mxu0 %v8629
        %8631 = vmatprep.subr.mxu0 0.0
        %v8632 = vand.u32 %v8292, 4294901760
        %v8633 = vsub.f32 %v8292, %v8632
        %v8634 = vand.u32 %v8633, 4294901760
        %v8635 = vsub.f32 %v8633, %v8634
        %v8636 = vand.u32 %v8635, 4294901760
        %8637 = vmatpush1.msra.mxu0 %v8636
        %8638 = vmatprep.subr.mxu0 0.0
        %v8639 = vand.u32 %v8293, 4294901760
        %v8640 = vsub.f32 %v8293, %v8639
        %v8641 = vand.u32 %v8640, 4294901760
        %v8642 = vsub.f32 %v8640, %v8641
        %v8643 = vand.u32 %v8642, 4294901760
        %8644 = vmatpush1.msra.mxu0 %v8643
        %v8645 = vand.u32 %v8259, 4294901760
        %8646 = vmatprep.mubr.f32.mxu0 %v8645
        %v8647 = vand.u32 %v8258, 4294901760
        %8648 = vmatmul.mubr.f32.gmra.mrb[0].mxu0 %v8647
        %v8649 = vpop.f32.mrb[0].mxu0
        %v8650 = vadd.f32 %v8403, %v8649
        %v8651 = vpop.f32.mrb[0].mxu0
        %v8652 = vand.u32 %v8261, 4294901760
        %8653 = vmatprep.mubr.f32.mxu0 %v8652
        %v8654 = vand.u32 %v8260, 4294901760
        %8655 = vmatmul.mubr.f32.gmra.mrb[0].mxu0 %v8654
        %v8656 = vpop.f32.mrb[0].mxu0
        %v8657 = vadd.f32 %v8418, %v8656
        %v8658 = vpop.f32.mrb[0].mxu0
        %8659 = vdwg.mxu0
        %8660 = vmatprep.subr.mxu0 0.0
        %v8661 = vand.u32 %v8262, 4294901760
        %v8662 = vsub.f32 %v8262, %v8661
        %8663 = vmatpush1.msra.mxu0 %v8662
        %8664 = vmatprep.subr.mxu0 0.0
        %v8665 = vand.u32 %v8263, 4294901760
        %v8666 = vsub.f32 %v8263, %v8665
        %8667 = vmatpush1.msra.mxu0 %v8666
        %8668 = vmatprep.subr.mxu0 0.0
        %v8669 = vand.u32 %v8264, 4294901760
        %v8670 = vsub.f32 %v8264, %v8669
        %8671 = vmatpush1.msra.mxu0 %v8670
        %8672 = vmatprep.subr.mxu0 0.0
        %v8673 = vand.u32 %v8265, 4294901760
        %v8674 = vsub.f32 %v8265, %v8673
        %8675 = vmatpush1.msra.mxu0 %v8674
        %8676 = vmatprep.subr.mxu0 0.0
        %v8677 = vand.u32 %v8266, 4294901760
        %v8678 = vsub.f32 %v8266, %v8677
        %8679 = vmatpush1.msra.mxu0 %v8678
        %8680 = vmatprep.subr.mxu0 0.0
        %v8681 = vand.u32 %v8267, 4294901760
        %v8682 = vsub.f32 %v8267, %v8681
        %8683 = vmatpush1.msra.mxu0 %v8682
        %8684 = vmatprep.subr.mxu0 0.0
        %v8685 = vand.u32 %v8268, 4294901760
        %v8686 = vsub.f32 %v8268, %v8685
        %8687 = vmatpush1.msra.mxu0 %v8686
        %8688 = vmatprep.subr.mxu0 0.0
        %v8689 = vand.u32 %v8269, 4294901760
        %v8690 = vsub.f32 %v8269, %v8689
        %8691 = vmatpush1.msra.mxu0 %v8690
        %8692 = vmatprep.subr.mxu0 0.0
        %v8693 = vand.u32 %v8270, 4294901760
        %v8694 = vsub.f32 %v8270, %v8693
        %8695 = vmatpush1.msra.mxu0 %v8694
        %8696 = vmatprep.subr.mxu0 0.0
        %v8697 = vand.u32 %v8271, 4294901760
        %v8698 = vsub.f32 %v8271, %v8697
        %8699 = vmatpush1.msra.mxu0 %v8698
        %8700 = vmatprep.subr.mxu0 0.0
        %v8701 = vand.u32 %v8272, 4294901760
        %v8702 = vsub.f32 %v8272, %v8701
        %8703 = vmatpush1.msra.mxu0 %v8702
        %8704 = vmatprep.subr.mxu0 0.0
        %v8705 = vand.u32 %v8273, 4294901760
        %v8706 = vsub.f32 %v8273, %v8705
        %8707 = vmatpush1.msra.mxu0 %v8706
        %8708 = vmatprep.subr.mxu0 0.0
        %v8709 = vand.u32 %v8274, 4294901760
        %v8710 = vsub.f32 %v8274, %v8709
        %8711 = vmatpush1.msra.mxu0 %v8710
        %8712 = vmatprep.subr.mxu0 0.0
        %v8713 = vand.u32 %v8275, 4294901760
        %v8714 = vsub.f32 %v8275, %v8713
        %8715 = vmatpush1.msra.mxu0 %v8714
        %8716 = vmatprep.subr.mxu0 0.0
        %v8717 = vand.u32 %v8276, 4294901760
        %v8718 = vsub.f32 %v8276, %v8717
        %8719 = vmatpush1.msra.mxu0 %v8718
        %8720 = vmatprep.subr.mxu0 0.0
        %v8721 = vand.u32 %v8277, 4294901760
        %v8722 = vsub.f32 %v8277, %v8721
        %8723 = vmatpush1.msra.mxu0 %v8722
        %8724 = vmatprep.subr.mxu0 0.0
        %v8725 = vand.u32 %v8278, 4294901760
        %v8726 = vsub.f32 %v8278, %v8725
        %8727 = vmatpush1.msra.mxu0 %v8726
        %8728 = vmatprep.subr.mxu0 0.0
        %v8729 = vand.u32 %v8279, 4294901760
        %v8730 = vsub.f32 %v8279, %v8729
        %8731 = vmatpush1.msra.mxu0 %v8730
        %8732 = vmatprep.subr.mxu0 0.0
        %v8733 = vand.u32 %v8280, 4294901760
        %v8734 = vsub.f32 %v8280, %v8733
        %8735 = vmatpush1.msra.mxu0 %v8734
        %8736 = vmatprep.subr.mxu0 0.0
        %v8737 = vand.u32 %v8281, 4294901760
        %v8738 = vsub.f32 %v8281, %v8737
        %8739 = vmatpush1.msra.mxu0 %v8738
        %8740 = vmatprep.subr.mxu0 0.0
        %v8741 = vand.u32 %v8282, 4294901760
        %v8742 = vsub.f32 %v8282, %v8741
        %8743 = vmatpush1.msra.mxu0 %v8742
        %8744 = vmatprep.subr.mxu0 0.0
        %v8745 = vand.u32 %v8283, 4294901760
        %v8746 = vsub.f32 %v8283, %v8745
        %8747 = vmatpush1.msra.mxu0 %v8746
        %8748 = vmatprep.subr.mxu0 0.0
        %v8749 = vand.u32 %v8284, 4294901760
        %v8750 = vsub.f32 %v8284, %v8749
        %8751 = vmatpush1.msra.mxu0 %v8750
        %8752 = vmatprep.subr.mxu0 0.0
        %v8753 = vand.u32 %v8285, 4294901760
        %v8754 = vsub.f32 %v8285, %v8753
        %8755 = vmatpush1.msra.mxu0 %v8754
        %8756 = vmatprep.subr.mxu0 0.0
        %v8757 = vand.u32 %v8286, 4294901760
        %v8758 = vsub.f32 %v8286, %v8757
        %8759 = vmatpush1.msra.mxu0 %v8758
        %8760 = vmatprep.subr.mxu0 0.0
        %v8761 = vand.u32 %v8287, 4294901760
        %v8762 = vsub.f32 %v8287, %v8761
        %8763 = vmatpush1.msra.mxu0 %v8762
        %8764 = vmatprep.subr.mxu0 0.0
        %v8765 = vand.u32 %v8288, 4294901760
        %v8766 = vsub.f32 %v8288, %v8765
        %8767 = vmatpush1.msra.mxu0 %v8766
        %8768 = vmatprep.subr.mxu0 0.0
        %v8769 = vand.u32 %v8289, 4294901760
        %v8770 = vsub.f32 %v8289, %v8769
        %8771 = vmatpush1.msra.mxu0 %v8770
        %8772 = vmatprep.subr.mxu0 0.0
        %v8773 = vand.u32 %v8290, 4294901760
        %v8774 = vsub.f32 %v8290, %v8773
        %8775 = vmatpush1.msra.mxu0 %v8774
        %8776 = vmatprep.subr.mxu0 0.0
        %v8777 = vand.u32 %v8291, 4294901760
        %v8778 = vsub.f32 %v8291, %v8777
        %8779 = vmatpush1.msra.mxu0 %v8778
        %8780 = vmatprep.subr.mxu0 0.0
        %v8781 = vand.u32 %v8292, 4294901760
        %v8782 = vsub.f32 %v8292, %v8781
        %8783 = vmatpush1.msra.mxu0 %v8782
        %8784 = vmatprep.subr.mxu0 0.0
        %v8785 = vand.u32 %v8293, 4294901760
        %v8786 = vsub.f32 %v8293, %v8785
        %8787 = vmatpush1.msra.mxu0 %v8786
        %v8788 = vand.u32 %v8259, 4294901760
        %v8789 = vsub.f32 %v8259, %v8788
        %8790 = vmatprep.mubr.f32.mxu0 %v8789
        %v8791 = vand.u32 %v8258, 4294901760
        %v8792 = vsub.f32 %v8258, %v8791
        %8793 = vmatmul.mubr.f32.gmra.mrb[0].mxu0 %v8792
        %v8794 = vpop.f32.mrb[0].mxu0
        %v8795 = vadd.f32 %v8650, %v8794
        %v8796 = vpop.f32.mrb[0].mxu0
        %v8797 = vand.u32 %v8261, 4294901760
        %v8798 = vsub.f32 %v8261, %v8797
        %8799 = vmatprep.mubr.f32.mxu0 %v8798
        %v8800 = vand.u32 %v8260, 4294901760
        %v8801 = vsub.f32 %v8260, %v8800
        %8802 = vmatmul.mubr.f32.gmra.mrb[0].mxu0 %v8801
        %v8803 = vpop.f32.mrb[0].mxu0
        %v8804 = vadd.f32 %v8657, %v8803
        %v8805 = vpop.f32.mrb[0].mxu0
        %8806 = vdwg.mxu0
        %8807 = vmatprep.subr.mxu0 0.0
        %v8808 = vand.u32 %v8262, 4294901760
        %8809 = vmatpush1.msra.mxu0 %v8808
        %8810 = vmatprep.subr.mxu0 0.0
        %v8811 = vand.u32 %v8263, 4294901760
        %8812 = vmatpush1.msra.mxu0 %v8811
        %8813 = vmatprep.subr.mxu0 0.0
        %v8814 = vand.u32 %v8264, 4294901760
        %8815 = vmatpush1.msra.mxu0 %v8814
        %8816 = vmatprep.subr.mxu0 0.0
        %v8817 = vand.u32 %v8265, 4294901760
        %8818 = vmatpush1.msra.mxu0 %v8817
        %8819 = vmatprep.subr.mxu0 0.0
        %v8820 = vand.u32 %v8266, 4294901760
        %8821 = vmatpush1.msra.mxu0 %v8820
        %8822 = vmatprep.subr.mxu0 0.0
        %v8823 = vand.u32 %v8267, 4294901760
        %8824 = vmatpush1.msra.mxu0 %v8823
        %8825 = vmatprep.subr.mxu0 0.0
        %v8826 = vand.u32 %v8268, 4294901760
        %8827 = vmatpush1.msra.mxu0 %v8826
        %8828 = vmatprep.subr.mxu0 0.0
        %v8829 = vand.u32 %v8269, 4294901760
        %8830 = vmatpush1.msra.mxu0 %v8829
        %8831 = vmatprep.subr.mxu0 0.0
        %v8832 = vand.u32 %v8270, 4294901760
        %8833 = vmatpush1.msra.mxu0 %v8832
        %8834 = vmatprep.subr.mxu0 0.0
        %v8835 = vand.u32 %v8271, 4294901760
        %8836 = vmatpush1.msra.mxu0 %v8835
        %8837 = vmatprep.subr.mxu0 0.0
        %v8838 = vand.u32 %v8272, 4294901760
        %8839 = vmatpush1.msra.mxu0 %v8838
        %8840 = vmatprep.subr.mxu0 0.0
        %v8841 = vand.u32 %v8273, 4294901760
        %8842 = vmatpush1.msra.mxu0 %v8841
        %8843 = vmatprep.subr.mxu0 0.0
        %v8844 = vand.u32 %v8274, 4294901760
        %8845 = vmatpush1.msra.mxu0 %v8844
        %8846 = vmatprep.subr.mxu0 0.0
        %v8847 = vand.u32 %v8275, 4294901760
        %8848 = vmatpush1.msra.mxu0 %v8847
        %8849 = vmatprep.subr.mxu0 0.0
        %v8850 = vand.u32 %v8276, 4294901760
        %8851 = vmatpush1.msra.mxu0 %v8850
        %8852 = vmatprep.subr.mxu0 0.0
        %v8853 = vand.u32 %v8277, 4294901760
        %8854 = vmatpush1.msra.mxu0 %v8853
        %8855 = vmatprep.subr.mxu0 0.0
        %v8856 = vand.u32 %v8278, 4294901760
        %8857 = vmatpush1.msra.mxu0 %v8856
        %8858 = vmatprep.subr.mxu0 0.0
        %v8859 = vand.u32 %v8279, 4294901760
        %8860 = vmatpush1.msra.mxu0 %v8859
        %8861 = vmatprep.subr.mxu0 0.0
        %v8862 = vand.u32 %v8280, 4294901760
        %8863 = vmatpush1.msra.mxu0 %v8862
        %8864 = vmatprep.subr.mxu0 0.0
        %v8865 = vand.u32 %v8281, 4294901760
        %8866 = vmatpush1.msra.mxu0 %v8865
        %8867 = vmatprep.subr.mxu0 0.0
        %v8868 = vand.u32 %v8282, 4294901760
        %8869 = vmatpush1.msra.mxu0 %v8868
        %8870 = vmatprep.subr.mxu0 0.0
        %v8871 = vand.u32 %v8283, 4294901760
        %8872 = vmatpush1.msra.mxu0 %v8871
        %8873 = vmatprep.subr.mxu0 0.0
        %v8874 = vand.u32 %v8284, 4294901760
        %8875 = vmatpush1.msra.mxu0 %v8874
        %8876 = vmatprep.subr.mxu0 0.0
        %v8877 = vand.u32 %v8285, 4294901760
        %8878 = vmatpush1.msra.mxu0 %v8877
        %8879 = vmatprep.subr.mxu0 0.0
        %v8880 = vand.u32 %v8286, 4294901760
        %8881 = vmatpush1.msra.mxu0 %v8880
        %8882 = vmatprep.subr.mxu0 0.0
        %v8883 = vand.u32 %v8287, 4294901760
        %8884 = vmatpush1.msra.mxu0 %v8883
        %8885 = vmatprep.subr.mxu0 0.0
        %v8886 = vand.u32 %v8288, 4294901760
        %8887 = vmatpush1.msra.mxu0 %v8886
        %8888 = vmatprep.subr.mxu0 0.0
        %v8889 = vand.u32 %v8289, 4294901760
        %8890 = vmatpush1.msra.mxu0 %v8889
        %8891 = vmatprep.subr.mxu0 0.0
        %v8892 = vand.u32 %v8290, 4294901760
        %8893 = vmatpush1.msra.mxu0 %v8892
        %8894 = vmatprep.subr.mxu0 0.0
        %v8895 = vand.u32 %v8291, 4294901760
        %8896 = vmatpush1.msra.mxu0 %v8895
        %8897 = vmatprep.subr.mxu0 0.0
        %v8898 = vand.u32 %v8292, 4294901760
        %8899 = vmatpush1.msra.mxu0 %v8898
        %8900 = vmatprep.subr.mxu0 0.0
        %v8901 = vand.u32 %v8293, 4294901760
        %8902 = vmatpush1.msra.mxu0 %v8901
        %v8903 = vand.u32 %v8259, 4294901760
        %v8904 = vsub.f32 %v8259, %v8903
        %v8905 = vand.u32 %v8904, 4294901760
        %8906 = vmatprep.mubr.f32.mxu0 %v8905
        %v8907 = vand.u32 %v8258, 4294901760
        %v8908 = vsub.f32 %v8258, %v8907
        %v8909 = vand.u32 %v8908, 4294901760
        %8910 = vmatmul.mubr.f32.gmra.mrb[0].mxu0 %v8909
        %v8911 = vpop.f32.mrb[0].mxu0
        %v8912 = vadd.f32 %v8795, %v8911
        %v8913 = vpop.f32.mrb[0].mxu0
        %v8914 = vand.u32 %v8261, 4294901760
        %v8915 = vsub.f32 %v8261, %v8914
        %v8916 = vand.u32 %v8915, 4294901760
        %8917 = vmatprep.mubr.f32.mxu0 %v8916
        %v8918 = vand.u32 %v8260, 4294901760
        %v8919 = vsub.f32 %v8260, %v8918
        %v8920 = vand.u32 %v8919, 4294901760
        %8921 = vmatmul.mubr.f32.gmra.mrb[0].mxu0 %v8920
        %v8922 = vpop.f32.mrb[0].mxu0
        %v8923 = vadd.f32 %v8804, %v8922
        %v8924 = vpop.f32.mrb[0].mxu0
        %8925 = vdwg.mxu0
        %8926 = vmatprep.subr.mxu0 0.0
        %v8927 = vand.u32 %v8262, 4294901760
        %v8928 = vsub.f32 %v8262, %v8927
        %v8929 = vand.u32 %v8928, 4294901760
        %8930 = vmatpush1.msra.mxu0 %v8929
        %8931 = vmatprep.subr.mxu0 0.0
        %v8932 = vand.u32 %v8263, 4294901760
        %v8933 = vsub.f32 %v8263, %v8932
        %v8934 = vand.u32 %v8933, 4294901760
        %8935 = vmatpush1.msra.mxu0 %v8934
        %8936 = vmatprep.subr.mxu0 0.0
        %v8937 = vand.u32 %v8264, 4294901760
        %v8938 = vsub.f32 %v8264, %v8937
        %v8939 = vand.u32 %v8938, 4294901760
        %8940 = vmatpush1.msra.mxu0 %v8939
        %8941 = vmatprep.subr.mxu0 0.0
        %v8942 = vand.u32 %v8265, 4294901760
        %v8943 = vsub.f32 %v8265, %v8942
        %v8944 = vand.u32 %v8943, 4294901760
        %8945 = vmatpush1.msra.mxu0 %v8944
        %8946 = vmatprep.subr.mxu0 0.0
        %v8947 = vand.u32 %v8266, 4294901760
        %v8948 = vsub.f32 %v8266, %v8947
        %v8949 = vand.u32 %v8948, 4294901760
        %8950 = vmatpush1.msra.mxu0 %v8949
        %8951 = vmatprep.subr.mxu0 0.0
        %v8952 = vand.u32 %v8267, 4294901760
        %v8953 = vsub.f32 %v8267, %v8952
        %v8954 = vand.u32 %v8953, 4294901760
        %8955 = vmatpush1.msra.mxu0 %v8954
        %8956 = vmatprep.subr.mxu0 0.0
        %v8957 = vand.u32 %v8268, 4294901760
        %v8958 = vsub.f32 %v8268, %v8957
        %v8959 = vand.u32 %v8958, 4294901760
        %8960 = vmatpush1.msra.mxu0 %v8959
        %8961 = vmatprep.subr.mxu0 0.0
        %v8962 = vand.u32 %v8269, 4294901760
        %v8963 = vsub.f32 %v8269, %v8962
        %v8964 = vand.u32 %v8963, 4294901760
        %8965 = vmatpush1.msra.mxu0 %v8964
        %8966 = vmatprep.subr.mxu0 0.0
        %v8967 = vand.u32 %v8270, 4294901760
        %v8968 = vsub.f32 %v8270, %v8967
        %v8969 = vand.u32 %v8968, 4294901760
        %8970 = vmatpush1.msra.mxu0 %v8969
        %8971 = vmatprep.subr.mxu0 0.0
        %v8972 = vand.u32 %v8271, 4294901760
        %v8973 = vsub.f32 %v8271, %v8972
        %v8974 = vand.u32 %v8973, 4294901760
        %8975 = vmatpush1.msra.mxu0 %v8974
        %8976 = vmatprep.subr.mxu0 0.0
        %v8977 = vand.u32 %v8272, 4294901760
        %v8978 = vsub.f32 %v8272, %v8977
        %v8979 = vand.u32 %v8978, 4294901760
        %8980 = vmatpush1.msra.mxu0 %v8979
        %8981 = vmatprep.subr.mxu0 0.0
        %v8982 = vand.u32 %v8273, 4294901760
        %v8983 = vsub.f32 %v8273, %v8982
        %v8984 = vand.u32 %v8983, 4294901760
        %8985 = vmatpush1.msra.mxu0 %v8984
        %8986 = vmatprep.subr.mxu0 0.0
        %v8987 = vand.u32 %v8274, 4294901760
        %v8988 = vsub.f32 %v8274, %v8987
        %v8989 = vand.u32 %v8988, 4294901760
        %8990 = vmatpush1.msra.mxu0 %v8989
        %8991 = vmatprep.subr.mxu0 0.0
        %v8992 = vand.u32 %v8275, 4294901760
        %v8993 = vsub.f32 %v8275, %v8992
        %v8994 = vand.u32 %v8993, 4294901760
        %8995 = vmatpush1.msra.mxu0 %v8994
        %8996 = vmatprep.subr.mxu0 0.0
        %v8997 = vand.u32 %v8276, 4294901760
        %v8998 = vsub.f32 %v8276, %v8997
        %v8999 = vand.u32 %v8998, 4294901760
        %9000 = vmatpush1.msra.mxu0 %v8999
        %9001 = vmatprep.subr.mxu0 0.0
        %v9002 = vand.u32 %v8277, 4294901760
        %v9003 = vsub.f32 %v8277, %v9002
        %v9004 = vand.u32 %v9003, 4294901760
        %9005 = vmatpush1.msra.mxu0 %v9004
        %9006 = vmatprep.subr.mxu0 0.0
        %v9007 = vand.u32 %v8278, 4294901760
        %v9008 = vsub.f32 %v8278, %v9007
        %v9009 = vand.u32 %v9008, 4294901760
        %9010 = vmatpush1.msra.mxu0 %v9009
        %9011 = vmatprep.subr.mxu0 0.0
        %v9012 = vand.u32 %v8279, 4294901760
        %v9013 = vsub.f32 %v8279, %v9012
        %v9014 = vand.u32 %v9013, 4294901760
        %9015 = vmatpush1.msra.mxu0 %v9014
        %9016 = vmatprep.subr.mxu0 0.0
        %v9017 = vand.u32 %v8280, 4294901760
        %v9018 = vsub.f32 %v8280, %v9017
        %v9019 = vand.u32 %v9018, 4294901760
        %9020 = vmatpush1.msra.mxu0 %v9019
        %9021 = vmatprep.subr.mxu0 0.0
        %v9022 = vand.u32 %v8281, 4294901760
        %v9023 = vsub.f32 %v8281, %v9022
        %v9024 = vand.u32 %v9023, 4294901760
        %9025 = vmatpush1.msra.mxu0 %v9024
        %9026 = vmatprep.subr.mxu0 0.0
        %v9027 = vand.u32 %v8282, 4294901760
        %v9028 = vsub.f32 %v8282, %v9027
        %v9029 = vand.u32 %v9028, 4294901760
        %9030 = vmatpush1.msra.mxu0 %v9029
        %9031 = vmatprep.subr.mxu0 0.0
        %v9032 = vand.u32 %v8283, 4294901760
        %v9033 = vsub.f32 %v8283, %v9032
        %v9034 = vand.u32 %v9033, 4294901760
        %9035 = vmatpush1.msra.mxu0 %v9034
        %9036 = vmatprep.subr.mxu0 0.0
        %v9037 = vand.u32 %v8284, 4294901760
        %v9038 = vsub.f32 %v8284, %v9037
        %v9039 = vand.u32 %v9038, 4294901760
        %9040 = vmatpush1.msra.mxu0 %v9039
        %9041 = vmatprep.subr.mxu0 0.0
        %v9042 = vand.u32 %v8285, 4294901760
        %v9043 = vsub.f32 %v8285, %v9042
        %v9044 = vand.u32 %v9043, 4294901760
        %9045 = vmatpush1.msra.mxu0 %v9044
        %9046 = vmatprep.subr.mxu0 0.0
        %v9047 = vand.u32 %v8286, 4294901760
        %v9048 = vsub.f32 %v8286, %v9047
        %v9049 = vand.u32 %v9048, 4294901760
        %9050 = vmatpush1.msra.mxu0 %v9049
        %9051 = vmatprep.subr.mxu0 0.0
        %v9052 = vand.u32 %v8287, 4294901760
        %v9053 = vsub.f32 %v8287, %v9052
        %v9054 = vand.u32 %v9053, 4294901760
        %9055 = vmatpush1.msra.mxu0 %v9054
        %9056 = vmatprep.subr.mxu0 0.0
        %v9057 = vand.u32 %v8288, 4294901760
        %v9058 = vsub.f32 %v8288, %v9057
        %v9059 = vand.u32 %v9058, 4294901760
        %9060 = vmatpush1.msra.mxu0 %v9059
        %9061 = vmatprep.subr.mxu0 0.0
        %v9062 = vand.u32 %v8289, 4294901760
        %v9063 = vsub.f32 %v8289, %v9062
        %v9064 = vand.u32 %v9063, 4294901760
        %9065 = vmatpush1.msra.mxu0 %v9064
        %9066 = vmatprep.subr.mxu0 0.0
        %v9067 = vand.u32 %v8290, 4294901760
        %v9068 = vsub.f32 %v8290, %v9067
        %v9069 = vand.u32 %v9068, 4294901760
        %9070 = vmatpush1.msra.mxu0 %v9069
        %9071 = vmatprep.subr.mxu0 0.0
        %v9072 = vand.u32 %v8291, 4294901760
        %v9073 = vsub.f32 %v8291, %v9072
        %v9074 = vand.u32 %v9073, 4294901760
        %9075 = vmatpush1.msra.mxu0 %v9074
        %9076 = vmatprep.subr.mxu0 0.0
        %v9077 = vand.u32 %v8292, 4294901760
        %v9078 = vsub.f32 %v8292, %v9077
        %v9079 = vand.u32 %v9078, 4294901760
        %9080 = vmatpush1.msra.mxu0 %v9079
        %9081 = vmatprep.subr.mxu0 0.0
        %v9082 = vand.u32 %v8293, 4294901760
        %v9083 = vsub.f32 %v8293, %v9082
        %v9084 = vand.u32 %v9083, 4294901760
        %9085 = vmatpush1.msra.mxu0 %v9084
        %v9086 = vand.u32 %v8259, 4294901760
        %9087 = vmatprep.mubr.f32.mxu0 %v9086
        %v9088 = vand.u32 %v8258, 4294901760
        %9089 = vmatmul.mubr.f32.gmra.mrb[0].mxu0 %v9088
        %v9090 = vpop.f32.mrb[0].mxu0
        %v9091 = vadd.f32 %v8912, %v9090
        %v9092 = vpop.f32.mrb[0].mxu0
        %v9093 = vand.u32 %v8261, 4294901760
        %9094 = vmatprep.mubr.f32.mxu0 %v9093
        %v9095 = vand.u32 %v8260, 4294901760
        %9096 = vmatmul.mubr.f32.gmra.mrb[0].mxu0 %v9095
        %v9097 = vpop.f32.mrb[0].mxu0
        %v9098 = vadd.f32 %v8923, %v9097
        %v9099 = vpop.f32.mrb[0].mxu0
        %9100 = vdwg.mxu0
        %9101 = vmatprep.subr.mxu0 0.0
        %v9102 = vand.u32 %v8262, 4294901760
        %9103 = vmatpush1.msra.mxu0 %v9102
        %9104 = vmatprep.subr.mxu0 0.0
        %v9105 = vand.u32 %v8263, 4294901760
        %9106 = vmatpush1.msra.mxu0 %v9105
        %9107 = vmatprep.subr.mxu0 0.0
        %v9108 = vand.u32 %v8264, 4294901760
        %9109 = vmatpush1.msra.mxu0 %v9108
        %9110 = vmatprep.subr.mxu0 0.0
        %v9111 = vand.u32 %v8265, 4294901760
        %9112 = vmatpush1.msra.mxu0 %v9111
        %9113 = vmatprep.subr.mxu0 0.0
        %v9114 = vand.u32 %v8266, 4294901760
        %9115 = vmatpush1.msra.mxu0 %v9114
        %9116 = vmatprep.subr.mxu0 0.0
        %v9117 = vand.u32 %v8267, 4294901760
        %9118 = vmatpush1.msra.mxu0 %v9117
        %9119 = vmatprep.subr.mxu0 0.0
        %v9120 = vand.u32 %v8268, 4294901760
        %9121 = vmatpush1.msra.mxu0 %v9120
        %9122 = vmatprep.subr.mxu0 0.0
        %v9123 = vand.u32 %v8269, 4294901760
        %9124 = vmatpush1.msra.mxu0 %v9123
        %9125 = vmatprep.subr.mxu0 0.0
        %v9126 = vand.u32 %v8270, 4294901760
        %9127 = vmatpush1.msra.mxu0 %v9126
        %9128 = vmatprep.subr.mxu0 0.0
        %v9129 = vand.u32 %v8271, 4294901760
        %9130 = vmatpush1.msra.mxu0 %v9129
        %9131 = vmatprep.subr.mxu0 0.0
        %v9132 = vand.u32 %v8272, 4294901760
        %9133 = vmatpush1.msra.mxu0 %v9132
        %9134 = vmatprep.subr.mxu0 0.0
        %v9135 = vand.u32 %v8273, 4294901760
        %9136 = vmatpush1.msra.mxu0 %v9135
        %9137 = vmatprep.subr.mxu0 0.0
        %v9138 = vand.u32 %v8274, 4294901760
        %9139 = vmatpush1.msra.mxu0 %v9138
        %9140 = vmatprep.subr.mxu0 0.0
        %v9141 = vand.u32 %v8275, 4294901760
        %9142 = vmatpush1.msra.mxu0 %v9141
        %9143 = vmatprep.subr.mxu0 0.0
        %v9144 = vand.u32 %v8276, 4294901760
        %9145 = vmatpush1.msra.mxu0 %v9144
        %9146 = vmatprep.subr.mxu0 0.0
        %v9147 = vand.u32 %v8277, 4294901760
        %9148 = vmatpush1.msra.mxu0 %v9147
        %9149 = vmatprep.subr.mxu0 0.0
        %v9150 = vand.u32 %v8278, 4294901760
        %9151 = vmatpush1.msra.mxu0 %v9150
        %9152 = vmatprep.subr.mxu0 0.0
        %v9153 = vand.u32 %v8279, 4294901760
        %9154 = vmatpush1.msra.mxu0 %v9153
        %9155 = vmatprep.subr.mxu0 0.0
        %v9156 = vand.u32 %v8280, 4294901760
        %9157 = vmatpush1.msra.mxu0 %v9156
        %9158 = vmatprep.subr.mxu0 0.0
        %v9159 = vand.u32 %v8281, 4294901760
        %9160 = vmatpush1.msra.mxu0 %v9159
        %9161 = vmatprep.subr.mxu0 0.0
        %v9162 = vand.u32 %v8282, 4294901760
        %9163 = vmatpush1.msra.mxu0 %v9162
        %9164 = vmatprep.subr.mxu0 0.0
        %v9165 = vand.u32 %v8283, 4294901760
        %9166 = vmatpush1.msra.mxu0 %v9165
        %9167 = vmatprep.subr.mxu0 0.0
        %v9168 = vand.u32 %v8284, 4294901760
        %9169 = vmatpush1.msra.mxu0 %v9168
        %9170 = vmatprep.subr.mxu0 0.0
        %v9171 = vand.u32 %v8285, 4294901760
        %9172 = vmatpush1.msra.mxu0 %v9171
        %9173 = vmatprep.subr.mxu0 0.0
        %v9174 = vand.u32 %v8286, 4294901760
        %9175 = vmatpush1.msra.mxu0 %v9174
        %9176 = vmatprep.subr.mxu0 0.0
        %v9177 = vand.u32 %v8287, 4294901760
        %9178 = vmatpush1.msra.mxu0 %v9177
        %9179 = vmatprep.subr.mxu0 0.0
        %v9180 = vand.u32 %v8288, 4294901760
        %9181 = vmatpush1.msra.mxu0 %v9180
        %9182 = vmatprep.subr.mxu0 0.0
        %v9183 = vand.u32 %v8289, 4294901760
        %9184 = vmatpush1.msra.mxu0 %v9183
        %9185 = vmatprep.subr.mxu0 0.0
        %v9186 = vand.u32 %v8290, 4294901760
        %9187 = vmatpush1.msra.mxu0 %v9186
        %9188 = vmatprep.subr.mxu0 0.0
        %v9189 = vand.u32 %v8291, 4294901760
        %9190 = vmatpush1.msra.mxu0 %v9189
        %9191 = vmatprep.subr.mxu0 0.0
        %v9192 = vand.u32 %v8292, 4294901760
        %9193 = vmatpush1.msra.mxu0 %v9192
        %9194 = vmatprep.subr.mxu0 0.0
        %v9195 = vand.u32 %v8293, 4294901760
        %9196 = vmatpush1.msra.mxu0 %v9195
        %v9197 = vand.u32 %v8259, 4294901760
        %9198 = vmatprep.mubr.f32.mxu0 %v9197
        %v9199 = vand.u32 %v8258, 4294901760
        %9200 = vmatmul.mubr.f32.gmra.mrb[0].mxu0 %v9199
        %v9201 = vpop.f32.mrb[0].mxu0
        %v9202 = vadd.f32 %v9091, %v9201
        %v9203 = vpop.f32.mrb[0].mxu0
        %v9204 = vand.u32 %v8261, 4294901760
        %9205 = vmatprep.mubr.f32.mxu0 %v9204
        %v9206 = vand.u32 %v8260, 4294901760
        %9207 = vmatmul.mubr.f32.gmra.mrb[0].mxu0 %v9206
        %v9208 = vpop.f32.mrb[0].mxu0
        %v9209 = vadd.f32 %v9098, %v9208
        %v9210 = vpop.f32.mrb[0].mxu0
        %9211 = vdwg.mxu0
        %v9212 = vld [vmem:[%s10] sm:$0x1]
        %v9213 = vld [vmem:[%s11] sm:$0x1]
        %9214 = vadd.xlane.f32.xlu0 %v9202
        %v9215 = vpop.xlane.xlu0 %9214
        %9216 = vadd.xlane.f32.xlu0 %v9209
        %v9217 = vpop.xlane.xlu0 %9216
        %v9218 = vmul.f32 %v9215, %v7277
        %v9219 = vmul.f32 %v9217, %v7277
        %v9220 = vmul.f32 %v9202, %v9202
        %v9221 = vmul.f32 %v9209, %v9209
        %9222 = vadd.xlane.f32.xlu0 %v9220
        %v9223 = vpop.xlane.xlu0 %9222
        %9224 = vadd.xlane.f32.xlu0 %v9221
        %v9225 = vpop.xlane.xlu0 %9224
        %v9226 = vmul.f32 %v9223, %v7277
        %v9227 = vmul.f32 %v9225, %v7277
        %v9228 = vmul.f32 %v9218, %v9218
        %v9229 = vmul.f32 %v9219, %v9219
        %v9230 = vsub.f32 %v9226, %v9228
        %v9231 = vsub.f32 %v9227, %v9229
        %v9232 = vmax.f32 %v9230, 0.0
        %v9233 = vmax.f32 %v9231, 0.0
        %v9234 = vsub.f32 %v9202, %v9218
        %v9235 = vsub.f32 %v9209, %v9219
        %v9236 = vadd.f32 %v9232, 1e-05
        %v9237 = vadd.f32 %v9233, 1e-05
        %v9238 = vrsqrt.pop %v9236
        %v9239 = vrsqrt.pop %v9237
        %v9240 = vmul.f32 %v9234, %v9238
        %v9241 = vmul.f32 %v9235, %v9239
        %v9243 = vlaneseq
        %v9244 = vshrl.u32 %v9243, 7
        %v9245 = vsub.s32 0, %v9244
        %v9246 = vrot.slane %v9212, %v9245
        %v9248 = vmul.f32 %v9240, %v9246
        %v9249 = vmul.f32 %v9241, %v9246
        %v9251 = vlaneseq
        %v9252 = vshrl.u32 %v9251, 7
        %v9253 = vsub.s32 0, %v9252
        %v9254 = vrot.slane %v9213, %v9253
        %v9256 = vadd.f32 %v9248, %v9254
        %v9257 = vadd.f32 %v9249, %v9254
        %v9258 = vadd.f32 %v3977, %v9256
        %v9259 = vadd.f32 %v3978, %v9257
        %9260 = vst [vmem:[%s593] sm:$0xff] %v9258
        %9261 = vst [vmem:[%s593 + $0x8] sm:$0xff] %v9259
        %s9262 = sand.u32 %s336, 1
        %s9263 = scalar_lea.sflag [#allocation5], %s9262
        %s9264 = sand.u32 %s336, 1
        %s9265 = smul.addr %s9264, 16
        %s9266 = scalar_lea.vmem [#allocation17], %s9265
        // Predicated region
        $region105: #{tpu_custom_call.1} parent=67 // pred_check
          %p9267 = pneg %p346
        $region106: #{tpu_custom_call.1} parent=67 // pred_check_branch
          %9269 = sbr.rel (%p9267) target = $region108
        $region107: #{tpu_custom_call.1} parent=67 // pred_region
          %s9270 = smul.u32 %s41, 2
          %s9271 = sadd.s32 %s9270, %s42
          %s9272 = smul.u32 2, %s9271
          %s9274 = ssub.s32 256, 256
          %9275 = vsyncadd %s9263, %s9274
          %s9276 = smul.addr %s40, 4
          %s9277 = sadd.s32 %s9272, %s9276
          %s9278 = smul.addr %s9277, 128
          %s9279 = scalar_lea.hbm %s12, %s9278
          %s9280 = sshll.u32 %s9266, 4
          %s9281 = int_to_ptr.vmem [resolvable:$true] %s9280
          %9286 = dma.vmem_to_hbm [thread:$0]  %s9281, 256, %s9279, %s9263, 128, 128, 8
        $region108: #{tpu_custom_call.1} parent=67 // pred_fallthru
          _
      $region68: #{tpu_custom_call.1} parent=5 // pred_fallthru
        _
      %p9287 = scmp.le.s32.totalorder 2, %s30
      // Predicated region
      $region109: #{tpu_custom_call.1} parent=5 // pred_check
        %p9288 = pneg %p9287
      $region110: #{tpu_custom_call.1} parent=5 // pred_check_branch
        %9290 = sbr.rel (%p9288) target = $region112
      $region111: #{tpu_custom_call.1} parent=5 // pred_region
        %s9291 = ssub.s32 %s30, 2
        // Predicated region
        $region113: #{tpu_custom_call.1} parent=111 // pred_check
          %p9292 = pneg %p352
        $region114: #{tpu_custom_call.1} parent=111 // pred_check_branch
          %9294 = sbr.rel (%p9292) target = $region116
        $region115: #{tpu_custom_call.1} parent=111 // pred_region
          %s9295 = sand.u32 %s337, 1
          %s9296 = scalar_lea.sflag [#allocation5], %s9295
          %s9297 = sand.u32 %s337, 1
          %s9298 = smul.addr %s9297, 16
          %s9299 = scalar_lea.vmem [#allocation17], %s9298
          %9300 = dma.done %s9296, 256
        $region116: #{tpu_custom_call.1} parent=111 // pred_fallthru
          _
      $region112: #{tpu_custom_call.1} parent=5 // pred_fallthru
        _
    $region6: #{tpu_custom_call.1} parent=1 // loop_footer
      %s34 = sadd.s32 1, %s30
    $region7: #{tpu_custom_call.1} parent=1 // loop_footer_branch
      %29 = sbr.rel target = $region3
    $region8: #{tpu_custom_call.1} parent=1 // loop_exit
      _
    %9301 = vsyncpa [#allocation4], 1
    %s9302 = scalar_lea.sflag [#allocation4], 1
    %9303 = vsyncpa %s9302, 1
    %9304 = vsyncpa [#allocation7], 1
    %s9305 = scalar_lea.sflag [#allocation7], 1
    %9306 = vsyncpa %s9305, 1
    %9307 = vsyncpa [#allocation10], 1
    %9308 = vsyncpa [#allocation13], 1
    %9309 = vsyncpa [#allocation16], 1
    %9310 = vsyncpa [#allocation5], 1
    %s9311 = scalar_lea.sflag [#allocation5], 1
    %9312 = vsyncpa %s9311, 1

</llo_original>
